<compile_context>
chip_gen: v7x
topology: tpu7x:2x2x1
jax: 0.10.0
libtpu: 0.0.40
codegen_flags: <defaults>
</compile_context>

<pallas_src>
import jax
import jax.numpy as jnp
from jax import lax
from jax.experimental import pallas as pl
from jax.experimental.pallas import tpu as pltpu

EPS = 1e-5
N_BLOCKS = 5


# ---------------------------------------------------------------------------
# pure-JAX reference (original (B, H, T) formulation, biases included; used
# only for the correctness check in __main__ -- it also validates that the
# bias cancellation through training-mode BN is exact)
# ---------------------------------------------------------------------------
def _conv1x1(x, W, b):
    y = jnp.einsum("oi,bit->bot", W, x, preferred_element_type=jnp.float32)
    return y + b[None, :, :]


def _cbn(x, c, Wg, bg, Wb, bb):
    mean = jnp.mean(jnp.mean(x, axis=2, keepdims=True), axis=0, keepdims=True)
    var = jnp.mean(
        jnp.mean((x - mean) ** 2, axis=2, keepdims=True), axis=0, keepdims=True
    )
    x_hat = (x - mean) * lax.rsqrt(var + EPS)
    gamma = (
        jnp.einsum("bc,hc->bh", c, Wg, preferred_element_type=jnp.float32)[:, :, None]
        + bg[None, :, :]
    )
    beta = (
        jnp.einsum("bc,hc->bh", c, Wb, preferred_element_type=jnp.float32)[:, :, None]
        + bb[None, :, :]
    )
    return gamma * x_hat + beta


def _forward(p_nct, c, params):
    (Wp, bp, Wg, bg, Wb, bb, Wfc, bfc, fWg, fbg, fWb, fbb, Wo, bo) = params
    net = _conv1x1(p_nct, Wp, bp)
    for blk in range(N_BLOCKS):
        h = jnp.maximum(
            _cbn(net, c, Wg[blk, 0], bg[blk, 0], Wb[blk, 0], bb[blk, 0]), 0.0
        )
        h = _conv1x1(h, Wfc[blk, 0], bfc[blk, 0])
        dx = jnp.maximum(
            _cbn(h, c, Wb=Wb[blk, 1], bb=bb[blk, 1], Wg=Wg[blk, 1], bg=bg[blk, 1]), 0.0
        )
        dx = _conv1x1(dx, Wfc[blk, 1], bfc[blk, 1])
        net = net + dx
    h = jnp.maximum(_cbn(net, c, fWg, fbg, fWb, fbb), 0.0)
    out = _conv1x1(h, Wo, bo)
    return out[:, 0, :]


# ---------------------------------------------------------------------------
# Pallas kernel: whole forward pass in VMEM, (H, B*T) layout.
# ---------------------------------------------------------------------------
def decoder_kernel(
    p_ref,      # (D, B*T)        points, lane index = b*T + t
    c_ref,      # (C+1, B)        condition codes (columns) + trailing ones row
    waff_ref,   # (2*11*H, C+1)   stacked [gamma_i | beta_i] CBN affine weights+bias
    wfc_ref,    # (10, H, H)      fc_0 / fc_1 weights of the 5 blocks
    small_ref,  # (H, D+2)        cols 0..D-1 = fc_p weight, col D = fc_out weight^T,
                #                 [0, D+1] = fc_out bias
    out_ref,    # (1, B*T)
):
    D, BT = p_ref.shape
    B = c_ref.shape[1]
    H = wfc_ref.shape[1]
    T = BT // B
    inv_n = 1.0 / BT

    # Per-batch gamma/beta of all 11 CBNs from one tiny MXU matmul:
    # (22H, C+1) x (C+1, B).  The ones row of c folds the affine conv biases in.
    G = jnp.dot(waff_ref[...], c_ref[...], preferred_element_type=jnp.float32)

    def cbn_relu(x, i):
        # Training-mode BN over all B*T lanes (biased variance) with the
        # per-batch conditional affine + ReLU folded into one FMA per element:
        #   y = a*x + (beta - a*mean),  a = gamma * rsqrt(var + eps)
        # sum(x) and sum(x*x) are independent lane reductions (overlap on XLU).
        s1 = jnp.sum(x, axis=1, keepdims=True)
        s2 = jnp.sum(x * x, axis=1, keepdims=True)
        mean = s1 * inv_n
        var = jnp.maximum(s2 * inv_n - mean * mean, 0.0)
        inv_std = lax.rsqrt(var + EPS)
        halves = []
        for b in range(B):
            gamma = G[(2 * i) * H:(2 * i + 1) * H, b:b + 1]       # (H, 1)
            beta = G[(2 * i + 1) * H:(2 * i + 2) * H, b:b + 1]    # (H, 1)
            a = gamma * inv_std
            bias = beta - a * mean
            halves.append(
                jnp.maximum(a * x[:, b * T:(b + 1) * T] + bias, 0.0)
            )
        return jnp.concatenate(halves, axis=1)

    # fc_p: Cin = D (=3) -> D VPU broadcast-FMAs instead of a K=3 MXU matmul.
    # (fc_p bias dropped -- it cancels exactly in the first CBN's x - mean.)
    net = small_ref[:, 0:1] * p_ref[0:1, :]
    for d in range(1, D):
        net = net + small_ref[:, d:d + 1] * p_ref[d:d + 1, :]

    # 5 x CResnetBlockConv1d: each 1x1 conv is one (H,H) x (H, B*T) matmul.
    # (fc_0 / fc_1 biases dropped -- they cancel through the following CBNs.)
    for blk in range(N_BLOCKS):
        h = cbn_relu(net, 2 * blk)
        h = jnp.dot(wfc_ref[2 * blk], h, preferred_element_type=jnp.float32)
        dx = cbn_relu(h, 2 * blk + 1)
        dx = jnp.dot(wfc_ref[2 * blk + 1], dx, preferred_element_type=jnp.float32)
        net = net + dx

    # final CBN + ReLU + fc_out (Cout=1 -> broadcast-mul + sublane reduce).
    h = cbn_relu(net, 2 * N_BLOCKS)
    out_ref[...] = (
        jnp.sum(small_ref[:, D:D + 1] * h, axis=0, keepdims=True)
        + small_ref[0:1, D + 1:D + 2]
    )


def decoder_cbatchnorm(p, c, params):
    """p: (B, T, D) points, c: (B, C) condition code -> (B, T) logits."""
    (Wp, bp, Wg, bg, Wb, bb, Wfc, bfc, fWg, fbg, fWb, fbb, Wo, bo) = params
    B, T, D = p.shape
    C = c.shape[1]
    H = Wp.shape[0]
    BT = B * T
    n_cbn = 2 * N_BLOCKS + 1

    # ---- layout glue / parameter packing (reshape & concat only, no math) ---
    p2 = jnp.transpose(p, (2, 0, 1)).reshape(D, BT)                     # (D, B*T)
    c2 = jnp.concatenate([c.T, jnp.ones((1, B), jnp.float32)], axis=0)  # (C+1, B)

    Wg_l = [Wg[blk, j] for blk in range(N_BLOCKS) for j in range(2)] + [fWg]
    bg_l = [bg[blk, j] for blk in range(N_BLOCKS) for j in range(2)] + [fbg]
    Wb_l = [Wb[blk, j] for blk in range(N_BLOCKS) for j in range(2)] + [fWb]
    bb_l = [bb[blk, j] for blk in range(N_BLOCKS) for j in range(2)] + [fbb]
    rows = []
    for i in range(n_cbn):
        rows.append(jnp.concatenate([Wg_l[i], bg_l[i]], axis=1))   # gamma_i (H, C+1)
        rows.append(jnp.concatenate([Wb_l[i], bb_l[i]], axis=1))   # beta_i  (H, C+1)
    W_aff = jnp.concatenate(rows, axis=0)                          # (22H, C+1)

    Wfc_pack = Wfc.reshape(2 * N_BLOCKS, H, H)                     # (10, H, H)

    # Small parameters packed into one lane-dense slab.  fc_p / fc_0 / fc_1
    # biases (bp, bfc) are intentionally NOT passed: they cancel exactly in
    # the training-mode BatchNorms that consume every such conv output.
    small = jnp.concatenate(
        [Wp, Wo.T, jnp.pad(bo, ((0, H - 1), (0, 0)))], axis=1)     # (H, D+2)

    inputs = (p2, c2, W_aff, Wfc_pack, small)

    # advisory cost estimate for the XLA scheduler
    flops = 2 * (2 * n_cbn * H) * (C + 1) * B          # per-batch affine matmul
    flops += 2 * 2 * N_BLOCKS * H * H * BT             # fc_0 / fc_1 convs
    flops += 2 * D * H * BT + 2 * H * BT               # fc_p + fc_out
    flops += n_cbn * 6 * H * BT                        # CBN elementwise (approx)
    bytes_accessed = sum(int(x.size) * 4 for x in inputs) + BT * 4

    out2 = pl.pallas_call(
        decoder_kernel,
        out_shape=jax.ShapeDtypeStruct((1, BT), jnp.float32),
        in_specs=[pl.BlockSpec(memory_space=pltpu.MemorySpace.VMEM)] * len(inputs),
        out_specs=pl.BlockSpec(memory_space=pltpu.MemorySpace.VMEM),
        cost_estimate=pl.CostEstimate(
            flops=int(flops),
            transcendentals=int(n_cbn * H),
            bytes_accessed=int(bytes_accessed),
        ),
    )(*inputs)
    return out2.reshape(B, T)


# ---------------------------------------------------------------------------
# deterministic parameter construction (shapes from the module __init__)
# ---------------------------------------------------------------------------
def init_params(key, D, C, H):
    ks = jax.random.split(key, 14)

    def rnd(k, shape, scale=0.1):
        return (scale * jax.random.normal(k, shape)).astype(jnp.float32)

    Wp = rnd(ks[0], (H, D)); bp = rnd(ks[1], (H, 1))                 # fc_p
    Wg = rnd(ks[2], (N_BLOCKS, 2, H, C)); bg = rnd(ks[3], (N_BLOCKS, 2, H, 1))
    Wb = rnd(ks[4], (N_BLOCKS, 2, H, C)); bb = rnd(ks[5], (N_BLOCKS, 2, H, 1))
    Wfc = rnd(ks[6], (N_BLOCKS, 2, H, H)); bfc = rnd(ks[7], (N_BLOCKS, 2, H, 1))
    fWg = rnd(ks[8], (H, C)); fbg = rnd(ks[9], (H, 1))               # final CBN
    fWb = rnd(ks[10], (H, C)); fbb = rnd(ks[11], (H, 1))
    Wo = rnd(ks[12], (1, H)); bo = rnd(ks[13], (1, 1))               # fc_out
    return (Wp, bp, Wg, bg, Wb, bb, Wfc, bfc, fWg, fbg, fWb, fbb, Wo, bo)


if __name__ == "__main__":
    B, T, D, C, H = 2, 128, 3, 32, 64  # batch, points, dim, c_dim, hidden_size
    key = jax.random.PRNGKey(0)
    kp, kc, kw = jax.random.split(key, 3)
    p = jax.random.normal(kp, (B, T, D), dtype=jnp.float32)
    c = jax.random.normal(kc, (B, C), dtype=jnp.float32)
    params = init_params(kw, D, C, H)

    out = decoder_cbatchnorm(p, c, params)
    jax.block_until_ready(out)

    ref = _forward(jnp.transpose(p, (0, 2, 1)), c, params)
    assert out.shape == (B, T)
    assert jnp.allclose(out, ref, atol=1e-4, rtol=1e-4), "mismatch vs reference"
    print("KERNEL_OK")
</pallas_src>

<mosaic_0001>
module attributes {stable_mosaic.version = 11 : i64} {
  func.func @decoder_kernel(%arg0: memref<3x256xf32, #tpu.memory_space<vmem>>, %arg1: memref<33x2xf32, #tpu.memory_space<vmem>>, %arg2: memref<1408x33xf32, #tpu.memory_space<vmem>>, %arg3: memref<10x64x64xf32, #tpu.memory_space<vmem>>, %arg4: memref<64x5xf32, #tpu.memory_space<vmem>>, %arg5: memref<1x256xf32, #tpu.memory_space<vmem>>) attributes {dimension_semantics = [], scalar_prefetch = 0 : i64, scratch_operands = 0 : i64, tpu.core_type = #tpu.core_type<tc>} {
    %c0 = arith.constant 0 : index
    %c0_0 = arith.constant 0 : index
    %0 = vector.load %arg2[%c0, %c0_0] : memref<1408x33xf32, #tpu.memory_space<vmem>>, vector<1408x33xf32>
    %c0_1 = arith.constant 0 : index
    %c0_2 = arith.constant 0 : index
    %1 = vector.load %arg1[%c0_1, %c0_2] : memref<33x2xf32, #tpu.memory_space<vmem>>, vector<33x2xf32>
    %cst = arith.constant dense<0.000000e+00> : vector<1408x2xf32>
    %2 = tpu.matmul %0, %1, %cst {dimension_numbers = #tpu.dot_dimension_numbers<[1], [0], [0], [1], [0, 0, 1, 1], [], []>} : vector<1408x33xf32>, vector<33x2xf32>, vector<1408x2xf32> -> vector<1408x2xf32>
    %c0_3 = arith.constant 0 : index
    %c0_4 = arith.constant 0 : index
    %3 = vector.load %arg4[%c0_3, %c0_4] : memref<64x5xf32, #tpu.memory_space<vmem>>, vector<64x1xf32>
    %c0_5 = arith.constant 0 : index
    %c0_6 = arith.constant 0 : index
    %4 = vector.load %arg0[%c0_5, %c0_6] : memref<3x256xf32, #tpu.memory_space<vmem>>, vector<1x256xf32>
    %5 = vector.broadcast %3 : vector<64x1xf32> to vector<64x256xf32>
    %6 = vector.broadcast %4 : vector<1x256xf32> to vector<64x256xf32>
    %7 = arith.mulf %5, %6 : vector<64x256xf32>
    %c0_7 = arith.constant 0 : index
    %c1 = arith.constant 1 : index
    %8 = vector.load %arg4[%c0_7, %c1] : memref<64x5xf32, #tpu.memory_space<vmem>>, vector<64x1xf32>
    %c1_8 = arith.constant 1 : index
    %c0_9 = arith.constant 0 : index
    %9 = vector.load %arg0[%c1_8, %c0_9] : memref<3x256xf32, #tpu.memory_space<vmem>>, vector<1x256xf32>
    %10 = vector.broadcast %8 : vector<64x1xf32> to vector<64x256xf32>
    %11 = vector.broadcast %9 : vector<1x256xf32> to vector<64x256xf32>
    %12 = arith.mulf %10, %11 : vector<64x256xf32>
    %13 = arith.addf %7, %12 : vector<64x256xf32>
    %c0_10 = arith.constant 0 : index
    %c2 = arith.constant 2 : index
    %14 = vector.load %arg4[%c0_10, %c2] : memref<64x5xf32, #tpu.memory_space<vmem>>, vector<64x1xf32>
    %c2_11 = arith.constant 2 : index
    %c0_12 = arith.constant 0 : index
    %15 = vector.load %arg0[%c2_11, %c0_12] : memref<3x256xf32, #tpu.memory_space<vmem>>, vector<1x256xf32>
    %16 = vector.broadcast %14 : vector<64x1xf32> to vector<64x256xf32>
    %17 = vector.broadcast %15 : vector<1x256xf32> to vector<64x256xf32>
    %18 = arith.mulf %16, %17 : vector<64x256xf32>
    %19 = arith.addf %13, %18 : vector<64x256xf32>
    %cst_13 = arith.constant dense<0.000000e+00> : vector<64xf32>
    %20 = vector.multi_reduction <add>, %19, %cst_13 [1] : vector<64x256xf32> to vector<64xf32>
    %21 = vector.shape_cast %20 : vector<64xf32> to vector<64x1xf32>
    %22 = arith.mulf %19, %19 : vector<64x256xf32>
    %cst_14 = arith.constant dense<0.000000e+00> : vector<64xf32>
    %23 = vector.multi_reduction <add>, %22, %cst_14 [1] : vector<64x256xf32> to vector<64xf32>
    %24 = vector.shape_cast %23 : vector<64xf32> to vector<64x1xf32>
    %cst_15 = arith.constant 3.906250e-03 : f32
    %25 = vector.broadcast %cst_15 : f32 to vector<64x1xf32>
    %26 = arith.mulf %21, %25 : vector<64x1xf32>
    %cst_16 = arith.constant 3.906250e-03 : f32
    %27 = vector.broadcast %cst_16 : f32 to vector<64x1xf32>
    %28 = arith.mulf %24, %27 : vector<64x1xf32>
    %29 = arith.mulf %26, %26 : vector<64x1xf32>
    %30 = arith.subf %28, %29 : vector<64x1xf32>
    %cst_17 = arith.constant 0.000000e+00 : f32
    %31 = vector.broadcast %cst_17 : f32 to vector<64x1xf32>
    %32 = arith.maximumf %30, %31 : vector<64x1xf32>
    %cst_18 = arith.constant 9.99999974E-6 : f32
    %33 = vector.broadcast %cst_18 : f32 to vector<64x1xf32>
    %34 = arith.addf %32, %33 : vector<64x1xf32>
    %35 = math.rsqrt %34 : vector<64x1xf32>
    %36 = vector.extract_strided_slice %2 {offsets = [0, 0], sizes = [64, 1], strides = [1, 1]} : vector<1408x2xf32> to vector<64x1xf32>
    %37 = vector.extract_strided_slice %2 {offsets = [64, 0], sizes = [64, 1], strides = [1, 1]} : vector<1408x2xf32> to vector<64x1xf32>
    %38 = arith.mulf %36, %35 : vector<64x1xf32>
    %39 = arith.mulf %38, %26 : vector<64x1xf32>
    %40 = arith.subf %37, %39 : vector<64x1xf32>
    %41 = vector.extract_strided_slice %19 {offsets = [0, 0], sizes = [64, 128], strides = [1, 1]} : vector<64x256xf32> to vector<64x128xf32>
    %42 = vector.broadcast %38 : vector<64x1xf32> to vector<64x128xf32>
    %43 = arith.mulf %42, %41 : vector<64x128xf32>
    %44 = vector.broadcast %40 : vector<64x1xf32> to vector<64x128xf32>
    %45 = arith.addf %43, %44 : vector<64x128xf32>
    %cst_19 = arith.constant 0.000000e+00 : f32
    %46 = vector.broadcast %cst_19 : f32 to vector<64x128xf32>
    %47 = arith.maximumf %45, %46 : vector<64x128xf32>
    %48 = vector.extract_strided_slice %2 {offsets = [0, 1], sizes = [64, 1], strides = [1, 1]} : vector<1408x2xf32> to vector<64x1xf32>
    %49 = vector.extract_strided_slice %2 {offsets = [64, 1], sizes = [64, 1], strides = [1, 1]} : vector<1408x2xf32> to vector<64x1xf32>
    %50 = arith.mulf %48, %35 : vector<64x1xf32>
    %51 = arith.mulf %50, %26 : vector<64x1xf32>
    %52 = arith.subf %49, %51 : vector<64x1xf32>
    %53 = vector.extract_strided_slice %19 {offsets = [0, 128], sizes = [64, 128], strides = [1, 1]} : vector<64x256xf32> to vector<64x128xf32>
    %54 = vector.broadcast %50 : vector<64x1xf32> to vector<64x128xf32>
    %55 = arith.mulf %54, %53 : vector<64x128xf32>
    %56 = vector.broadcast %52 : vector<64x1xf32> to vector<64x128xf32>
    %57 = arith.addf %55, %56 : vector<64x128xf32>
    %cst_20 = arith.constant 0.000000e+00 : f32
    %58 = vector.broadcast %cst_20 : f32 to vector<64x128xf32>
    %59 = arith.maximumf %57, %58 : vector<64x128xf32>
    %60 = tpu.concatenate %47, %59 in 1 : vector<64x128xf32>, vector<64x128xf32> -> vector<64x256xf32>
    %c0_21 = arith.constant 0 : index
    %c0_22 = arith.constant 0 : index
    %c0_23 = arith.constant 0 : index
    %61 = vector.load %arg3[%c0_21, %c0_22, %c0_23] : memref<10x64x64xf32, #tpu.memory_space<vmem>>, vector<1x64x64xf32>
    %62 = vector.shape_cast %61 : vector<1x64x64xf32> to vector<64x64xf32>
    %cst_24 = arith.constant dense<0.000000e+00> : vector<64x256xf32>
    %63 = tpu.matmul %62, %60, %cst_24 {dimension_numbers = #tpu.dot_dimension_numbers<[1], [0], [0], [1], [0, 0, 1, 1], [], []>} : vector<64x64xf32>, vector<64x256xf32>, vector<64x256xf32> -> vector<64x256xf32>
    %cst_25 = arith.constant dense<0.000000e+00> : vector<64xf32>
    %64 = vector.multi_reduction <add>, %63, %cst_25 [1] : vector<64x256xf32> to vector<64xf32>
    %65 = vector.shape_cast %64 : vector<64xf32> to vector<64x1xf32>
    %66 = arith.mulf %63, %63 : vector<64x256xf32>
    %cst_26 = arith.constant dense<0.000000e+00> : vector<64xf32>
    %67 = vector.multi_reduction <add>, %66, %cst_26 [1] : vector<64x256xf32> to vector<64xf32>
    %68 = vector.shape_cast %67 : vector<64xf32> to vector<64x1xf32>
    %cst_27 = arith.constant 3.906250e-03 : f32
    %69 = vector.broadcast %cst_27 : f32 to vector<64x1xf32>
    %70 = arith.mulf %65, %69 : vector<64x1xf32>
    %cst_28 = arith.constant 3.906250e-03 : f32
    %71 = vector.broadcast %cst_28 : f32 to vector<64x1xf32>
    %72 = arith.mulf %68, %71 : vector<64x1xf32>
    %73 = arith.mulf %70, %70 : vector<64x1xf32>
    %74 = arith.subf %72, %73 : vector<64x1xf32>
    %cst_29 = arith.constant 0.000000e+00 : f32
    %75 = vector.broadcast %cst_29 : f32 to vector<64x1xf32>
    %76 = arith.maximumf %74, %75 : vector<64x1xf32>
    %cst_30 = arith.constant 9.99999974E-6 : f32
    %77 = vector.broadcast %cst_30 : f32 to vector<64x1xf32>
    %78 = arith.addf %76, %77 : vector<64x1xf32>
    %79 = math.rsqrt %78 : vector<64x1xf32>
    %80 = vector.extract_strided_slice %2 {offsets = [128, 0], sizes = [64, 1], strides = [1, 1]} : vector<1408x2xf32> to vector<64x1xf32>
    %81 = vector.extract_strided_slice %2 {offsets = [192, 0], sizes = [64, 1], strides = [1, 1]} : vector<1408x2xf32> to vector<64x1xf32>
    %82 = arith.mulf %80, %79 : vector<64x1xf32>
    %83 = arith.mulf %82, %70 : vector<64x1xf32>
    %84 = arith.subf %81, %83 : vector<64x1xf32>
    %85 = vector.extract_strided_slice %63 {offsets = [0, 0], sizes = [64, 128], strides = [1, 1]} : vector<64x256xf32> to vector<64x128xf32>
    %86 = vector.broadcast %82 : vector<64x1xf32> to vector<64x128xf32>
    %87 = arith.mulf %86, %85 : vector<64x128xf32>
    %88 = vector.broadcast %84 : vector<64x1xf32> to vector<64x128xf32>
    %89 = arith.addf %87, %88 : vector<64x128xf32>
    %cst_31 = arith.constant 0.000000e+00 : f32
    %90 = vector.broadcast %cst_31 : f32 to vector<64x128xf32>
    %91 = arith.maximumf %89, %90 : vector<64x128xf32>
    %92 = vector.extract_strided_slice %2 {offsets = [128, 1], sizes = [64, 1], strides = [1, 1]} : vector<1408x2xf32> to vector<64x1xf32>
    %93 = vector.extract_strided_slice %2 {offsets = [192, 1], sizes = [64, 1], strides = [1, 1]} : vector<1408x2xf32> to vector<64x1xf32>
    %94 = arith.mulf %92, %79 : vector<64x1xf32>
    %95 = arith.mulf %94, %70 : vector<64x1xf32>
    %96 = arith.subf %93, %95 : vector<64x1xf32>
    %97 = vector.extract_strided_slice %63 {offsets = [0, 128], sizes = [64, 128], strides = [1, 1]} : vector<64x256xf32> to vector<64x128xf32>
    %98 = vector.broadcast %94 : vector<64x1xf32> to vector<64x128xf32>
    %99 = arith.mulf %98, %97 : vector<64x128xf32>
    %100 = vector.broadcast %96 : vector<64x1xf32> to vector<64x128xf32>
    %101 = arith.addf %99, %100 : vector<64x128xf32>
    %cst_32 = arith.constant 0.000000e+00 : f32
    %102 = vector.broadcast %cst_32 : f32 to vector<64x128xf32>
    %103 = arith.maximumf %101, %102 : vector<64x128xf32>
    %104 = tpu.concatenate %91, %103 in 1 : vector<64x128xf32>, vector<64x128xf32> -> vector<64x256xf32>
    %c1_33 = arith.constant 1 : index
    %c0_34 = arith.constant 0 : index
    %c0_35 = arith.constant 0 : index
    %105 = vector.load %arg3[%c1_33, %c0_34, %c0_35] : memref<10x64x64xf32, #tpu.memory_space<vmem>>, vector<1x64x64xf32>
    %106 = vector.shape_cast %105 : vector<1x64x64xf32> to vector<64x64xf32>
    %cst_36 = arith.constant dense<0.000000e+00> : vector<64x256xf32>
    %107 = tpu.matmul %106, %104, %cst_36 {dimension_numbers = #tpu.dot_dimension_numbers<[1], [0], [0], [1], [0, 0, 1, 1], [], []>} : vector<64x64xf32>, vector<64x256xf32>, vector<64x256xf32> -> vector<64x256xf32>
    %108 = arith.addf %19, %107 : vector<64x256xf32>
    %cst_37 = arith.constant dense<0.000000e+00> : vector<64xf32>
    %109 = vector.multi_reduction <add>, %108, %cst_37 [1] : vector<64x256xf32> to vector<64xf32>
    %110 = vector.shape_cast %109 : vector<64xf32> to vector<64x1xf32>
    %111 = arith.mulf %108, %108 : vector<64x256xf32>
    %cst_38 = arith.constant dense<0.000000e+00> : vector<64xf32>
    %112 = vector.multi_reduction <add>, %111, %cst_38 [1] : vector<64x256xf32> to vector<64xf32>
    %113 = vector.shape_cast %112 : vector<64xf32> to vector<64x1xf32>
    %cst_39 = arith.constant 3.906250e-03 : f32
    %114 = vector.broadcast %cst_39 : f32 to vector<64x1xf32>
    %115 = arith.mulf %110, %114 : vector<64x1xf32>
    %cst_40 = arith.constant 3.906250e-03 : f32
    %116 = vector.broadcast %cst_40 : f32 to vector<64x1xf32>
    %117 = arith.mulf %113, %116 : vector<64x1xf32>
    %118 = arith.mulf %115, %115 : vector<64x1xf32>
    %119 = arith.subf %117, %118 : vector<64x1xf32>
    %cst_41 = arith.constant 0.000000e+00 : f32
    %120 = vector.broadcast %cst_41 : f32 to vector<64x1xf32>
    %121 = arith.maximumf %119, %120 : vector<64x1xf32>
    %cst_42 = arith.constant 9.99999974E-6 : f32
    %122 = vector.broadcast %cst_42 : f32 to vector<64x1xf32>
    %123 = arith.addf %121, %122 : vector<64x1xf32>
    %124 = math.rsqrt %123 : vector<64x1xf32>
    %125 = vector.extract_strided_slice %2 {offsets = [256, 0], sizes = [64, 1], strides = [1, 1]} : vector<1408x2xf32> to vector<64x1xf32>
    %126 = vector.extract_strided_slice %2 {offsets = [320, 0], sizes = [64, 1], strides = [1, 1]} : vector<1408x2xf32> to vector<64x1xf32>
    %127 = arith.mulf %125, %124 : vector<64x1xf32>
    %128 = arith.mulf %127, %115 : vector<64x1xf32>
    %129 = arith.subf %126, %128 : vector<64x1xf32>
    %130 = vector.extract_strided_slice %108 {offsets = [0, 0], sizes = [64, 128], strides = [1, 1]} : vector<64x256xf32> to vector<64x128xf32>
    %131 = vector.broadcast %127 : vector<64x1xf32> to vector<64x128xf32>
    %132 = arith.mulf %131, %130 : vector<64x128xf32>
    %133 = vector.broadcast %129 : vector<64x1xf32> to vector<64x128xf32>
    %134 = arith.addf %132, %133 : vector<64x128xf32>
    %cst_43 = arith.constant 0.000000e+00 : f32
    %135 = vector.broadcast %cst_43 : f32 to vector<64x128xf32>
    %136 = arith.maximumf %134, %135 : vector<64x128xf32>
    %137 = vector.extract_strided_slice %2 {offsets = [256, 1], sizes = [64, 1], strides = [1, 1]} : vector<1408x2xf32> to vector<64x1xf32>
    %138 = vector.extract_strided_slice %2 {offsets = [320, 1], sizes = [64, 1], strides = [1, 1]} : vector<1408x2xf32> to vector<64x1xf32>
    %139 = arith.mulf %137, %124 : vector<64x1xf32>
    %140 = arith.mulf %139, %115 : vector<64x1xf32>
    %141 = arith.subf %138, %140 : vector<64x1xf32>
    %142 = vector.extract_strided_slice %108 {offsets = [0, 128], sizes = [64, 128], strides = [1, 1]} : vector<64x256xf32> to vector<64x128xf32>
    %143 = vector.broadcast %139 : vector<64x1xf32> to vector<64x128xf32>
    %144 = arith.mulf %143, %142 : vector<64x128xf32>
    %145 = vector.broadcast %141 : vector<64x1xf32> to vector<64x128xf32>
    %146 = arith.addf %144, %145 : vector<64x128xf32>
    %cst_44 = arith.constant 0.000000e+00 : f32
    %147 = vector.broadcast %cst_44 : f32 to vector<64x128xf32>
    %148 = arith.maximumf %146, %147 : vector<64x128xf32>
    %149 = tpu.concatenate %136, %148 in 1 : vector<64x128xf32>, vector<64x128xf32> -> vector<64x256xf32>
    %c2_45 = arith.constant 2 : index
    %c0_46 = arith.constant 0 : index
    %c0_47 = arith.constant 0 : index
    %150 = vector.load %arg3[%c2_45, %c0_46, %c0_47] : memref<10x64x64xf32, #tpu.memory_space<vmem>>, vector<1x64x64xf32>
    %151 = vector.shape_cast %150 : vector<1x64x64xf32> to vector<64x64xf32>
    %cst_48 = arith.constant dense<0.000000e+00> : vector<64x256xf32>
    %152 = tpu.matmul %151, %149, %cst_48 {dimension_numbers = #tpu.dot_dimension_numbers<[1], [0], [0], [1], [0, 0, 1, 1], [], []>} : vector<64x64xf32>, vector<64x256xf32>, vector<64x256xf32> -> vector<64x256xf32>
    %cst_49 = arith.constant dense<0.000000e+00> : vector<64xf32>
    %153 = vector.multi_reduction <add>, %152, %cst_49 [1] : vector<64x256xf32> to vector<64xf32>
    %154 = vector.shape_cast %153 : vector<64xf32> to vector<64x1xf32>
    %155 = arith.mulf %152, %152 : vector<64x256xf32>
    %cst_50 = arith.constant dense<0.000000e+00> : vector<64xf32>
    %156 = vector.multi_reduction <add>, %155, %cst_50 [1] : vector<64x256xf32> to vector<64xf32>
    %157 = vector.shape_cast %156 : vector<64xf32> to vector<64x1xf32>
    %cst_51 = arith.constant 3.906250e-03 : f32
    %158 = vector.broadcast %cst_51 : f32 to vector<64x1xf32>
    %159 = arith.mulf %154, %158 : vector<64x1xf32>
    %cst_52 = arith.constant 3.906250e-03 : f32
    %160 = vector.broadcast %cst_52 : f32 to vector<64x1xf32>
    %161 = arith.mulf %157, %160 : vector<64x1xf32>
    %162 = arith.mulf %159, %159 : vector<64x1xf32>
    %163 = arith.subf %161, %162 : vector<64x1xf32>
    %cst_53 = arith.constant 0.000000e+00 : f32
    %164 = vector.broadcast %cst_53 : f32 to vector<64x1xf32>
    %165 = arith.maximumf %163, %164 : vector<64x1xf32>
    %cst_54 = arith.constant 9.99999974E-6 : f32
    %166 = vector.broadcast %cst_54 : f32 to vector<64x1xf32>
    %167 = arith.addf %165, %166 : vector<64x1xf32>
    %168 = math.rsqrt %167 : vector<64x1xf32>
    %169 = vector.extract_strided_slice %2 {offsets = [384, 0], sizes = [64, 1], strides = [1, 1]} : vector<1408x2xf32> to vector<64x1xf32>
    %170 = vector.extract_strided_slice %2 {offsets = [448, 0], sizes = [64, 1], strides = [1, 1]} : vector<1408x2xf32> to vector<64x1xf32>
    %171 = arith.mulf %169, %168 : vector<64x1xf32>
    %172 = arith.mulf %171, %159 : vector<64x1xf32>
    %173 = arith.subf %170, %172 : vector<64x1xf32>
    %174 = vector.extract_strided_slice %152 {offsets = [0, 0], sizes = [64, 128], strides = [1, 1]} : vector<64x256xf32> to vector<64x128xf32>
    %175 = vector.broadcast %171 : vector<64x1xf32> to vector<64x128xf32>
    %176 = arith.mulf %175, %174 : vector<64x128xf32>
    %177 = vector.broadcast %173 : vector<64x1xf32> to vector<64x128xf32>
    %178 = arith.addf %176, %177 : vector<64x128xf32>
    %cst_55 = arith.constant 0.000000e+00 : f32
    %179 = vector.broadcast %cst_55 : f32 to vector<64x128xf32>
    %180 = arith.maximumf %178, %179 : vector<64x128xf32>
    %181 = vector.extract_strided_slice %2 {offsets = [384, 1], sizes = [64, 1], strides = [1, 1]} : vector<1408x2xf32> to vector<64x1xf32>
    %182 = vector.extract_strided_slice %2 {offsets = [448, 1], sizes = [64, 1], strides = [1, 1]} : vector<1408x2xf32> to vector<64x1xf32>
    %183 = arith.mulf %181, %168 : vector<64x1xf32>
    %184 = arith.mulf %183, %159 : vector<64x1xf32>
    %185 = arith.subf %182, %184 : vector<64x1xf32>
    %186 = vector.extract_strided_slice %152 {offsets = [0, 128], sizes = [64, 128], strides = [1, 1]} : vector<64x256xf32> to vector<64x128xf32>
    %187 = vector.broadcast %183 : vector<64x1xf32> to vector<64x128xf32>
    %188 = arith.mulf %187, %186 : vector<64x128xf32>
    %189 = vector.broadcast %185 : vector<64x1xf32> to vector<64x128xf32>
    %190 = arith.addf %188, %189 : vector<64x128xf32>
    %cst_56 = arith.constant 0.000000e+00 : f32
    %191 = vector.broadcast %cst_56 : f32 to vector<64x128xf32>
    %192 = arith.maximumf %190, %191 : vector<64x128xf32>
    %193 = tpu.concatenate %180, %192 in 1 : vector<64x128xf32>, vector<64x128xf32> -> vector<64x256xf32>
    %c3 = arith.constant 3 : index
    %c0_57 = arith.constant 0 : index
    %c0_58 = arith.constant 0 : index
    %194 = vector.load %arg3[%c3, %c0_57, %c0_58] : memref<10x64x64xf32, #tpu.memory_space<vmem>>, vector<1x64x64xf32>
    %195 = vector.shape_cast %194 : vector<1x64x64xf32> to vector<64x64xf32>
    %cst_59 = arith.constant dense<0.000000e+00> : vector<64x256xf32>
    %196 = tpu.matmul %195, %193, %cst_59 {dimension_numbers = #tpu.dot_dimension_numbers<[1], [0], [0], [1], [0, 0, 1, 1], [], []>} : vector<64x64xf32>, vector<64x256xf32>, vector<64x256xf32> -> vector<64x256xf32>
    %197 = arith.addf %108, %196 : vector<64x256xf32>
    %cst_60 = arith.constant dense<0.000000e+00> : vector<64xf32>
    %198 = vector.multi_reduction <add>, %197, %cst_60 [1] : vector<64x256xf32> to vector<64xf32>
    %199 = vector.shape_cast %198 : vector<64xf32> to vector<64x1xf32>
    %200 = arith.mulf %197, %197 : vector<64x256xf32>
    %cst_61 = arith.constant dense<0.000000e+00> : vector<64xf32>
    %201 = vector.multi_reduction <add>, %200, %cst_61 [1] : vector<64x256xf32> to vector<64xf32>
    %202 = vector.shape_cast %201 : vector<64xf32> to vector<64x1xf32>
    %cst_62 = arith.constant 3.906250e-03 : f32
    %203 = vector.broadcast %cst_62 : f32 to vector<64x1xf32>
    %204 = arith.mulf %199, %203 : vector<64x1xf32>
    %cst_63 = arith.constant 3.906250e-03 : f32
    %205 = vector.broadcast %cst_63 : f32 to vector<64x1xf32>
    %206 = arith.mulf %202, %205 : vector<64x1xf32>
    %207 = arith.mulf %204, %204 : vector<64x1xf32>
    %208 = arith.subf %206, %207 : vector<64x1xf32>
    %cst_64 = arith.constant 0.000000e+00 : f32
    %209 = vector.broadcast %cst_64 : f32 to vector<64x1xf32>
    %210 = arith.maximumf %208, %209 : vector<64x1xf32>
    %cst_65 = arith.constant 9.99999974E-6 : f32
    %211 = vector.broadcast %cst_65 : f32 to vector<64x1xf32>
    %212 = arith.addf %210, %211 : vector<64x1xf32>
    %213 = math.rsqrt %212 : vector<64x1xf32>
    %214 = vector.extract_strided_slice %2 {offsets = [512, 0], sizes = [64, 1], strides = [1, 1]} : vector<1408x2xf32> to vector<64x1xf32>
    %215 = vector.extract_strided_slice %2 {offsets = [576, 0], sizes = [64, 1], strides = [1, 1]} : vector<1408x2xf32> to vector<64x1xf32>
    %216 = arith.mulf %214, %213 : vector<64x1xf32>
    %217 = arith.mulf %216, %204 : vector<64x1xf32>
    %218 = arith.subf %215, %217 : vector<64x1xf32>
    %219 = vector.extract_strided_slice %197 {offsets = [0, 0], sizes = [64, 128], strides = [1, 1]} : vector<64x256xf32> to vector<64x128xf32>
    %220 = vector.broadcast %216 : vector<64x1xf32> to vector<64x128xf32>
    %221 = arith.mulf %220, %219 : vector<64x128xf32>
    %222 = vector.broadcast %218 : vector<64x1xf32> to vector<64x128xf32>
    %223 = arith.addf %221, %222 : vector<64x128xf32>
    %cst_66 = arith.constant 0.000000e+00 : f32
    %224 = vector.broadcast %cst_66 : f32 to vector<64x128xf32>
    %225 = arith.maximumf %223, %224 : vector<64x128xf32>
    %226 = vector.extract_strided_slice %2 {offsets = [512, 1], sizes = [64, 1], strides = [1, 1]} : vector<1408x2xf32> to vector<64x1xf32>
    %227 = vector.extract_strided_slice %2 {offsets = [576, 1], sizes = [64, 1], strides = [1, 1]} : vector<1408x2xf32> to vector<64x1xf32>
    %228 = arith.mulf %226, %213 : vector<64x1xf32>
    %229 = arith.mulf %228, %204 : vector<64x1xf32>
    %230 = arith.subf %227, %229 : vector<64x1xf32>
    %231 = vector.extract_strided_slice %197 {offsets = [0, 128], sizes = [64, 128], strides = [1, 1]} : vector<64x256xf32> to vector<64x128xf32>
    %232 = vector.broadcast %228 : vector<64x1xf32> to vector<64x128xf32>
    %233 = arith.mulf %232, %231 : vector<64x128xf32>
    %234 = vector.broadcast %230 : vector<64x1xf32> to vector<64x128xf32>
    %235 = arith.addf %233, %234 : vector<64x128xf32>
    %cst_67 = arith.constant 0.000000e+00 : f32
    %236 = vector.broadcast %cst_67 : f32 to vector<64x128xf32>
    %237 = arith.maximumf %235, %236 : vector<64x128xf32>
    %238 = tpu.concatenate %225, %237 in 1 : vector<64x128xf32>, vector<64x128xf32> -> vector<64x256xf32>
    %c4 = arith.constant 4 : index
    %c0_68 = arith.constant 0 : index
    %c0_69 = arith.constant 0 : index
    %239 = vector.load %arg3[%c4, %c0_68, %c0_69] : memref<10x64x64xf32, #tpu.memory_space<vmem>>, vector<1x64x64xf32>
    %240 = vector.shape_cast %239 : vector<1x64x64xf32> to vector<64x64xf32>
    %cst_70 = arith.constant dense<0.000000e+00> : vector<64x256xf32>
    %241 = tpu.matmul %240, %238, %cst_70 {dimension_numbers = #tpu.dot_dimension_numbers<[1], [0], [0], [1], [0, 0, 1, 1], [], []>} : vector<64x64xf32>, vector<64x256xf32>, vector<64x256xf32> -> vector<64x256xf32>
    %cst_71 = arith.constant dense<0.000000e+00> : vector<64xf32>
    %242 = vector.multi_reduction <add>, %241, %cst_71 [1] : vector<64x256xf32> to vector<64xf32>
    %243 = vector.shape_cast %242 : vector<64xf32> to vector<64x1xf32>
    %244 = arith.mulf %241, %241 : vector<64x256xf32>
    %cst_72 = arith.constant dense<0.000000e+00> : vector<64xf32>
    %245 = vector.multi_reduction <add>, %244, %cst_72 [1] : vector<64x256xf32> to vector<64xf32>
    %246 = vector.shape_cast %245 : vector<64xf32> to vector<64x1xf32>
    %cst_73 = arith.constant 3.906250e-03 : f32
    %247 = vector.broadcast %cst_73 : f32 to vector<64x1xf32>
    %248 = arith.mulf %243, %247 : vector<64x1xf32>
    %cst_74 = arith.constant 3.906250e-03 : f32
    %249 = vector.broadcast %cst_74 : f32 to vector<64x1xf32>
    %250 = arith.mulf %246, %249 : vector<64x1xf32>
    %251 = arith.mulf %248, %248 : vector<64x1xf32>
    %252 = arith.subf %250, %251 : vector<64x1xf32>
    %cst_75 = arith.constant 0.000000e+00 : f32
    %253 = vector.broadcast %cst_75 : f32 to vector<64x1xf32>
    %254 = arith.maximumf %252, %253 : vector<64x1xf32>
    %cst_76 = arith.constant 9.99999974E-6 : f32
    %255 = vector.broadcast %cst_76 : f32 to vector<64x1xf32>
    %256 = arith.addf %254, %255 : vector<64x1xf32>
    %257 = math.rsqrt %256 : vector<64x1xf32>
    %258 = vector.extract_strided_slice %2 {offsets = [640, 0], sizes = [64, 1], strides = [1, 1]} : vector<1408x2xf32> to vector<64x1xf32>
    %259 = vector.extract_strided_slice %2 {offsets = [704, 0], sizes = [64, 1], strides = [1, 1]} : vector<1408x2xf32> to vector<64x1xf32>
    %260 = arith.mulf %258, %257 : vector<64x1xf32>
    %261 = arith.mulf %260, %248 : vector<64x1xf32>
    %262 = arith.subf %259, %261 : vector<64x1xf32>
    %263 = vector.extract_strided_slice %241 {offsets = [0, 0], sizes = [64, 128], strides = [1, 1]} : vector<64x256xf32> to vector<64x128xf32>
    %264 = vector.broadcast %260 : vector<64x1xf32> to vector<64x128xf32>
    %265 = arith.mulf %264, %263 : vector<64x128xf32>
    %266 = vector.broadcast %262 : vector<64x1xf32> to vector<64x128xf32>
    %267 = arith.addf %265, %266 : vector<64x128xf32>
    %cst_77 = arith.constant 0.000000e+00 : f32
    %268 = vector.broadcast %cst_77 : f32 to vector<64x128xf32>
    %269 = arith.maximumf %267, %268 : vector<64x128xf32>
    %270 = vector.extract_strided_slice %2 {offsets = [640, 1], sizes = [64, 1], strides = [1, 1]} : vector<1408x2xf32> to vector<64x1xf32>
    %271 = vector.extract_strided_slice %2 {offsets = [704, 1], sizes = [64, 1], strides = [1, 1]} : vector<1408x2xf32> to vector<64x1xf32>
    %272 = arith.mulf %270, %257 : vector<64x1xf32>
    %273 = arith.mulf %272, %248 : vector<64x1xf32>
    %274 = arith.subf %271, %273 : vector<64x1xf32>
    %275 = vector.extract_strided_slice %241 {offsets = [0, 128], sizes = [64, 128], strides = [1, 1]} : vector<64x256xf32> to vector<64x128xf32>
    %276 = vector.broadcast %272 : vector<64x1xf32> to vector<64x128xf32>
    %277 = arith.mulf %276, %275 : vector<64x128xf32>
    %278 = vector.broadcast %274 : vector<64x1xf32> to vector<64x128xf32>
    %279 = arith.addf %277, %278 : vector<64x128xf32>
    %cst_78 = arith.constant 0.000000e+00 : f32
    %280 = vector.broadcast %cst_78 : f32 to vector<64x128xf32>
    %281 = arith.maximumf %279, %280 : vector<64x128xf32>
    %282 = tpu.concatenate %269, %281 in 1 : vector<64x128xf32>, vector<64x128xf32> -> vector<64x256xf32>
    %c5 = arith.constant 5 : index
    %c0_79 = arith.constant 0 : index
    %c0_80 = arith.constant 0 : index
    %283 = vector.load %arg3[%c5, %c0_79, %c0_80] : memref<10x64x64xf32, #tpu.memory_space<vmem>>, vector<1x64x64xf32>
    %284 = vector.shape_cast %283 : vector<1x64x64xf32> to vector<64x64xf32>
    %cst_81 = arith.constant dense<0.000000e+00> : vector<64x256xf32>
    %285 = tpu.matmul %284, %282, %cst_81 {dimension_numbers = #tpu.dot_dimension_numbers<[1], [0], [0], [1], [0, 0, 1, 1], [], []>} : vector<64x64xf32>, vector<64x256xf32>, vector<64x256xf32> -> vector<64x256xf32>
    %286 = arith.addf %197, %285 : vector<64x256xf32>
    %cst_82 = arith.constant dense<0.000000e+00> : vector<64xf32>
    %287 = vector.multi_reduction <add>, %286, %cst_82 [1] : vector<64x256xf32> to vector<64xf32>
    %288 = vector.shape_cast %287 : vector<64xf32> to vector<64x1xf32>
    %289 = arith.mulf %286, %286 : vector<64x256xf32>
    %cst_83 = arith.constant dense<0.000000e+00> : vector<64xf32>
    %290 = vector.multi_reduction <add>, %289, %cst_83 [1] : vector<64x256xf32> to vector<64xf32>
    %291 = vector.shape_cast %290 : vector<64xf32> to vector<64x1xf32>
    %cst_84 = arith.constant 3.906250e-03 : f32
    %292 = vector.broadcast %cst_84 : f32 to vector<64x1xf32>
    %293 = arith.mulf %288, %292 : vector<64x1xf32>
    %cst_85 = arith.constant 3.906250e-03 : f32
    %294 = vector.broadcast %cst_85 : f32 to vector<64x1xf32>
    %295 = arith.mulf %291, %294 : vector<64x1xf32>
    %296 = arith.mulf %293, %293 : vector<64x1xf32>
    %297 = arith.subf %295, %296 : vector<64x1xf32>
    %cst_86 = arith.constant 0.000000e+00 : f32
    %298 = vector.broadcast %cst_86 : f32 to vector<64x1xf32>
    %299 = arith.maximumf %297, %298 : vector<64x1xf32>
    %cst_87 = arith.constant 9.99999974E-6 : f32
    %300 = vector.broadcast %cst_87 : f32 to vector<64x1xf32>
    %301 = arith.addf %299, %300 : vector<64x1xf32>
    %302 = math.rsqrt %301 : vector<64x1xf32>
    %303 = vector.extract_strided_slice %2 {offsets = [768, 0], sizes = [64, 1], strides = [1, 1]} : vector<1408x2xf32> to vector<64x1xf32>
    %304 = vector.extract_strided_slice %2 {offsets = [832, 0], sizes = [64, 1], strides = [1, 1]} : vector<1408x2xf32> to vector<64x1xf32>
    %305 = arith.mulf %303, %302 : vector<64x1xf32>
    %306 = arith.mulf %305, %293 : vector<64x1xf32>
    %307 = arith.subf %304, %306 : vector<64x1xf32>
    %308 = vector.extract_strided_slice %286 {offsets = [0, 0], sizes = [64, 128], strides = [1, 1]} : vector<64x256xf32> to vector<64x128xf32>
    %309 = vector.broadcast %305 : vector<64x1xf32> to vector<64x128xf32>
    %310 = arith.mulf %309, %308 : vector<64x128xf32>
    %311 = vector.broadcast %307 : vector<64x1xf32> to vector<64x128xf32>
    %312 = arith.addf %310, %311 : vector<64x128xf32>
    %cst_88 = arith.constant 0.000000e+00 : f32
    %313 = vector.broadcast %cst_88 : f32 to vector<64x128xf32>
    %314 = arith.maximumf %312, %313 : vector<64x128xf32>
    %315 = vector.extract_strided_slice %2 {offsets = [768, 1], sizes = [64, 1], strides = [1, 1]} : vector<1408x2xf32> to vector<64x1xf32>
    %316 = vector.extract_strided_slice %2 {offsets = [832, 1], sizes = [64, 1], strides = [1, 1]} : vector<1408x2xf32> to vector<64x1xf32>
    %317 = arith.mulf %315, %302 : vector<64x1xf32>
    %318 = arith.mulf %317, %293 : vector<64x1xf32>
    %319 = arith.subf %316, %318 : vector<64x1xf32>
    %320 = vector.extract_strided_slice %286 {offsets = [0, 128], sizes = [64, 128], strides = [1, 1]} : vector<64x256xf32> to vector<64x128xf32>
    %321 = vector.broadcast %317 : vector<64x1xf32> to vector<64x128xf32>
    %322 = arith.mulf %321, %320 : vector<64x128xf32>
    %323 = vector.broadcast %319 : vector<64x1xf32> to vector<64x128xf32>
    %324 = arith.addf %322, %323 : vector<64x128xf32>
    %cst_89 = arith.constant 0.000000e+00 : f32
    %325 = vector.broadcast %cst_89 : f32 to vector<64x128xf32>
    %326 = arith.maximumf %324, %325 : vector<64x128xf32>
    %327 = tpu.concatenate %314, %326 in 1 : vector<64x128xf32>, vector<64x128xf32> -> vector<64x256xf32>
    %c6 = arith.constant 6 : index
    %c0_90 = arith.constant 0 : index
    %c0_91 = arith.constant 0 : index
    %328 = vector.load %arg3[%c6, %c0_90, %c0_91] : memref<10x64x64xf32, #tpu.memory_space<vmem>>, vector<1x64x64xf32>
    %329 = vector.shape_cast %328 : vector<1x64x64xf32> to vector<64x64xf32>
    %cst_92 = arith.constant dense<0.000000e+00> : vector<64x256xf32>
    %330 = tpu.matmul %329, %327, %cst_92 {dimension_numbers = #tpu.dot_dimension_numbers<[1], [0], [0], [1], [0, 0, 1, 1], [], []>} : vector<64x64xf32>, vector<64x256xf32>, vector<64x256xf32> -> vector<64x256xf32>
    %cst_93 = arith.constant dense<0.000000e+00> : vector<64xf32>
    %331 = vector.multi_reduction <add>, %330, %cst_93 [1] : vector<64x256xf32> to vector<64xf32>
    %332 = vector.shape_cast %331 : vector<64xf32> to vector<64x1xf32>
    %333 = arith.mulf %330, %330 : vector<64x256xf32>
    %cst_94 = arith.constant dense<0.000000e+00> : vector<64xf32>
    %334 = vector.multi_reduction <add>, %333, %cst_94 [1] : vector<64x256xf32> to vector<64xf32>
    %335 = vector.shape_cast %334 : vector<64xf32> to vector<64x1xf32>
    %cst_95 = arith.constant 3.906250e-03 : f32
    %336 = vector.broadcast %cst_95 : f32 to vector<64x1xf32>
    %337 = arith.mulf %332, %336 : vector<64x1xf32>
    %cst_96 = arith.constant 3.906250e-03 : f32
    %338 = vector.broadcast %cst_96 : f32 to vector<64x1xf32>
    %339 = arith.mulf %335, %338 : vector<64x1xf32>
    %340 = arith.mulf %337, %337 : vector<64x1xf32>
    %341 = arith.subf %339, %340 : vector<64x1xf32>
    %cst_97 = arith.constant 0.000000e+00 : f32
    %342 = vector.broadcast %cst_97 : f32 to vector<64x1xf32>
    %343 = arith.maximumf %341, %342 : vector<64x1xf32>
    %cst_98 = arith.constant 9.99999974E-6 : f32
    %344 = vector.broadcast %cst_98 : f32 to vector<64x1xf32>
    %345 = arith.addf %343, %344 : vector<64x1xf32>
    %346 = math.rsqrt %345 : vector<64x1xf32>
    %347 = vector.extract_strided_slice %2 {offsets = [896, 0], sizes = [64, 1], strides = [1, 1]} : vector<1408x2xf32> to vector<64x1xf32>
    %348 = vector.extract_strided_slice %2 {offsets = [960, 0], sizes = [64, 1], strides = [1, 1]} : vector<1408x2xf32> to vector<64x1xf32>
    %349 = arith.mulf %347, %346 : vector<64x1xf32>
    %350 = arith.mulf %349, %337 : vector<64x1xf32>
    %351 = arith.subf %348, %350 : vector<64x1xf32>
    %352 = vector.extract_strided_slice %330 {offsets = [0, 0], sizes = [64, 128], strides = [1, 1]} : vector<64x256xf32> to vector<64x128xf32>
    %353 = vector.broadcast %349 : vector<64x1xf32> to vector<64x128xf32>
    %354 = arith.mulf %353, %352 : vector<64x128xf32>
    %355 = vector.broadcast %351 : vector<64x1xf32> to vector<64x128xf32>
    %356 = arith.addf %354, %355 : vector<64x128xf32>
    %cst_99 = arith.constant 0.000000e+00 : f32
    %357 = vector.broadcast %cst_99 : f32 to vector<64x128xf32>
    %358 = arith.maximumf %356, %357 : vector<64x128xf32>
    %359 = vector.extract_strided_slice %2 {offsets = [896, 1], sizes = [64, 1], strides = [1, 1]} : vector<1408x2xf32> to vector<64x1xf32>
    %360 = vector.extract_strided_slice %2 {offsets = [960, 1], sizes = [64, 1], strides = [1, 1]} : vector<1408x2xf32> to vector<64x1xf32>
    %361 = arith.mulf %359, %346 : vector<64x1xf32>
    %362 = arith.mulf %361, %337 : vector<64x1xf32>
    %363 = arith.subf %360, %362 : vector<64x1xf32>
    %364 = vector.extract_strided_slice %330 {offsets = [0, 128], sizes = [64, 128], strides = [1, 1]} : vector<64x256xf32> to vector<64x128xf32>
    %365 = vector.broadcast %361 : vector<64x1xf32> to vector<64x128xf32>
    %366 = arith.mulf %365, %364 : vector<64x128xf32>
    %367 = vector.broadcast %363 : vector<64x1xf32> to vector<64x128xf32>
    %368 = arith.addf %366, %367 : vector<64x128xf32>
    %cst_100 = arith.constant 0.000000e+00 : f32
    %369 = vector.broadcast %cst_100 : f32 to vector<64x128xf32>
    %370 = arith.maximumf %368, %369 : vector<64x128xf32>
    %371 = tpu.concatenate %358, %370 in 1 : vector<64x128xf32>, vector<64x128xf32> -> vector<64x256xf32>
    %c7 = arith.constant 7 : index
    %c0_101 = arith.constant 0 : index
    %c0_102 = arith.constant 0 : index
    %372 = vector.load %arg3[%c7, %c0_101, %c0_102] : memref<10x64x64xf32, #tpu.memory_space<vmem>>, vector<1x64x64xf32>
    %373 = vector.shape_cast %372 : vector<1x64x64xf32> to vector<64x64xf32>
    %cst_103 = arith.constant dense<0.000000e+00> : vector<64x256xf32>
    %374 = tpu.matmul %373, %371, %cst_103 {dimension_numbers = #tpu.dot_dimension_numbers<[1], [0], [0], [1], [0, 0, 1, 1], [], []>} : vector<64x64xf32>, vector<64x256xf32>, vector<64x256xf32> -> vector<64x256xf32>
    %375 = arith.addf %286, %374 : vector<64x256xf32>
    %cst_104 = arith.constant dense<0.000000e+00> : vector<64xf32>
    %376 = vector.multi_reduction <add>, %375, %cst_104 [1] : vector<64x256xf32> to vector<64xf32>
    %377 = vector.shape_cast %376 : vector<64xf32> to vector<64x1xf32>
    %378 = arith.mulf %375, %375 : vector<64x256xf32>
    %cst_105 = arith.constant dense<0.000000e+00> : vector<64xf32>
    %379 = vector.multi_reduction <add>, %378, %cst_105 [1] : vector<64x256xf32> to vector<64xf32>
    %380 = vector.shape_cast %379 : vector<64xf32> to vector<64x1xf32>
    %cst_106 = arith.constant 3.906250e-03 : f32
    %381 = vector.broadcast %cst_106 : f32 to vector<64x1xf32>
    %382 = arith.mulf %377, %381 : vector<64x1xf32>
    %cst_107 = arith.constant 3.906250e-03 : f32
    %383 = vector.broadcast %cst_107 : f32 to vector<64x1xf32>
    %384 = arith.mulf %380, %383 : vector<64x1xf32>
    %385 = arith.mulf %382, %382 : vector<64x1xf32>
    %386 = arith.subf %384, %385 : vector<64x1xf32>
    %cst_108 = arith.constant 0.000000e+00 : f32
    %387 = vector.broadcast %cst_108 : f32 to vector<64x1xf32>
    %388 = arith.maximumf %386, %387 : vector<64x1xf32>
    %cst_109 = arith.constant 9.99999974E-6 : f32
    %389 = vector.broadcast %cst_109 : f32 to vector<64x1xf32>
    %390 = arith.addf %388, %389 : vector<64x1xf32>
    %391 = math.rsqrt %390 : vector<64x1xf32>
    %392 = vector.extract_strided_slice %2 {offsets = [1024, 0], sizes = [64, 1], strides = [1, 1]} : vector<1408x2xf32> to vector<64x1xf32>
    %393 = vector.extract_strided_slice %2 {offsets = [1088, 0], sizes = [64, 1], strides = [1, 1]} : vector<1408x2xf32> to vector<64x1xf32>
    %394 = arith.mulf %392, %391 : vector<64x1xf32>
    %395 = arith.mulf %394, %382 : vector<64x1xf32>
    %396 = arith.subf %393, %395 : vector<64x1xf32>
    %397 = vector.extract_strided_slice %375 {offsets = [0, 0], sizes = [64, 128], strides = [1, 1]} : vector<64x256xf32> to vector<64x128xf32>
    %398 = vector.broadcast %394 : vector<64x1xf32> to vector<64x128xf32>
    %399 = arith.mulf %398, %397 : vector<64x128xf32>
    %400 = vector.broadcast %396 : vector<64x1xf32> to vector<64x128xf32>
    %401 = arith.addf %399, %400 : vector<64x128xf32>
    %cst_110 = arith.constant 0.000000e+00 : f32
    %402 = vector.broadcast %cst_110 : f32 to vector<64x128xf32>
    %403 = arith.maximumf %401, %402 : vector<64x128xf32>
    %404 = vector.extract_strided_slice %2 {offsets = [1024, 1], sizes = [64, 1], strides = [1, 1]} : vector<1408x2xf32> to vector<64x1xf32>
    %405 = vector.extract_strided_slice %2 {offsets = [1088, 1], sizes = [64, 1], strides = [1, 1]} : vector<1408x2xf32> to vector<64x1xf32>
    %406 = arith.mulf %404, %391 : vector<64x1xf32>
    %407 = arith.mulf %406, %382 : vector<64x1xf32>
    %408 = arith.subf %405, %407 : vector<64x1xf32>
    %409 = vector.extract_strided_slice %375 {offsets = [0, 128], sizes = [64, 128], strides = [1, 1]} : vector<64x256xf32> to vector<64x128xf32>
    %410 = vector.broadcast %406 : vector<64x1xf32> to vector<64x128xf32>
    %411 = arith.mulf %410, %409 : vector<64x128xf32>
    %412 = vector.broadcast %408 : vector<64x1xf32> to vector<64x128xf32>
    %413 = arith.addf %411, %412 : vector<64x128xf32>
    %cst_111 = arith.constant 0.000000e+00 : f32
    %414 = vector.broadcast %cst_111 : f32 to vector<64x128xf32>
    %415 = arith.maximumf %413, %414 : vector<64x128xf32>
    %416 = tpu.concatenate %403, %415 in 1 : vector<64x128xf32>, vector<64x128xf32> -> vector<64x256xf32>
    %c8 = arith.constant 8 : index
    %c0_112 = arith.constant 0 : index
    %c0_113 = arith.constant 0 : index
    %417 = vector.load %arg3[%c8, %c0_112, %c0_113] : memref<10x64x64xf32, #tpu.memory_space<vmem>>, vector<1x64x64xf32>
    %418 = vector.shape_cast %417 : vector<1x64x64xf32> to vector<64x64xf32>
    %cst_114 = arith.constant dense<0.000000e+00> : vector<64x256xf32>
    %419 = tpu.matmul %418, %416, %cst_114 {dimension_numbers = #tpu.dot_dimension_numbers<[1], [0], [0], [1], [0, 0, 1, 1], [], []>} : vector<64x64xf32>, vector<64x256xf32>, vector<64x256xf32> -> vector<64x256xf32>
    %cst_115 = arith.constant dense<0.000000e+00> : vector<64xf32>
    %420 = vector.multi_reduction <add>, %419, %cst_115 [1] : vector<64x256xf32> to vector<64xf32>
    %421 = vector.shape_cast %420 : vector<64xf32> to vector<64x1xf32>
    %422 = arith.mulf %419, %419 : vector<64x256xf32>
    %cst_116 = arith.constant dense<0.000000e+00> : vector<64xf32>
    %423 = vector.multi_reduction <add>, %422, %cst_116 [1] : vector<64x256xf32> to vector<64xf32>
    %424 = vector.shape_cast %423 : vector<64xf32> to vector<64x1xf32>
    %cst_117 = arith.constant 3.906250e-03 : f32
    %425 = vector.broadcast %cst_117 : f32 to vector<64x1xf32>
    %426 = arith.mulf %421, %425 : vector<64x1xf32>
    %cst_118 = arith.constant 3.906250e-03 : f32
    %427 = vector.broadcast %cst_118 : f32 to vector<64x1xf32>
    %428 = arith.mulf %424, %427 : vector<64x1xf32>
    %429 = arith.mulf %426, %426 : vector<64x1xf32>
    %430 = arith.subf %428, %429 : vector<64x1xf32>
    %cst_119 = arith.constant 0.000000e+00 : f32
    %431 = vector.broadcast %cst_119 : f32 to vector<64x1xf32>
    %432 = arith.maximumf %430, %431 : vector<64x1xf32>
    %cst_120 = arith.constant 9.99999974E-6 : f32
    %433 = vector.broadcast %cst_120 : f32 to vector<64x1xf32>
    %434 = arith.addf %432, %433 : vector<64x1xf32>
    %435 = math.rsqrt %434 : vector<64x1xf32>
    %436 = vector.extract_strided_slice %2 {offsets = [1152, 0], sizes = [64, 1], strides = [1, 1]} : vector<1408x2xf32> to vector<64x1xf32>
    %437 = vector.extract_strided_slice %2 {offsets = [1216, 0], sizes = [64, 1], strides = [1, 1]} : vector<1408x2xf32> to vector<64x1xf32>
    %438 = arith.mulf %436, %435 : vector<64x1xf32>
    %439 = arith.mulf %438, %426 : vector<64x1xf32>
    %440 = arith.subf %437, %439 : vector<64x1xf32>
    %441 = vector.extract_strided_slice %419 {offsets = [0, 0], sizes = [64, 128], strides = [1, 1]} : vector<64x256xf32> to vector<64x128xf32>
    %442 = vector.broadcast %438 : vector<64x1xf32> to vector<64x128xf32>
    %443 = arith.mulf %442, %441 : vector<64x128xf32>
    %444 = vector.broadcast %440 : vector<64x1xf32> to vector<64x128xf32>
    %445 = arith.addf %443, %444 : vector<64x128xf32>
    %cst_121 = arith.constant 0.000000e+00 : f32
    %446 = vector.broadcast %cst_121 : f32 to vector<64x128xf32>
    %447 = arith.maximumf %445, %446 : vector<64x128xf32>
    %448 = vector.extract_strided_slice %2 {offsets = [1152, 1], sizes = [64, 1], strides = [1, 1]} : vector<1408x2xf32> to vector<64x1xf32>
    %449 = vector.extract_strided_slice %2 {offsets = [1216, 1], sizes = [64, 1], strides = [1, 1]} : vector<1408x2xf32> to vector<64x1xf32>
    %450 = arith.mulf %448, %435 : vector<64x1xf32>
    %451 = arith.mulf %450, %426 : vector<64x1xf32>
    %452 = arith.subf %449, %451 : vector<64x1xf32>
    %453 = vector.extract_strided_slice %419 {offsets = [0, 128], sizes = [64, 128], strides = [1, 1]} : vector<64x256xf32> to vector<64x128xf32>
    %454 = vector.broadcast %450 : vector<64x1xf32> to vector<64x128xf32>
    %455 = arith.mulf %454, %453 : vector<64x128xf32>
    %456 = vector.broadcast %452 : vector<64x1xf32> to vector<64x128xf32>
    %457 = arith.addf %455, %456 : vector<64x128xf32>
    %cst_122 = arith.constant 0.000000e+00 : f32
    %458 = vector.broadcast %cst_122 : f32 to vector<64x128xf32>
    %459 = arith.maximumf %457, %458 : vector<64x128xf32>
    %460 = tpu.concatenate %447, %459 in 1 : vector<64x128xf32>, vector<64x128xf32> -> vector<64x256xf32>
    %c9 = arith.constant 9 : index
    %c0_123 = arith.constant 0 : index
    %c0_124 = arith.constant 0 : index
    %461 = vector.load %arg3[%c9, %c0_123, %c0_124] : memref<10x64x64xf32, #tpu.memory_space<vmem>>, vector<1x64x64xf32>
    %462 = vector.shape_cast %461 : vector<1x64x64xf32> to vector<64x64xf32>
    %cst_125 = arith.constant dense<0.000000e+00> : vector<64x256xf32>
    %463 = tpu.matmul %462, %460, %cst_125 {dimension_numbers = #tpu.dot_dimension_numbers<[1], [0], [0], [1], [0, 0, 1, 1], [], []>} : vector<64x64xf32>, vector<64x256xf32>, vector<64x256xf32> -> vector<64x256xf32>
    %464 = arith.addf %375, %463 : vector<64x256xf32>
    %cst_126 = arith.constant dense<0.000000e+00> : vector<64xf32>
    %465 = vector.multi_reduction <add>, %464, %cst_126 [1] : vector<64x256xf32> to vector<64xf32>
    %466 = vector.shape_cast %465 : vector<64xf32> to vector<64x1xf32>
    %467 = arith.mulf %464, %464 : vector<64x256xf32>
    %cst_127 = arith.constant dense<0.000000e+00> : vector<64xf32>
    %468 = vector.multi_reduction <add>, %467, %cst_127 [1] : vector<64x256xf32> to vector<64xf32>
    %469 = vector.shape_cast %468 : vector<64xf32> to vector<64x1xf32>
    %cst_128 = arith.constant 3.906250e-03 : f32
    %470 = vector.broadcast %cst_128 : f32 to vector<64x1xf32>
    %471 = arith.mulf %466, %470 : vector<64x1xf32>
    %cst_129 = arith.constant 3.906250e-03 : f32
    %472 = vector.broadcast %cst_129 : f32 to vector<64x1xf32>
    %473 = arith.mulf %469, %472 : vector<64x1xf32>
    %474 = arith.mulf %471, %471 : vector<64x1xf32>
    %475 = arith.subf %473, %474 : vector<64x1xf32>
    %cst_130 = arith.constant 0.000000e+00 : f32
    %476 = vector.broadcast %cst_130 : f32 to vector<64x1xf32>
    %477 = arith.maximumf %475, %476 : vector<64x1xf32>
    %cst_131 = arith.constant 9.99999974E-6 : f32
    %478 = vector.broadcast %cst_131 : f32 to vector<64x1xf32>
    %479 = arith.addf %477, %478 : vector<64x1xf32>
    %480 = math.rsqrt %479 : vector<64x1xf32>
    %481 = vector.extract_strided_slice %2 {offsets = [1280, 0], sizes = [64, 1], strides = [1, 1]} : vector<1408x2xf32> to vector<64x1xf32>
    %482 = vector.extract_strided_slice %2 {offsets = [1344, 0], sizes = [64, 1], strides = [1, 1]} : vector<1408x2xf32> to vector<64x1xf32>
    %483 = arith.mulf %481, %480 : vector<64x1xf32>
    %484 = arith.mulf %483, %471 : vector<64x1xf32>
    %485 = arith.subf %482, %484 : vector<64x1xf32>
    %486 = vector.extract_strided_slice %464 {offsets = [0, 0], sizes = [64, 128], strides = [1, 1]} : vector<64x256xf32> to vector<64x128xf32>
    %487 = vector.broadcast %483 : vector<64x1xf32> to vector<64x128xf32>
    %488 = arith.mulf %487, %486 : vector<64x128xf32>
    %489 = vector.broadcast %485 : vector<64x1xf32> to vector<64x128xf32>
    %490 = arith.addf %488, %489 : vector<64x128xf32>
    %cst_132 = arith.constant 0.000000e+00 : f32
    %491 = vector.broadcast %cst_132 : f32 to vector<64x128xf32>
    %492 = arith.maximumf %490, %491 : vector<64x128xf32>
    %493 = vector.extract_strided_slice %2 {offsets = [1280, 1], sizes = [64, 1], strides = [1, 1]} : vector<1408x2xf32> to vector<64x1xf32>
    %494 = vector.extract_strided_slice %2 {offsets = [1344, 1], sizes = [64, 1], strides = [1, 1]} : vector<1408x2xf32> to vector<64x1xf32>
    %495 = arith.mulf %493, %480 : vector<64x1xf32>
    %496 = arith.mulf %495, %471 : vector<64x1xf32>
    %497 = arith.subf %494, %496 : vector<64x1xf32>
    %498 = vector.extract_strided_slice %464 {offsets = [0, 128], sizes = [64, 128], strides = [1, 1]} : vector<64x256xf32> to vector<64x128xf32>
    %499 = vector.broadcast %495 : vector<64x1xf32> to vector<64x128xf32>
    %500 = arith.mulf %499, %498 : vector<64x128xf32>
    %501 = vector.broadcast %497 : vector<64x1xf32> to vector<64x128xf32>
    %502 = arith.addf %500, %501 : vector<64x128xf32>
    %cst_133 = arith.constant 0.000000e+00 : f32
    %503 = vector.broadcast %cst_133 : f32 to vector<64x128xf32>
    %504 = arith.maximumf %502, %503 : vector<64x128xf32>
    %505 = tpu.concatenate %492, %504 in 1 : vector<64x128xf32>, vector<64x128xf32> -> vector<64x256xf32>
    %c0_134 = arith.constant 0 : index
    %c3_135 = arith.constant 3 : index
    %506 = vector.load %arg4[%c0_134, %c3_135] : memref<64x5xf32, #tpu.memory_space<vmem>>, vector<64x1xf32>
    %507 = vector.broadcast %506 : vector<64x1xf32> to vector<64x256xf32>
    %508 = arith.mulf %507, %505 : vector<64x256xf32>
    %cst_136 = arith.constant dense<0.000000e+00> : vector<256xf32>
    %509 = vector.multi_reduction <add>, %508, %cst_136 [0] : vector<64x256xf32> to vector<256xf32>
    %510 = vector.shape_cast %509 : vector<256xf32> to vector<1x256xf32>
    %c0_137 = arith.constant 0 : index
    %c4_138 = arith.constant 4 : index
    %511 = vector.load %arg4[%c0_137, %c4_138] : memref<64x5xf32, #tpu.memory_space<vmem>>, vector<1x1xf32>
    %512 = vector.broadcast %511 : vector<1x1xf32> to vector<1x256xf32>
    %513 = arith.addf %510, %512 : vector<1x256xf32>
    %c0_139 = arith.constant 0 : index
    %c0_140 = arith.constant 0 : index
    %514 = vector.load %arg5[%c0_139, %c0_140] : memref<1x256xf32, #tpu.memory_space<vmem>>, vector<1x256xf32>
    tpu.vector_store %arg5[%c0_139, %c0_140], %513 {strides = array<i32>} : memref<1x256xf32, #tpu.memory_space<vmem>>, vector<1x256xf32>,
    return
  }
}

</mosaic_0001>

<llo_original>
// kernel: tpu_custom_call.1
$region0: #{tpu_custom_call.1}
  #allocation0 [shape = 'u32[]', space=smem, size = 0x4, offset = 0x4, fixed_abs, tag = 'smem constant byte address 0x4 - core index']
  #allocation1 [shape = 'u32[144,128]{1,0:T(1,128)}', space=vmem, size = 0x12000, scoped, tag = 'internal scratch']
  %s0 = inlined_call_operand.vmem [shape: f32[3,256], index: 0, kind: input, shape index: {}]
  %s1 = inlined_call_operand.vmem [shape: f32[33,2], index: 1, kind: input, shape index: {}]
  %s2 = inlined_call_operand.vmem [shape: f32[1408,33], index: 2, kind: input, shape index: {}]
  %s3 = inlined_call_operand.vmem [shape: f32[10,64,64], index: 3, kind: input, shape index: {}]
  %s4 = inlined_call_operand.vmem [shape: f32[64,5], index: 4, kind: input, shape index: {}]
  %s5 = inlined_call_operand.hbm [shape: f32[1,256], index: 5, kind: output, shape index: {}]
  %s6 = sld [smem:[#allocation0]]
  $region30: #{tpu_custom_call.1} parent=0
    _
  %s8 = ssub.s32 1, %s6
  %s9 = scalar_select 0, %s8, %s6
  $region1: #{tpu_custom_call.1} parent=0
    #allocation2 [shape = 'u8[1024]{0}', space=vmem, size = 0x400, scoped, tag = 'output window, operand 0, single buffered']
    #allocation3 [shape = 's32[1]{0}', space=sflag, size = 0x4, scoped, tag = 'scoped memory for tpu_custom_call.1']
    %10 = vsyncpa [#allocation3], 0
    // Predicated region
    $region2: #{tpu_custom_call.1} parent=1 // pred_check
      _
    $region3: #{tpu_custom_call.1} parent=1 // pred_check_branch
      %12 = sbr.rel (0) target = $region5
    $region4: #{tpu_custom_call.1} parent=1 // pred_region
      _
    $region5: #{tpu_custom_call.1} parent=1 // pred_fallthru
      _
    // Predicated region
    $region6: #{tpu_custom_call.1} parent=1 // pred_check
      _
    $region7: #{tpu_custom_call.1} parent=1 // pred_check_branch
      %14 = sbr.rel (0) target = $region9
    $region8: #{tpu_custom_call.1} parent=1 // pred_region
      _
    $region9: #{tpu_custom_call.1} parent=1 // pred_fallthru
      _
    // Predicated region
    $region10: #{tpu_custom_call.1} parent=1 // pred_check
      _
    $region11: #{tpu_custom_call.1} parent=1 // pred_check_branch
      %16 = sbr.rel (0) target = $region13
    $region12: #{tpu_custom_call.1} parent=1 // pred_region
      _
    $region13: #{tpu_custom_call.1} parent=1 // pred_fallthru
      _
    // Predicated region
    $region14: #{tpu_custom_call.1} parent=1 // pred_check
      _
    $region15: #{tpu_custom_call.1} parent=1 // pred_check_branch
      %18 = sbr.rel (0) target = $region17
    $region16: #{tpu_custom_call.1} parent=1 // pred_region
      _
    $region17: #{tpu_custom_call.1} parent=1 // pred_fallthru
      _
    // Predicated region
    $region18: #{tpu_custom_call.1} parent=1 // pred_check
      _
    $region19: #{tpu_custom_call.1} parent=1 // pred_check_branch
      %20 = sbr.rel (0) target = $region21
    $region20: #{tpu_custom_call.1} parent=1 // pred_region
      _
    $region21: #{tpu_custom_call.1} parent=1 // pred_fallthru
      _
    %v21 = vld [vmem:[%s2] sm:$0xff]
    %v22 = vld [vmem:[%s2 + $0x8] sm:$0xff]
    %v23 = vld [vmem:[%s2 + $0x10] sm:$0xff]
    %v24 = vld [vmem:[%s2 + $0x18] sm:$0xff]
    %v25 = vld [vmem:[%s2 + $0x20] sm:$0xff]
    %v26 = vld [vmem:[%s2 + $0x28] sm:$0xff]
    %v27 = vld [vmem:[%s2 + $0x30] sm:$0xff]
    %v28 = vld [vmem:[%s2 + $0x38] sm:$0xff]
    %v29 = vld [vmem:[%s2 + $0x40] sm:$0xff]
    %v30 = vld [vmem:[%s2 + $0x48] sm:$0xff]
    %v31 = vld [vmem:[%s2 + $0x50] sm:$0xff]
    %v32 = vld [vmem:[%s2 + $0x58] sm:$0xff]
    %v33 = vld [vmem:[%s2 + $0x60] sm:$0xff]
    %v34 = vld [vmem:[%s2 + $0x68] sm:$0xff]
    %v35 = vld [vmem:[%s2 + $0x70] sm:$0xff]
    %v36 = vld [vmem:[%s2 + $0x78] sm:$0xff]
    %v37 = vld [vmem:[%s2 + $0x80] sm:$0xff]
    %v38 = vld [vmem:[%s2 + $0x88] sm:$0xff]
    %v39 = vld [vmem:[%s2 + $0x90] sm:$0xff]
    %v40 = vld [vmem:[%s2 + $0x98] sm:$0xff]
    %v41 = vld [vmem:[%s2 + $0xa0] sm:$0xff]
    %v42 = vld [vmem:[%s2 + $0xa8] sm:$0xff]
    %v43 = vld [vmem:[%s2 + $0xb0] sm:$0xff]
    %v44 = vld [vmem:[%s2 + $0xb8] sm:$0xff]
    %v45 = vld [vmem:[%s2 + $0xc0] sm:$0xff]
    %v46 = vld [vmem:[%s2 + $0xc8] sm:$0xff]
    %v47 = vld [vmem:[%s2 + $0xd0] sm:$0xff]
    %v48 = vld [vmem:[%s2 + $0xd8] sm:$0xff]
    %v49 = vld [vmem:[%s2 + $0xe0] sm:$0xff]
    %v50 = vld [vmem:[%s2 + $0xe8] sm:$0xff]
    %v51 = vld [vmem:[%s2 + $0xf0] sm:$0xff]
    %v52 = vld [vmem:[%s2 + $0xf8] sm:$0xff]
    %v53 = vld [vmem:[%s2 + $0x100] sm:$0xff]
    %v54 = vld [vmem:[%s2 + $0x108] sm:$0xff]
    %v55 = vld [vmem:[%s2 + $0x110] sm:$0xff]
    %v56 = vld [vmem:[%s2 + $0x118] sm:$0xff]
    %v57 = vld [vmem:[%s2 + $0x120] sm:$0xff]
    %v58 = vld [vmem:[%s2 + $0x128] sm:$0xff]
    %v59 = vld [vmem:[%s2 + $0x130] sm:$0xff]
    %v60 = vld [vmem:[%s2 + $0x138] sm:$0xff]
    %v61 = vld [vmem:[%s2 + $0x140] sm:$0xff]
    %v62 = vld [vmem:[%s2 + $0x148] sm:$0xff]
    %v63 = vld [vmem:[%s2 + $0x150] sm:$0xff]
    %v64 = vld [vmem:[%s2 + $0x158] sm:$0xff]
    %v65 = vld [vmem:[%s2 + $0x160] sm:$0xff]
    %v66 = vld [vmem:[%s2 + $0x168] sm:$0xff]
    %v67 = vld [vmem:[%s2 + $0x170] sm:$0xff]
    %v68 = vld [vmem:[%s2 + $0x178] sm:$0xff]
    %v69 = vld [vmem:[%s2 + $0x180] sm:$0xff]
    %v70 = vld [vmem:[%s2 + $0x188] sm:$0xff]
    %v71 = vld [vmem:[%s2 + $0x190] sm:$0xff]
    %v72 = vld [vmem:[%s2 + $0x198] sm:$0xff]
    %v73 = vld [vmem:[%s2 + $0x1a0] sm:$0xff]
    %v74 = vld [vmem:[%s2 + $0x1a8] sm:$0xff]
    %v75 = vld [vmem:[%s2 + $0x1b0] sm:$0xff]
    %v76 = vld [vmem:[%s2 + $0x1b8] sm:$0xff]
    %v77 = vld [vmem:[%s2 + $0x1c0] sm:$0xff]
    %v78 = vld [vmem:[%s2 + $0x1c8] sm:$0xff]
    %v79 = vld [vmem:[%s2 + $0x1d0] sm:$0xff]
    %v80 = vld [vmem:[%s2 + $0x1d8] sm:$0xff]
    %v81 = vld [vmem:[%s2 + $0x1e0] sm:$0xff]
    %v82 = vld [vmem:[%s2 + $0x1e8] sm:$0xff]
    %v83 = vld [vmem:[%s2 + $0x1f0] sm:$0xff]
    %v84 = vld [vmem:[%s2 + $0x1f8] sm:$0xff]
    %v85 = vld [vmem:[%s2 + $0x200] sm:$0xff]
    %v86 = vld [vmem:[%s2 + $0x208] sm:$0xff]
    %v87 = vld [vmem:[%s2 + $0x210] sm:$0xff]
    %v88 = vld [vmem:[%s2 + $0x218] sm:$0xff]
    %v89 = vld [vmem:[%s2 + $0x220] sm:$0xff]
    %v90 = vld [vmem:[%s2 + $0x228] sm:$0xff]
    %v91 = vld [vmem:[%s2 + $0x230] sm:$0xff]
    %v92 = vld [vmem:[%s2 + $0x238] sm:$0xff]
    %v93 = vld [vmem:[%s2 + $0x240] sm:$0xff]
    %v94 = vld [vmem:[%s2 + $0x248] sm:$0xff]
    %v95 = vld [vmem:[%s2 + $0x250] sm:$0xff]
    %v96 = vld [vmem:[%s2 + $0x258] sm:$0xff]
    %v97 = vld [vmem:[%s2 + $0x260] sm:$0xff]
    %v98 = vld [vmem:[%s2 + $0x268] sm:$0xff]
    %v99 = vld [vmem:[%s2 + $0x270] sm:$0xff]
    %v100 = vld [vmem:[%s2 + $0x278] sm:$0xff]
    %v101 = vld [vmem:[%s2 + $0x280] sm:$0xff]
    %v102 = vld [vmem:[%s2 + $0x288] sm:$0xff]
    %v103 = vld [vmem:[%s2 + $0x290] sm:$0xff]
    %v104 = vld [vmem:[%s2 + $0x298] sm:$0xff]
    %v105 = vld [vmem:[%s2 + $0x2a0] sm:$0xff]
    %v106 = vld [vmem:[%s2 + $0x2a8] sm:$0xff]
    %v107 = vld [vmem:[%s2 + $0x2b0] sm:$0xff]
    %v108 = vld [vmem:[%s2 + $0x2b8] sm:$0xff]
    %v109 = vld [vmem:[%s2 + $0x2c0] sm:$0xff]
    %v110 = vld [vmem:[%s2 + $0x2c8] sm:$0xff]
    %v111 = vld [vmem:[%s2 + $0x2d0] sm:$0xff]
    %v112 = vld [vmem:[%s2 + $0x2d8] sm:$0xff]
    %v113 = vld [vmem:[%s2 + $0x2e0] sm:$0xff]
    %v114 = vld [vmem:[%s2 + $0x2e8] sm:$0xff]
    %v115 = vld [vmem:[%s2 + $0x2f0] sm:$0xff]
    %v116 = vld [vmem:[%s2 + $0x2f8] sm:$0xff]
    %v117 = vld [vmem:[%s2 + $0x300] sm:$0xff]
    %v118 = vld [vmem:[%s2 + $0x308] sm:$0xff]
    %v119 = vld [vmem:[%s2 + $0x310] sm:$0xff]
    %v120 = vld [vmem:[%s2 + $0x318] sm:$0xff]
    %v121 = vld [vmem:[%s2 + $0x320] sm:$0xff]
    %v122 = vld [vmem:[%s2 + $0x328] sm:$0xff]
    %v123 = vld [vmem:[%s2 + $0x330] sm:$0xff]
    %v124 = vld [vmem:[%s2 + $0x338] sm:$0xff]
    %v125 = vld [vmem:[%s2 + $0x340] sm:$0xff]
    %v126 = vld [vmem:[%s2 + $0x348] sm:$0xff]
    %v127 = vld [vmem:[%s2 + $0x350] sm:$0xff]
    %v128 = vld [vmem:[%s2 + $0x358] sm:$0xff]
    %v129 = vld [vmem:[%s2 + $0x360] sm:$0xff]
    %v130 = vld [vmem:[%s2 + $0x368] sm:$0xff]
    %v131 = vld [vmem:[%s2 + $0x370] sm:$0xff]
    %v132 = vld [vmem:[%s2 + $0x378] sm:$0xff]
    %v133 = vld [vmem:[%s2 + $0x380] sm:$0xff]
    %v134 = vld [vmem:[%s2 + $0x388] sm:$0xff]
    %v135 = vld [vmem:[%s2 + $0x390] sm:$0xff]
    %v136 = vld [vmem:[%s2 + $0x398] sm:$0xff]
    %v137 = vld [vmem:[%s2 + $0x3a0] sm:$0xff]
    %v138 = vld [vmem:[%s2 + $0x3a8] sm:$0xff]
    %v139 = vld [vmem:[%s2 + $0x3b0] sm:$0xff]
    %v140 = vld [vmem:[%s2 + $0x3b8] sm:$0xff]
    %v141 = vld [vmem:[%s2 + $0x3c0] sm:$0xff]
    %v142 = vld [vmem:[%s2 + $0x3c8] sm:$0xff]
    %v143 = vld [vmem:[%s2 + $0x3d0] sm:$0xff]
    %v144 = vld [vmem:[%s2 + $0x3d8] sm:$0xff]
    %v145 = vld [vmem:[%s2 + $0x3e0] sm:$0xff]
    %v146 = vld [vmem:[%s2 + $0x3e8] sm:$0xff]
    %v147 = vld [vmem:[%s2 + $0x3f0] sm:$0xff]
    %v148 = vld [vmem:[%s2 + $0x3f8] sm:$0xff]
    %v149 = vld [vmem:[%s2 + $0x400] sm:$0xff]
    %v150 = vld [vmem:[%s2 + $0x408] sm:$0xff]
    %v151 = vld [vmem:[%s2 + $0x410] sm:$0xff]
    %v152 = vld [vmem:[%s2 + $0x418] sm:$0xff]
    %v153 = vld [vmem:[%s2 + $0x420] sm:$0xff]
    %v154 = vld [vmem:[%s2 + $0x428] sm:$0xff]
    %v155 = vld [vmem:[%s2 + $0x430] sm:$0xff]
    %v156 = vld [vmem:[%s2 + $0x438] sm:$0xff]
    %v157 = vld [vmem:[%s2 + $0x440] sm:$0xff]
    %v158 = vld [vmem:[%s2 + $0x448] sm:$0xff]
    %v159 = vld [vmem:[%s2 + $0x450] sm:$0xff]
    %v160 = vld [vmem:[%s2 + $0x458] sm:$0xff]
    %v161 = vld [vmem:[%s2 + $0x460] sm:$0xff]
    %v162 = vld [vmem:[%s2 + $0x468] sm:$0xff]
    %v163 = vld [vmem:[%s2 + $0x470] sm:$0xff]
    %v164 = vld [vmem:[%s2 + $0x478] sm:$0xff]
    %v165 = vld [vmem:[%s2 + $0x480] sm:$0xff]
    %v166 = vld [vmem:[%s2 + $0x488] sm:$0xff]
    %v167 = vld [vmem:[%s2 + $0x490] sm:$0xff]
    %v168 = vld [vmem:[%s2 + $0x498] sm:$0xff]
    %v169 = vld [vmem:[%s2 + $0x4a0] sm:$0xff]
    %v170 = vld [vmem:[%s2 + $0x4a8] sm:$0xff]
    %v171 = vld [vmem:[%s2 + $0x4b0] sm:$0xff]
    %v172 = vld [vmem:[%s2 + $0x4b8] sm:$0xff]
    %v173 = vld [vmem:[%s2 + $0x4c0] sm:$0xff]
    %v174 = vld [vmem:[%s2 + $0x4c8] sm:$0xff]
    %v175 = vld [vmem:[%s2 + $0x4d0] sm:$0xff]
    %v176 = vld [vmem:[%s2 + $0x4d8] sm:$0xff]
    %v177 = vld [vmem:[%s2 + $0x4e0] sm:$0xff]
    %v178 = vld [vmem:[%s2 + $0x4e8] sm:$0xff]
    %v179 = vld [vmem:[%s2 + $0x4f0] sm:$0xff]
    %v180 = vld [vmem:[%s2 + $0x4f8] sm:$0xff]
    %v181 = vld [vmem:[%s2 + $0x500] sm:$0xff]
    %v182 = vld [vmem:[%s2 + $0x508] sm:$0xff]
    %v183 = vld [vmem:[%s2 + $0x510] sm:$0xff]
    %v184 = vld [vmem:[%s2 + $0x518] sm:$0xff]
    %v185 = vld [vmem:[%s2 + $0x520] sm:$0xff]
    %v186 = vld [vmem:[%s2 + $0x528] sm:$0xff]
    %v187 = vld [vmem:[%s2 + $0x530] sm:$0xff]
    %v188 = vld [vmem:[%s2 + $0x538] sm:$0xff]
    %v189 = vld [vmem:[%s2 + $0x540] sm:$0xff]
    %v190 = vld [vmem:[%s2 + $0x548] sm:$0xff]
    %v191 = vld [vmem:[%s2 + $0x550] sm:$0xff]
    %v192 = vld [vmem:[%s2 + $0x558] sm:$0xff]
    %v193 = vld [vmem:[%s2 + $0x560] sm:$0xff]
    %v194 = vld [vmem:[%s2 + $0x568] sm:$0xff]
    %v195 = vld [vmem:[%s2 + $0x570] sm:$0xff]
    %v196 = vld [vmem:[%s2 + $0x578] sm:$0xff]
    %v197 = vld [vmem:[%s1] sm:$0xff]
    %v198 = vld [vmem:[%s1 + $0x8] sm:$0xff]
    %v199 = vld [vmem:[%s1 + $0x10] sm:$0xff]
    %v200 = vld [vmem:[%s1 + $0x18] sm:$0xff]
    %v201 = vld [vmem:[%s1 + $0x20] sm:$0x1]
    %vm202 = vcmask 269312
    %v204 = vsel %vm202, %v21, 0
    %v207 = vsel %vm202, %v22, 0
    %v210 = vsel %vm202, %v23, 0
    %v213 = vsel %vm202, %v24, 0
    %v216 = vsel %vm202, %v25, 0
    %v219 = vsel %vm202, %v26, 0
    %v222 = vsel %vm202, %v27, 0
    %v225 = vsel %vm202, %v28, 0
    %v228 = vsel %vm202, %v29, 0
    %v231 = vsel %vm202, %v30, 0
    %v234 = vsel %vm202, %v31, 0
    %v237 = vsel %vm202, %v32, 0
    %v240 = vsel %vm202, %v33, 0
    %v243 = vsel %vm202, %v34, 0
    %v246 = vsel %vm202, %v35, 0
    %v249 = vsel %vm202, %v36, 0
    %v252 = vsel %vm202, %v37, 0
    %v255 = vsel %vm202, %v38, 0
    %v258 = vsel %vm202, %v39, 0
    %v261 = vsel %vm202, %v40, 0
    %v264 = vsel %vm202, %v41, 0
    %v267 = vsel %vm202, %v42, 0
    %v270 = vsel %vm202, %v43, 0
    %v273 = vsel %vm202, %v44, 0
    %v276 = vsel %vm202, %v45, 0
    %v279 = vsel %vm202, %v46, 0
    %v282 = vsel %vm202, %v47, 0
    %v285 = vsel %vm202, %v48, 0
    %v288 = vsel %vm202, %v49, 0
    %v291 = vsel %vm202, %v50, 0
    %v294 = vsel %vm202, %v51, 0
    %v297 = vsel %vm202, %v52, 0
    %v300 = vsel %vm202, %v53, 0
    %v303 = vsel %vm202, %v54, 0
    %v306 = vsel %vm202, %v55, 0
    %v309 = vsel %vm202, %v56, 0
    %v312 = vsel %vm202, %v57, 0
    %v315 = vsel %vm202, %v58, 0
    %v318 = vsel %vm202, %v59, 0
    %v321 = vsel %vm202, %v60, 0
    %v324 = vsel %vm202, %v61, 0
    %v327 = vsel %vm202, %v62, 0
    %v330 = vsel %vm202, %v63, 0
    %v333 = vsel %vm202, %v64, 0
    %v336 = vsel %vm202, %v65, 0
    %v339 = vsel %vm202, %v66, 0
    %v342 = vsel %vm202, %v67, 0
    %v345 = vsel %vm202, %v68, 0
    %v348 = vsel %vm202, %v69, 0
    %v351 = vsel %vm202, %v70, 0
    %v354 = vsel %vm202, %v71, 0
    %v357 = vsel %vm202, %v72, 0
    %v360 = vsel %vm202, %v73, 0
    %v363 = vsel %vm202, %v74, 0
    %v366 = vsel %vm202, %v75, 0
    %v369 = vsel %vm202, %v76, 0
    %v372 = vsel %vm202, %v77, 0
    %v375 = vsel %vm202, %v78, 0
    %v378 = vsel %vm202, %v79, 0
    %v381 = vsel %vm202, %v80, 0
    %v384 = vsel %vm202, %v81, 0
    %v387 = vsel %vm202, %v82, 0
    %v390 = vsel %vm202, %v83, 0
    %v393 = vsel %vm202, %v84, 0
    %v396 = vsel %vm202, %v85, 0
    %v399 = vsel %vm202, %v86, 0
    %v402 = vsel %vm202, %v87, 0
    %v405 = vsel %vm202, %v88, 0
    %v408 = vsel %vm202, %v89, 0
    %v411 = vsel %vm202, %v90, 0
    %v414 = vsel %vm202, %v91, 0
    %v417 = vsel %vm202, %v92, 0
    %v420 = vsel %vm202, %v93, 0
    %v423 = vsel %vm202, %v94, 0
    %v426 = vsel %vm202, %v95, 0
    %v429 = vsel %vm202, %v96, 0
    %v432 = vsel %vm202, %v97, 0
    %v435 = vsel %vm202, %v98, 0
    %v438 = vsel %vm202, %v99, 0
    %v441 = vsel %vm202, %v100, 0
    %v444 = vsel %vm202, %v101, 0
    %v447 = vsel %vm202, %v102, 0
    %v450 = vsel %vm202, %v103, 0
    %v453 = vsel %vm202, %v104, 0
    %v456 = vsel %vm202, %v105, 0
    %v459 = vsel %vm202, %v106, 0
    %v462 = vsel %vm202, %v107, 0
    %v465 = vsel %vm202, %v108, 0
    %v468 = vsel %vm202, %v109, 0
    %v471 = vsel %vm202, %v110, 0
    %v474 = vsel %vm202, %v111, 0
    %v477 = vsel %vm202, %v112, 0
    %v480 = vsel %vm202, %v113, 0
    %v483 = vsel %vm202, %v114, 0
    %v486 = vsel %vm202, %v115, 0
    %v489 = vsel %vm202, %v116, 0
    %v492 = vsel %vm202, %v117, 0
    %v495 = vsel %vm202, %v118, 0
    %v498 = vsel %vm202, %v119, 0
    %v501 = vsel %vm202, %v120, 0
    %v504 = vsel %vm202, %v121, 0
    %v507 = vsel %vm202, %v122, 0
    %v510 = vsel %vm202, %v123, 0
    %v513 = vsel %vm202, %v124, 0
    %v516 = vsel %vm202, %v125, 0
    %v519 = vsel %vm202, %v126, 0
    %v522 = vsel %vm202, %v127, 0
    %v525 = vsel %vm202, %v128, 0
    %v528 = vsel %vm202, %v129, 0
    %v531 = vsel %vm202, %v130, 0
    %v534 = vsel %vm202, %v131, 0
    %v537 = vsel %vm202, %v132, 0
    %v540 = vsel %vm202, %v133, 0
    %v543 = vsel %vm202, %v134, 0
    %v546 = vsel %vm202, %v135, 0
    %v549 = vsel %vm202, %v136, 0
    %v552 = vsel %vm202, %v137, 0
    %v555 = vsel %vm202, %v138, 0
    %v558 = vsel %vm202, %v139, 0
    %v561 = vsel %vm202, %v140, 0
    %v564 = vsel %vm202, %v141, 0
    %v567 = vsel %vm202, %v142, 0
    %v570 = vsel %vm202, %v143, 0
    %v573 = vsel %vm202, %v144, 0
    %v576 = vsel %vm202, %v145, 0
    %v579 = vsel %vm202, %v146, 0
    %v582 = vsel %vm202, %v147, 0
    %v585 = vsel %vm202, %v148, 0
    %v588 = vsel %vm202, %v149, 0
    %v591 = vsel %vm202, %v150, 0
    %v594 = vsel %vm202, %v151, 0
    %v597 = vsel %vm202, %v152, 0
    %v600 = vsel %vm202, %v153, 0
    %v603 = vsel %vm202, %v154, 0
    %v606 = vsel %vm202, %v155, 0
    %v609 = vsel %vm202, %v156, 0
    %v612 = vsel %vm202, %v157, 0
    %v615 = vsel %vm202, %v158, 0
    %v618 = vsel %vm202, %v159, 0
    %v621 = vsel %vm202, %v160, 0
    %v624 = vsel %vm202, %v161, 0
    %v627 = vsel %vm202, %v162, 0
    %v630 = vsel %vm202, %v163, 0
    %v633 = vsel %vm202, %v164, 0
    %v636 = vsel %vm202, %v165, 0
    %v639 = vsel %vm202, %v166, 0
    %v642 = vsel %vm202, %v167, 0
    %v645 = vsel %vm202, %v168, 0
    %v648 = vsel %vm202, %v169, 0
    %v651 = vsel %vm202, %v170, 0
    %v654 = vsel %vm202, %v171, 0
    %v657 = vsel %vm202, %v172, 0
    %v660 = vsel %vm202, %v173, 0
    %v663 = vsel %vm202, %v174, 0
    %v666 = vsel %vm202, %v175, 0
    %v669 = vsel %vm202, %v176, 0
    %v672 = vsel %vm202, %v177, 0
    %v675 = vsel %vm202, %v178, 0
    %v678 = vsel %vm202, %v179, 0
    %v681 = vsel %vm202, %v180, 0
    %v684 = vsel %vm202, %v181, 0
    %v687 = vsel %vm202, %v182, 0
    %v690 = vsel %vm202, %v183, 0
    %v693 = vsel %vm202, %v184, 0
    %v696 = vsel %vm202, %v185, 0
    %v699 = vsel %vm202, %v186, 0
    %v702 = vsel %vm202, %v187, 0
    %v705 = vsel %vm202, %v188, 0
    %v708 = vsel %vm202, %v189, 0
    %v711 = vsel %vm202, %v190, 0
    %v714 = vsel %vm202, %v191, 0
    %v717 = vsel %vm202, %v192, 0
    %v720 = vsel %vm202, %v193, 0
    %v723 = vsel %vm202, %v194, 0
    %v726 = vsel %vm202, %v195, 0
    %v729 = vsel %vm202, %v196, 0
    %vm731 = vcmask 1040384
    %v733 = vsel %vm731, %v201, 0
    %735 = vmatprep.subr.mxu0 0.0
    %736 = vmatpush1.msra.mxu0 %v197
    %737 = vmatprep.subr.mxu0 0.0
    %738 = vmatpush1.msra.mxu0 %v198
    %739 = vmatprep.subr.mxu0 0.0
    %740 = vmatpush1.msra.mxu0 %v199
    %741 = vmatprep.subr.mxu0 0.0
    %742 = vmatpush1.msra.mxu0 %v200
    %743 = vmatprep.subr.mxu0 0.0
    %744 = vmatpush1.msra.mxu0 %v733
    %745 = vmatprep.subr.mxu0 0.0
    %746 = vmatpush1.msra.mxu0 0.0
    %747 = vmatprep.subr.mxu0 0.0
    %748 = vmatpush1.msra.mxu0 0.0
    %749 = vmatprep.subr.mxu0 0.0
    %750 = vmatpush1.msra.mxu0 0.0
    %751 = vmatprep.subr.mxu0 0.0
    %752 = vmatpush1.msra.mxu0 0.0
    %753 = vmatprep.subr.mxu0 0.0
    %754 = vmatpush1.msra.mxu0 0.0
    %755 = vmatprep.subr.mxu0 0.0
    %756 = vmatpush1.msra.mxu0 0.0
    %757 = vmatprep.subr.mxu0 0.0
    %758 = vmatpush1.msra.mxu0 0.0
    %759 = vmatprep.subr.mxu0 0.0
    %760 = vmatpush1.msra.mxu0 0.0
    %761 = vmatprep.subr.mxu0 0.0
    %762 = vmatpush1.msra.mxu0 0.0
    %763 = vmatprep.subr.mxu0 0.0
    %764 = vmatpush1.msra.mxu0 0.0
    %765 = vmatprep.subr.mxu0 0.0
    %766 = vmatpush1.msra.mxu0 0.0
    %767 = vmatprep.subr.mxu0 0.0
    %768 = vmatpush1.msra.mxu0 0.0
    %769 = vmatprep.subr.mxu0 0.0
    %770 = vmatpush1.msra.mxu0 0.0
    %771 = vmatprep.subr.mxu0 0.0
    %772 = vmatpush1.msra.mxu0 0.0
    %773 = vmatprep.subr.mxu0 0.0
    %774 = vmatpush1.msra.mxu0 0.0
    %775 = vmatprep.subr.mxu0 0.0
    %776 = vmatpush1.msra.mxu0 0.0
    %777 = vmatprep.subr.mxu0 0.0
    %778 = vmatpush1.msra.mxu0 0.0
    %779 = vmatprep.subr.mxu0 0.0
    %780 = vmatpush1.msra.mxu0 0.0
    %781 = vmatprep.subr.mxu0 0.0
    %782 = vmatpush1.msra.mxu0 0.0
    %783 = vmatprep.subr.mxu0 0.0
    %784 = vmatpush1.msra.mxu0 0.0
    %785 = vmatprep.subr.mxu0 0.0
    %786 = vmatpush1.msra.mxu0 0.0
    %787 = vmatprep.subr.mxu0 0.0
    %788 = vmatpush1.msra.mxu0 0.0
    %789 = vmatprep.subr.mxu0 0.0
    %790 = vmatpush1.msra.mxu0 0.0
    %791 = vmatprep.subr.mxu0 0.0
    %792 = vmatpush1.msra.mxu0 0.0
    %793 = vmatprep.subr.mxu0 0.0
    %794 = vmatpush1.msra.mxu0 0.0
    %795 = vmatprep.subr.mxu0 0.0
    %796 = vmatpush1.msra.mxu0 0.0
    %797 = vmatprep.subr.mxu0 0.0
    %798 = vmatpush1.msra.mxu0 0.0
    %799 = vmatprep.mubr.f32.mxu0 0.0
    %800 = vmatmul.mubr.f32.gmra.mrb[0].mxu0 %v204
    %v801 = vpop.f32.mrb[0].mxu0
    %v802 = vadd.f32 0.0, %v801
    %v803 = vpop.f32.mrb[0].mxu0
    %804 = vmatprep.mubr.f32.mxu0 0.0
    %805 = vmatmul.mubr.f32.gmra.mrb[0].mxu0 %v207
    %v806 = vpop.f32.mrb[0].mxu0
    %v807 = vadd.f32 0.0, %v806
    %v808 = vpop.f32.mrb[0].mxu0
    %809 = vmatprep.mubr.f32.mxu0 0.0
    %810 = vmatmul.mubr.f32.gmra.mrb[0].mxu0 %v210
    %v811 = vpop.f32.mrb[0].mxu0
    %v812 = vadd.f32 0.0, %v811
    %v813 = vpop.f32.mrb[0].mxu0
    %814 = vmatprep.mubr.f32.mxu0 0.0
    %815 = vmatmul.mubr.f32.gmra.mrb[0].mxu0 %v213
    %v816 = vpop.f32.mrb[0].mxu0
    %v817 = vadd.f32 0.0, %v816
    %v818 = vpop.f32.mrb[0].mxu0
    %819 = vmatprep.mubr.f32.mxu0 0.0
    %820 = vmatmul.mubr.f32.gmra.mrb[0].mxu0 %v216
    %v821 = vpop.f32.mrb[0].mxu0
    %v822 = vadd.f32 0.0, %v821
    %v823 = vpop.f32.mrb[0].mxu0
    %824 = vmatprep.mubr.f32.mxu0 0.0
    %825 = vmatmul.mubr.f32.gmra.mrb[0].mxu0 %v219
    %v826 = vpop.f32.mrb[0].mxu0
    %v827 = vadd.f32 0.0, %v826
    %v828 = vpop.f32.mrb[0].mxu0
    %829 = vmatprep.mubr.f32.mxu0 0.0
    %830 = vmatmul.mubr.f32.gmra.mrb[0].mxu0 %v222
    %v831 = vpop.f32.mrb[0].mxu0
    %v832 = vadd.f32 0.0, %v831
    %v833 = vpop.f32.mrb[0].mxu0
    %834 = vmatprep.mubr.f32.mxu0 0.0
    %835 = vmatmul.mubr.f32.gmra.mrb[0].mxu0 %v225
    %v836 = vpop.f32.mrb[0].mxu0
    %v837 = vadd.f32 0.0, %v836
    %v838 = vpop.f32.mrb[0].mxu0
    %839 = vmatprep.mubr.f32.mxu0 0.0
    %840 = vmatmul.mubr.f32.gmra.mrb[0].mxu0 %v228
    %v841 = vpop.f32.mrb[0].mxu0
    %v842 = vadd.f32 0.0, %v841
    %v843 = vpop.f32.mrb[0].mxu0
    %844 = vmatprep.mubr.f32.mxu0 0.0
    %845 = vmatmul.mubr.f32.gmra.mrb[0].mxu0 %v231
    %v846 = vpop.f32.mrb[0].mxu0
    %v847 = vadd.f32 0.0, %v846
    %v848 = vpop.f32.mrb[0].mxu0
    %849 = vmatprep.mubr.f32.mxu0 0.0
    %850 = vmatmul.mubr.f32.gmra.mrb[0].mxu0 %v234
    %v851 = vpop.f32.mrb[0].mxu0
    %v852 = vadd.f32 0.0, %v851
    %v853 = vpop.f32.mrb[0].mxu0
    %854 = vmatprep.mubr.f32.mxu0 0.0
    %855 = vmatmul.mubr.f32.gmra.mrb[0].mxu0 %v237
    %v856 = vpop.f32.mrb[0].mxu0
    %v857 = vadd.f32 0.0, %v856
    %v858 = vpop.f32.mrb[0].mxu0
    %859 = vmatprep.mubr.f32.mxu0 0.0
    %860 = vmatmul.mubr.f32.gmra.mrb[0].mxu0 %v240
    %v861 = vpop.f32.mrb[0].mxu0
    %v862 = vadd.f32 0.0, %v861
    %v863 = vpop.f32.mrb[0].mxu0
    %864 = vmatprep.mubr.f32.mxu0 0.0
    %865 = vmatmul.mubr.f32.gmra.mrb[0].mxu0 %v243
    %v866 = vpop.f32.mrb[0].mxu0
    %v867 = vadd.f32 0.0, %v866
    %v868 = vpop.f32.mrb[0].mxu0
    %869 = vmatprep.mubr.f32.mxu0 0.0
    %870 = vmatmul.mubr.f32.gmra.mrb[0].mxu0 %v246
    %v871 = vpop.f32.mrb[0].mxu0
    %v872 = vadd.f32 0.0, %v871
    %v873 = vpop.f32.mrb[0].mxu0
    %874 = vmatprep.mubr.f32.mxu0 0.0
    %875 = vmatmul.mubr.f32.gmra.mrb[0].mxu0 %v249
    %v876 = vpop.f32.mrb[0].mxu0
    %v877 = vadd.f32 0.0, %v876
    %v878 = vpop.f32.mrb[0].mxu0
    %879 = vmatprep.mubr.f32.mxu0 0.0
    %880 = vmatmul.mubr.f32.gmra.mrb[0].mxu0 %v252
    %v881 = vpop.f32.mrb[0].mxu0
    %v882 = vadd.f32 0.0, %v881
    %v883 = vpop.f32.mrb[0].mxu0
    %884 = vmatprep.mubr.f32.mxu0 0.0
    %885 = vmatmul.mubr.f32.gmra.mrb[0].mxu0 %v255
    %v886 = vpop.f32.mrb[0].mxu0
    %v887 = vadd.f32 0.0, %v886
    %v888 = vpop.f32.mrb[0].mxu0
    %889 = vmatprep.mubr.f32.mxu0 0.0
    %890 = vmatmul.mubr.f32.gmra.mrb[0].mxu0 %v258
    %v891 = vpop.f32.mrb[0].mxu0
    %v892 = vadd.f32 0.0, %v891
    %v893 = vpop.f32.mrb[0].mxu0
    %894 = vmatprep.mubr.f32.mxu0 0.0
    %895 = vmatmul.mubr.f32.gmra.mrb[0].mxu0 %v261
    %v896 = vpop.f32.mrb[0].mxu0
    %v897 = vadd.f32 0.0, %v896
    %v898 = vpop.f32.mrb[0].mxu0
    %899 = vmatprep.mubr.f32.mxu0 0.0
    %900 = vmatmul.mubr.f32.gmra.mrb[0].mxu0 %v264
    %v901 = vpop.f32.mrb[0].mxu0
    %v902 = vadd.f32 0.0, %v901
    %v903 = vpop.f32.mrb[0].mxu0
    %904 = vmatprep.mubr.f32.mxu0 0.0
    %905 = vmatmul.mubr.f32.gmra.mrb[0].mxu0 %v267
    %v906 = vpop.f32.mrb[0].mxu0
    %v907 = vadd.f32 0.0, %v906
    %v908 = vpop.f32.mrb[0].mxu0
    %909 = vmatprep.mubr.f32.mxu0 0.0
    %910 = vmatmul.mubr.f32.gmra.mrb[0].mxu0 %v270
    %v911 = vpop.f32.mrb[0].mxu0
    %v912 = vadd.f32 0.0, %v911
    %v913 = vpop.f32.mrb[0].mxu0
    %914 = vmatprep.mubr.f32.mxu0 0.0
    %915 = vmatmul.mubr.f32.gmra.mrb[0].mxu0 %v273
    %v916 = vpop.f32.mrb[0].mxu0
    %v917 = vadd.f32 0.0, %v916
    %v918 = vpop.f32.mrb[0].mxu0
    %919 = vmatprep.mubr.f32.mxu0 0.0
    %920 = vmatmul.mubr.f32.gmra.mrb[0].mxu0 %v276
    %v921 = vpop.f32.mrb[0].mxu0
    %v922 = vadd.f32 0.0, %v921
    %v923 = vpop.f32.mrb[0].mxu0
    %924 = vmatprep.mubr.f32.mxu0 0.0
    %925 = vmatmul.mubr.f32.gmra.mrb[0].mxu0 %v279
    %v926 = vpop.f32.mrb[0].mxu0
    %v927 = vadd.f32 0.0, %v926
    %v928 = vpop.f32.mrb[0].mxu0
    %929 = vmatprep.mubr.f32.mxu0 0.0
    %930 = vmatmul.mubr.f32.gmra.mrb[0].mxu0 %v282
    %v931 = vpop.f32.mrb[0].mxu0
    %v932 = vadd.f32 0.0, %v931
    %v933 = vpop.f32.mrb[0].mxu0
    %934 = vmatprep.mubr.f32.mxu0 0.0
    %935 = vmatmul.mubr.f32.gmra.mrb[0].mxu0 %v285
    %v936 = vpop.f32.mrb[0].mxu0
    %v937 = vadd.f32 0.0, %v936
    %v938 = vpop.f32.mrb[0].mxu0
    %939 = vmatprep.mubr.f32.mxu0 0.0
    %940 = vmatmul.mubr.f32.gmra.mrb[0].mxu0 %v288
    %v941 = vpop.f32.mrb[0].mxu0
    %v942 = vadd.f32 0.0, %v941
    %v943 = vpop.f32.mrb[0].mxu0
    %944 = vmatprep.mubr.f32.mxu0 0.0
    %945 = vmatmul.mubr.f32.gmra.mrb[0].mxu0 %v291
    %v946 = vpop.f32.mrb[0].mxu0
    %v947 = vadd.f32 0.0, %v946
    %v948 = vpop.f32.mrb[0].mxu0
    %949 = vmatprep.mubr.f32.mxu0 0.0
    %950 = vmatmul.mubr.f32.gmra.mrb[0].mxu0 %v294
    %v951 = vpop.f32.mrb[0].mxu0
    %v952 = vadd.f32 0.0, %v951
    %v953 = vpop.f32.mrb[0].mxu0
    %954 = vmatprep.mubr.f32.mxu0 0.0
    %955 = vmatmul.mubr.f32.gmra.mrb[0].mxu0 %v297
    %v956 = vpop.f32.mrb[0].mxu0
    %v957 = vadd.f32 0.0, %v956
    %v958 = vpop.f32.mrb[0].mxu0
    %959 = vmatprep.mubr.f32.mxu0 0.0
    %960 = vmatmul.mubr.f32.gmra.mrb[0].mxu0 %v300
    %v961 = vpop.f32.mrb[0].mxu0
    %v962 = vadd.f32 0.0, %v961
    %v963 = vpop.f32.mrb[0].mxu0
    %964 = vmatprep.mubr.f32.mxu0 0.0
    %965 = vmatmul.mubr.f32.gmra.mrb[0].mxu0 %v303
    %v966 = vpop.f32.mrb[0].mxu0
    %v967 = vadd.f32 0.0, %v966
    %v968 = vpop.f32.mrb[0].mxu0
    %969 = vmatprep.mubr.f32.mxu0 0.0
    %970 = vmatmul.mubr.f32.gmra.mrb[0].mxu0 %v306
    %v971 = vpop.f32.mrb[0].mxu0
    %v972 = vadd.f32 0.0, %v971
    %v973 = vpop.f32.mrb[0].mxu0
    %974 = vmatprep.mubr.f32.mxu0 0.0
    %975 = vmatmul.mubr.f32.gmra.mrb[0].mxu0 %v309
    %v976 = vpop.f32.mrb[0].mxu0
    %v977 = vadd.f32 0.0, %v976
    %v978 = vpop.f32.mrb[0].mxu0
    %979 = vmatprep.mubr.f32.mxu0 0.0
    %980 = vmatmul.mubr.f32.gmra.mrb[0].mxu0 %v312
    %v981 = vpop.f32.mrb[0].mxu0
    %v982 = vadd.f32 0.0, %v981
    %v983 = vpop.f32.mrb[0].mxu0
    %984 = vmatprep.mubr.f32.mxu0 0.0
    %985 = vmatmul.mubr.f32.gmra.mrb[0].mxu0 %v315
    %v986 = vpop.f32.mrb[0].mxu0
    %v987 = vadd.f32 0.0, %v986
    %v988 = vpop.f32.mrb[0].mxu0
    %989 = vmatprep.mubr.f32.mxu0 0.0
    %990 = vmatmul.mubr.f32.gmra.mrb[0].mxu0 %v318
    %v991 = vpop.f32.mrb[0].mxu0
    %v992 = vadd.f32 0.0, %v991
    %v993 = vpop.f32.mrb[0].mxu0
    %994 = vmatprep.mubr.f32.mxu0 0.0
    %995 = vmatmul.mubr.f32.gmra.mrb[0].mxu0 %v321
    %v996 = vpop.f32.mrb[0].mxu0
    %v997 = vadd.f32 0.0, %v996
    %v998 = vpop.f32.mrb[0].mxu0
    %999 = vmatprep.mubr.f32.mxu0 0.0
    %1000 = vmatmul.mubr.f32.gmra.mrb[0].mxu0 %v324
    %v1001 = vpop.f32.mrb[0].mxu0
    %v1002 = vadd.f32 0.0, %v1001
    %v1003 = vpop.f32.mrb[0].mxu0
    %1004 = vmatprep.mubr.f32.mxu0 0.0
    %1005 = vmatmul.mubr.f32.gmra.mrb[0].mxu0 %v327
    %v1006 = vpop.f32.mrb[0].mxu0
    %v1007 = vadd.f32 0.0, %v1006
    %v1008 = vpop.f32.mrb[0].mxu0
    %1009 = vmatprep.mubr.f32.mxu0 0.0
    %1010 = vmatmul.mubr.f32.gmra.mrb[0].mxu0 %v330
    %v1011 = vpop.f32.mrb[0].mxu0
    %v1012 = vadd.f32 0.0, %v1011
    %v1013 = vpop.f32.mrb[0].mxu0
    %1014 = vmatprep.mubr.f32.mxu0 0.0
    %1015 = vmatmul.mubr.f32.gmra.mrb[0].mxu0 %v333
    %v1016 = vpop.f32.mrb[0].mxu0
    %v1017 = vadd.f32 0.0, %v1016
    %v1018 = vpop.f32.mrb[0].mxu0
    %1019 = vmatprep.mubr.f32.mxu0 0.0
    %1020 = vmatmul.mubr.f32.gmra.mrb[0].mxu0 %v336
    %v1021 = vpop.f32.mrb[0].mxu0
    %v1022 = vadd.f32 0.0, %v1021
    %v1023 = vpop.f32.mrb[0].mxu0
    %1024 = vmatprep.mubr.f32.mxu0 0.0
    %1025 = vmatmul.mubr.f32.gmra.mrb[0].mxu0 %v339
    %v1026 = vpop.f32.mrb[0].mxu0
    %v1027 = vadd.f32 0.0, %v1026
    %v1028 = vpop.f32.mrb[0].mxu0
    %1029 = vmatprep.mubr.f32.mxu0 0.0
    %1030 = vmatmul.mubr.f32.gmra.mrb[0].mxu0 %v342
    %v1031 = vpop.f32.mrb[0].mxu0
    %v1032 = vadd.f32 0.0, %v1031
    %v1033 = vpop.f32.mrb[0].mxu0
    %1034 = vmatprep.mubr.f32.mxu0 0.0
    %1035 = vmatmul.mubr.f32.gmra.mrb[0].mxu0 %v345
    %v1036 = vpop.f32.mrb[0].mxu0
    %v1037 = vadd.f32 0.0, %v1036
    %v1038 = vpop.f32.mrb[0].mxu0
    %1039 = vmatprep.mubr.f32.mxu0 0.0
    %1040 = vmatmul.mubr.f32.gmra.mrb[0].mxu0 %v348
    %v1041 = vpop.f32.mrb[0].mxu0
    %v1042 = vadd.f32 0.0, %v1041
    %v1043 = vpop.f32.mrb[0].mxu0
    %1044 = vmatprep.mubr.f32.mxu0 0.0
    %1045 = vmatmul.mubr.f32.gmra.mrb[0].mxu0 %v351
    %v1046 = vpop.f32.mrb[0].mxu0
    %v1047 = vadd.f32 0.0, %v1046
    %v1048 = vpop.f32.mrb[0].mxu0
    %1049 = vmatprep.mubr.f32.mxu0 0.0
    %1050 = vmatmul.mubr.f32.gmra.mrb[0].mxu0 %v354
    %v1051 = vpop.f32.mrb[0].mxu0
    %v1052 = vadd.f32 0.0, %v1051
    %v1053 = vpop.f32.mrb[0].mxu0
    %1054 = vmatprep.mubr.f32.mxu0 0.0
    %1055 = vmatmul.mubr.f32.gmra.mrb[0].mxu0 %v357
    %v1056 = vpop.f32.mrb[0].mxu0
    %v1057 = vadd.f32 0.0, %v1056
    %v1058 = vpop.f32.mrb[0].mxu0
    %1059 = vmatprep.mubr.f32.mxu0 0.0
    %1060 = vmatmul.mubr.f32.gmra.mrb[0].mxu0 %v360
    %v1061 = vpop.f32.mrb[0].mxu0
    %v1062 = vadd.f32 0.0, %v1061
    %v1063 = vpop.f32.mrb[0].mxu0
    %1064 = vmatprep.mubr.f32.mxu0 0.0
    %1065 = vmatmul.mubr.f32.gmra.mrb[0].mxu0 %v363
    %v1066 = vpop.f32.mrb[0].mxu0
    %v1067 = vadd.f32 0.0, %v1066
    %v1068 = vpop.f32.mrb[0].mxu0
    %1069 = vmatprep.mubr.f32.mxu0 0.0
    %1070 = vmatmul.mubr.f32.gmra.mrb[0].mxu0 %v366
    %v1071 = vpop.f32.mrb[0].mxu0
    %v1072 = vadd.f32 0.0, %v1071
    %v1073 = vpop.f32.mrb[0].mxu0
    %1074 = vmatprep.mubr.f32.mxu0 0.0
    %1075 = vmatmul.mubr.f32.gmra.mrb[0].mxu0 %v369
    %v1076 = vpop.f32.mrb[0].mxu0
    %v1077 = vadd.f32 0.0, %v1076
    %v1078 = vpop.f32.mrb[0].mxu0
    %1079 = vmatprep.mubr.f32.mxu0 0.0
    %1080 = vmatmul.mubr.f32.gmra.mrb[0].mxu0 %v372
    %v1081 = vpop.f32.mrb[0].mxu0
    %v1082 = vadd.f32 0.0, %v1081
    %v1083 = vpop.f32.mrb[0].mxu0
    %1084 = vmatprep.mubr.f32.mxu0 0.0
    %1085 = vmatmul.mubr.f32.gmra.mrb[0].mxu0 %v375
    %v1086 = vpop.f32.mrb[0].mxu0
    %v1087 = vadd.f32 0.0, %v1086
    %v1088 = vpop.f32.mrb[0].mxu0
    %1089 = vmatprep.mubr.f32.mxu0 0.0
    %1090 = vmatmul.mubr.f32.gmra.mrb[0].mxu0 %v378
    %v1091 = vpop.f32.mrb[0].mxu0
    %v1092 = vadd.f32 0.0, %v1091
    %v1093 = vpop.f32.mrb[0].mxu0
    %1094 = vmatprep.mubr.f32.mxu0 0.0
    %1095 = vmatmul.mubr.f32.gmra.mrb[0].mxu0 %v381
    %v1096 = vpop.f32.mrb[0].mxu0
    %v1097 = vadd.f32 0.0, %v1096
    %v1098 = vpop.f32.mrb[0].mxu0
    %1099 = vmatprep.mubr.f32.mxu0 0.0
    %1100 = vmatmul.mubr.f32.gmra.mrb[0].mxu0 %v384
    %v1101 = vpop.f32.mrb[0].mxu0
    %v1102 = vadd.f32 0.0, %v1101
    %v1103 = vpop.f32.mrb[0].mxu0
    %1104 = vmatprep.mubr.f32.mxu0 0.0
    %1105 = vmatmul.mubr.f32.gmra.mrb[0].mxu0 %v387
    %v1106 = vpop.f32.mrb[0].mxu0
    %v1107 = vadd.f32 0.0, %v1106
    %v1108 = vpop.f32.mrb[0].mxu0
    %1109 = vmatprep.mubr.f32.mxu0 0.0
    %1110 = vmatmul.mubr.f32.gmra.mrb[0].mxu0 %v390
    %v1111 = vpop.f32.mrb[0].mxu0
    %v1112 = vadd.f32 0.0, %v1111
    %v1113 = vpop.f32.mrb[0].mxu0
    %1114 = vmatprep.mubr.f32.mxu0 0.0
    %1115 = vmatmul.mubr.f32.gmra.mrb[0].mxu0 %v393
    %v1116 = vpop.f32.mrb[0].mxu0
    %v1117 = vadd.f32 0.0, %v1116
    %v1118 = vpop.f32.mrb[0].mxu0
    %1119 = vmatprep.mubr.f32.mxu0 0.0
    %1120 = vmatmul.mubr.f32.gmra.mrb[0].mxu0 %v396
    %v1121 = vpop.f32.mrb[0].mxu0
    %v1122 = vadd.f32 0.0, %v1121
    %v1123 = vpop.f32.mrb[0].mxu0
    %1124 = vmatprep.mubr.f32.mxu0 0.0
    %1125 = vmatmul.mubr.f32.gmra.mrb[0].mxu0 %v399
    %v1126 = vpop.f32.mrb[0].mxu0
    %v1127 = vadd.f32 0.0, %v1126
    %v1128 = vpop.f32.mrb[0].mxu0
    %1129 = vmatprep.mubr.f32.mxu0 0.0
    %1130 = vmatmul.mubr.f32.gmra.mrb[0].mxu0 %v402
    %v1131 = vpop.f32.mrb[0].mxu0
    %v1132 = vadd.f32 0.0, %v1131
    %v1133 = vpop.f32.mrb[0].mxu0
    %1134 = vmatprep.mubr.f32.mxu0 0.0
    %1135 = vmatmul.mubr.f32.gmra.mrb[0].mxu0 %v405
    %v1136 = vpop.f32.mrb[0].mxu0
    %v1137 = vadd.f32 0.0, %v1136
    %v1138 = vpop.f32.mrb[0].mxu0
    %1139 = vmatprep.mubr.f32.mxu0 0.0
    %1140 = vmatmul.mubr.f32.gmra.mrb[0].mxu0 %v408
    %v1141 = vpop.f32.mrb[0].mxu0
    %v1142 = vadd.f32 0.0, %v1141
    %v1143 = vpop.f32.mrb[0].mxu0
    %1144 = vmatprep.mubr.f32.mxu0 0.0
    %1145 = vmatmul.mubr.f32.gmra.mrb[0].mxu0 %v411
    %v1146 = vpop.f32.mrb[0].mxu0
    %v1147 = vadd.f32 0.0, %v1146
    %v1148 = vpop.f32.mrb[0].mxu0
    %1149 = vmatprep.mubr.f32.mxu0 0.0
    %1150 = vmatmul.mubr.f32.gmra.mrb[0].mxu0 %v414
    %v1151 = vpop.f32.mrb[0].mxu0
    %v1152 = vadd.f32 0.0, %v1151
    %v1153 = vpop.f32.mrb[0].mxu0
    %1154 = vmatprep.mubr.f32.mxu0 0.0
    %1155 = vmatmul.mubr.f32.gmra.mrb[0].mxu0 %v417
    %v1156 = vpop.f32.mrb[0].mxu0
    %v1157 = vadd.f32 0.0, %v1156
    %v1158 = vpop.f32.mrb[0].mxu0
    %1159 = vmatprep.mubr.f32.mxu0 0.0
    %1160 = vmatmul.mubr.f32.gmra.mrb[0].mxu0 %v420
    %v1161 = vpop.f32.mrb[0].mxu0
    %v1162 = vadd.f32 0.0, %v1161
    %v1163 = vpop.f32.mrb[0].mxu0
    %1164 = vmatprep.mubr.f32.mxu0 0.0
    %1165 = vmatmul.mubr.f32.gmra.mrb[0].mxu0 %v423
    %v1166 = vpop.f32.mrb[0].mxu0
    %v1167 = vadd.f32 0.0, %v1166
    %v1168 = vpop.f32.mrb[0].mxu0
    %1169 = vmatprep.mubr.f32.mxu0 0.0
    %1170 = vmatmul.mubr.f32.gmra.mrb[0].mxu0 %v426
    %v1171 = vpop.f32.mrb[0].mxu0
    %v1172 = vadd.f32 0.0, %v1171
    %v1173 = vpop.f32.mrb[0].mxu0
    %1174 = vmatprep.mubr.f32.mxu0 0.0
    %1175 = vmatmul.mubr.f32.gmra.mrb[0].mxu0 %v429
    %v1176 = vpop.f32.mrb[0].mxu0
    %v1177 = vadd.f32 0.0, %v1176
    %v1178 = vpop.f32.mrb[0].mxu0
    %1179 = vmatprep.mubr.f32.mxu0 0.0
    %1180 = vmatmul.mubr.f32.gmra.mrb[0].mxu0 %v432
    %v1181 = vpop.f32.mrb[0].mxu0
    %v1182 = vadd.f32 0.0, %v1181
    %v1183 = vpop.f32.mrb[0].mxu0
    %1184 = vmatprep.mubr.f32.mxu0 0.0
    %1185 = vmatmul.mubr.f32.gmra.mrb[0].mxu0 %v435
    %v1186 = vpop.f32.mrb[0].mxu0
    %v1187 = vadd.f32 0.0, %v1186
    %v1188 = vpop.f32.mrb[0].mxu0
    %1189 = vmatprep.mubr.f32.mxu0 0.0
    %1190 = vmatmul.mubr.f32.gmra.mrb[0].mxu0 %v438
    %v1191 = vpop.f32.mrb[0].mxu0
    %v1192 = vadd.f32 0.0, %v1191
    %v1193 = vpop.f32.mrb[0].mxu0
    %1194 = vmatprep.mubr.f32.mxu0 0.0
    %1195 = vmatmul.mubr.f32.gmra.mrb[0].mxu0 %v441
    %v1196 = vpop.f32.mrb[0].mxu0
    %v1197 = vadd.f32 0.0, %v1196
    %v1198 = vpop.f32.mrb[0].mxu0
    %1199 = vmatprep.mubr.f32.mxu0 0.0
    %1200 = vmatmul.mubr.f32.gmra.mrb[0].mxu0 %v444
    %v1201 = vpop.f32.mrb[0].mxu0
    %v1202 = vadd.f32 0.0, %v1201
    %v1203 = vpop.f32.mrb[0].mxu0
    %1204 = vmatprep.mubr.f32.mxu0 0.0
    %1205 = vmatmul.mubr.f32.gmra.mrb[0].mxu0 %v447
    %v1206 = vpop.f32.mrb[0].mxu0
    %v1207 = vadd.f32 0.0, %v1206
    %v1208 = vpop.f32.mrb[0].mxu0
    %1209 = vmatprep.mubr.f32.mxu0 0.0
    %1210 = vmatmul.mubr.f32.gmra.mrb[0].mxu0 %v450
    %v1211 = vpop.f32.mrb[0].mxu0
    %v1212 = vadd.f32 0.0, %v1211
    %v1213 = vpop.f32.mrb[0].mxu0
    %1214 = vmatprep.mubr.f32.mxu0 0.0
    %1215 = vmatmul.mubr.f32.gmra.mrb[0].mxu0 %v453
    %v1216 = vpop.f32.mrb[0].mxu0
    %v1217 = vadd.f32 0.0, %v1216
    %v1218 = vpop.f32.mrb[0].mxu0
    %1219 = vmatprep.mubr.f32.mxu0 0.0
    %1220 = vmatmul.mubr.f32.gmra.mrb[0].mxu0 %v456
    %v1221 = vpop.f32.mrb[0].mxu0
    %v1222 = vadd.f32 0.0, %v1221
    %v1223 = vpop.f32.mrb[0].mxu0
    %1224 = vmatprep.mubr.f32.mxu0 0.0
    %1225 = vmatmul.mubr.f32.gmra.mrb[0].mxu0 %v459
    %v1226 = vpop.f32.mrb[0].mxu0
    %v1227 = vadd.f32 0.0, %v1226
    %v1228 = vpop.f32.mrb[0].mxu0
    %1229 = vmatprep.mubr.f32.mxu0 0.0
    %1230 = vmatmul.mubr.f32.gmra.mrb[0].mxu0 %v462
    %v1231 = vpop.f32.mrb[0].mxu0
    %v1232 = vadd.f32 0.0, %v1231
    %v1233 = vpop.f32.mrb[0].mxu0
    %1234 = vmatprep.mubr.f32.mxu0 0.0
    %1235 = vmatmul.mubr.f32.gmra.mrb[0].mxu0 %v465
    %v1236 = vpop.f32.mrb[0].mxu0
    %v1237 = vadd.f32 0.0, %v1236
    %v1238 = vpop.f32.mrb[0].mxu0
    %1239 = vmatprep.mubr.f32.mxu0 0.0
    %1240 = vmatmul.mubr.f32.gmra.mrb[0].mxu0 %v468
    %v1241 = vpop.f32.mrb[0].mxu0
    %v1242 = vadd.f32 0.0, %v1241
    %v1243 = vpop.f32.mrb[0].mxu0
    %1244 = vmatprep.mubr.f32.mxu0 0.0
    %1245 = vmatmul.mubr.f32.gmra.mrb[0].mxu0 %v471
    %v1246 = vpop.f32.mrb[0].mxu0
    %v1247 = vadd.f32 0.0, %v1246
    %v1248 = vpop.f32.mrb[0].mxu0
    %1249 = vmatprep.mubr.f32.mxu0 0.0
    %1250 = vmatmul.mubr.f32.gmra.mrb[0].mxu0 %v474
    %v1251 = vpop.f32.mrb[0].mxu0
    %v1252 = vadd.f32 0.0, %v1251
    %v1253 = vpop.f32.mrb[0].mxu0
    %1254 = vmatprep.mubr.f32.mxu0 0.0
    %1255 = vmatmul.mubr.f32.gmra.mrb[0].mxu0 %v477
    %v1256 = vpop.f32.mrb[0].mxu0
    %v1257 = vadd.f32 0.0, %v1256
    %v1258 = vpop.f32.mrb[0].mxu0
    %1259 = vmatprep.mubr.f32.mxu0 0.0
    %1260 = vmatmul.mubr.f32.gmra.mrb[0].mxu0 %v480
    %v1261 = vpop.f32.mrb[0].mxu0
    %v1262 = vadd.f32 0.0, %v1261
    %v1263 = vpop.f32.mrb[0].mxu0
    %1264 = vmatprep.mubr.f32.mxu0 0.0
    %1265 = vmatmul.mubr.f32.gmra.mrb[0].mxu0 %v483
    %v1266 = vpop.f32.mrb[0].mxu0
    %v1267 = vadd.f32 0.0, %v1266
    %v1268 = vpop.f32.mrb[0].mxu0
    %1269 = vmatprep.mubr.f32.mxu0 0.0
    %1270 = vmatmul.mubr.f32.gmra.mrb[0].mxu0 %v486
    %v1271 = vpop.f32.mrb[0].mxu0
    %v1272 = vadd.f32 0.0, %v1271
    %v1273 = vpop.f32.mrb[0].mxu0
    %1274 = vmatprep.mubr.f32.mxu0 0.0
    %1275 = vmatmul.mubr.f32.gmra.mrb[0].mxu0 %v489
    %v1276 = vpop.f32.mrb[0].mxu0
    %v1277 = vadd.f32 0.0, %v1276
    %v1278 = vpop.f32.mrb[0].mxu0
    %1279 = vmatprep.mubr.f32.mxu0 0.0
    %1280 = vmatmul.mubr.f32.gmra.mrb[0].mxu0 %v492
    %v1281 = vpop.f32.mrb[0].mxu0
    %v1282 = vadd.f32 0.0, %v1281
    %v1283 = vpop.f32.mrb[0].mxu0
    %1284 = vmatprep.mubr.f32.mxu0 0.0
    %1285 = vmatmul.mubr.f32.gmra.mrb[0].mxu0 %v495
    %v1286 = vpop.f32.mrb[0].mxu0
    %v1287 = vadd.f32 0.0, %v1286
    %v1288 = vpop.f32.mrb[0].mxu0
    %1289 = vmatprep.mubr.f32.mxu0 0.0
    %1290 = vmatmul.mubr.f32.gmra.mrb[0].mxu0 %v498
    %v1291 = vpop.f32.mrb[0].mxu0
    %v1292 = vadd.f32 0.0, %v1291
    %v1293 = vpop.f32.mrb[0].mxu0
    %1294 = vmatprep.mubr.f32.mxu0 0.0
    %1295 = vmatmul.mubr.f32.gmra.mrb[0].mxu0 %v501
    %v1296 = vpop.f32.mrb[0].mxu0
    %v1297 = vadd.f32 0.0, %v1296
    %v1298 = vpop.f32.mrb[0].mxu0
    %1299 = vmatprep.mubr.f32.mxu0 0.0
    %1300 = vmatmul.mubr.f32.gmra.mrb[0].mxu0 %v504
    %v1301 = vpop.f32.mrb[0].mxu0
    %v1302 = vadd.f32 0.0, %v1301
    %v1303 = vpop.f32.mrb[0].mxu0
    %1304 = vmatprep.mubr.f32.mxu0 0.0
    %1305 = vmatmul.mubr.f32.gmra.mrb[0].mxu0 %v507
    %v1306 = vpop.f32.mrb[0].mxu0
    %v1307 = vadd.f32 0.0, %v1306
    %v1308 = vpop.f32.mrb[0].mxu0
    %1309 = vmatprep.mubr.f32.mxu0 0.0
    %1310 = vmatmul.mubr.f32.gmra.mrb[0].mxu0 %v510
    %v1311 = vpop.f32.mrb[0].mxu0
    %v1312 = vadd.f32 0.0, %v1311
    %v1313 = vpop.f32.mrb[0].mxu0
    %1314 = vmatprep.mubr.f32.mxu0 0.0
    %1315 = vmatmul.mubr.f32.gmra.mrb[0].mxu0 %v513
    %v1316 = vpop.f32.mrb[0].mxu0
    %v1317 = vadd.f32 0.0, %v1316
    %v1318 = vpop.f32.mrb[0].mxu0
    %1319 = vmatprep.mubr.f32.mxu0 0.0
    %1320 = vmatmul.mubr.f32.gmra.mrb[0].mxu0 %v516
    %v1321 = vpop.f32.mrb[0].mxu0
    %v1322 = vadd.f32 0.0, %v1321
    %v1323 = vpop.f32.mrb[0].mxu0
    %1324 = vmatprep.mubr.f32.mxu0 0.0
    %1325 = vmatmul.mubr.f32.gmra.mrb[0].mxu0 %v519
    %v1326 = vpop.f32.mrb[0].mxu0
    %v1327 = vadd.f32 0.0, %v1326
    %v1328 = vpop.f32.mrb[0].mxu0
    %1329 = vmatprep.mubr.f32.mxu0 0.0
    %1330 = vmatmul.mubr.f32.gmra.mrb[0].mxu0 %v522
    %v1331 = vpop.f32.mrb[0].mxu0
    %v1332 = vadd.f32 0.0, %v1331
    %v1333 = vpop.f32.mrb[0].mxu0
    %1334 = vmatprep.mubr.f32.mxu0 0.0
    %1335 = vmatmul.mubr.f32.gmra.mrb[0].mxu0 %v525
    %v1336 = vpop.f32.mrb[0].mxu0
    %v1337 = vadd.f32 0.0, %v1336
    %v1338 = vpop.f32.mrb[0].mxu0
    %1339 = vmatprep.mubr.f32.mxu0 0.0
    %1340 = vmatmul.mubr.f32.gmra.mrb[0].mxu0 %v528
    %v1341 = vpop.f32.mrb[0].mxu0
    %v1342 = vadd.f32 0.0, %v1341
    %v1343 = vpop.f32.mrb[0].mxu0
    %1344 = vmatprep.mubr.f32.mxu0 0.0
    %1345 = vmatmul.mubr.f32.gmra.mrb[0].mxu0 %v531
    %v1346 = vpop.f32.mrb[0].mxu0
    %v1347 = vadd.f32 0.0, %v1346
    %v1348 = vpop.f32.mrb[0].mxu0
    %1349 = vmatprep.mubr.f32.mxu0 0.0
    %1350 = vmatmul.mubr.f32.gmra.mrb[0].mxu0 %v534
    %v1351 = vpop.f32.mrb[0].mxu0
    %v1352 = vadd.f32 0.0, %v1351
    %v1353 = vpop.f32.mrb[0].mxu0
    %1354 = vmatprep.mubr.f32.mxu0 0.0
    %1355 = vmatmul.mubr.f32.gmra.mrb[0].mxu0 %v537
    %v1356 = vpop.f32.mrb[0].mxu0
    %v1357 = vadd.f32 0.0, %v1356
    %v1358 = vpop.f32.mrb[0].mxu0
    %1359 = vmatprep.mubr.f32.mxu0 0.0
    %1360 = vmatmul.mubr.f32.gmra.mrb[0].mxu0 %v540
    %v1361 = vpop.f32.mrb[0].mxu0
    %v1362 = vadd.f32 0.0, %v1361
    %v1363 = vpop.f32.mrb[0].mxu0
    %1364 = vmatprep.mubr.f32.mxu0 0.0
    %1365 = vmatmul.mubr.f32.gmra.mrb[0].mxu0 %v543
    %v1366 = vpop.f32.mrb[0].mxu0
    %v1367 = vadd.f32 0.0, %v1366
    %v1368 = vpop.f32.mrb[0].mxu0
    %1369 = vmatprep.mubr.f32.mxu0 0.0
    %1370 = vmatmul.mubr.f32.gmra.mrb[0].mxu0 %v546
    %v1371 = vpop.f32.mrb[0].mxu0
    %v1372 = vadd.f32 0.0, %v1371
    %v1373 = vpop.f32.mrb[0].mxu0
    %1374 = vmatprep.mubr.f32.mxu0 0.0
    %1375 = vmatmul.mubr.f32.gmra.mrb[0].mxu0 %v549
    %v1376 = vpop.f32.mrb[0].mxu0
    %v1377 = vadd.f32 0.0, %v1376
    %v1378 = vpop.f32.mrb[0].mxu0
    %1379 = vmatprep.mubr.f32.mxu0 0.0
    %1380 = vmatmul.mubr.f32.gmra.mrb[0].mxu0 %v552
    %v1381 = vpop.f32.mrb[0].mxu0
    %v1382 = vadd.f32 0.0, %v1381
    %v1383 = vpop.f32.mrb[0].mxu0
    %1384 = vmatprep.mubr.f32.mxu0 0.0
    %1385 = vmatmul.mubr.f32.gmra.mrb[0].mxu0 %v555
    %v1386 = vpop.f32.mrb[0].mxu0
    %v1387 = vadd.f32 0.0, %v1386
    %v1388 = vpop.f32.mrb[0].mxu0
    %1389 = vmatprep.mubr.f32.mxu0 0.0
    %1390 = vmatmul.mubr.f32.gmra.mrb[0].mxu0 %v558
    %v1391 = vpop.f32.mrb[0].mxu0
    %v1392 = vadd.f32 0.0, %v1391
    %v1393 = vpop.f32.mrb[0].mxu0
    %1394 = vmatprep.mubr.f32.mxu0 0.0
    %1395 = vmatmul.mubr.f32.gmra.mrb[0].mxu0 %v561
    %v1396 = vpop.f32.mrb[0].mxu0
    %v1397 = vadd.f32 0.0, %v1396
    %v1398 = vpop.f32.mrb[0].mxu0
    %1399 = vmatprep.mubr.f32.mxu0 0.0
    %1400 = vmatmul.mubr.f32.gmra.mrb[0].mxu0 %v564
    %v1401 = vpop.f32.mrb[0].mxu0
    %v1402 = vadd.f32 0.0, %v1401
    %v1403 = vpop.f32.mrb[0].mxu0
    %1404 = vmatprep.mubr.f32.mxu0 0.0
    %1405 = vmatmul.mubr.f32.gmra.mrb[0].mxu0 %v567
    %v1406 = vpop.f32.mrb[0].mxu0
    %v1407 = vadd.f32 0.0, %v1406
    %v1408 = vpop.f32.mrb[0].mxu0
    %1409 = vmatprep.mubr.f32.mxu0 0.0
    %1410 = vmatmul.mubr.f32.gmra.mrb[0].mxu0 %v570
    %v1411 = vpop.f32.mrb[0].mxu0
    %v1412 = vadd.f32 0.0, %v1411
    %v1413 = vpop.f32.mrb[0].mxu0
    %1414 = vmatprep.mubr.f32.mxu0 0.0
    %1415 = vmatmul.mubr.f32.gmra.mrb[0].mxu0 %v573
    %v1416 = vpop.f32.mrb[0].mxu0
    %v1417 = vadd.f32 0.0, %v1416
    %v1418 = vpop.f32.mrb[0].mxu0
    %1419 = vmatprep.mubr.f32.mxu0 0.0
    %1420 = vmatmul.mubr.f32.gmra.mrb[0].mxu0 %v576
    %v1421 = vpop.f32.mrb[0].mxu0
    %v1422 = vadd.f32 0.0, %v1421
    %v1423 = vpop.f32.mrb[0].mxu0
    %1424 = vmatprep.mubr.f32.mxu0 0.0
    %1425 = vmatmul.mubr.f32.gmra.mrb[0].mxu0 %v579
    %v1426 = vpop.f32.mrb[0].mxu0
    %v1427 = vadd.f32 0.0, %v1426
    %v1428 = vpop.f32.mrb[0].mxu0
    %1429 = vmatprep.mubr.f32.mxu0 0.0
    %1430 = vmatmul.mubr.f32.gmra.mrb[0].mxu0 %v582
    %v1431 = vpop.f32.mrb[0].mxu0
    %v1432 = vadd.f32 0.0, %v1431
    %v1433 = vpop.f32.mrb[0].mxu0
    %1434 = vmatprep.mubr.f32.mxu0 0.0
    %1435 = vmatmul.mubr.f32.gmra.mrb[0].mxu0 %v585
    %v1436 = vpop.f32.mrb[0].mxu0
    %v1437 = vadd.f32 0.0, %v1436
    %v1438 = vpop.f32.mrb[0].mxu0
    %1439 = vmatprep.mubr.f32.mxu0 0.0
    %1440 = vmatmul.mubr.f32.gmra.mrb[0].mxu0 %v588
    %v1441 = vpop.f32.mrb[0].mxu0
    %v1442 = vadd.f32 0.0, %v1441
    %v1443 = vpop.f32.mrb[0].mxu0
    %1444 = vmatprep.mubr.f32.mxu0 0.0
    %1445 = vmatmul.mubr.f32.gmra.mrb[0].mxu0 %v591
    %v1446 = vpop.f32.mrb[0].mxu0
    %v1447 = vadd.f32 0.0, %v1446
    %v1448 = vpop.f32.mrb[0].mxu0
    %1449 = vmatprep.mubr.f32.mxu0 0.0
    %1450 = vmatmul.mubr.f32.gmra.mrb[0].mxu0 %v594
    %v1451 = vpop.f32.mrb[0].mxu0
    %v1452 = vadd.f32 0.0, %v1451
    %v1453 = vpop.f32.mrb[0].mxu0
    %1454 = vmatprep.mubr.f32.mxu0 0.0
    %1455 = vmatmul.mubr.f32.gmra.mrb[0].mxu0 %v597
    %v1456 = vpop.f32.mrb[0].mxu0
    %v1457 = vadd.f32 0.0, %v1456
    %v1458 = vpop.f32.mrb[0].mxu0
    %1459 = vmatprep.mubr.f32.mxu0 0.0
    %1460 = vmatmul.mubr.f32.gmra.mrb[0].mxu0 %v600
    %v1461 = vpop.f32.mrb[0].mxu0
    %v1462 = vadd.f32 0.0, %v1461
    %v1463 = vpop.f32.mrb[0].mxu0
    %1464 = vmatprep.mubr.f32.mxu0 0.0
    %1465 = vmatmul.mubr.f32.gmra.mrb[0].mxu0 %v603
    %v1466 = vpop.f32.mrb[0].mxu0
    %v1467 = vadd.f32 0.0, %v1466
    %v1468 = vpop.f32.mrb[0].mxu0
    %1469 = vmatprep.mubr.f32.mxu0 0.0
    %1470 = vmatmul.mubr.f32.gmra.mrb[0].mxu0 %v606
    %v1471 = vpop.f32.mrb[0].mxu0
    %v1472 = vadd.f32 0.0, %v1471
    %v1473 = vpop.f32.mrb[0].mxu0
    %1474 = vmatprep.mubr.f32.mxu0 0.0
    %1475 = vmatmul.mubr.f32.gmra.mrb[0].mxu0 %v609
    %v1476 = vpop.f32.mrb[0].mxu0
    %v1477 = vadd.f32 0.0, %v1476
    %v1478 = vpop.f32.mrb[0].mxu0
    %1479 = vmatprep.mubr.f32.mxu0 0.0
    %1480 = vmatmul.mubr.f32.gmra.mrb[0].mxu0 %v612
    %v1481 = vpop.f32.mrb[0].mxu0
    %v1482 = vadd.f32 0.0, %v1481
    %v1483 = vpop.f32.mrb[0].mxu0
    %1484 = vmatprep.mubr.f32.mxu0 0.0
    %1485 = vmatmul.mubr.f32.gmra.mrb[0].mxu0 %v615
    %v1486 = vpop.f32.mrb[0].mxu0
    %v1487 = vadd.f32 0.0, %v1486
    %v1488 = vpop.f32.mrb[0].mxu0
    %1489 = vmatprep.mubr.f32.mxu0 0.0
    %1490 = vmatmul.mubr.f32.gmra.mrb[0].mxu0 %v618
    %v1491 = vpop.f32.mrb[0].mxu0
    %v1492 = vadd.f32 0.0, %v1491
    %v1493 = vpop.f32.mrb[0].mxu0
    %1494 = vmatprep.mubr.f32.mxu0 0.0
    %1495 = vmatmul.mubr.f32.gmra.mrb[0].mxu0 %v621
    %v1496 = vpop.f32.mrb[0].mxu0
    %v1497 = vadd.f32 0.0, %v1496
    %v1498 = vpop.f32.mrb[0].mxu0
    %1499 = vmatprep.mubr.f32.mxu0 0.0
    %1500 = vmatmul.mubr.f32.gmra.mrb[0].mxu0 %v624
    %v1501 = vpop.f32.mrb[0].mxu0
    %v1502 = vadd.f32 0.0, %v1501
    %v1503 = vpop.f32.mrb[0].mxu0
    %1504 = vmatprep.mubr.f32.mxu0 0.0
    %1505 = vmatmul.mubr.f32.gmra.mrb[0].mxu0 %v627
    %v1506 = vpop.f32.mrb[0].mxu0
    %v1507 = vadd.f32 0.0, %v1506
    %v1508 = vpop.f32.mrb[0].mxu0
    %1509 = vmatprep.mubr.f32.mxu0 0.0
    %1510 = vmatmul.mubr.f32.gmra.mrb[0].mxu0 %v630
    %v1511 = vpop.f32.mrb[0].mxu0
    %v1512 = vadd.f32 0.0, %v1511
    %v1513 = vpop.f32.mrb[0].mxu0
    %1514 = vmatprep.mubr.f32.mxu0 0.0
    %1515 = vmatmul.mubr.f32.gmra.mrb[0].mxu0 %v633
    %v1516 = vpop.f32.mrb[0].mxu0
    %v1517 = vadd.f32 0.0, %v1516
    %v1518 = vpop.f32.mrb[0].mxu0
    %1519 = vmatprep.mubr.f32.mxu0 0.0
    %1520 = vmatmul.mubr.f32.gmra.mrb[0].mxu0 %v636
    %v1521 = vpop.f32.mrb[0].mxu0
    %v1522 = vadd.f32 0.0, %v1521
    %v1523 = vpop.f32.mrb[0].mxu0
    %1524 = vmatprep.mubr.f32.mxu0 0.0
    %1525 = vmatmul.mubr.f32.gmra.mrb[0].mxu0 %v639
    %v1526 = vpop.f32.mrb[0].mxu0
    %v1527 = vadd.f32 0.0, %v1526
    %v1528 = vpop.f32.mrb[0].mxu0
    %1529 = vmatprep.mubr.f32.mxu0 0.0
    %1530 = vmatmul.mubr.f32.gmra.mrb[0].mxu0 %v642
    %v1531 = vpop.f32.mrb[0].mxu0
    %v1532 = vadd.f32 0.0, %v1531
    %v1533 = vpop.f32.mrb[0].mxu0
    %1534 = vmatprep.mubr.f32.mxu0 0.0
    %1535 = vmatmul.mubr.f32.gmra.mrb[0].mxu0 %v645
    %v1536 = vpop.f32.mrb[0].mxu0
    %v1537 = vadd.f32 0.0, %v1536
    %v1538 = vpop.f32.mrb[0].mxu0
    %1539 = vmatprep.mubr.f32.mxu0 0.0
    %1540 = vmatmul.mubr.f32.gmra.mrb[0].mxu0 %v648
    %v1541 = vpop.f32.mrb[0].mxu0
    %v1542 = vadd.f32 0.0, %v1541
    %v1543 = vpop.f32.mrb[0].mxu0
    %1544 = vmatprep.mubr.f32.mxu0 0.0
    %1545 = vmatmul.mubr.f32.gmra.mrb[0].mxu0 %v651
    %v1546 = vpop.f32.mrb[0].mxu0
    %v1547 = vadd.f32 0.0, %v1546
    %v1548 = vpop.f32.mrb[0].mxu0
    %1549 = vmatprep.mubr.f32.mxu0 0.0
    %1550 = vmatmul.mubr.f32.gmra.mrb[0].mxu0 %v654
    %v1551 = vpop.f32.mrb[0].mxu0
    %v1552 = vadd.f32 0.0, %v1551
    %v1553 = vpop.f32.mrb[0].mxu0
    %1554 = vmatprep.mubr.f32.mxu0 0.0
    %1555 = vmatmul.mubr.f32.gmra.mrb[0].mxu0 %v657
    %v1556 = vpop.f32.mrb[0].mxu0
    %v1557 = vadd.f32 0.0, %v1556
    %v1558 = vpop.f32.mrb[0].mxu0
    %1559 = vmatprep.mubr.f32.mxu0 0.0
    %1560 = vmatmul.mubr.f32.gmra.mrb[0].mxu0 %v660
    %v1561 = vpop.f32.mrb[0].mxu0
    %v1562 = vadd.f32 0.0, %v1561
    %v1563 = vpop.f32.mrb[0].mxu0
    %1564 = vmatprep.mubr.f32.mxu0 0.0
    %1565 = vmatmul.mubr.f32.gmra.mrb[0].mxu0 %v663
    %v1566 = vpop.f32.mrb[0].mxu0
    %v1567 = vadd.f32 0.0, %v1566
    %v1568 = vpop.f32.mrb[0].mxu0
    %1569 = vmatprep.mubr.f32.mxu0 0.0
    %1570 = vmatmul.mubr.f32.gmra.mrb[0].mxu0 %v666
    %v1571 = vpop.f32.mrb[0].mxu0
    %v1572 = vadd.f32 0.0, %v1571
    %v1573 = vpop.f32.mrb[0].mxu0
    %1574 = vmatprep.mubr.f32.mxu0 0.0
    %1575 = vmatmul.mubr.f32.gmra.mrb[0].mxu0 %v669
    %v1576 = vpop.f32.mrb[0].mxu0
    %v1577 = vadd.f32 0.0, %v1576
    %v1578 = vpop.f32.mrb[0].mxu0
    %1579 = vmatprep.mubr.f32.mxu0 0.0
    %1580 = vmatmul.mubr.f32.gmra.mrb[0].mxu0 %v672
    %v1581 = vpop.f32.mrb[0].mxu0
    %v1582 = vadd.f32 0.0, %v1581
    %v1583 = vpop.f32.mrb[0].mxu0
    %1584 = vmatprep.mubr.f32.mxu0 0.0
    %1585 = vmatmul.mubr.f32.gmra.mrb[0].mxu0 %v675
    %v1586 = vpop.f32.mrb[0].mxu0
    %v1587 = vadd.f32 0.0, %v1586
    %v1588 = vpop.f32.mrb[0].mxu0
    %1589 = vmatprep.mubr.f32.mxu0 0.0
    %1590 = vmatmul.mubr.f32.gmra.mrb[0].mxu0 %v678
    %v1591 = vpop.f32.mrb[0].mxu0
    %v1592 = vadd.f32 0.0, %v1591
    %v1593 = vpop.f32.mrb[0].mxu0
    %1594 = vmatprep.mubr.f32.mxu0 0.0
    %1595 = vmatmul.mubr.f32.gmra.mrb[0].mxu0 %v681
    %v1596 = vpop.f32.mrb[0].mxu0
    %v1597 = vadd.f32 0.0, %v1596
    %v1598 = vpop.f32.mrb[0].mxu0
    %1599 = vmatprep.mubr.f32.mxu0 0.0
    %1600 = vmatmul.mubr.f32.gmra.mrb[0].mxu0 %v684
    %v1601 = vpop.f32.mrb[0].mxu0
    %v1602 = vadd.f32 0.0, %v1601
    %v1603 = vpop.f32.mrb[0].mxu0
    %1604 = vmatprep.mubr.f32.mxu0 0.0
    %1605 = vmatmul.mubr.f32.gmra.mrb[0].mxu0 %v687
    %v1606 = vpop.f32.mrb[0].mxu0
    %v1607 = vadd.f32 0.0, %v1606
    %v1608 = vpop.f32.mrb[0].mxu0
    %1609 = vmatprep.mubr.f32.mxu0 0.0
    %1610 = vmatmul.mubr.f32.gmra.mrb[0].mxu0 %v690
    %v1611 = vpop.f32.mrb[0].mxu0
    %v1612 = vadd.f32 0.0, %v1611
    %v1613 = vpop.f32.mrb[0].mxu0
    %1614 = vmatprep.mubr.f32.mxu0 0.0
    %1615 = vmatmul.mubr.f32.gmra.mrb[0].mxu0 %v693
    %v1616 = vpop.f32.mrb[0].mxu0
    %v1617 = vadd.f32 0.0, %v1616
    %v1618 = vpop.f32.mrb[0].mxu0
    %1619 = vmatprep.mubr.f32.mxu0 0.0
    %1620 = vmatmul.mubr.f32.gmra.mrb[0].mxu0 %v696
    %v1621 = vpop.f32.mrb[0].mxu0
    %v1622 = vadd.f32 0.0, %v1621
    %v1623 = vpop.f32.mrb[0].mxu0
    %1624 = vmatprep.mubr.f32.mxu0 0.0
    %1625 = vmatmul.mubr.f32.gmra.mrb[0].mxu0 %v699
    %v1626 = vpop.f32.mrb[0].mxu0
    %v1627 = vadd.f32 0.0, %v1626
    %v1628 = vpop.f32.mrb[0].mxu0
    %1629 = vmatprep.mubr.f32.mxu0 0.0
    %1630 = vmatmul.mubr.f32.gmra.mrb[0].mxu0 %v702
    %v1631 = vpop.f32.mrb[0].mxu0
    %v1632 = vadd.f32 0.0, %v1631
    %v1633 = vpop.f32.mrb[0].mxu0
    %1634 = vmatprep.mubr.f32.mxu0 0.0
    %1635 = vmatmul.mubr.f32.gmra.mrb[0].mxu0 %v705
    %v1636 = vpop.f32.mrb[0].mxu0
    %v1637 = vadd.f32 0.0, %v1636
    %v1638 = vpop.f32.mrb[0].mxu0
    %1639 = vmatprep.mubr.f32.mxu0 0.0
    %1640 = vmatmul.mubr.f32.gmra.mrb[0].mxu0 %v708
    %v1641 = vpop.f32.mrb[0].mxu0
    %v1642 = vadd.f32 0.0, %v1641
    %v1643 = vpop.f32.mrb[0].mxu0
    %1644 = vmatprep.mubr.f32.mxu0 0.0
    %1645 = vmatmul.mubr.f32.gmra.mrb[0].mxu0 %v711
    %v1646 = vpop.f32.mrb[0].mxu0
    %v1647 = vadd.f32 0.0, %v1646
    %v1648 = vpop.f32.mrb[0].mxu0
    %1649 = vmatprep.mubr.f32.mxu0 0.0
    %1650 = vmatmul.mubr.f32.gmra.mrb[0].mxu0 %v714
    %v1651 = vpop.f32.mrb[0].mxu0
    %v1652 = vadd.f32 0.0, %v1651
    %v1653 = vpop.f32.mrb[0].mxu0
    %1654 = vmatprep.mubr.f32.mxu0 0.0
    %1655 = vmatmul.mubr.f32.gmra.mrb[0].mxu0 %v717
    %v1656 = vpop.f32.mrb[0].mxu0
    %v1657 = vadd.f32 0.0, %v1656
    %v1658 = vpop.f32.mrb[0].mxu0
    %1659 = vmatprep.mubr.f32.mxu0 0.0
    %1660 = vmatmul.mubr.f32.gmra.mrb[0].mxu0 %v720
    %v1661 = vpop.f32.mrb[0].mxu0
    %v1662 = vadd.f32 0.0, %v1661
    %v1663 = vpop.f32.mrb[0].mxu0
    %1664 = vmatprep.mubr.f32.mxu0 0.0
    %1665 = vmatmul.mubr.f32.gmra.mrb[0].mxu0 %v723
    %v1666 = vpop.f32.mrb[0].mxu0
    %v1667 = vadd.f32 0.0, %v1666
    %v1668 = vpop.f32.mrb[0].mxu0
    %1669 = vmatprep.mubr.f32.mxu0 0.0
    %1670 = vmatmul.mubr.f32.gmra.mrb[0].mxu0 %v726
    %v1671 = vpop.f32.mrb[0].mxu0
    %v1672 = vadd.f32 0.0, %v1671
    %v1673 = vpop.f32.mrb[0].mxu0
    %1674 = vmatprep.mubr.f32.mxu0 0.0
    %1675 = vmatmul.mubr.f32.gmra.mrb[0].mxu0 %v729
    %v1676 = vpop.f32.mrb[0].mxu0
    %v1677 = vadd.f32 0.0, %v1676
    %v1678 = vpop.f32.mrb[0].mxu0
    %1679 = vdwg.mxu0
    %v1680 = vld [vmem:[%s4] sm:$0xff]
    %v1681 = vld [vmem:[%s4 + $0x8] sm:$0xff]
    %v1682 = vld [vmem:[%s4 + $0x10] sm:$0xff]
    %v1683 = vld [vmem:[%s4 + $0x18] sm:$0xff]
    %v1684 = vld [vmem:[%s4 + $0x20] sm:$0xff]
    %v1685 = vld [vmem:[%s4 + $0x28] sm:$0xff]
    %v1686 = vld [vmem:[%s4 + $0x30] sm:$0xff]
    %v1687 = vld [vmem:[%s4 + $0x38] sm:$0xff]
    %v1688 = vld [vmem:[%s0] ss:$4 sm:$0x3]
    %1690 = vset.pattern.permute.xlu0 0
    %1691 = vperm.xlu0 %1690, %v1680
    %v1692 = vpop.permute.xlu0 %1691
    %1695 = vset.pattern.permute.xlu0 0
    %1696 = vperm.xlu0 %1695, %v1681
    %v1697 = vpop.permute.xlu0 %1696
    %1700 = vset.pattern.permute.xlu0 0
    %1701 = vperm.xlu0 %1700, %v1682
    %v1702 = vpop.permute.xlu0 %1701
    %1705 = vset.pattern.permute.xlu0 0
    %1706 = vperm.xlu0 %1705, %v1683
    %v1707 = vpop.permute.xlu0 %1706
    %1710 = vset.pattern.permute.xlu0 0
    %1711 = vperm.xlu0 %1710, %v1684
    %v1712 = vpop.permute.xlu0 %1711
    %1715 = vset.pattern.permute.xlu0 0
    %1716 = vperm.xlu0 %1715, %v1685
    %v1717 = vpop.permute.xlu0 %1716
    %1720 = vset.pattern.permute.xlu0 0
    %1721 = vperm.xlu0 %1720, %v1686
    %v1722 = vpop.permute.xlu0 %1721
    %1725 = vset.pattern.permute.xlu0 0
    %1726 = vperm.xlu0 %1725, %v1687
    %v1727 = vpop.permute.xlu0 %1726
    %v1730 = vlaneseq
    %v1731 = vshrl.u32 %v1730, 7
    %v1732 = vsub.s32 0, %v1731
    %v1733 = vrot.slane %v1688, %v1732
    %v1734 = vlaneseq
    %v1735 = vshrl.u32 %v1734, 7
    %v1736 = vsub.s32 1, %v1735
    %v1737 = vrot.slane %v1688, %v1736
    %v1740 = vmul.f32 %v1692, %v1733
    %v1741 = vmul.f32 %v1692, %v1737
    %v1742 = vmul.f32 %v1697, %v1733
    %v1743 = vmul.f32 %v1697, %v1737
    %v1744 = vmul.f32 %v1702, %v1733
    %v1745 = vmul.f32 %v1702, %v1737
    %v1746 = vmul.f32 %v1707, %v1733
    %v1747 = vmul.f32 %v1707, %v1737
    %v1748 = vmul.f32 %v1712, %v1733
    %v1749 = vmul.f32 %v1712, %v1737
    %v1750 = vmul.f32 %v1717, %v1733
    %v1751 = vmul.f32 %v1717, %v1737
    %v1752 = vmul.f32 %v1722, %v1733
    %v1753 = vmul.f32 %v1722, %v1737
    %v1754 = vmul.f32 %v1727, %v1733
    %v1755 = vmul.f32 %v1727, %v1737
    %s1756 = scalar_lea.vmem %s0, 1
    %v1757 = vld [vmem:[%s1756] ss:$4 sm:$0x3]
    %1758 = vset.pattern.permute.xlu0 1
    %1759 = vperm.xlu0 %1758, %v1680
    %v1760 = vpop.permute.xlu0 %1759
    %1762 = vset.pattern.permute.xlu0 1
    %1763 = vperm.xlu0 %1762, %v1681
    %v1764 = vpop.permute.xlu0 %1763
    %1766 = vset.pattern.permute.xlu0 1
    %1767 = vperm.xlu0 %1766, %v1682
    %v1768 = vpop.permute.xlu0 %1767
    %1770 = vset.pattern.permute.xlu0 1
    %1771 = vperm.xlu0 %1770, %v1683
    %v1772 = vpop.permute.xlu0 %1771
    %1774 = vset.pattern.permute.xlu0 1
    %1775 = vperm.xlu0 %1774, %v1684
    %v1776 = vpop.permute.xlu0 %1775
    %1778 = vset.pattern.permute.xlu0 1
    %1779 = vperm.xlu0 %1778, %v1685
    %v1780 = vpop.permute.xlu0 %1779
    %1782 = vset.pattern.permute.xlu0 1
    %1783 = vperm.xlu0 %1782, %v1686
    %v1784 = vpop.permute.xlu0 %1783
    %1786 = vset.pattern.permute.xlu0 1
    %1787 = vperm.xlu0 %1786, %v1687
    %v1788 = vpop.permute.xlu0 %1787
    %v1791 = vlaneseq
    %v1792 = vshrl.u32 %v1791, 7
    %v1793 = vsub.s32 0, %v1792
    %v1794 = vrot.slane %v1757, %v1793
    %v1795 = vlaneseq
    %v1796 = vshrl.u32 %v1795, 7
    %v1797 = vsub.s32 1, %v1796
    %v1798 = vrot.slane %v1757, %v1797
    %v1801 = vmul.f32 %v1760, %v1794
    %v1802 = vmul.f32 %v1760, %v1798
    %v1803 = vmul.f32 %v1764, %v1794
    %v1804 = vmul.f32 %v1764, %v1798
    %v1805 = vmul.f32 %v1768, %v1794
    %v1806 = vmul.f32 %v1768, %v1798
    %v1807 = vmul.f32 %v1772, %v1794
    %v1808 = vmul.f32 %v1772, %v1798
    %v1809 = vmul.f32 %v1776, %v1794
    %v1810 = vmul.f32 %v1776, %v1798
    %v1811 = vmul.f32 %v1780, %v1794
    %v1812 = vmul.f32 %v1780, %v1798
    %v1813 = vmul.f32 %v1784, %v1794
    %v1814 = vmul.f32 %v1784, %v1798
    %v1815 = vmul.f32 %v1788, %v1794
    %v1816 = vmul.f32 %v1788, %v1798
    %v1817 = vadd.f32 %v1740, %v1801
    %v1818 = vadd.f32 %v1741, %v1802
    %v1819 = vadd.f32 %v1742, %v1803
    %v1820 = vadd.f32 %v1743, %v1804
    %v1821 = vadd.f32 %v1744, %v1805
    %v1822 = vadd.f32 %v1745, %v1806
    %v1823 = vadd.f32 %v1746, %v1807
    %v1824 = vadd.f32 %v1747, %v1808
    %v1825 = vadd.f32 %v1748, %v1809
    %v1826 = vadd.f32 %v1749, %v1810
    %v1827 = vadd.f32 %v1750, %v1811
    %v1828 = vadd.f32 %v1751, %v1812
    %v1829 = vadd.f32 %v1752, %v1813
    %v1830 = vadd.f32 %v1753, %v1814
    %v1831 = vadd.f32 %v1754, %v1815
    %v1832 = vadd.f32 %v1755, %v1816
    %s1833 = scalar_lea.vmem %s0, 2
    %v1834 = vld [vmem:[%s1833] ss:$4 sm:$0x3]
    %1835 = vset.pattern.permute.xlu0 2
    %1836 = vperm.xlu0 %1835, %v1680
    %v1837 = vpop.permute.xlu0 %1836
    %1839 = vset.pattern.permute.xlu0 2
    %1840 = vperm.xlu0 %1839, %v1681
    %v1841 = vpop.permute.xlu0 %1840
    %1843 = vset.pattern.permute.xlu0 2
    %1844 = vperm.xlu0 %1843, %v1682
    %v1845 = vpop.permute.xlu0 %1844
    %1847 = vset.pattern.permute.xlu0 2
    %1848 = vperm.xlu0 %1847, %v1683
    %v1849 = vpop.permute.xlu0 %1848
    %1851 = vset.pattern.permute.xlu0 2
    %1852 = vperm.xlu0 %1851, %v1684
    %v1853 = vpop.permute.xlu0 %1852
    %1855 = vset.pattern.permute.xlu0 2
    %1856 = vperm.xlu0 %1855, %v1685
    %v1857 = vpop.permute.xlu0 %1856
    %1859 = vset.pattern.permute.xlu0 2
    %1860 = vperm.xlu0 %1859, %v1686
    %v1861 = vpop.permute.xlu0 %1860
    %1863 = vset.pattern.permute.xlu0 2
    %1864 = vperm.xlu0 %1863, %v1687
    %v1865 = vpop.permute.xlu0 %1864
    %v1868 = vlaneseq
    %v1869 = vshrl.u32 %v1868, 7
    %v1870 = vsub.s32 0, %v1869
    %v1871 = vrot.slane %v1834, %v1870
    %v1872 = vlaneseq
    %v1873 = vshrl.u32 %v1872, 7
    %v1874 = vsub.s32 1, %v1873
    %v1875 = vrot.slane %v1834, %v1874
    %v1878 = vmul.f32 %v1837, %v1871
    %v1879 = vmul.f32 %v1837, %v1875
    %v1880 = vmul.f32 %v1841, %v1871
    %v1881 = vmul.f32 %v1841, %v1875
    %v1882 = vmul.f32 %v1845, %v1871
    %v1883 = vmul.f32 %v1845, %v1875
    %v1884 = vmul.f32 %v1849, %v1871
    %v1885 = vmul.f32 %v1849, %v1875
    %v1886 = vmul.f32 %v1853, %v1871
    %v1887 = vmul.f32 %v1853, %v1875
    %v1888 = vmul.f32 %v1857, %v1871
    %v1889 = vmul.f32 %v1857, %v1875
    %v1890 = vmul.f32 %v1861, %v1871
    %v1891 = vmul.f32 %v1861, %v1875
    %v1892 = vmul.f32 %v1865, %v1871
    %v1893 = vmul.f32 %v1865, %v1875
    %v1894 = vadd.f32 %v1817, %v1878
    %v1895 = vadd.f32 %v1818, %v1879
    %v1896 = vadd.f32 %v1819, %v1880
    %v1897 = vadd.f32 %v1820, %v1881
    %v1898 = vadd.f32 %v1821, %v1882
    %v1899 = vadd.f32 %v1822, %v1883
    %v1900 = vadd.f32 %v1823, %v1884
    %v1901 = vadd.f32 %v1824, %v1885
    %v1902 = vadd.f32 %v1825, %v1886
    %v1903 = vadd.f32 %v1826, %v1887
    %v1904 = vadd.f32 %v1827, %v1888
    %v1905 = vadd.f32 %v1828, %v1889
    %v1906 = vadd.f32 %v1829, %v1890
    %v1907 = vadd.f32 %v1830, %v1891
    %v1908 = vadd.f32 %v1831, %v1892
    %v1909 = vadd.f32 %v1832, %v1893
    %v1910 = vadd.f32 %v1894, %v1895
    %1911 = vadd.xlane.f32.xlu0 %v1910
    %v1912 = vpop.xlane.xlu0 %1911
    %v1913 = vadd.f32 %v1896, %v1897
    %1914 = vadd.xlane.f32.xlu0 %v1913
    %v1915 = vpop.xlane.xlu0 %1914
    %v1916 = vadd.f32 %v1898, %v1899
    %1917 = vadd.xlane.f32.xlu0 %v1916
    %v1918 = vpop.xlane.xlu0 %1917
    %v1919 = vadd.f32 %v1900, %v1901
    %1920 = vadd.xlane.f32.xlu0 %v1919
    %v1921 = vpop.xlane.xlu0 %1920
    %v1922 = vadd.f32 %v1902, %v1903
    %1923 = vadd.xlane.f32.xlu0 %v1922
    %v1924 = vpop.xlane.xlu0 %1923
    %v1925 = vadd.f32 %v1904, %v1905
    %1926 = vadd.xlane.f32.xlu0 %v1925
    %v1927 = vpop.xlane.xlu0 %1926
    %v1928 = vadd.f32 %v1906, %v1907
    %1929 = vadd.xlane.f32.xlu0 %v1928
    %v1930 = vpop.xlane.xlu0 %1929
    %v1931 = vadd.f32 %v1908, %v1909
    %1932 = vadd.xlane.f32.xlu0 %v1931
    %v1933 = vpop.xlane.xlu0 %1932
    %v1934 = vmul.f32 %v1894, %v1894
    %v1935 = vmul.f32 %v1895, %v1895
    %v1936 = vmul.f32 %v1896, %v1896
    %v1937 = vmul.f32 %v1897, %v1897
    %v1938 = vmul.f32 %v1898, %v1898
    %v1939 = vmul.f32 %v1899, %v1899
    %v1940 = vmul.f32 %v1900, %v1900
    %v1941 = vmul.f32 %v1901, %v1901
    %v1942 = vmul.f32 %v1902, %v1902
    %v1943 = vmul.f32 %v1903, %v1903
    %v1944 = vmul.f32 %v1904, %v1904
    %v1945 = vmul.f32 %v1905, %v1905
    %v1946 = vmul.f32 %v1906, %v1906
    %v1947 = vmul.f32 %v1907, %v1907
    %v1948 = vmul.f32 %v1908, %v1908
    %v1949 = vmul.f32 %v1909, %v1909
    %v1950 = vadd.f32 %v1934, %v1935
    %1951 = vadd.xlane.f32.xlu0 %v1950
    %v1952 = vpop.xlane.xlu0 %1951
    %v1953 = vadd.f32 %v1936, %v1937
    %1954 = vadd.xlane.f32.xlu0 %v1953
    %v1955 = vpop.xlane.xlu0 %1954
    %v1956 = vadd.f32 %v1938, %v1939
    %1957 = vadd.xlane.f32.xlu0 %v1956
    %v1958 = vpop.xlane.xlu0 %1957
    %v1959 = vadd.f32 %v1940, %v1941
    %1960 = vadd.xlane.f32.xlu0 %v1959
    %v1961 = vpop.xlane.xlu0 %1960
    %v1962 = vadd.f32 %v1942, %v1943
    %1963 = vadd.xlane.f32.xlu0 %v1962
    %v1964 = vpop.xlane.xlu0 %1963
    %v1965 = vadd.f32 %v1944, %v1945
    %1966 = vadd.xlane.f32.xlu0 %v1965
    %v1967 = vpop.xlane.xlu0 %1966
    %v1968 = vadd.f32 %v1946, %v1947
    %1969 = vadd.xlane.f32.xlu0 %v1968
    %v1970 = vpop.xlane.xlu0 %1969
    %v1971 = vadd.f32 %v1948, %v1949
    %1972 = vadd.xlane.f32.xlu0 %v1971
    %v1973 = vpop.xlane.xlu0 %1972
    %v1974 = vmul.f32 %v1912, 0.00390625
    %v1975 = vmul.f32 %v1915, 0.00390625
    %v1976 = vmul.f32 %v1918, 0.00390625
    %v1977 = vmul.f32 %v1921, 0.00390625
    %v1978 = vmul.f32 %v1924, 0.00390625
    %v1979 = vmul.f32 %v1927, 0.00390625
    %v1980 = vmul.f32 %v1930, 0.00390625
    %v1981 = vmul.f32 %v1933, 0.00390625
    %v1982 = vmul.f32 %v1952, 0.00390625
    %v1983 = vmul.f32 %v1955, 0.00390625
    %v1984 = vmul.f32 %v1958, 0.00390625
    %v1985 = vmul.f32 %v1961, 0.00390625
    %v1986 = vmul.f32 %v1964, 0.00390625
    %v1987 = vmul.f32 %v1967, 0.00390625
    %v1988 = vmul.f32 %v1970, 0.00390625
    %v1989 = vmul.f32 %v1973, 0.00390625
    %v1990 = vmul.f32 %v1974, %v1974
    %v1991 = vmul.f32 %v1975, %v1975
    %v1992 = vmul.f32 %v1976, %v1976
    %v1993 = vmul.f32 %v1977, %v1977
    %v1994 = vmul.f32 %v1978, %v1978
    %v1995 = vmul.f32 %v1979, %v1979
    %v1996 = vmul.f32 %v1980, %v1980
    %v1997 = vmul.f32 %v1981, %v1981
    %v1998 = vsub.f32 %v1982, %v1990
    %v1999 = vsub.f32 %v1983, %v1991
    %v2000 = vsub.f32 %v1984, %v1992
    %v2001 = vsub.f32 %v1985, %v1993
    %v2002 = vsub.f32 %v1986, %v1994
    %v2003 = vsub.f32 %v1987, %v1995
    %v2004 = vsub.f32 %v1988, %v1996
    %v2005 = vsub.f32 %v1989, %v1997
    %v2006 = vmax.f32 %v1998, 0.0
    %v2007 = vmax.f32 %v1999, 0.0
    %v2008 = vmax.f32 %v2000, 0.0
    %v2009 = vmax.f32 %v2001, 0.0
    %v2010 = vmax.f32 %v2002, 0.0
    %v2011 = vmax.f32 %v2003, 0.0
    %v2012 = vmax.f32 %v2004, 0.0
    %v2013 = vmax.f32 %v2005, 0.0
    %v2014 = vadd.f32 %v2006, 1e-05
    %v2015 = vadd.f32 %v2007, 1e-05
    %v2016 = vadd.f32 %v2008, 1e-05
    %v2017 = vadd.f32 %v2009, 1e-05
    %v2018 = vadd.f32 %v2010, 1e-05
    %v2019 = vadd.f32 %v2011, 1e-05
    %v2020 = vadd.f32 %v2012, 1e-05
    %v2021 = vadd.f32 %v2013, 1e-05
    %v2022 = vrsqrt.pop %v2014
    %v2023 = vrsqrt.pop %v2015
    %v2024 = vrsqrt.pop %v2016
    %v2025 = vrsqrt.pop %v2017
    %v2026 = vrsqrt.pop %v2018
    %v2027 = vrsqrt.pop %v2019
    %v2028 = vrsqrt.pop %v2020
    %v2029 = vrsqrt.pop %v2021
    %v2030 = vmul.f32 %v802, %v2022
    %v2031 = vmul.f32 %v807, %v2023
    %v2032 = vmul.f32 %v812, %v2024
    %v2033 = vmul.f32 %v817, %v2025
    %v2034 = vmul.f32 %v822, %v2026
    %v2035 = vmul.f32 %v827, %v2027
    %v2036 = vmul.f32 %v832, %v2028
    %v2037 = vmul.f32 %v837, %v2029
    %v2038 = vmul.f32 %v2030, %v1974
    %v2039 = vmul.f32 %v2031, %v1975
    %v2040 = vmul.f32 %v2032, %v1976
    %v2041 = vmul.f32 %v2033, %v1977
    %v2042 = vmul.f32 %v2034, %v1978
    %v2043 = vmul.f32 %v2035, %v1979
    %v2044 = vmul.f32 %v2036, %v1980
    %v2045 = vmul.f32 %v2037, %v1981
    %v2046 = vsub.f32 %v842, %v2038
    %v2047 = vsub.f32 %v847, %v2039
    %v2048 = vsub.f32 %v852, %v2040
    %v2049 = vsub.f32 %v857, %v2041
    %v2050 = vsub.f32 %v862, %v2042
    %v2051 = vsub.f32 %v867, %v2043
    %v2052 = vsub.f32 %v872, %v2044
    %v2053 = vsub.f32 %v877, %v2045
    %2055 = vset.pattern.permute.xlu0 0
    %2056 = vperm.xlu0 %2055, %v2030
    %v2057 = vpop.permute.xlu0 %2056
    %2060 = vset.pattern.permute.xlu0 0
    %2061 = vperm.xlu0 %2060, %v2031
    %v2062 = vpop.permute.xlu0 %2061
    %2065 = vset.pattern.permute.xlu0 0
    %2066 = vperm.xlu0 %2065, %v2032
    %v2067 = vpop.permute.xlu0 %2066
    %2070 = vset.pattern.permute.xlu0 0
    %2071 = vperm.xlu0 %2070, %v2033
    %v2072 = vpop.permute.xlu0 %2071
    %2075 = vset.pattern.permute.xlu0 0
    %2076 = vperm.xlu0 %2075, %v2034
    %v2077 = vpop.permute.xlu0 %2076
    %2080 = vset.pattern.permute.xlu0 0
    %2081 = vperm.xlu0 %2080, %v2035
    %v2082 = vpop.permute.xlu0 %2081
    %2085 = vset.pattern.permute.xlu0 0
    %2086 = vperm.xlu0 %2085, %v2036
    %v2087 = vpop.permute.xlu0 %2086
    %2090 = vset.pattern.permute.xlu0 0
    %2091 = vperm.xlu0 %2090, %v2037
    %v2092 = vpop.permute.xlu0 %2091
    %v2094 = vmul.f32 %v2057, %v1894
    %v2095 = vmul.f32 %v2062, %v1896
    %v2096 = vmul.f32 %v2067, %v1898
    %v2097 = vmul.f32 %v2072, %v1900
    %v2098 = vmul.f32 %v2077, %v1902
    %v2099 = vmul.f32 %v2082, %v1904
    %v2100 = vmul.f32 %v2087, %v1906
    %v2101 = vmul.f32 %v2092, %v1908
    %2103 = vset.pattern.permute.xlu0 0
    %2104 = vperm.xlu0 %2103, %v2046
    %v2105 = vpop.permute.xlu0 %2104
    %2108 = vset.pattern.permute.xlu0 0
    %2109 = vperm.xlu0 %2108, %v2047
    %v2110 = vpop.permute.xlu0 %2109
    %2113 = vset.pattern.permute.xlu0 0
    %2114 = vperm.xlu0 %2113, %v2048
    %v2115 = vpop.permute.xlu0 %2114
    %2118 = vset.pattern.permute.xlu0 0
    %2119 = vperm.xlu0 %2118, %v2049
    %v2120 = vpop.permute.xlu0 %2119
    %2123 = vset.pattern.permute.xlu0 0
    %2124 = vperm.xlu0 %2123, %v2050
    %v2125 = vpop.permute.xlu0 %2124
    %2128 = vset.pattern.permute.xlu0 0
    %2129 = vperm.xlu0 %2128, %v2051
    %v2130 = vpop.permute.xlu0 %2129
    %2133 = vset.pattern.permute.xlu0 0
    %2134 = vperm.xlu0 %2133, %v2052
    %v2135 = vpop.permute.xlu0 %2134
    %2138 = vset.pattern.permute.xlu0 0
    %2139 = vperm.xlu0 %2138, %v2053
    %v2140 = vpop.permute.xlu0 %2139
    %v2142 = vadd.f32 %v2094, %v2105
    %v2143 = vadd.f32 %v2095, %v2110
    %v2144 = vadd.f32 %v2096, %v2115
    %v2145 = vadd.f32 %v2097, %v2120
    %v2146 = vadd.f32 %v2098, %v2125
    %v2147 = vadd.f32 %v2099, %v2130
    %v2148 = vadd.f32 %v2100, %v2135
    %v2149 = vadd.f32 %v2101, %v2140
    %v2150 = vmax.f32 %v2142, 0.0
    %v2151 = vmax.f32 %v2143, 0.0
    %v2152 = vmax.f32 %v2144, 0.0
    %v2153 = vmax.f32 %v2145, 0.0
    %v2154 = vmax.f32 %v2146, 0.0
    %v2155 = vmax.f32 %v2147, 0.0
    %v2156 = vmax.f32 %v2148, 0.0
    %v2157 = vmax.f32 %v2149, 0.0
    %2158 = vset.pattern.permute.xlu0 1
    %2159 = vperm.xlu0 %2158, %v2030
    %v2160 = vpop.permute.xlu0 %2159
    %2162 = vset.pattern.permute.xlu0 1
    %2163 = vperm.xlu0 %2162, %v2031
    %v2164 = vpop.permute.xlu0 %2163
    %2166 = vset.pattern.permute.xlu0 1
    %2167 = vperm.xlu0 %2166, %v2032
    %v2168 = vpop.permute.xlu0 %2167
    %2170 = vset.pattern.permute.xlu0 1
    %2171 = vperm.xlu0 %2170, %v2033
    %v2172 = vpop.permute.xlu0 %2171
    %2174 = vset.pattern.permute.xlu0 1
    %2175 = vperm.xlu0 %2174, %v2034
    %v2176 = vpop.permute.xlu0 %2175
    %2178 = vset.pattern.permute.xlu0 1
    %2179 = vperm.xlu0 %2178, %v2035
    %v2180 = vpop.permute.xlu0 %2179
    %2182 = vset.pattern.permute.xlu0 1
    %2183 = vperm.xlu0 %2182, %v2036
    %v2184 = vpop.permute.xlu0 %2183
    %2186 = vset.pattern.permute.xlu0 1
    %2187 = vperm.xlu0 %2186, %v2037
    %v2188 = vpop.permute.xlu0 %2187
    %v2190 = vmul.f32 %v2160, %v1895
    %v2191 = vmul.f32 %v2164, %v1897
    %v2192 = vmul.f32 %v2168, %v1899
    %v2193 = vmul.f32 %v2172, %v1901
    %v2194 = vmul.f32 %v2176, %v1903
    %v2195 = vmul.f32 %v2180, %v1905
    %v2196 = vmul.f32 %v2184, %v1907
    %v2197 = vmul.f32 %v2188, %v1909
    %2198 = vset.pattern.permute.xlu0 1
    %2199 = vperm.xlu0 %2198, %v2046
    %v2200 = vpop.permute.xlu0 %2199
    %2202 = vset.pattern.permute.xlu0 1
    %2203 = vperm.xlu0 %2202, %v2047
    %v2204 = vpop.permute.xlu0 %2203
    %2206 = vset.pattern.permute.xlu0 1
    %2207 = vperm.xlu0 %2206, %v2048
    %v2208 = vpop.permute.xlu0 %2207
    %2210 = vset.pattern.permute.xlu0 1
    %2211 = vperm.xlu0 %2210, %v2049
    %v2212 = vpop.permute.xlu0 %2211
    %2214 = vset.pattern.permute.xlu0 1
    %2215 = vperm.xlu0 %2214, %v2050
    %v2216 = vpop.permute.xlu0 %2215
    %2218 = vset.pattern.permute.xlu0 1
    %2219 = vperm.xlu0 %2218, %v2051
    %v2220 = vpop.permute.xlu0 %2219
    %2222 = vset.pattern.permute.xlu0 1
    %2223 = vperm.xlu0 %2222, %v2052
    %v2224 = vpop.permute.xlu0 %2223
    %2226 = vset.pattern.permute.xlu0 1
    %2227 = vperm.xlu0 %2226, %v2053
    %v2228 = vpop.permute.xlu0 %2227
    %v2230 = vadd.f32 %v2190, %v2200
    %v2231 = vadd.f32 %v2191, %v2204
    %v2232 = vadd.f32 %v2192, %v2208
    %v2233 = vadd.f32 %v2193, %v2212
    %v2234 = vadd.f32 %v2194, %v2216
    %v2235 = vadd.f32 %v2195, %v2220
    %v2236 = vadd.f32 %v2196, %v2224
    %v2237 = vadd.f32 %v2197, %v2228
    %v2238 = vmax.f32 %v2230, 0.0
    %v2239 = vmax.f32 %v2231, 0.0
    %v2240 = vmax.f32 %v2232, 0.0
    %v2241 = vmax.f32 %v2233, 0.0
    %v2242 = vmax.f32 %v2234, 0.0
    %v2243 = vmax.f32 %v2235, 0.0
    %v2244 = vmax.f32 %v2236, 0.0
    %v2245 = vmax.f32 %v2237, 0.0
    %v2246 = vld [vmem:[%s3] sm:$0xff]
    %v2247 = vld [vmem:[%s3 + $0x8] sm:$0xff]
    %v2248 = vld [vmem:[%s3 + $0x10] sm:$0xff]
    %v2249 = vld [vmem:[%s3 + $0x18] sm:$0xff]
    %v2250 = vld [vmem:[%s3 + $0x20] sm:$0xff]
    %v2251 = vld [vmem:[%s3 + $0x28] sm:$0xff]
    %v2252 = vld [vmem:[%s3 + $0x30] sm:$0xff]
    %v2253 = vld [vmem:[%s3 + $0x38] sm:$0xff]
    %vm2254 = vcmask 523264
    %v2256 = vsel %vm2254, %v2246, 0
    %v2259 = vsel %vm2254, %v2247, 0
    %v2262 = vsel %vm2254, %v2248, 0
    %v2265 = vsel %vm2254, %v2249, 0
    %v2268 = vsel %vm2254, %v2250, 0
    %v2271 = vsel %vm2254, %v2251, 0
    %v2274 = vsel %vm2254, %v2252, 0
    %v2277 = vsel %vm2254, %v2253, 0
    %2279 = vmatprep.subr.mxu0 %v2238
    %2280 = vmatpush1.msra.mxu0 %v2150
    %2281 = vmatprep.subr.mxu0 %v2239
    %2282 = vmatpush1.msra.mxu0 %v2151
    %2283 = vmatprep.subr.mxu0 %v2240
    %2284 = vmatpush1.msra.mxu0 %v2152
    %2285 = vmatprep.subr.mxu0 %v2241
    %2286 = vmatpush1.msra.mxu0 %v2153
    %2287 = vmatprep.subr.mxu0 %v2242
    %2288 = vmatpush1.msra.mxu0 %v2154
    %2289 = vmatprep.subr.mxu0 %v2243
    %2290 = vmatpush1.msra.mxu0 %v2155
    %2291 = vmatprep.subr.mxu0 %v2244
    %2292 = vmatpush1.msra.mxu0 %v2156
    %2293 = vmatprep.subr.mxu0 %v2245
    %2294 = vmatpush1.msra.mxu0 %v2157
    %2295 = vmatprep.subr.mxu0 0.0
    %2296 = vmatpush1.msra.mxu0 0.0
    %2297 = vmatprep.subr.mxu0 0.0
    %2298 = vmatpush1.msra.mxu0 0.0
    %2299 = vmatprep.subr.mxu0 0.0
    %2300 = vmatpush1.msra.mxu0 0.0
    %2301 = vmatprep.subr.mxu0 0.0
    %2302 = vmatpush1.msra.mxu0 0.0
    %2303 = vmatprep.subr.mxu0 0.0
    %2304 = vmatpush1.msra.mxu0 0.0
    %2305 = vmatprep.subr.mxu0 0.0
    %2306 = vmatpush1.msra.mxu0 0.0
    %2307 = vmatprep.subr.mxu0 0.0
    %2308 = vmatpush1.msra.mxu0 0.0
    %2309 = vmatprep.subr.mxu0 0.0
    %2310 = vmatpush1.msra.mxu0 0.0
    %2311 = vmatprep.subr.mxu0 0.0
    %2312 = vmatpush1.msra.mxu0 0.0
    %2313 = vmatprep.subr.mxu0 0.0
    %2314 = vmatpush1.msra.mxu0 0.0
    %2315 = vmatprep.subr.mxu0 0.0
    %2316 = vmatpush1.msra.mxu0 0.0
    %2317 = vmatprep.subr.mxu0 0.0
    %2318 = vmatpush1.msra.mxu0 0.0
    %2319 = vmatprep.subr.mxu0 0.0
    %2320 = vmatpush1.msra.mxu0 0.0
    %2321 = vmatprep.subr.mxu0 0.0
    %2322 = vmatpush1.msra.mxu0 0.0
    %2323 = vmatprep.subr.mxu0 0.0
    %2324 = vmatpush1.msra.mxu0 0.0
    %2325 = vmatprep.subr.mxu0 0.0
    %2326 = vmatpush1.msra.mxu0 0.0
    %2327 = vmatprep.subr.mxu0 0.0
    %2328 = vmatpush1.msra.mxu0 0.0
    %2329 = vmatprep.subr.mxu0 0.0
    %2330 = vmatpush1.msra.mxu0 0.0
    %2331 = vmatprep.subr.mxu0 0.0
    %2332 = vmatpush1.msra.mxu0 0.0
    %2333 = vmatprep.subr.mxu0 0.0
    %2334 = vmatpush1.msra.mxu0 0.0
    %2335 = vmatprep.subr.mxu0 0.0
    %2336 = vmatpush1.msra.mxu0 0.0
    %2337 = vmatprep.subr.mxu0 0.0
    %2338 = vmatpush1.msra.mxu0 0.0
    %2339 = vmatprep.subr.mxu0 0.0
    %2340 = vmatpush1.msra.mxu0 0.0
    %2341 = vmatprep.subr.mxu0 0.0
    %2342 = vmatpush1.msra.mxu0 0.0
    %2343 = vmatprep.mubr.f32.mxu0 0.0
    %2344 = vmatmul.mubr.f32.gmra.mrb[0].mxu0 %v2256
    %v2345 = vpop.f32.mrb[0].mxu0
    %v2346 = vadd.f32 0.0, %v2345
    %v2347 = vpop.f32.mrb[0].mxu0
    %v2348 = vadd.f32 0.0, %v2347
    %2349 = vmatprep.mubr.f32.mxu0 0.0
    %2350 = vmatmul.mubr.f32.gmra.mrb[0].mxu0 %v2259
    %v2351 = vpop.f32.mrb[0].mxu0
    %v2352 = vadd.f32 0.0, %v2351
    %v2353 = vpop.f32.mrb[0].mxu0
    %v2354 = vadd.f32 0.0, %v2353
    %2355 = vmatprep.mubr.f32.mxu0 0.0
    %2356 = vmatmul.mubr.f32.gmra.mrb[0].mxu0 %v2262
    %v2357 = vpop.f32.mrb[0].mxu0
    %v2358 = vadd.f32 0.0, %v2357
    %v2359 = vpop.f32.mrb[0].mxu0
    %v2360 = vadd.f32 0.0, %v2359
    %2361 = vmatprep.mubr.f32.mxu0 0.0
    %2362 = vmatmul.mubr.f32.gmra.mrb[0].mxu0 %v2265
    %v2363 = vpop.f32.mrb[0].mxu0
    %v2364 = vadd.f32 0.0, %v2363
    %v2365 = vpop.f32.mrb[0].mxu0
    %v2366 = vadd.f32 0.0, %v2365
    %2367 = vmatprep.mubr.f32.mxu0 0.0
    %2368 = vmatmul.mubr.f32.gmra.mrb[0].mxu0 %v2268
    %v2369 = vpop.f32.mrb[0].mxu0
    %v2370 = vadd.f32 0.0, %v2369
    %v2371 = vpop.f32.mrb[0].mxu0
    %v2372 = vadd.f32 0.0, %v2371
    %2373 = vmatprep.mubr.f32.mxu0 0.0
    %2374 = vmatmul.mubr.f32.gmra.mrb[0].mxu0 %v2271
    %v2375 = vpop.f32.mrb[0].mxu0
    %v2376 = vadd.f32 0.0, %v2375
    %v2377 = vpop.f32.mrb[0].mxu0
    %v2378 = vadd.f32 0.0, %v2377
    %2379 = vmatprep.mubr.f32.mxu0 0.0
    %2380 = vmatmul.mubr.f32.gmra.mrb[0].mxu0 %v2274
    %v2381 = vpop.f32.mrb[0].mxu0
    %v2382 = vadd.f32 0.0, %v2381
    %v2383 = vpop.f32.mrb[0].mxu0
    %v2384 = vadd.f32 0.0, %v2383
    %2385 = vmatprep.mubr.f32.mxu0 0.0
    %2386 = vmatmul.mubr.f32.gmra.mrb[0].mxu0 %v2277
    %v2387 = vpop.f32.mrb[0].mxu0
    %v2388 = vadd.f32 0.0, %v2387
    %v2389 = vpop.f32.mrb[0].mxu0
    %v2390 = vadd.f32 0.0, %v2389
    %2391 = vdwg.mxu0
    %v2392 = vadd.f32 %v2346, %v2348
    %2393 = vadd.xlane.f32.xlu0 %v2392
    %v2394 = vpop.xlane.xlu0 %2393
    %v2395 = vadd.f32 %v2352, %v2354
    %2396 = vadd.xlane.f32.xlu0 %v2395
    %v2397 = vpop.xlane.xlu0 %2396
    %v2398 = vadd.f32 %v2358, %v2360
    %2399 = vadd.xlane.f32.xlu0 %v2398
    %v2400 = vpop.xlane.xlu0 %2399
    %v2401 = vadd.f32 %v2364, %v2366
    %2402 = vadd.xlane.f32.xlu0 %v2401
    %v2403 = vpop.xlane.xlu0 %2402
    %v2404 = vadd.f32 %v2370, %v2372
    %2405 = vadd.xlane.f32.xlu0 %v2404
    %v2406 = vpop.xlane.xlu0 %2405
    %v2407 = vadd.f32 %v2376, %v2378
    %2408 = vadd.xlane.f32.xlu0 %v2407
    %v2409 = vpop.xlane.xlu0 %2408
    %v2410 = vadd.f32 %v2382, %v2384
    %2411 = vadd.xlane.f32.xlu0 %v2410
    %v2412 = vpop.xlane.xlu0 %2411
    %v2413 = vadd.f32 %v2388, %v2390
    %2414 = vadd.xlane.f32.xlu0 %v2413
    %v2415 = vpop.xlane.xlu0 %2414
    %v2416 = vmul.f32 %v2346, %v2346
    %v2417 = vmul.f32 %v2348, %v2348
    %v2418 = vmul.f32 %v2352, %v2352
    %v2419 = vmul.f32 %v2354, %v2354
    %v2420 = vmul.f32 %v2358, %v2358
    %v2421 = vmul.f32 %v2360, %v2360
    %v2422 = vmul.f32 %v2364, %v2364
    %v2423 = vmul.f32 %v2366, %v2366
    %v2424 = vmul.f32 %v2370, %v2370
    %v2425 = vmul.f32 %v2372, %v2372
    %v2426 = vmul.f32 %v2376, %v2376
    %v2427 = vmul.f32 %v2378, %v2378
    %v2428 = vmul.f32 %v2382, %v2382
    %v2429 = vmul.f32 %v2384, %v2384
    %v2430 = vmul.f32 %v2388, %v2388
    %v2431 = vmul.f32 %v2390, %v2390
    %v2432 = vadd.f32 %v2416, %v2417
    %2433 = vadd.xlane.f32.xlu0 %v2432
    %v2434 = vpop.xlane.xlu0 %2433
    %v2435 = vadd.f32 %v2418, %v2419
    %2436 = vadd.xlane.f32.xlu0 %v2435
    %v2437 = vpop.xlane.xlu0 %2436
    %v2438 = vadd.f32 %v2420, %v2421
    %2439 = vadd.xlane.f32.xlu0 %v2438
    %v2440 = vpop.xlane.xlu0 %2439
    %v2441 = vadd.f32 %v2422, %v2423
    %2442 = vadd.xlane.f32.xlu0 %v2441
    %v2443 = vpop.xlane.xlu0 %2442
    %v2444 = vadd.f32 %v2424, %v2425
    %2445 = vadd.xlane.f32.xlu0 %v2444
    %v2446 = vpop.xlane.xlu0 %2445
    %v2447 = vadd.f32 %v2426, %v2427
    %2448 = vadd.xlane.f32.xlu0 %v2447
    %v2449 = vpop.xlane.xlu0 %2448
    %v2450 = vadd.f32 %v2428, %v2429
    %2451 = vadd.xlane.f32.xlu0 %v2450
    %v2452 = vpop.xlane.xlu0 %2451
    %v2453 = vadd.f32 %v2430, %v2431
    %2454 = vadd.xlane.f32.xlu0 %v2453
    %v2455 = vpop.xlane.xlu0 %2454
    %v2456 = vmul.f32 %v2394, 0.00390625
    %v2457 = vmul.f32 %v2397, 0.00390625
    %v2458 = vmul.f32 %v2400, 0.00390625
    %v2459 = vmul.f32 %v2403, 0.00390625
    %v2460 = vmul.f32 %v2406, 0.00390625
    %v2461 = vmul.f32 %v2409, 0.00390625
    %v2462 = vmul.f32 %v2412, 0.00390625
    %v2463 = vmul.f32 %v2415, 0.00390625
    %v2464 = vmul.f32 %v2434, 0.00390625
    %v2465 = vmul.f32 %v2437, 0.00390625
    %v2466 = vmul.f32 %v2440, 0.00390625
    %v2467 = vmul.f32 %v2443, 0.00390625
    %v2468 = vmul.f32 %v2446, 0.00390625
    %v2469 = vmul.f32 %v2449, 0.00390625
    %v2470 = vmul.f32 %v2452, 0.00390625
    %v2471 = vmul.f32 %v2455, 0.00390625
    %v2472 = vmul.f32 %v2456, %v2456
    %v2473 = vmul.f32 %v2457, %v2457
    %v2474 = vmul.f32 %v2458, %v2458
    %v2475 = vmul.f32 %v2459, %v2459
    %v2476 = vmul.f32 %v2460, %v2460
    %v2477 = vmul.f32 %v2461, %v2461
    %v2478 = vmul.f32 %v2462, %v2462
    %v2479 = vmul.f32 %v2463, %v2463
    %v2480 = vsub.f32 %v2464, %v2472
    %v2481 = vsub.f32 %v2465, %v2473
    %v2482 = vsub.f32 %v2466, %v2474
    %v2483 = vsub.f32 %v2467, %v2475
    %v2484 = vsub.f32 %v2468, %v2476
    %v2485 = vsub.f32 %v2469, %v2477
    %v2486 = vsub.f32 %v2470, %v2478
    %v2487 = vsub.f32 %v2471, %v2479
    %v2488 = vmax.f32 %v2480, 0.0
    %v2489 = vmax.f32 %v2481, 0.0
    %v2490 = vmax.f32 %v2482, 0.0
    %v2491 = vmax.f32 %v2483, 0.0
    %v2492 = vmax.f32 %v2484, 0.0
    %v2493 = vmax.f32 %v2485, 0.0
    %v2494 = vmax.f32 %v2486, 0.0
    %v2495 = vmax.f32 %v2487, 0.0
    %v2496 = vadd.f32 %v2488, 1e-05
    %v2497 = vadd.f32 %v2489, 1e-05
    %v2498 = vadd.f32 %v2490, 1e-05
    %v2499 = vadd.f32 %v2491, 1e-05
    %v2500 = vadd.f32 %v2492, 1e-05
    %v2501 = vadd.f32 %v2493, 1e-05
    %v2502 = vadd.f32 %v2494, 1e-05
    %v2503 = vadd.f32 %v2495, 1e-05
    %v2504 = vrsqrt.pop %v2496
    %v2505 = vrsqrt.pop %v2497
    %v2506 = vrsqrt.pop %v2498
    %v2507 = vrsqrt.pop %v2499
    %v2508 = vrsqrt.pop %v2500
    %v2509 = vrsqrt.pop %v2501
    %v2510 = vrsqrt.pop %v2502
    %v2511 = vrsqrt.pop %v2503
    %v2512 = vmul.f32 %v882, %v2504
    %v2513 = vmul.f32 %v887, %v2505
    %v2514 = vmul.f32 %v892, %v2506
    %v2515 = vmul.f32 %v897, %v2507
    %v2516 = vmul.f32 %v902, %v2508
    %v2517 = vmul.f32 %v907, %v2509
    %v2518 = vmul.f32 %v912, %v2510
    %v2519 = vmul.f32 %v917, %v2511
    %v2520 = vmul.f32 %v2512, %v2456
    %v2521 = vmul.f32 %v2513, %v2457
    %v2522 = vmul.f32 %v2514, %v2458
    %v2523 = vmul.f32 %v2515, %v2459
    %v2524 = vmul.f32 %v2516, %v2460
    %v2525 = vmul.f32 %v2517, %v2461
    %v2526 = vmul.f32 %v2518, %v2462
    %v2527 = vmul.f32 %v2519, %v2463
    %v2528 = vsub.f32 %v922, %v2520
    %v2529 = vsub.f32 %v927, %v2521
    %v2530 = vsub.f32 %v932, %v2522
    %v2531 = vsub.f32 %v937, %v2523
    %v2532 = vsub.f32 %v942, %v2524
    %v2533 = vsub.f32 %v947, %v2525
    %v2534 = vsub.f32 %v952, %v2526
    %v2535 = vsub.f32 %v957, %v2527
    %2537 = vset.pattern.permute.xlu0 0
    %2538 = vperm.xlu0 %2537, %v2512
    %v2539 = vpop.permute.xlu0 %2538
    %2542 = vset.pattern.permute.xlu0 0
    %2543 = vperm.xlu0 %2542, %v2513
    %v2544 = vpop.permute.xlu0 %2543
    %2547 = vset.pattern.permute.xlu0 0
    %2548 = vperm.xlu0 %2547, %v2514
    %v2549 = vpop.permute.xlu0 %2548
    %2552 = vset.pattern.permute.xlu0 0
    %2553 = vperm.xlu0 %2552, %v2515
    %v2554 = vpop.permute.xlu0 %2553
    %2557 = vset.pattern.permute.xlu0 0
    %2558 = vperm.xlu0 %2557, %v2516
    %v2559 = vpop.permute.xlu0 %2558
    %2562 = vset.pattern.permute.xlu0 0
    %2563 = vperm.xlu0 %2562, %v2517
    %v2564 = vpop.permute.xlu0 %2563
    %2567 = vset.pattern.permute.xlu0 0
    %2568 = vperm.xlu0 %2567, %v2518
    %v2569 = vpop.permute.xlu0 %2568
    %2572 = vset.pattern.permute.xlu0 0
    %2573 = vperm.xlu0 %2572, %v2519
    %v2574 = vpop.permute.xlu0 %2573
    %v2576 = vmul.f32 %v2539, %v2346
    %v2577 = vmul.f32 %v2544, %v2352
    %v2578 = vmul.f32 %v2549, %v2358
    %v2579 = vmul.f32 %v2554, %v2364
    %v2580 = vmul.f32 %v2559, %v2370
    %v2581 = vmul.f32 %v2564, %v2376
    %v2582 = vmul.f32 %v2569, %v2382
    %v2583 = vmul.f32 %v2574, %v2388
    %2585 = vset.pattern.permute.xlu0 0
    %2586 = vperm.xlu0 %2585, %v2528
    %v2587 = vpop.permute.xlu0 %2586
    %2590 = vset.pattern.permute.xlu0 0
    %2591 = vperm.xlu0 %2590, %v2529
    %v2592 = vpop.permute.xlu0 %2591
    %2595 = vset.pattern.permute.xlu0 0
    %2596 = vperm.xlu0 %2595, %v2530
    %v2597 = vpop.permute.xlu0 %2596
    %2600 = vset.pattern.permute.xlu0 0
    %2601 = vperm.xlu0 %2600, %v2531
    %v2602 = vpop.permute.xlu0 %2601
    %2605 = vset.pattern.permute.xlu0 0
    %2606 = vperm.xlu0 %2605, %v2532
    %v2607 = vpop.permute.xlu0 %2606
    %2610 = vset.pattern.permute.xlu0 0
    %2611 = vperm.xlu0 %2610, %v2533
    %v2612 = vpop.permute.xlu0 %2611
    %2615 = vset.pattern.permute.xlu0 0
    %2616 = vperm.xlu0 %2615, %v2534
    %v2617 = vpop.permute.xlu0 %2616
    %2620 = vset.pattern.permute.xlu0 0
    %2621 = vperm.xlu0 %2620, %v2535
    %v2622 = vpop.permute.xlu0 %2621
    %v2624 = vadd.f32 %v2576, %v2587
    %v2625 = vadd.f32 %v2577, %v2592
    %v2626 = vadd.f32 %v2578, %v2597
    %v2627 = vadd.f32 %v2579, %v2602
    %v2628 = vadd.f32 %v2580, %v2607
    %v2629 = vadd.f32 %v2581, %v2612
    %v2630 = vadd.f32 %v2582, %v2617
    %v2631 = vadd.f32 %v2583, %v2622
    %v2632 = vmax.f32 %v2624, 0.0
    %v2633 = vmax.f32 %v2625, 0.0
    %v2634 = vmax.f32 %v2626, 0.0
    %v2635 = vmax.f32 %v2627, 0.0
    %v2636 = vmax.f32 %v2628, 0.0
    %v2637 = vmax.f32 %v2629, 0.0
    %v2638 = vmax.f32 %v2630, 0.0
    %v2639 = vmax.f32 %v2631, 0.0
    %2640 = vset.pattern.permute.xlu0 1
    %2641 = vperm.xlu0 %2640, %v2512
    %v2642 = vpop.permute.xlu0 %2641
    %2644 = vset.pattern.permute.xlu0 1
    %2645 = vperm.xlu0 %2644, %v2513
    %v2646 = vpop.permute.xlu0 %2645
    %2648 = vset.pattern.permute.xlu0 1
    %2649 = vperm.xlu0 %2648, %v2514
    %v2650 = vpop.permute.xlu0 %2649
    %2652 = vset.pattern.permute.xlu0 1
    %2653 = vperm.xlu0 %2652, %v2515
    %v2654 = vpop.permute.xlu0 %2653
    %2656 = vset.pattern.permute.xlu0 1
    %2657 = vperm.xlu0 %2656, %v2516
    %v2658 = vpop.permute.xlu0 %2657
    %2660 = vset.pattern.permute.xlu0 1
    %2661 = vperm.xlu0 %2660, %v2517
    %v2662 = vpop.permute.xlu0 %2661
    %2664 = vset.pattern.permute.xlu0 1
    %2665 = vperm.xlu0 %2664, %v2518
    %v2666 = vpop.permute.xlu0 %2665
    %2668 = vset.pattern.permute.xlu0 1
    %2669 = vperm.xlu0 %2668, %v2519
    %v2670 = vpop.permute.xlu0 %2669
    %v2672 = vmul.f32 %v2642, %v2348
    %v2673 = vmul.f32 %v2646, %v2354
    %v2674 = vmul.f32 %v2650, %v2360
    %v2675 = vmul.f32 %v2654, %v2366
    %v2676 = vmul.f32 %v2658, %v2372
    %v2677 = vmul.f32 %v2662, %v2378
    %v2678 = vmul.f32 %v2666, %v2384
    %v2679 = vmul.f32 %v2670, %v2390
    %2680 = vset.pattern.permute.xlu0 1
    %2681 = vperm.xlu0 %2680, %v2528
    %v2682 = vpop.permute.xlu0 %2681
    %2684 = vset.pattern.permute.xlu0 1
    %2685 = vperm.xlu0 %2684, %v2529
    %v2686 = vpop.permute.xlu0 %2685
    %2688 = vset.pattern.permute.xlu0 1
    %2689 = vperm.xlu0 %2688, %v2530
    %v2690 = vpop.permute.xlu0 %2689
    %2692 = vset.pattern.permute.xlu0 1
    %2693 = vperm.xlu0 %2692, %v2531
    %v2694 = vpop.permute.xlu0 %2693
    %2696 = vset.pattern.permute.xlu0 1
    %2697 = vperm.xlu0 %2696, %v2532
    %v2698 = vpop.permute.xlu0 %2697
    %2700 = vset.pattern.permute.xlu0 1
    %2701 = vperm.xlu0 %2700, %v2533
    %v2702 = vpop.permute.xlu0 %2701
    %2704 = vset.pattern.permute.xlu0 1
    %2705 = vperm.xlu0 %2704, %v2534
    %v2706 = vpop.permute.xlu0 %2705
    %2708 = vset.pattern.permute.xlu0 1
    %2709 = vperm.xlu0 %2708, %v2535
    %v2710 = vpop.permute.xlu0 %2709
    %v2712 = vadd.f32 %v2672, %v2682
    %v2713 = vadd.f32 %v2673, %v2686
    %v2714 = vadd.f32 %v2674, %v2690
    %v2715 = vadd.f32 %v2675, %v2694
    %v2716 = vadd.f32 %v2676, %v2698
    %v2717 = vadd.f32 %v2677, %v2702
    %v2718 = vadd.f32 %v2678, %v2706
    %v2719 = vadd.f32 %v2679, %v2710
    %v2720 = vmax.f32 %v2712, 0.0
    %v2721 = vmax.f32 %v2713, 0.0
    %v2722 = vmax.f32 %v2714, 0.0
    %v2723 = vmax.f32 %v2715, 0.0
    %v2724 = vmax.f32 %v2716, 0.0
    %v2725 = vmax.f32 %v2717, 0.0
    %v2726 = vmax.f32 %v2718, 0.0
    %v2727 = vmax.f32 %v2719, 0.0
    %s2728 = scalar_lea.vmem %s3, 64
    %v2729 = vld [vmem:[%s2728] sm:$0xff]
    %v2730 = vld [vmem:[%s2728 + $0x8] sm:$0xff]
    %v2731 = vld [vmem:[%s2728 + $0x10] sm:$0xff]
    %v2732 = vld [vmem:[%s2728 + $0x18] sm:$0xff]
    %v2733 = vld [vmem:[%s2728 + $0x20] sm:$0xff]
    %v2734 = vld [vmem:[%s2728 + $0x28] sm:$0xff]
    %v2735 = vld [vmem:[%s2728 + $0x30] sm:$0xff]
    %v2736 = vld [vmem:[%s2728 + $0x38] sm:$0xff]
    %v2738 = vsel %vm2254, %v2729, 0
    %v2741 = vsel %vm2254, %v2730, 0
    %v2744 = vsel %vm2254, %v2731, 0
    %v2747 = vsel %vm2254, %v2732, 0
    %v2750 = vsel %vm2254, %v2733, 0
    %v2753 = vsel %vm2254, %v2734, 0
    %v2756 = vsel %vm2254, %v2735, 0
    %v2759 = vsel %vm2254, %v2736, 0
    %2761 = vmatprep.subr.mxu0 %v2720
    %2762 = vmatpush1.msra.mxu0 %v2632
    %2763 = vmatprep.subr.mxu0 %v2721
    %2764 = vmatpush1.msra.mxu0 %v2633
    %2765 = vmatprep.subr.mxu0 %v2722
    %2766 = vmatpush1.msra.mxu0 %v2634
    %2767 = vmatprep.subr.mxu0 %v2723
    %2768 = vmatpush1.msra.mxu0 %v2635
    %2769 = vmatprep.subr.mxu0 %v2724
    %2770 = vmatpush1.msra.mxu0 %v2636
    %2771 = vmatprep.subr.mxu0 %v2725
    %2772 = vmatpush1.msra.mxu0 %v2637
    %2773 = vmatprep.subr.mxu0 %v2726
    %2774 = vmatpush1.msra.mxu0 %v2638
    %2775 = vmatprep.subr.mxu0 %v2727
    %2776 = vmatpush1.msra.mxu0 %v2639
    %2777 = vmatprep.subr.mxu0 0.0
    %2778 = vmatpush1.msra.mxu0 0.0
    %2779 = vmatprep.subr.mxu0 0.0
    %2780 = vmatpush1.msra.mxu0 0.0
    %2781 = vmatprep.subr.mxu0 0.0
    %2782 = vmatpush1.msra.mxu0 0.0
    %2783 = vmatprep.subr.mxu0 0.0
    %2784 = vmatpush1.msra.mxu0 0.0
    %2785 = vmatprep.subr.mxu0 0.0
    %2786 = vmatpush1.msra.mxu0 0.0
    %2787 = vmatprep.subr.mxu0 0.0
    %2788 = vmatpush1.msra.mxu0 0.0
    %2789 = vmatprep.subr.mxu0 0.0
    %2790 = vmatpush1.msra.mxu0 0.0
    %2791 = vmatprep.subr.mxu0 0.0
    %2792 = vmatpush1.msra.mxu0 0.0
    %2793 = vmatprep.subr.mxu0 0.0
    %2794 = vmatpush1.msra.mxu0 0.0
    %2795 = vmatprep.subr.mxu0 0.0
    %2796 = vmatpush1.msra.mxu0 0.0
    %2797 = vmatprep.subr.mxu0 0.0
    %2798 = vmatpush1.msra.mxu0 0.0
    %2799 = vmatprep.subr.mxu0 0.0
    %2800 = vmatpush1.msra.mxu0 0.0
    %2801 = vmatprep.subr.mxu0 0.0
    %2802 = vmatpush1.msra.mxu0 0.0
    %2803 = vmatprep.subr.mxu0 0.0
    %2804 = vmatpush1.msra.mxu0 0.0
    %2805 = vmatprep.subr.mxu0 0.0
    %2806 = vmatpush1.msra.mxu0 0.0
    %2807 = vmatprep.subr.mxu0 0.0
    %2808 = vmatpush1.msra.mxu0 0.0
    %2809 = vmatprep.subr.mxu0 0.0
    %2810 = vmatpush1.msra.mxu0 0.0
    %2811 = vmatprep.subr.mxu0 0.0
    %2812 = vmatpush1.msra.mxu0 0.0
    %2813 = vmatprep.subr.mxu0 0.0
    %2814 = vmatpush1.msra.mxu0 0.0
    %2815 = vmatprep.subr.mxu0 0.0
    %2816 = vmatpush1.msra.mxu0 0.0
    %2817 = vmatprep.subr.mxu0 0.0
    %2818 = vmatpush1.msra.mxu0 0.0
    %2819 = vmatprep.subr.mxu0 0.0
    %2820 = vmatpush1.msra.mxu0 0.0
    %2821 = vmatprep.subr.mxu0 0.0
    %2822 = vmatpush1.msra.mxu0 0.0
    %2823 = vmatprep.subr.mxu0 0.0
    %2824 = vmatpush1.msra.mxu0 0.0
    %2825 = vmatprep.mubr.f32.mxu0 0.0
    %2826 = vmatmul.mubr.f32.gmra.mrb[0].mxu0 %v2738
    %v2827 = vpop.f32.mrb[0].mxu0
    %v2828 = vadd.f32 0.0, %v2827
    %v2829 = vpop.f32.mrb[0].mxu0
    %v2830 = vadd.f32 0.0, %v2829
    %2831 = vmatprep.mubr.f32.mxu0 0.0
    %2832 = vmatmul.mubr.f32.gmra.mrb[0].mxu0 %v2741
    %v2833 = vpop.f32.mrb[0].mxu0
    %v2834 = vadd.f32 0.0, %v2833
    %v2835 = vpop.f32.mrb[0].mxu0
    %v2836 = vadd.f32 0.0, %v2835
    %2837 = vmatprep.mubr.f32.mxu0 0.0
    %2838 = vmatmul.mubr.f32.gmra.mrb[0].mxu0 %v2744
    %v2839 = vpop.f32.mrb[0].mxu0
    %v2840 = vadd.f32 0.0, %v2839
    %v2841 = vpop.f32.mrb[0].mxu0
    %v2842 = vadd.f32 0.0, %v2841
    %2843 = vmatprep.mubr.f32.mxu0 0.0
    %2844 = vmatmul.mubr.f32.gmra.mrb[0].mxu0 %v2747
    %v2845 = vpop.f32.mrb[0].mxu0
    %v2846 = vadd.f32 0.0, %v2845
    %v2847 = vpop.f32.mrb[0].mxu0
    %v2848 = vadd.f32 0.0, %v2847
    %2849 = vmatprep.mubr.f32.mxu0 0.0
    %2850 = vmatmul.mubr.f32.gmra.mrb[0].mxu0 %v2750
    %v2851 = vpop.f32.mrb[0].mxu0
    %v2852 = vadd.f32 0.0, %v2851
    %v2853 = vpop.f32.mrb[0].mxu0
    %v2854 = vadd.f32 0.0, %v2853
    %2855 = vmatprep.mubr.f32.mxu0 0.0
    %2856 = vmatmul.mubr.f32.gmra.mrb[0].mxu0 %v2753
    %v2857 = vpop.f32.mrb[0].mxu0
    %v2858 = vadd.f32 0.0, %v2857
    %v2859 = vpop.f32.mrb[0].mxu0
    %v2860 = vadd.f32 0.0, %v2859
    %2861 = vmatprep.mubr.f32.mxu0 0.0
    %2862 = vmatmul.mubr.f32.gmra.mrb[0].mxu0 %v2756
    %v2863 = vpop.f32.mrb[0].mxu0
    %v2864 = vadd.f32 0.0, %v2863
    %v2865 = vpop.f32.mrb[0].mxu0
    %v2866 = vadd.f32 0.0, %v2865
    %2867 = vmatprep.mubr.f32.mxu0 0.0
    %2868 = vmatmul.mubr.f32.gmra.mrb[0].mxu0 %v2759
    %v2869 = vpop.f32.mrb[0].mxu0
    %v2870 = vadd.f32 0.0, %v2869
    %v2871 = vpop.f32.mrb[0].mxu0
    %v2872 = vadd.f32 0.0, %v2871
    %2873 = vdwg.mxu0
    %v2874 = vadd.f32 %v1894, %v2828
    %v2875 = vadd.f32 %v1895, %v2830
    %v2876 = vadd.f32 %v1896, %v2834
    %v2877 = vadd.f32 %v1897, %v2836
    %v2878 = vadd.f32 %v1898, %v2840
    %v2879 = vadd.f32 %v1899, %v2842
    %v2880 = vadd.f32 %v1900, %v2846
    %v2881 = vadd.f32 %v1901, %v2848
    %v2882 = vadd.f32 %v1902, %v2852
    %v2883 = vadd.f32 %v1903, %v2854
    %v2884 = vadd.f32 %v1904, %v2858
    %v2885 = vadd.f32 %v1905, %v2860
    %v2886 = vadd.f32 %v1906, %v2864
    %v2887 = vadd.f32 %v1907, %v2866
    %v2888 = vadd.f32 %v1908, %v2870
    %v2889 = vadd.f32 %v1909, %v2872
    %v2890 = vadd.f32 %v2874, %v2875
    %2891 = vadd.xlane.f32.xlu0 %v2890
    %v2892 = vpop.xlane.xlu0 %2891
    %v2893 = vadd.f32 %v2876, %v2877
    %2894 = vadd.xlane.f32.xlu0 %v2893
    %v2895 = vpop.xlane.xlu0 %2894
    %v2896 = vadd.f32 %v2878, %v2879
    %2897 = vadd.xlane.f32.xlu0 %v2896
    %v2898 = vpop.xlane.xlu0 %2897
    %v2899 = vadd.f32 %v2880, %v2881
    %2900 = vadd.xlane.f32.xlu0 %v2899
    %v2901 = vpop.xlane.xlu0 %2900
    %v2902 = vadd.f32 %v2882, %v2883
    %2903 = vadd.xlane.f32.xlu0 %v2902
    %v2904 = vpop.xlane.xlu0 %2903
    %v2905 = vadd.f32 %v2884, %v2885
    %2906 = vadd.xlane.f32.xlu0 %v2905
    %v2907 = vpop.xlane.xlu0 %2906
    %v2908 = vadd.f32 %v2886, %v2887
    %2909 = vadd.xlane.f32.xlu0 %v2908
    %v2910 = vpop.xlane.xlu0 %2909
    %v2911 = vadd.f32 %v2888, %v2889
    %2912 = vadd.xlane.f32.xlu0 %v2911
    %v2913 = vpop.xlane.xlu0 %2912
    %v2914 = vmul.f32 %v2874, %v2874
    %v2915 = vmul.f32 %v2875, %v2875
    %v2916 = vmul.f32 %v2876, %v2876
    %v2917 = vmul.f32 %v2877, %v2877
    %v2918 = vmul.f32 %v2878, %v2878
    %v2919 = vmul.f32 %v2879, %v2879
    %v2920 = vmul.f32 %v2880, %v2880
    %v2921 = vmul.f32 %v2881, %v2881
    %v2922 = vmul.f32 %v2882, %v2882
    %v2923 = vmul.f32 %v2883, %v2883
    %v2924 = vmul.f32 %v2884, %v2884
    %v2925 = vmul.f32 %v2885, %v2885
    %v2926 = vmul.f32 %v2886, %v2886
    %v2927 = vmul.f32 %v2887, %v2887
    %v2928 = vmul.f32 %v2888, %v2888
    %v2929 = vmul.f32 %v2889, %v2889
    %v2930 = vadd.f32 %v2914, %v2915
    %2931 = vadd.xlane.f32.xlu0 %v2930
    %v2932 = vpop.xlane.xlu0 %2931
    %v2933 = vadd.f32 %v2916, %v2917
    %2934 = vadd.xlane.f32.xlu0 %v2933
    %v2935 = vpop.xlane.xlu0 %2934
    %v2936 = vadd.f32 %v2918, %v2919
    %2937 = vadd.xlane.f32.xlu0 %v2936
    %v2938 = vpop.xlane.xlu0 %2937
    %v2939 = vadd.f32 %v2920, %v2921
    %2940 = vadd.xlane.f32.xlu0 %v2939
    %v2941 = vpop.xlane.xlu0 %2940
    %v2942 = vadd.f32 %v2922, %v2923
    %2943 = vadd.xlane.f32.xlu0 %v2942
    %v2944 = vpop.xlane.xlu0 %2943
    %v2945 = vadd.f32 %v2924, %v2925
    %2946 = vadd.xlane.f32.xlu0 %v2945
    %v2947 = vpop.xlane.xlu0 %2946
    %v2948 = vadd.f32 %v2926, %v2927
    %2949 = vadd.xlane.f32.xlu0 %v2948
    %v2950 = vpop.xlane.xlu0 %2949
    %v2951 = vadd.f32 %v2928, %v2929
    %2952 = vadd.xlane.f32.xlu0 %v2951
    %v2953 = vpop.xlane.xlu0 %2952
    %v2954 = vmul.f32 %v2892, 0.00390625
    %v2955 = vmul.f32 %v2895, 0.00390625
    %v2956 = vmul.f32 %v2898, 0.00390625
    %v2957 = vmul.f32 %v2901, 0.00390625
    %v2958 = vmul.f32 %v2904, 0.00390625
    %v2959 = vmul.f32 %v2907, 0.00390625
    %v2960 = vmul.f32 %v2910, 0.00390625
    %v2961 = vmul.f32 %v2913, 0.00390625
    %v2962 = vmul.f32 %v2932, 0.00390625
    %v2963 = vmul.f32 %v2935, 0.00390625
    %v2964 = vmul.f32 %v2938, 0.00390625
    %v2965 = vmul.f32 %v2941, 0.00390625
    %v2966 = vmul.f32 %v2944, 0.00390625
    %v2967 = vmul.f32 %v2947, 0.00390625
    %v2968 = vmul.f32 %v2950, 0.00390625
    %v2969 = vmul.f32 %v2953, 0.00390625
    %v2970 = vmul.f32 %v2954, %v2954
    %v2971 = vmul.f32 %v2955, %v2955
    %v2972 = vmul.f32 %v2956, %v2956
    %v2973 = vmul.f32 %v2957, %v2957
    %v2974 = vmul.f32 %v2958, %v2958
    %v2975 = vmul.f32 %v2959, %v2959
    %v2976 = vmul.f32 %v2960, %v2960
    %v2977 = vmul.f32 %v2961, %v2961
    %v2978 = vsub.f32 %v2962, %v2970
    %v2979 = vsub.f32 %v2963, %v2971
    %v2980 = vsub.f32 %v2964, %v2972
    %v2981 = vsub.f32 %v2965, %v2973
    %v2982 = vsub.f32 %v2966, %v2974
    %v2983 = vsub.f32 %v2967, %v2975
    %v2984 = vsub.f32 %v2968, %v2976
    %v2985 = vsub.f32 %v2969, %v2977
    %v2986 = vmax.f32 %v2978, 0.0
    %v2987 = vmax.f32 %v2979, 0.0
    %v2988 = vmax.f32 %v2980, 0.0
    %v2989 = vmax.f32 %v2981, 0.0
    %v2990 = vmax.f32 %v2982, 0.0
    %v2991 = vmax.f32 %v2983, 0.0
    %v2992 = vmax.f32 %v2984, 0.0
    %v2993 = vmax.f32 %v2985, 0.0
    %v2994 = vadd.f32 %v2986, 1e-05
    %v2995 = vadd.f32 %v2987, 1e-05
    %v2996 = vadd.f32 %v2988, 1e-05
    %v2997 = vadd.f32 %v2989, 1e-05
    %v2998 = vadd.f32 %v2990, 1e-05
    %v2999 = vadd.f32 %v2991, 1e-05
    %v3000 = vadd.f32 %v2992, 1e-05
    %v3001 = vadd.f32 %v2993, 1e-05
    %v3002 = vrsqrt.pop %v2994
    %v3003 = vrsqrt.pop %v2995
    %v3004 = vrsqrt.pop %v2996
    %v3005 = vrsqrt.pop %v2997
    %v3006 = vrsqrt.pop %v2998
    %v3007 = vrsqrt.pop %v2999
    %v3008 = vrsqrt.pop %v3000
    %v3009 = vrsqrt.pop %v3001
    %v3010 = vmul.f32 %v962, %v3002
    %v3011 = vmul.f32 %v967, %v3003
    %v3012 = vmul.f32 %v972, %v3004
    %v3013 = vmul.f32 %v977, %v3005
    %v3014 = vmul.f32 %v982, %v3006
    %v3015 = vmul.f32 %v987, %v3007
    %v3016 = vmul.f32 %v992, %v3008
    %v3017 = vmul.f32 %v997, %v3009
    %v3018 = vmul.f32 %v3010, %v2954
    %v3019 = vmul.f32 %v3011, %v2955
    %v3020 = vmul.f32 %v3012, %v2956
    %v3021 = vmul.f32 %v3013, %v2957
    %v3022 = vmul.f32 %v3014, %v2958
    %v3023 = vmul.f32 %v3015, %v2959
    %v3024 = vmul.f32 %v3016, %v2960
    %v3025 = vmul.f32 %v3017, %v2961
    %v3026 = vsub.f32 %v1002, %v3018
    %v3027 = vsub.f32 %v1007, %v3019
    %v3028 = vsub.f32 %v1012, %v3020
    %v3029 = vsub.f32 %v1017, %v3021
    %v3030 = vsub.f32 %v1022, %v3022
    %v3031 = vsub.f32 %v1027, %v3023
    %v3032 = vsub.f32 %v1032, %v3024
    %v3033 = vsub.f32 %v1037, %v3025
    %3035 = vset.pattern.permute.xlu0 0
    %3036 = vperm.xlu0 %3035, %v3010
    %v3037 = vpop.permute.xlu0 %3036
    %3040 = vset.pattern.permute.xlu0 0
    %3041 = vperm.xlu0 %3040, %v3011
    %v3042 = vpop.permute.xlu0 %3041
    %3045 = vset.pattern.permute.xlu0 0
    %3046 = vperm.xlu0 %3045, %v3012
    %v3047 = vpop.permute.xlu0 %3046
    %3050 = vset.pattern.permute.xlu0 0
    %3051 = vperm.xlu0 %3050, %v3013
    %v3052 = vpop.permute.xlu0 %3051
    %3055 = vset.pattern.permute.xlu0 0
    %3056 = vperm.xlu0 %3055, %v3014
    %v3057 = vpop.permute.xlu0 %3056
    %3060 = vset.pattern.permute.xlu0 0
    %3061 = vperm.xlu0 %3060, %v3015
    %v3062 = vpop.permute.xlu0 %3061
    %3065 = vset.pattern.permute.xlu0 0
    %3066 = vperm.xlu0 %3065, %v3016
    %v3067 = vpop.permute.xlu0 %3066
    %3070 = vset.pattern.permute.xlu0 0
    %3071 = vperm.xlu0 %3070, %v3017
    %v3072 = vpop.permute.xlu0 %3071
    %v3074 = vmul.f32 %v3037, %v2874
    %v3075 = vmul.f32 %v3042, %v2876
    %v3076 = vmul.f32 %v3047, %v2878
    %v3077 = vmul.f32 %v3052, %v2880
    %v3078 = vmul.f32 %v3057, %v2882
    %v3079 = vmul.f32 %v3062, %v2884
    %v3080 = vmul.f32 %v3067, %v2886
    %v3081 = vmul.f32 %v3072, %v2888
    %3083 = vset.pattern.permute.xlu0 0
    %3084 = vperm.xlu0 %3083, %v3026
    %v3085 = vpop.permute.xlu0 %3084
    %3088 = vset.pattern.permute.xlu0 0
    %3089 = vperm.xlu0 %3088, %v3027
    %v3090 = vpop.permute.xlu0 %3089
    %3093 = vset.pattern.permute.xlu0 0
    %3094 = vperm.xlu0 %3093, %v3028
    %v3095 = vpop.permute.xlu0 %3094
    %3098 = vset.pattern.permute.xlu0 0
    %3099 = vperm.xlu0 %3098, %v3029
    %v3100 = vpop.permute.xlu0 %3099
    %3103 = vset.pattern.permute.xlu0 0
    %3104 = vperm.xlu0 %3103, %v3030
    %v3105 = vpop.permute.xlu0 %3104
    %3108 = vset.pattern.permute.xlu0 0
    %3109 = vperm.xlu0 %3108, %v3031
    %v3110 = vpop.permute.xlu0 %3109
    %3113 = vset.pattern.permute.xlu0 0
    %3114 = vperm.xlu0 %3113, %v3032
    %v3115 = vpop.permute.xlu0 %3114
    %3118 = vset.pattern.permute.xlu0 0
    %3119 = vperm.xlu0 %3118, %v3033
    %v3120 = vpop.permute.xlu0 %3119
    %v3122 = vadd.f32 %v3074, %v3085
    %v3123 = vadd.f32 %v3075, %v3090
    %v3124 = vadd.f32 %v3076, %v3095
    %v3125 = vadd.f32 %v3077, %v3100
    %v3126 = vadd.f32 %v3078, %v3105
    %v3127 = vadd.f32 %v3079, %v3110
    %v3128 = vadd.f32 %v3080, %v3115
    %v3129 = vadd.f32 %v3081, %v3120
    %v3130 = vmax.f32 %v3122, 0.0
    %v3131 = vmax.f32 %v3123, 0.0
    %v3132 = vmax.f32 %v3124, 0.0
    %v3133 = vmax.f32 %v3125, 0.0
    %v3134 = vmax.f32 %v3126, 0.0
    %v3135 = vmax.f32 %v3127, 0.0
    %v3136 = vmax.f32 %v3128, 0.0
    %v3137 = vmax.f32 %v3129, 0.0
    %3138 = vset.pattern.permute.xlu0 1
    %3139 = vperm.xlu0 %3138, %v3010
    %v3140 = vpop.permute.xlu0 %3139
    %3142 = vset.pattern.permute.xlu0 1
    %3143 = vperm.xlu0 %3142, %v3011
    %v3144 = vpop.permute.xlu0 %3143
    %3146 = vset.pattern.permute.xlu0 1
    %3147 = vperm.xlu0 %3146, %v3012
    %v3148 = vpop.permute.xlu0 %3147
    %3150 = vset.pattern.permute.xlu0 1
    %3151 = vperm.xlu0 %3150, %v3013
    %v3152 = vpop.permute.xlu0 %3151
    %3154 = vset.pattern.permute.xlu0 1
    %3155 = vperm.xlu0 %3154, %v3014
    %v3156 = vpop.permute.xlu0 %3155
    %3158 = vset.pattern.permute.xlu0 1
    %3159 = vperm.xlu0 %3158, %v3015
    %v3160 = vpop.permute.xlu0 %3159
    %3162 = vset.pattern.permute.xlu0 1
    %3163 = vperm.xlu0 %3162, %v3016
    %v3164 = vpop.permute.xlu0 %3163
    %3166 = vset.pattern.permute.xlu0 1
    %3167 = vperm.xlu0 %3166, %v3017
    %v3168 = vpop.permute.xlu0 %3167
    %v3170 = vmul.f32 %v3140, %v2875
    %v3171 = vmul.f32 %v3144, %v2877
    %v3172 = vmul.f32 %v3148, %v2879
    %v3173 = vmul.f32 %v3152, %v2881
    %v3174 = vmul.f32 %v3156, %v2883
    %v3175 = vmul.f32 %v3160, %v2885
    %v3176 = vmul.f32 %v3164, %v2887
    %v3177 = vmul.f32 %v3168, %v2889
    %3178 = vset.pattern.permute.xlu0 1
    %3179 = vperm.xlu0 %3178, %v3026
    %v3180 = vpop.permute.xlu0 %3179
    %3182 = vset.pattern.permute.xlu0 1
    %3183 = vperm.xlu0 %3182, %v3027
    %v3184 = vpop.permute.xlu0 %3183
    %3186 = vset.pattern.permute.xlu0 1
    %3187 = vperm.xlu0 %3186, %v3028
    %v3188 = vpop.permute.xlu0 %3187
    %3190 = vset.pattern.permute.xlu0 1
    %3191 = vperm.xlu0 %3190, %v3029
    %v3192 = vpop.permute.xlu0 %3191
    %3194 = vset.pattern.permute.xlu0 1
    %3195 = vperm.xlu0 %3194, %v3030
    %v3196 = vpop.permute.xlu0 %3195
    %3198 = vset.pattern.permute.xlu0 1
    %3199 = vperm.xlu0 %3198, %v3031
    %v3200 = vpop.permute.xlu0 %3199
    %3202 = vset.pattern.permute.xlu0 1
    %3203 = vperm.xlu0 %3202, %v3032
    %v3204 = vpop.permute.xlu0 %3203
    %3206 = vset.pattern.permute.xlu0 1
    %3207 = vperm.xlu0 %3206, %v3033
    %v3208 = vpop.permute.xlu0 %3207
    %v3210 = vadd.f32 %v3170, %v3180
    %v3211 = vadd.f32 %v3171, %v3184
    %v3212 = vadd.f32 %v3172, %v3188
    %v3213 = vadd.f32 %v3173, %v3192
    %v3214 = vadd.f32 %v3174, %v3196
    %v3215 = vadd.f32 %v3175, %v3200
    %v3216 = vadd.f32 %v3176, %v3204
    %v3217 = vadd.f32 %v3177, %v3208
    %v3218 = vmax.f32 %v3210, 0.0
    %v3219 = vmax.f32 %v3211, 0.0
    %v3220 = vmax.f32 %v3212, 0.0
    %v3221 = vmax.f32 %v3213, 0.0
    %v3222 = vmax.f32 %v3214, 0.0
    %v3223 = vmax.f32 %v3215, 0.0
    %v3224 = vmax.f32 %v3216, 0.0
    %v3225 = vmax.f32 %v3217, 0.0
    %s3226 = scalar_lea.vmem %s3, 128
    %v3227 = vld [vmem:[%s3226] sm:$0xff]
    %v3228 = vld [vmem:[%s3226 + $0x8] sm:$0xff]
    %v3229 = vld [vmem:[%s3226 + $0x10] sm:$0xff]
    %v3230 = vld [vmem:[%s3226 + $0x18] sm:$0xff]
    %v3231 = vld [vmem:[%s3226 + $0x20] sm:$0xff]
    %v3232 = vld [vmem:[%s3226 + $0x28] sm:$0xff]
    %v3233 = vld [vmem:[%s3226 + $0x30] sm:$0xff]
    %v3234 = vld [vmem:[%s3226 + $0x38] sm:$0xff]
    %v3236 = vsel %vm2254, %v3227, 0
    %v3239 = vsel %vm2254, %v3228, 0
    %v3242 = vsel %vm2254, %v3229, 0
    %v3245 = vsel %vm2254, %v3230, 0
    %v3248 = vsel %vm2254, %v3231, 0
    %v3251 = vsel %vm2254, %v3232, 0
    %v3254 = vsel %vm2254, %v3233, 0
    %v3257 = vsel %vm2254, %v3234, 0
    %3259 = vmatprep.subr.mxu0 %v3218
    %3260 = vmatpush1.msra.mxu0 %v3130
    %3261 = vmatprep.subr.mxu0 %v3219
    %3262 = vmatpush1.msra.mxu0 %v3131
    %3263 = vmatprep.subr.mxu0 %v3220
    %3264 = vmatpush1.msra.mxu0 %v3132
    %3265 = vmatprep.subr.mxu0 %v3221
    %3266 = vmatpush1.msra.mxu0 %v3133
    %3267 = vmatprep.subr.mxu0 %v3222
    %3268 = vmatpush1.msra.mxu0 %v3134
    %3269 = vmatprep.subr.mxu0 %v3223
    %3270 = vmatpush1.msra.mxu0 %v3135
    %3271 = vmatprep.subr.mxu0 %v3224
    %3272 = vmatpush1.msra.mxu0 %v3136
    %3273 = vmatprep.subr.mxu0 %v3225
    %3274 = vmatpush1.msra.mxu0 %v3137
    %3275 = vmatprep.subr.mxu0 0.0
    %3276 = vmatpush1.msra.mxu0 0.0
    %3277 = vmatprep.subr.mxu0 0.0
    %3278 = vmatpush1.msra.mxu0 0.0
    %3279 = vmatprep.subr.mxu0 0.0
    %3280 = vmatpush1.msra.mxu0 0.0
    %3281 = vmatprep.subr.mxu0 0.0
    %3282 = vmatpush1.msra.mxu0 0.0
    %3283 = vmatprep.subr.mxu0 0.0
    %3284 = vmatpush1.msra.mxu0 0.0
    %3285 = vmatprep.subr.mxu0 0.0
    %3286 = vmatpush1.msra.mxu0 0.0
    %3287 = vmatprep.subr.mxu0 0.0
    %3288 = vmatpush1.msra.mxu0 0.0
    %3289 = vmatprep.subr.mxu0 0.0
    %3290 = vmatpush1.msra.mxu0 0.0
    %3291 = vmatprep.subr.mxu0 0.0
    %3292 = vmatpush1.msra.mxu0 0.0
    %3293 = vmatprep.subr.mxu0 0.0
    %3294 = vmatpush1.msra.mxu0 0.0
    %3295 = vmatprep.subr.mxu0 0.0
    %3296 = vmatpush1.msra.mxu0 0.0
    %3297 = vmatprep.subr.mxu0 0.0
    %3298 = vmatpush1.msra.mxu0 0.0
    %3299 = vmatprep.subr.mxu0 0.0
    %3300 = vmatpush1.msra.mxu0 0.0
    %3301 = vmatprep.subr.mxu0 0.0
    %3302 = vmatpush1.msra.mxu0 0.0
    %3303 = vmatprep.subr.mxu0 0.0
    %3304 = vmatpush1.msra.mxu0 0.0
    %3305 = vmatprep.subr.mxu0 0.0
    %3306 = vmatpush1.msra.mxu0 0.0
    %3307 = vmatprep.subr.mxu0 0.0
    %3308 = vmatpush1.msra.mxu0 0.0
    %3309 = vmatprep.subr.mxu0 0.0
    %3310 = vmatpush1.msra.mxu0 0.0
    %3311 = vmatprep.subr.mxu0 0.0
    %3312 = vmatpush1.msra.mxu0 0.0
    %3313 = vmatprep.subr.mxu0 0.0
    %3314 = vmatpush1.msra.mxu0 0.0
    %3315 = vmatprep.subr.mxu0 0.0
    %3316 = vmatpush1.msra.mxu0 0.0
    %3317 = vmatprep.subr.mxu0 0.0
    %3318 = vmatpush1.msra.mxu0 0.0
    %3319 = vmatprep.subr.mxu0 0.0
    %3320 = vmatpush1.msra.mxu0 0.0
    %3321 = vmatprep.subr.mxu0 0.0
    %3322 = vmatpush1.msra.mxu0 0.0
    %3323 = vmatprep.mubr.f32.mxu0 0.0
    %3324 = vmatmul.mubr.f32.gmra.mrb[0].mxu0 %v3236
    %v3325 = vpop.f32.mrb[0].mxu0
    %v3326 = vadd.f32 0.0, %v3325
    %v3327 = vpop.f32.mrb[0].mxu0
    %v3328 = vadd.f32 0.0, %v3327
    %3329 = vmatprep.mubr.f32.mxu0 0.0
    %3330 = vmatmul.mubr.f32.gmra.mrb[0].mxu0 %v3239
    %v3331 = vpop.f32.mrb[0].mxu0
    %v3332 = vadd.f32 0.0, %v3331
    %v3333 = vpop.f32.mrb[0].mxu0
    %v3334 = vadd.f32 0.0, %v3333
    %3335 = vmatprep.mubr.f32.mxu0 0.0
    %3336 = vmatmul.mubr.f32.gmra.mrb[0].mxu0 %v3242
    %v3337 = vpop.f32.mrb[0].mxu0
    %v3338 = vadd.f32 0.0, %v3337
    %v3339 = vpop.f32.mrb[0].mxu0
    %v3340 = vadd.f32 0.0, %v3339
    %3341 = vmatprep.mubr.f32.mxu0 0.0
    %3342 = vmatmul.mubr.f32.gmra.mrb[0].mxu0 %v3245
    %v3343 = vpop.f32.mrb[0].mxu0
    %v3344 = vadd.f32 0.0, %v3343
    %v3345 = vpop.f32.mrb[0].mxu0
    %v3346 = vadd.f32 0.0, %v3345
    %3347 = vmatprep.mubr.f32.mxu0 0.0
    %3348 = vmatmul.mubr.f32.gmra.mrb[0].mxu0 %v3248
    %v3349 = vpop.f32.mrb[0].mxu0
    %v3350 = vadd.f32 0.0, %v3349
    %v3351 = vpop.f32.mrb[0].mxu0
    %v3352 = vadd.f32 0.0, %v3351
    %3353 = vmatprep.mubr.f32.mxu0 0.0
    %3354 = vmatmul.mubr.f32.gmra.mrb[0].mxu0 %v3251
    %v3355 = vpop.f32.mrb[0].mxu0
    %v3356 = vadd.f32 0.0, %v3355
    %v3357 = vpop.f32.mrb[0].mxu0
    %v3358 = vadd.f32 0.0, %v3357
    %3359 = vmatprep.mubr.f32.mxu0 0.0
    %3360 = vmatmul.mubr.f32.gmra.mrb[0].mxu0 %v3254
    %v3361 = vpop.f32.mrb[0].mxu0
    %v3362 = vadd.f32 0.0, %v3361
    %v3363 = vpop.f32.mrb[0].mxu0
    %v3364 = vadd.f32 0.0, %v3363
    %3365 = vmatprep.mubr.f32.mxu0 0.0
    %3366 = vmatmul.mubr.f32.gmra.mrb[0].mxu0 %v3257
    %v3367 = vpop.f32.mrb[0].mxu0
    %v3368 = vadd.f32 0.0, %v3367
    %v3369 = vpop.f32.mrb[0].mxu0
    %v3370 = vadd.f32 0.0, %v3369
    %3371 = vdwg.mxu0
    %v3372 = vadd.f32 %v3326, %v3328
    %3373 = vadd.xlane.f32.xlu0 %v3372
    %v3374 = vpop.xlane.xlu0 %3373
    %v3375 = vadd.f32 %v3332, %v3334
    %3376 = vadd.xlane.f32.xlu0 %v3375
    %v3377 = vpop.xlane.xlu0 %3376
    %v3378 = vadd.f32 %v3338, %v3340
    %3379 = vadd.xlane.f32.xlu0 %v3378
    %v3380 = vpop.xlane.xlu0 %3379
    %v3381 = vadd.f32 %v3344, %v3346
    %3382 = vadd.xlane.f32.xlu0 %v3381
    %v3383 = vpop.xlane.xlu0 %3382
    %v3384 = vadd.f32 %v3350, %v3352
    %3385 = vadd.xlane.f32.xlu0 %v3384
    %v3386 = vpop.xlane.xlu0 %3385
    %v3387 = vadd.f32 %v3356, %v3358
    %3388 = vadd.xlane.f32.xlu0 %v3387
    %v3389 = vpop.xlane.xlu0 %3388
    %v3390 = vadd.f32 %v3362, %v3364
    %3391 = vadd.xlane.f32.xlu0 %v3390
    %v3392 = vpop.xlane.xlu0 %3391
    %v3393 = vadd.f32 %v3368, %v3370
    %3394 = vadd.xlane.f32.xlu0 %v3393
    %v3395 = vpop.xlane.xlu0 %3394
    %v3396 = vmul.f32 %v3326, %v3326
    %v3397 = vmul.f32 %v3328, %v3328
    %v3398 = vmul.f32 %v3332, %v3332
    %v3399 = vmul.f32 %v3334, %v3334
    %v3400 = vmul.f32 %v3338, %v3338
    %v3401 = vmul.f32 %v3340, %v3340
    %v3402 = vmul.f32 %v3344, %v3344
    %v3403 = vmul.f32 %v3346, %v3346
    %v3404 = vmul.f32 %v3350, %v3350
    %v3405 = vmul.f32 %v3352, %v3352
    %v3406 = vmul.f32 %v3356, %v3356
    %v3407 = vmul.f32 %v3358, %v3358
    %v3408 = vmul.f32 %v3362, %v3362
    %v3409 = vmul.f32 %v3364, %v3364
    %v3410 = vmul.f32 %v3368, %v3368
    %v3411 = vmul.f32 %v3370, %v3370
    %v3412 = vadd.f32 %v3396, %v3397
    %3413 = vadd.xlane.f32.xlu0 %v3412
    %v3414 = vpop.xlane.xlu0 %3413
    %v3415 = vadd.f32 %v3398, %v3399
    %3416 = vadd.xlane.f32.xlu0 %v3415
    %v3417 = vpop.xlane.xlu0 %3416
    %v3418 = vadd.f32 %v3400, %v3401
    %3419 = vadd.xlane.f32.xlu0 %v3418
    %v3420 = vpop.xlane.xlu0 %3419
    %v3421 = vadd.f32 %v3402, %v3403
    %3422 = vadd.xlane.f32.xlu0 %v3421
    %v3423 = vpop.xlane.xlu0 %3422
    %v3424 = vadd.f32 %v3404, %v3405
    %3425 = vadd.xlane.f32.xlu0 %v3424
    %v3426 = vpop.xlane.xlu0 %3425
    %v3427 = vadd.f32 %v3406, %v3407
    %3428 = vadd.xlane.f32.xlu0 %v3427
    %v3429 = vpop.xlane.xlu0 %3428
    %v3430 = vadd.f32 %v3408, %v3409
    %3431 = vadd.xlane.f32.xlu0 %v3430
    %v3432 = vpop.xlane.xlu0 %3431
    %v3433 = vadd.f32 %v3410, %v3411
    %3434 = vadd.xlane.f32.xlu0 %v3433
    %v3435 = vpop.xlane.xlu0 %3434
    %v3436 = vmul.f32 %v3374, 0.00390625
    %v3437 = vmul.f32 %v3377, 0.00390625
    %v3438 = vmul.f32 %v3380, 0.00390625
    %v3439 = vmul.f32 %v3383, 0.00390625
    %v3440 = vmul.f32 %v3386, 0.00390625
    %v3441 = vmul.f32 %v3389, 0.00390625
    %v3442 = vmul.f32 %v3392, 0.00390625
    %v3443 = vmul.f32 %v3395, 0.00390625
    %v3444 = vmul.f32 %v3414, 0.00390625
    %v3445 = vmul.f32 %v3417, 0.00390625
    %v3446 = vmul.f32 %v3420, 0.00390625
    %v3447 = vmul.f32 %v3423, 0.00390625
    %v3448 = vmul.f32 %v3426, 0.00390625
    %v3449 = vmul.f32 %v3429, 0.00390625
    %v3450 = vmul.f32 %v3432, 0.00390625
    %v3451 = vmul.f32 %v3435, 0.00390625
    %v3452 = vmul.f32 %v3436, %v3436
    %v3453 = vmul.f32 %v3437, %v3437
    %v3454 = vmul.f32 %v3438, %v3438
    %v3455 = vmul.f32 %v3439, %v3439
    %v3456 = vmul.f32 %v3440, %v3440
    %v3457 = vmul.f32 %v3441, %v3441
    %v3458 = vmul.f32 %v3442, %v3442
    %v3459 = vmul.f32 %v3443, %v3443
    %v3460 = vsub.f32 %v3444, %v3452
    %v3461 = vsub.f32 %v3445, %v3453
    %v3462 = vsub.f32 %v3446, %v3454
    %v3463 = vsub.f32 %v3447, %v3455
    %v3464 = vsub.f32 %v3448, %v3456
    %v3465 = vsub.f32 %v3449, %v3457
    %v3466 = vsub.f32 %v3450, %v3458
    %v3467 = vsub.f32 %v3451, %v3459
    %v3468 = vmax.f32 %v3460, 0.0
    %v3469 = vmax.f32 %v3461, 0.0
    %v3470 = vmax.f32 %v3462, 0.0
    %v3471 = vmax.f32 %v3463, 0.0
    %v3472 = vmax.f32 %v3464, 0.0
    %v3473 = vmax.f32 %v3465, 0.0
    %v3474 = vmax.f32 %v3466, 0.0
    %v3475 = vmax.f32 %v3467, 0.0
    %v3476 = vadd.f32 %v3468, 1e-05
    %v3477 = vadd.f32 %v3469, 1e-05
    %v3478 = vadd.f32 %v3470, 1e-05
    %v3479 = vadd.f32 %v3471, 1e-05
    %v3480 = vadd.f32 %v3472, 1e-05
    %v3481 = vadd.f32 %v3473, 1e-05
    %v3482 = vadd.f32 %v3474, 1e-05
    %v3483 = vadd.f32 %v3475, 1e-05
    %v3484 = vrsqrt.pop %v3476
    %v3485 = vrsqrt.pop %v3477
    %v3486 = vrsqrt.pop %v3478
    %v3487 = vrsqrt.pop %v3479
    %v3488 = vrsqrt.pop %v3480
    %v3489 = vrsqrt.pop %v3481
    %v3490 = vrsqrt.pop %v3482
    %v3491 = vrsqrt.pop %v3483
    %v3492 = vmul.f32 %v1042, %v3484
    %v3493 = vmul.f32 %v1047, %v3485
    %v3494 = vmul.f32 %v1052, %v3486
    %v3495 = vmul.f32 %v1057, %v3487
    %v3496 = vmul.f32 %v1062, %v3488
    %v3497 = vmul.f32 %v1067, %v3489
    %v3498 = vmul.f32 %v1072, %v3490
    %v3499 = vmul.f32 %v1077, %v3491
    %v3500 = vmul.f32 %v3492, %v3436
    %v3501 = vmul.f32 %v3493, %v3437
    %v3502 = vmul.f32 %v3494, %v3438
    %v3503 = vmul.f32 %v3495, %v3439
    %v3504 = vmul.f32 %v3496, %v3440
    %v3505 = vmul.f32 %v3497, %v3441
    %v3506 = vmul.f32 %v3498, %v3442
    %v3507 = vmul.f32 %v3499, %v3443
    %v3508 = vsub.f32 %v1082, %v3500
    %v3509 = vsub.f32 %v1087, %v3501
    %v3510 = vsub.f32 %v1092, %v3502
    %v3511 = vsub.f32 %v1097, %v3503
    %v3512 = vsub.f32 %v1102, %v3504
    %v3513 = vsub.f32 %v1107, %v3505
    %v3514 = vsub.f32 %v1112, %v3506
    %v3515 = vsub.f32 %v1117, %v3507
    %3517 = vset.pattern.permute.xlu0 0
    %3518 = vperm.xlu0 %3517, %v3492
    %v3519 = vpop.permute.xlu0 %3518
    %3522 = vset.pattern.permute.xlu0 0
    %3523 = vperm.xlu0 %3522, %v3493
    %v3524 = vpop.permute.xlu0 %3523
    %3527 = vset.pattern.permute.xlu0 0
    %3528 = vperm.xlu0 %3527, %v3494
    %v3529 = vpop.permute.xlu0 %3528
    %3532 = vset.pattern.permute.xlu0 0
    %3533 = vperm.xlu0 %3532, %v3495
    %v3534 = vpop.permute.xlu0 %3533
    %3537 = vset.pattern.permute.xlu0 0
    %3538 = vperm.xlu0 %3537, %v3496
    %v3539 = vpop.permute.xlu0 %3538
    %3542 = vset.pattern.permute.xlu0 0
    %3543 = vperm.xlu0 %3542, %v3497
    %v3544 = vpop.permute.xlu0 %3543
    %3547 = vset.pattern.permute.xlu0 0
    %3548 = vperm.xlu0 %3547, %v3498
    %v3549 = vpop.permute.xlu0 %3548
    %3552 = vset.pattern.permute.xlu0 0
    %3553 = vperm.xlu0 %3552, %v3499
    %v3554 = vpop.permute.xlu0 %3553
    %v3556 = vmul.f32 %v3519, %v3326
    %v3557 = vmul.f32 %v3524, %v3332
    %v3558 = vmul.f32 %v3529, %v3338
    %v3559 = vmul.f32 %v3534, %v3344
    %v3560 = vmul.f32 %v3539, %v3350
    %v3561 = vmul.f32 %v3544, %v3356
    %v3562 = vmul.f32 %v3549, %v3362
    %v3563 = vmul.f32 %v3554, %v3368
    %3565 = vset.pattern.permute.xlu0 0
    %3566 = vperm.xlu0 %3565, %v3508
    %v3567 = vpop.permute.xlu0 %3566
    %3570 = vset.pattern.permute.xlu0 0
    %3571 = vperm.xlu0 %3570, %v3509
    %v3572 = vpop.permute.xlu0 %3571
    %3575 = vset.pattern.permute.xlu0 0
    %3576 = vperm.xlu0 %3575, %v3510
    %v3577 = vpop.permute.xlu0 %3576
    %3580 = vset.pattern.permute.xlu0 0
    %3581 = vperm.xlu0 %3580, %v3511
    %v3582 = vpop.permute.xlu0 %3581
    %3585 = vset.pattern.permute.xlu0 0
    %3586 = vperm.xlu0 %3585, %v3512
    %v3587 = vpop.permute.xlu0 %3586
    %3590 = vset.pattern.permute.xlu0 0
    %3591 = vperm.xlu0 %3590, %v3513
    %v3592 = vpop.permute.xlu0 %3591
    %3595 = vset.pattern.permute.xlu0 0
    %3596 = vperm.xlu0 %3595, %v3514
    %v3597 = vpop.permute.xlu0 %3596
    %3600 = vset.pattern.permute.xlu0 0
    %3601 = vperm.xlu0 %3600, %v3515
    %v3602 = vpop.permute.xlu0 %3601
    %v3604 = vadd.f32 %v3556, %v3567
    %v3605 = vadd.f32 %v3557, %v3572
    %v3606 = vadd.f32 %v3558, %v3577
    %v3607 = vadd.f32 %v3559, %v3582
    %v3608 = vadd.f32 %v3560, %v3587
    %v3609 = vadd.f32 %v3561, %v3592
    %v3610 = vadd.f32 %v3562, %v3597
    %v3611 = vadd.f32 %v3563, %v3602
    %v3612 = vmax.f32 %v3604, 0.0
    %v3613 = vmax.f32 %v3605, 0.0
    %v3614 = vmax.f32 %v3606, 0.0
    %v3615 = vmax.f32 %v3607, 0.0
    %v3616 = vmax.f32 %v3608, 0.0
    %v3617 = vmax.f32 %v3609, 0.0
    %v3618 = vmax.f32 %v3610, 0.0
    %v3619 = vmax.f32 %v3611, 0.0
    %3620 = vset.pattern.permute.xlu0 1
    %3621 = vperm.xlu0 %3620, %v3492
    %v3622 = vpop.permute.xlu0 %3621
    %3624 = vset.pattern.permute.xlu0 1
    %3625 = vperm.xlu0 %3624, %v3493
    %v3626 = vpop.permute.xlu0 %3625
    %3628 = vset.pattern.permute.xlu0 1
    %3629 = vperm.xlu0 %3628, %v3494
    %v3630 = vpop.permute.xlu0 %3629
    %3632 = vset.pattern.permute.xlu0 1
    %3633 = vperm.xlu0 %3632, %v3495
    %v3634 = vpop.permute.xlu0 %3633
    %3636 = vset.pattern.permute.xlu0 1
    %3637 = vperm.xlu0 %3636, %v3496
    %v3638 = vpop.permute.xlu0 %3637
    %3640 = vset.pattern.permute.xlu0 1
    %3641 = vperm.xlu0 %3640, %v3497
    %v3642 = vpop.permute.xlu0 %3641
    %3644 = vset.pattern.permute.xlu0 1
    %3645 = vperm.xlu0 %3644, %v3498
    %v3646 = vpop.permute.xlu0 %3645
    %3648 = vset.pattern.permute.xlu0 1
    %3649 = vperm.xlu0 %3648, %v3499
    %v3650 = vpop.permute.xlu0 %3649
    %v3652 = vmul.f32 %v3622, %v3328
    %v3653 = vmul.f32 %v3626, %v3334
    %v3654 = vmul.f32 %v3630, %v3340
    %v3655 = vmul.f32 %v3634, %v3346
    %v3656 = vmul.f32 %v3638, %v3352
    %v3657 = vmul.f32 %v3642, %v3358
    %v3658 = vmul.f32 %v3646, %v3364
    %v3659 = vmul.f32 %v3650, %v3370
    %3660 = vset.pattern.permute.xlu0 1
    %3661 = vperm.xlu0 %3660, %v3508
    %v3662 = vpop.permute.xlu0 %3661
    %3664 = vset.pattern.permute.xlu0 1
    %3665 = vperm.xlu0 %3664, %v3509
    %v3666 = vpop.permute.xlu0 %3665
    %3668 = vset.pattern.permute.xlu0 1
    %3669 = vperm.xlu0 %3668, %v3510
    %v3670 = vpop.permute.xlu0 %3669
    %3672 = vset.pattern.permute.xlu0 1
    %3673 = vperm.xlu0 %3672, %v3511
    %v3674 = vpop.permute.xlu0 %3673
    %3676 = vset.pattern.permute.xlu0 1
    %3677 = vperm.xlu0 %3676, %v3512
    %v3678 = vpop.permute.xlu0 %3677
    %3680 = vset.pattern.permute.xlu0 1
    %3681 = vperm.xlu0 %3680, %v3513
    %v3682 = vpop.permute.xlu0 %3681
    %3684 = vset.pattern.permute.xlu0 1
    %3685 = vperm.xlu0 %3684, %v3514
    %v3686 = vpop.permute.xlu0 %3685
    %3688 = vset.pattern.permute.xlu0 1
    %3689 = vperm.xlu0 %3688, %v3515
    %v3690 = vpop.permute.xlu0 %3689
    %v3692 = vadd.f32 %v3652, %v3662
    %v3693 = vadd.f32 %v3653, %v3666
    %v3694 = vadd.f32 %v3654, %v3670
    %v3695 = vadd.f32 %v3655, %v3674
    %v3696 = vadd.f32 %v3656, %v3678
    %v3697 = vadd.f32 %v3657, %v3682
    %v3698 = vadd.f32 %v3658, %v3686
    %v3699 = vadd.f32 %v3659, %v3690
    %v3700 = vmax.f32 %v3692, 0.0
    %v3701 = vmax.f32 %v3693, 0.0
    %v3702 = vmax.f32 %v3694, 0.0
    %v3703 = vmax.f32 %v3695, 0.0
    %v3704 = vmax.f32 %v3696, 0.0
    %v3705 = vmax.f32 %v3697, 0.0
    %v3706 = vmax.f32 %v3698, 0.0
    %v3707 = vmax.f32 %v3699, 0.0
    %s3708 = scalar_lea.vmem %s3, 192
    %v3709 = vld [vmem:[%s3708] sm:$0xff]
    %v3710 = vld [vmem:[%s3708 + $0x8] sm:$0xff]
    %v3711 = vld [vmem:[%s3708 + $0x10] sm:$0xff]
    %v3712 = vld [vmem:[%s3708 + $0x18] sm:$0xff]
    %v3713 = vld [vmem:[%s3708 + $0x20] sm:$0xff]
    %v3714 = vld [vmem:[%s3708 + $0x28] sm:$0xff]
    %v3715 = vld [vmem:[%s3708 + $0x30] sm:$0xff]
    %v3716 = vld [vmem:[%s3708 + $0x38] sm:$0xff]
    %v3718 = vsel %vm2254, %v3709, 0
    %v3721 = vsel %vm2254, %v3710, 0
    %v3724 = vsel %vm2254, %v3711, 0
    %v3727 = vsel %vm2254, %v3712, 0
    %v3730 = vsel %vm2254, %v3713, 0
    %v3733 = vsel %vm2254, %v3714, 0
    %v3736 = vsel %vm2254, %v3715, 0
    %v3739 = vsel %vm2254, %v3716, 0
    %3741 = vmatprep.subr.mxu0 %v3700
    %3742 = vmatpush1.msra.mxu0 %v3612
    %3743 = vmatprep.subr.mxu0 %v3701
    %3744 = vmatpush1.msra.mxu0 %v3613
    %3745 = vmatprep.subr.mxu0 %v3702
    %3746 = vmatpush1.msra.mxu0 %v3614
    %3747 = vmatprep.subr.mxu0 %v3703
    %3748 = vmatpush1.msra.mxu0 %v3615
    %3749 = vmatprep.subr.mxu0 %v3704
    %3750 = vmatpush1.msra.mxu0 %v3616
    %3751 = vmatprep.subr.mxu0 %v3705
    %3752 = vmatpush1.msra.mxu0 %v3617
    %3753 = vmatprep.subr.mxu0 %v3706
    %3754 = vmatpush1.msra.mxu0 %v3618
    %3755 = vmatprep.subr.mxu0 %v3707
    %3756 = vmatpush1.msra.mxu0 %v3619
    %3757 = vmatprep.subr.mxu0 0.0
    %3758 = vmatpush1.msra.mxu0 0.0
    %3759 = vmatprep.subr.mxu0 0.0
    %3760 = vmatpush1.msra.mxu0 0.0
    %3761 = vmatprep.subr.mxu0 0.0
    %3762 = vmatpush1.msra.mxu0 0.0
    %3763 = vmatprep.subr.mxu0 0.0
    %3764 = vmatpush1.msra.mxu0 0.0
    %3765 = vmatprep.subr.mxu0 0.0
    %3766 = vmatpush1.msra.mxu0 0.0
    %3767 = vmatprep.subr.mxu0 0.0
    %3768 = vmatpush1.msra.mxu0 0.0
    %3769 = vmatprep.subr.mxu0 0.0
    %3770 = vmatpush1.msra.mxu0 0.0
    %3771 = vmatprep.subr.mxu0 0.0
    %3772 = vmatpush1.msra.mxu0 0.0
    %3773 = vmatprep.subr.mxu0 0.0
    %3774 = vmatpush1.msra.mxu0 0.0
    %3775 = vmatprep.subr.mxu0 0.0
    %3776 = vmatpush1.msra.mxu0 0.0
    %3777 = vmatprep.subr.mxu0 0.0
    %3778 = vmatpush1.msra.mxu0 0.0
    %3779 = vmatprep.subr.mxu0 0.0
    %3780 = vmatpush1.msra.mxu0 0.0
    %3781 = vmatprep.subr.mxu0 0.0
    %3782 = vmatpush1.msra.mxu0 0.0
    %3783 = vmatprep.subr.mxu0 0.0
    %3784 = vmatpush1.msra.mxu0 0.0
    %3785 = vmatprep.subr.mxu0 0.0
    %3786 = vmatpush1.msra.mxu0 0.0
    %3787 = vmatprep.subr.mxu0 0.0
    %3788 = vmatpush1.msra.mxu0 0.0
    %3789 = vmatprep.subr.mxu0 0.0
    %3790 = vmatpush1.msra.mxu0 0.0
    %3791 = vmatprep.subr.mxu0 0.0
    %3792 = vmatpush1.msra.mxu0 0.0
    %3793 = vmatprep.subr.mxu0 0.0
    %3794 = vmatpush1.msra.mxu0 0.0
    %3795 = vmatprep.subr.mxu0 0.0
    %3796 = vmatpush1.msra.mxu0 0.0
    %3797 = vmatprep.subr.mxu0 0.0
    %3798 = vmatpush1.msra.mxu0 0.0
    %3799 = vmatprep.subr.mxu0 0.0
    %3800 = vmatpush1.msra.mxu0 0.0
    %3801 = vmatprep.subr.mxu0 0.0
    %3802 = vmatpush1.msra.mxu0 0.0
    %3803 = vmatprep.subr.mxu0 0.0
    %3804 = vmatpush1.msra.mxu0 0.0
    %3805 = vmatprep.mubr.f32.mxu0 0.0
    %3806 = vmatmul.mubr.f32.gmra.mrb[0].mxu0 %v3718
    %v3807 = vpop.f32.mrb[0].mxu0
    %v3808 = vadd.f32 0.0, %v3807
    %v3809 = vpop.f32.mrb[0].mxu0
    %v3810 = vadd.f32 0.0, %v3809
    %3811 = vmatprep.mubr.f32.mxu0 0.0
    %3812 = vmatmul.mubr.f32.gmra.mrb[0].mxu0 %v3721
    %v3813 = vpop.f32.mrb[0].mxu0
    %v3814 = vadd.f32 0.0, %v3813
    %v3815 = vpop.f32.mrb[0].mxu0
    %v3816 = vadd.f32 0.0, %v3815
    %3817 = vmatprep.mubr.f32.mxu0 0.0
    %3818 = vmatmul.mubr.f32.gmra.mrb[0].mxu0 %v3724
    %v3819 = vpop.f32.mrb[0].mxu0
    %v3820 = vadd.f32 0.0, %v3819
    %v3821 = vpop.f32.mrb[0].mxu0
    %v3822 = vadd.f32 0.0, %v3821
    %3823 = vmatprep.mubr.f32.mxu0 0.0
    %3824 = vmatmul.mubr.f32.gmra.mrb[0].mxu0 %v3727
    %v3825 = vpop.f32.mrb[0].mxu0
    %v3826 = vadd.f32 0.0, %v3825
    %v3827 = vpop.f32.mrb[0].mxu0
    %v3828 = vadd.f32 0.0, %v3827
    %3829 = vmatprep.mubr.f32.mxu0 0.0
    %3830 = vmatmul.mubr.f32.gmra.mrb[0].mxu0 %v3730
    %v3831 = vpop.f32.mrb[0].mxu0
    %v3832 = vadd.f32 0.0, %v3831
    %v3833 = vpop.f32.mrb[0].mxu0
    %v3834 = vadd.f32 0.0, %v3833
    %3835 = vmatprep.mubr.f32.mxu0 0.0
    %3836 = vmatmul.mubr.f32.gmra.mrb[0].mxu0 %v3733
    %v3837 = vpop.f32.mrb[0].mxu0
    %v3838 = vadd.f32 0.0, %v3837
    %v3839 = vpop.f32.mrb[0].mxu0
    %v3840 = vadd.f32 0.0, %v3839
    %3841 = vmatprep.mubr.f32.mxu0 0.0
    %3842 = vmatmul.mubr.f32.gmra.mrb[0].mxu0 %v3736
    %v3843 = vpop.f32.mrb[0].mxu0
    %v3844 = vadd.f32 0.0, %v3843
    %v3845 = vpop.f32.mrb[0].mxu0
    %v3846 = vadd.f32 0.0, %v3845
    %3847 = vmatprep.mubr.f32.mxu0 0.0
    %3848 = vmatmul.mubr.f32.gmra.mrb[0].mxu0 %v3739
    %v3849 = vpop.f32.mrb[0].mxu0
    %v3850 = vadd.f32 0.0, %v3849
    %v3851 = vpop.f32.mrb[0].mxu0
    %v3852 = vadd.f32 0.0, %v3851
    %3853 = vdwg.mxu0
    %v3854 = vadd.f32 %v2874, %v3808
    %v3855 = vadd.f32 %v2875, %v3810
    %v3856 = vadd.f32 %v2876, %v3814
    %v3857 = vadd.f32 %v2877, %v3816
    %v3858 = vadd.f32 %v2878, %v3820
    %v3859 = vadd.f32 %v2879, %v3822
    %v3860 = vadd.f32 %v2880, %v3826
    %v3861 = vadd.f32 %v2881, %v3828
    %v3862 = vadd.f32 %v2882, %v3832
    %v3863 = vadd.f32 %v2883, %v3834
    %v3864 = vadd.f32 %v2884, %v3838
    %v3865 = vadd.f32 %v2885, %v3840
    %v3866 = vadd.f32 %v2886, %v3844
    %v3867 = vadd.f32 %v2887, %v3846
    %v3868 = vadd.f32 %v2888, %v3850
    %v3869 = vadd.f32 %v2889, %v3852
    %v3870 = vadd.f32 %v3854, %v3855
    %3871 = vadd.xlane.f32.xlu0 %v3870
    %v3872 = vpop.xlane.xlu0 %3871
    %v3873 = vadd.f32 %v3856, %v3857
    %3874 = vadd.xlane.f32.xlu0 %v3873
    %v3875 = vpop.xlane.xlu0 %3874
    %v3876 = vadd.f32 %v3858, %v3859
    %3877 = vadd.xlane.f32.xlu0 %v3876
    %v3878 = vpop.xlane.xlu0 %3877
    %v3879 = vadd.f32 %v3860, %v3861
    %3880 = vadd.xlane.f32.xlu0 %v3879
    %v3881 = vpop.xlane.xlu0 %3880
    %v3882 = vadd.f32 %v3862, %v3863
    %3883 = vadd.xlane.f32.xlu0 %v3882
    %v3884 = vpop.xlane.xlu0 %3883
    %v3885 = vadd.f32 %v3864, %v3865
    %3886 = vadd.xlane.f32.xlu0 %v3885
    %v3887 = vpop.xlane.xlu0 %3886
    %v3888 = vadd.f32 %v3866, %v3867
    %3889 = vadd.xlane.f32.xlu0 %v3888
    %v3890 = vpop.xlane.xlu0 %3889
    %v3891 = vadd.f32 %v3868, %v3869
    %3892 = vadd.xlane.f32.xlu0 %v3891
    %v3893 = vpop.xlane.xlu0 %3892
    %v3894 = vmul.f32 %v3854, %v3854
    %v3895 = vmul.f32 %v3855, %v3855
    %v3896 = vmul.f32 %v3856, %v3856
    %v3897 = vmul.f32 %v3857, %v3857
    %v3898 = vmul.f32 %v3858, %v3858
    %v3899 = vmul.f32 %v3859, %v3859
    %v3900 = vmul.f32 %v3860, %v3860
    %v3901 = vmul.f32 %v3861, %v3861
    %v3902 = vmul.f32 %v3862, %v3862
    %v3903 = vmul.f32 %v3863, %v3863
    %v3904 = vmul.f32 %v3864, %v3864
    %v3905 = vmul.f32 %v3865, %v3865
    %v3906 = vmul.f32 %v3866, %v3866
    %v3907 = vmul.f32 %v3867, %v3867
    %v3908 = vmul.f32 %v3868, %v3868
    %v3909 = vmul.f32 %v3869, %v3869
    %v3910 = vadd.f32 %v3894, %v3895
    %3911 = vadd.xlane.f32.xlu0 %v3910
    %v3912 = vpop.xlane.xlu0 %3911
    %v3913 = vadd.f32 %v3896, %v3897
    %3914 = vadd.xlane.f32.xlu0 %v3913
    %v3915 = vpop.xlane.xlu0 %3914
    %v3916 = vadd.f32 %v3898, %v3899
    %3917 = vadd.xlane.f32.xlu0 %v3916
    %v3918 = vpop.xlane.xlu0 %3917
    %v3919 = vadd.f32 %v3900, %v3901
    %3920 = vadd.xlane.f32.xlu0 %v3919
    %v3921 = vpop.xlane.xlu0 %3920
    %v3922 = vadd.f32 %v3902, %v3903
    %3923 = vadd.xlane.f32.xlu0 %v3922
    %v3924 = vpop.xlane.xlu0 %3923
    %v3925 = vadd.f32 %v3904, %v3905
    %3926 = vadd.xlane.f32.xlu0 %v3925
    %v3927 = vpop.xlane.xlu0 %3926
    %v3928 = vadd.f32 %v3906, %v3907
    %3929 = vadd.xlane.f32.xlu0 %v3928
    %v3930 = vpop.xlane.xlu0 %3929
    %v3931 = vadd.f32 %v3908, %v3909
    %3932 = vadd.xlane.f32.xlu0 %v3931
    %v3933 = vpop.xlane.xlu0 %3932
    %v3934 = vmul.f32 %v3872, 0.00390625
    %v3935 = vmul.f32 %v3875, 0.00390625
    %v3936 = vmul.f32 %v3878, 0.00390625
    %v3937 = vmul.f32 %v3881, 0.00390625
    %v3938 = vmul.f32 %v3884, 0.00390625
    %v3939 = vmul.f32 %v3887, 0.00390625
    %v3940 = vmul.f32 %v3890, 0.00390625
    %v3941 = vmul.f32 %v3893, 0.00390625
    %v3942 = vmul.f32 %v3912, 0.00390625
    %v3943 = vmul.f32 %v3915, 0.00390625
    %v3944 = vmul.f32 %v3918, 0.00390625
    %v3945 = vmul.f32 %v3921, 0.00390625
    %v3946 = vmul.f32 %v3924, 0.00390625
    %v3947 = vmul.f32 %v3927, 0.00390625
    %v3948 = vmul.f32 %v3930, 0.00390625
    %v3949 = vmul.f32 %v3933, 0.00390625
    %v3950 = vmul.f32 %v3934, %v3934
    %v3951 = vmul.f32 %v3935, %v3935
    %v3952 = vmul.f32 %v3936, %v3936
    %v3953 = vmul.f32 %v3937, %v3937
    %v3954 = vmul.f32 %v3938, %v3938
    %v3955 = vmul.f32 %v3939, %v3939
    %v3956 = vmul.f32 %v3940, %v3940
    %v3957 = vmul.f32 %v3941, %v3941
    %v3958 = vsub.f32 %v3942, %v3950
    %v3959 = vsub.f32 %v3943, %v3951
    %v3960 = vsub.f32 %v3944, %v3952
    %v3961 = vsub.f32 %v3945, %v3953
    %v3962 = vsub.f32 %v3946, %v3954
    %v3963 = vsub.f32 %v3947, %v3955
    %v3964 = vsub.f32 %v3948, %v3956
    %v3965 = vsub.f32 %v3949, %v3957
    %v3966 = vmax.f32 %v3958, 0.0
    %v3967 = vmax.f32 %v3959, 0.0
    %v3968 = vmax.f32 %v3960, 0.0
    %v3969 = vmax.f32 %v3961, 0.0
    %v3970 = vmax.f32 %v3962, 0.0
    %v3971 = vmax.f32 %v3963, 0.0
    %v3972 = vmax.f32 %v3964, 0.0
    %v3973 = vmax.f32 %v3965, 0.0
    %v3974 = vadd.f32 %v3966, 1e-05
    %v3975 = vadd.f32 %v3967, 1e-05
    %v3976 = vadd.f32 %v3968, 1e-05
    %v3977 = vadd.f32 %v3969, 1e-05
    %v3978 = vadd.f32 %v3970, 1e-05
    %v3979 = vadd.f32 %v3971, 1e-05
    %v3980 = vadd.f32 %v3972, 1e-05
    %v3981 = vadd.f32 %v3973, 1e-05
    %v3982 = vrsqrt.pop %v3974
    %v3983 = vrsqrt.pop %v3975
    %v3984 = vrsqrt.pop %v3976
    %v3985 = vrsqrt.pop %v3977
    %v3986 = vrsqrt.pop %v3978
    %v3987 = vrsqrt.pop %v3979
    %v3988 = vrsqrt.pop %v3980
    %v3989 = vrsqrt.pop %v3981
    %v3990 = vmul.f32 %v1122, %v3982
    %v3991 = vmul.f32 %v1127, %v3983
    %v3992 = vmul.f32 %v1132, %v3984
    %v3993 = vmul.f32 %v1137, %v3985
    %v3994 = vmul.f32 %v1142, %v3986
    %v3995 = vmul.f32 %v1147, %v3987
    %v3996 = vmul.f32 %v1152, %v3988
    %v3997 = vmul.f32 %v1157, %v3989
    %v3998 = vmul.f32 %v3990, %v3934
    %v3999 = vmul.f32 %v3991, %v3935
    %v4000 = vmul.f32 %v3992, %v3936
    %v4001 = vmul.f32 %v3993, %v3937
    %v4002 = vmul.f32 %v3994, %v3938
    %v4003 = vmul.f32 %v3995, %v3939
    %v4004 = vmul.f32 %v3996, %v3940
    %v4005 = vmul.f32 %v3997, %v3941
    %v4006 = vsub.f32 %v1162, %v3998
    %v4007 = vsub.f32 %v1167, %v3999
    %v4008 = vsub.f32 %v1172, %v4000
    %v4009 = vsub.f32 %v1177, %v4001
    %v4010 = vsub.f32 %v1182, %v4002
    %v4011 = vsub.f32 %v1187, %v4003
    %v4012 = vsub.f32 %v1192, %v4004
    %v4013 = vsub.f32 %v1197, %v4005
    %4015 = vset.pattern.permute.xlu0 0
    %4016 = vperm.xlu0 %4015, %v3990
    %v4017 = vpop.permute.xlu0 %4016
    %4020 = vset.pattern.permute.xlu0 0
    %4021 = vperm.xlu0 %4020, %v3991
    %v4022 = vpop.permute.xlu0 %4021
    %4025 = vset.pattern.permute.xlu0 0
    %4026 = vperm.xlu0 %4025, %v3992
    %v4027 = vpop.permute.xlu0 %4026
    %4030 = vset.pattern.permute.xlu0 0
    %4031 = vperm.xlu0 %4030, %v3993
    %v4032 = vpop.permute.xlu0 %4031
    %4035 = vset.pattern.permute.xlu0 0
    %4036 = vperm.xlu0 %4035, %v3994
    %v4037 = vpop.permute.xlu0 %4036
    %4040 = vset.pattern.permute.xlu0 0
    %4041 = vperm.xlu0 %4040, %v3995
    %v4042 = vpop.permute.xlu0 %4041
    %4045 = vset.pattern.permute.xlu0 0
    %4046 = vperm.xlu0 %4045, %v3996
    %v4047 = vpop.permute.xlu0 %4046
    %4050 = vset.pattern.permute.xlu0 0
    %4051 = vperm.xlu0 %4050, %v3997
    %v4052 = vpop.permute.xlu0 %4051
    %v4054 = vmul.f32 %v4017, %v3854
    %v4055 = vmul.f32 %v4022, %v3856
    %v4056 = vmul.f32 %v4027, %v3858
    %v4057 = vmul.f32 %v4032, %v3860
    %v4058 = vmul.f32 %v4037, %v3862
    %v4059 = vmul.f32 %v4042, %v3864
    %v4060 = vmul.f32 %v4047, %v3866
    %v4061 = vmul.f32 %v4052, %v3868
    %4063 = vset.pattern.permute.xlu0 0
    %4064 = vperm.xlu0 %4063, %v4006
    %v4065 = vpop.permute.xlu0 %4064
    %4068 = vset.pattern.permute.xlu0 0
    %4069 = vperm.xlu0 %4068, %v4007
    %v4070 = vpop.permute.xlu0 %4069
    %4073 = vset.pattern.permute.xlu0 0
    %4074 = vperm.xlu0 %4073, %v4008
    %v4075 = vpop.permute.xlu0 %4074
    %4078 = vset.pattern.permute.xlu0 0
    %4079 = vperm.xlu0 %4078, %v4009
    %v4080 = vpop.permute.xlu0 %4079
    %4083 = vset.pattern.permute.xlu0 0
    %4084 = vperm.xlu0 %4083, %v4010
    %v4085 = vpop.permute.xlu0 %4084
    %4088 = vset.pattern.permute.xlu0 0
    %4089 = vperm.xlu0 %4088, %v4011
    %v4090 = vpop.permute.xlu0 %4089
    %4093 = vset.pattern.permute.xlu0 0
    %4094 = vperm.xlu0 %4093, %v4012
    %v4095 = vpop.permute.xlu0 %4094
    %4098 = vset.pattern.permute.xlu0 0
    %4099 = vperm.xlu0 %4098, %v4013
    %v4100 = vpop.permute.xlu0 %4099
    %v4102 = vadd.f32 %v4054, %v4065
    %v4103 = vadd.f32 %v4055, %v4070
    %v4104 = vadd.f32 %v4056, %v4075
    %v4105 = vadd.f32 %v4057, %v4080
    %v4106 = vadd.f32 %v4058, %v4085
    %v4107 = vadd.f32 %v4059, %v4090
    %v4108 = vadd.f32 %v4060, %v4095
    %v4109 = vadd.f32 %v4061, %v4100
    %v4110 = vmax.f32 %v4102, 0.0
    %v4111 = vmax.f32 %v4103, 0.0
    %v4112 = vmax.f32 %v4104, 0.0
    %v4113 = vmax.f32 %v4105, 0.0
    %v4114 = vmax.f32 %v4106, 0.0
    %v4115 = vmax.f32 %v4107, 0.0
    %v4116 = vmax.f32 %v4108, 0.0
    %v4117 = vmax.f32 %v4109, 0.0
    %4118 = vset.pattern.permute.xlu0 1
    %4119 = vperm.xlu0 %4118, %v3990
    %v4120 = vpop.permute.xlu0 %4119
    %4122 = vset.pattern.permute.xlu0 1
    %4123 = vperm.xlu0 %4122, %v3991
    %v4124 = vpop.permute.xlu0 %4123
    %4126 = vset.pattern.permute.xlu0 1
    %4127 = vperm.xlu0 %4126, %v3992
    %v4128 = vpop.permute.xlu0 %4127
    %4130 = vset.pattern.permute.xlu0 1
    %4131 = vperm.xlu0 %4130, %v3993
    %v4132 = vpop.permute.xlu0 %4131
    %4134 = vset.pattern.permute.xlu0 1
    %4135 = vperm.xlu0 %4134, %v3994
    %v4136 = vpop.permute.xlu0 %4135
    %4138 = vset.pattern.permute.xlu0 1
    %4139 = vperm.xlu0 %4138, %v3995
    %v4140 = vpop.permute.xlu0 %4139
    %4142 = vset.pattern.permute.xlu0 1
    %4143 = vperm.xlu0 %4142, %v3996
    %v4144 = vpop.permute.xlu0 %4143
    %4146 = vset.pattern.permute.xlu0 1
    %4147 = vperm.xlu0 %4146, %v3997
    %v4148 = vpop.permute.xlu0 %4147
    %v4150 = vmul.f32 %v4120, %v3855
    %v4151 = vmul.f32 %v4124, %v3857
    %v4152 = vmul.f32 %v4128, %v3859
    %v4153 = vmul.f32 %v4132, %v3861
    %v4154 = vmul.f32 %v4136, %v3863
    %v4155 = vmul.f32 %v4140, %v3865
    %v4156 = vmul.f32 %v4144, %v3867
    %v4157 = vmul.f32 %v4148, %v3869
    %4158 = vset.pattern.permute.xlu0 1
    %4159 = vperm.xlu0 %4158, %v4006
    %v4160 = vpop.permute.xlu0 %4159
    %4162 = vset.pattern.permute.xlu0 1
    %4163 = vperm.xlu0 %4162, %v4007
    %v4164 = vpop.permute.xlu0 %4163
    %4166 = vset.pattern.permute.xlu0 1
    %4167 = vperm.xlu0 %4166, %v4008
    %v4168 = vpop.permute.xlu0 %4167
    %4170 = vset.pattern.permute.xlu0 1
    %4171 = vperm.xlu0 %4170, %v4009
    %v4172 = vpop.permute.xlu0 %4171
    %4174 = vset.pattern.permute.xlu0 1
    %4175 = vperm.xlu0 %4174, %v4010
    %v4176 = vpop.permute.xlu0 %4175
    %4178 = vset.pattern.permute.xlu0 1
    %4179 = vperm.xlu0 %4178, %v4011
    %v4180 = vpop.permute.xlu0 %4179
    %4182 = vset.pattern.permute.xlu0 1
    %4183 = vperm.xlu0 %4182, %v4012
    %v4184 = vpop.permute.xlu0 %4183
    %4186 = vset.pattern.permute.xlu0 1
    %4187 = vperm.xlu0 %4186, %v4013
    %v4188 = vpop.permute.xlu0 %4187
    %v4190 = vadd.f32 %v4150, %v4160
    %v4191 = vadd.f32 %v4151, %v4164
    %v4192 = vadd.f32 %v4152, %v4168
    %v4193 = vadd.f32 %v4153, %v4172
    %v4194 = vadd.f32 %v4154, %v4176
    %v4195 = vadd.f32 %v4155, %v4180
    %v4196 = vadd.f32 %v4156, %v4184
    %v4197 = vadd.f32 %v4157, %v4188
    %v4198 = vmax.f32 %v4190, 0.0
    %v4199 = vmax.f32 %v4191, 0.0
    %v4200 = vmax.f32 %v4192, 0.0
    %v4201 = vmax.f32 %v4193, 0.0
    %v4202 = vmax.f32 %v4194, 0.0
    %v4203 = vmax.f32 %v4195, 0.0
    %v4204 = vmax.f32 %v4196, 0.0
    %v4205 = vmax.f32 %v4197, 0.0
    %s4206 = scalar_lea.vmem %s3, 256
    %v4207 = vld [vmem:[%s4206] sm:$0xff]
    %v4208 = vld [vmem:[%s4206 + $0x8] sm:$0xff]
    %v4209 = vld [vmem:[%s4206 + $0x10] sm:$0xff]
    %v4210 = vld [vmem:[%s4206 + $0x18] sm:$0xff]
    %v4211 = vld [vmem:[%s4206 + $0x20] sm:$0xff]
    %v4212 = vld [vmem:[%s4206 + $0x28] sm:$0xff]
    %v4213 = vld [vmem:[%s4206 + $0x30] sm:$0xff]
    %v4214 = vld [vmem:[%s4206 + $0x38] sm:$0xff]
    %v4216 = vsel %vm2254, %v4207, 0
    %v4219 = vsel %vm2254, %v4208, 0
    %v4222 = vsel %vm2254, %v4209, 0
    %v4225 = vsel %vm2254, %v4210, 0
    %v4228 = vsel %vm2254, %v4211, 0
    %v4231 = vsel %vm2254, %v4212, 0
    %v4234 = vsel %vm2254, %v4213, 0
    %v4237 = vsel %vm2254, %v4214, 0
    %4239 = vmatprep.subr.mxu0 %v4198
    %4240 = vmatpush1.msra.mxu0 %v4110
    %4241 = vmatprep.subr.mxu0 %v4199
    %4242 = vmatpush1.msra.mxu0 %v4111
    %4243 = vmatprep.subr.mxu0 %v4200
    %4244 = vmatpush1.msra.mxu0 %v4112
    %4245 = vmatprep.subr.mxu0 %v4201
    %4246 = vmatpush1.msra.mxu0 %v4113
    %4247 = vmatprep.subr.mxu0 %v4202
    %4248 = vmatpush1.msra.mxu0 %v4114
    %4249 = vmatprep.subr.mxu0 %v4203
    %4250 = vmatpush1.msra.mxu0 %v4115
    %4251 = vmatprep.subr.mxu0 %v4204
    %4252 = vmatpush1.msra.mxu0 %v4116
    %4253 = vmatprep.subr.mxu0 %v4205
    %4254 = vmatpush1.msra.mxu0 %v4117
    %4255 = vmatprep.subr.mxu0 0.0
    %4256 = vmatpush1.msra.mxu0 0.0
    %4257 = vmatprep.subr.mxu0 0.0
    %4258 = vmatpush1.msra.mxu0 0.0
    %4259 = vmatprep.subr.mxu0 0.0
    %4260 = vmatpush1.msra.mxu0 0.0
    %4261 = vmatprep.subr.mxu0 0.0
    %4262 = vmatpush1.msra.mxu0 0.0
    %4263 = vmatprep.subr.mxu0 0.0
    %4264 = vmatpush1.msra.mxu0 0.0
    %4265 = vmatprep.subr.mxu0 0.0
    %4266 = vmatpush1.msra.mxu0 0.0
    %4267 = vmatprep.subr.mxu0 0.0
    %4268 = vmatpush1.msra.mxu0 0.0
    %4269 = vmatprep.subr.mxu0 0.0
    %4270 = vmatpush1.msra.mxu0 0.0
    %4271 = vmatprep.subr.mxu0 0.0
    %4272 = vmatpush1.msra.mxu0 0.0
    %4273 = vmatprep.subr.mxu0 0.0
    %4274 = vmatpush1.msra.mxu0 0.0
    %4275 = vmatprep.subr.mxu0 0.0
    %4276 = vmatpush1.msra.mxu0 0.0
    %4277 = vmatprep.subr.mxu0 0.0
    %4278 = vmatpush1.msra.mxu0 0.0
    %4279 = vmatprep.subr.mxu0 0.0
    %4280 = vmatpush1.msra.mxu0 0.0
    %4281 = vmatprep.subr.mxu0 0.0
    %4282 = vmatpush1.msra.mxu0 0.0
    %4283 = vmatprep.subr.mxu0 0.0
    %4284 = vmatpush1.msra.mxu0 0.0
    %4285 = vmatprep.subr.mxu0 0.0
    %4286 = vmatpush1.msra.mxu0 0.0
    %4287 = vmatprep.subr.mxu0 0.0
    %4288 = vmatpush1.msra.mxu0 0.0
    %4289 = vmatprep.subr.mxu0 0.0
    %4290 = vmatpush1.msra.mxu0 0.0
    %4291 = vmatprep.subr.mxu0 0.0
    %4292 = vmatpush1.msra.mxu0 0.0
    %4293 = vmatprep.subr.mxu0 0.0
    %4294 = vmatpush1.msra.mxu0 0.0
    %4295 = vmatprep.subr.mxu0 0.0
    %4296 = vmatpush1.msra.mxu0 0.0
    %4297 = vmatprep.subr.mxu0 0.0
    %4298 = vmatpush1.msra.mxu0 0.0
    %4299 = vmatprep.subr.mxu0 0.0
    %4300 = vmatpush1.msra.mxu0 0.0
    %4301 = vmatprep.subr.mxu0 0.0
    %4302 = vmatpush1.msra.mxu0 0.0
    %4303 = vmatprep.mubr.f32.mxu0 0.0
    %4304 = vmatmul.mubr.f32.gmra.mrb[0].mxu0 %v4216
    %v4305 = vpop.f32.mrb[0].mxu0
    %v4306 = vadd.f32 0.0, %v4305
    %v4307 = vpop.f32.mrb[0].mxu0
    %v4308 = vadd.f32 0.0, %v4307
    %4309 = vmatprep.mubr.f32.mxu0 0.0
    %4310 = vmatmul.mubr.f32.gmra.mrb[0].mxu0 %v4219
    %v4311 = vpop.f32.mrb[0].mxu0
    %v4312 = vadd.f32 0.0, %v4311
    %v4313 = vpop.f32.mrb[0].mxu0
    %v4314 = vadd.f32 0.0, %v4313
    %4315 = vmatprep.mubr.f32.mxu0 0.0
    %4316 = vmatmul.mubr.f32.gmra.mrb[0].mxu0 %v4222
    %v4317 = vpop.f32.mrb[0].mxu0
    %v4318 = vadd.f32 0.0, %v4317
    %v4319 = vpop.f32.mrb[0].mxu0
    %v4320 = vadd.f32 0.0, %v4319
    %4321 = vmatprep.mubr.f32.mxu0 0.0
    %4322 = vmatmul.mubr.f32.gmra.mrb[0].mxu0 %v4225
    %v4323 = vpop.f32.mrb[0].mxu0
    %v4324 = vadd.f32 0.0, %v4323
    %v4325 = vpop.f32.mrb[0].mxu0
    %v4326 = vadd.f32 0.0, %v4325
    %4327 = vmatprep.mubr.f32.mxu0 0.0
    %4328 = vmatmul.mubr.f32.gmra.mrb[0].mxu0 %v4228
    %v4329 = vpop.f32.mrb[0].mxu0
    %v4330 = vadd.f32 0.0, %v4329
    %v4331 = vpop.f32.mrb[0].mxu0
    %v4332 = vadd.f32 0.0, %v4331
    %4333 = vmatprep.mubr.f32.mxu0 0.0
    %4334 = vmatmul.mubr.f32.gmra.mrb[0].mxu0 %v4231
    %v4335 = vpop.f32.mrb[0].mxu0
    %v4336 = vadd.f32 0.0, %v4335
    %v4337 = vpop.f32.mrb[0].mxu0
    %v4338 = vadd.f32 0.0, %v4337
    %4339 = vmatprep.mubr.f32.mxu0 0.0
    %4340 = vmatmul.mubr.f32.gmra.mrb[0].mxu0 %v4234
    %v4341 = vpop.f32.mrb[0].mxu0
    %v4342 = vadd.f32 0.0, %v4341
    %v4343 = vpop.f32.mrb[0].mxu0
    %v4344 = vadd.f32 0.0, %v4343
    %4345 = vmatprep.mubr.f32.mxu0 0.0
    %4346 = vmatmul.mubr.f32.gmra.mrb[0].mxu0 %v4237
    %v4347 = vpop.f32.mrb[0].mxu0
    %v4348 = vadd.f32 0.0, %v4347
    %v4349 = vpop.f32.mrb[0].mxu0
    %v4350 = vadd.f32 0.0, %v4349
    %4351 = vdwg.mxu0
    %v4352 = vadd.f32 %v4306, %v4308
    %4353 = vadd.xlane.f32.xlu0 %v4352
    %v4354 = vpop.xlane.xlu0 %4353
    %v4355 = vadd.f32 %v4312, %v4314
    %4356 = vadd.xlane.f32.xlu0 %v4355
    %v4357 = vpop.xlane.xlu0 %4356
    %v4358 = vadd.f32 %v4318, %v4320
    %4359 = vadd.xlane.f32.xlu0 %v4358
    %v4360 = vpop.xlane.xlu0 %4359
    %v4361 = vadd.f32 %v4324, %v4326
    %4362 = vadd.xlane.f32.xlu0 %v4361
    %v4363 = vpop.xlane.xlu0 %4362
    %v4364 = vadd.f32 %v4330, %v4332
    %4365 = vadd.xlane.f32.xlu0 %v4364
    %v4366 = vpop.xlane.xlu0 %4365
    %v4367 = vadd.f32 %v4336, %v4338
    %4368 = vadd.xlane.f32.xlu0 %v4367
    %v4369 = vpop.xlane.xlu0 %4368
    %v4370 = vadd.f32 %v4342, %v4344
    %4371 = vadd.xlane.f32.xlu0 %v4370
    %v4372 = vpop.xlane.xlu0 %4371
    %v4373 = vadd.f32 %v4348, %v4350
    %4374 = vadd.xlane.f32.xlu0 %v4373
    %v4375 = vpop.xlane.xlu0 %4374
    %v4376 = vmul.f32 %v4306, %v4306
    %v4377 = vmul.f32 %v4308, %v4308
    %v4378 = vmul.f32 %v4312, %v4312
    %v4379 = vmul.f32 %v4314, %v4314
    %v4380 = vmul.f32 %v4318, %v4318
    %v4381 = vmul.f32 %v4320, %v4320
    %v4382 = vmul.f32 %v4324, %v4324
    %v4383 = vmul.f32 %v4326, %v4326
    %v4384 = vmul.f32 %v4330, %v4330
    %v4385 = vmul.f32 %v4332, %v4332
    %v4386 = vmul.f32 %v4336, %v4336
    %v4387 = vmul.f32 %v4338, %v4338
    %v4388 = vmul.f32 %v4342, %v4342
    %v4389 = vmul.f32 %v4344, %v4344
    %v4390 = vmul.f32 %v4348, %v4348
    %v4391 = vmul.f32 %v4350, %v4350
    %v4392 = vadd.f32 %v4376, %v4377
    %4393 = vadd.xlane.f32.xlu0 %v4392
    %v4394 = vpop.xlane.xlu0 %4393
    %v4395 = vadd.f32 %v4378, %v4379
    %4396 = vadd.xlane.f32.xlu0 %v4395
    %v4397 = vpop.xlane.xlu0 %4396
    %v4398 = vadd.f32 %v4380, %v4381
    %4399 = vadd.xlane.f32.xlu0 %v4398
    %v4400 = vpop.xlane.xlu0 %4399
    %v4401 = vadd.f32 %v4382, %v4383
    %4402 = vadd.xlane.f32.xlu0 %v4401
    %v4403 = vpop.xlane.xlu0 %4402
    %v4404 = vadd.f32 %v4384, %v4385
    %4405 = vadd.xlane.f32.xlu0 %v4404
    %v4406 = vpop.xlane.xlu0 %4405
    %v4407 = vadd.f32 %v4386, %v4387
    %4408 = vadd.xlane.f32.xlu0 %v4407
    %v4409 = vpop.xlane.xlu0 %4408
    %v4410 = vadd.f32 %v4388, %v4389
    %4411 = vadd.xlane.f32.xlu0 %v4410
    %v4412 = vpop.xlane.xlu0 %4411
    %v4413 = vadd.f32 %v4390, %v4391
    %4414 = vadd.xlane.f32.xlu0 %v4413
    %v4415 = vpop.xlane.xlu0 %4414
    %v4416 = vmul.f32 %v4354, 0.00390625
    %v4417 = vmul.f32 %v4357, 0.00390625
    %v4418 = vmul.f32 %v4360, 0.00390625
    %v4419 = vmul.f32 %v4363, 0.00390625
    %v4420 = vmul.f32 %v4366, 0.00390625
    %v4421 = vmul.f32 %v4369, 0.00390625
    %v4422 = vmul.f32 %v4372, 0.00390625
    %v4423 = vmul.f32 %v4375, 0.00390625
    %v4424 = vmul.f32 %v4394, 0.00390625
    %v4425 = vmul.f32 %v4397, 0.00390625
    %v4426 = vmul.f32 %v4400, 0.00390625
    %v4427 = vmul.f32 %v4403, 0.00390625
    %v4428 = vmul.f32 %v4406, 0.00390625
    %v4429 = vmul.f32 %v4409, 0.00390625
    %v4430 = vmul.f32 %v4412, 0.00390625
    %v4431 = vmul.f32 %v4415, 0.00390625
    %v4432 = vmul.f32 %v4416, %v4416
    %v4433 = vmul.f32 %v4417, %v4417
    %v4434 = vmul.f32 %v4418, %v4418
    %v4435 = vmul.f32 %v4419, %v4419
    %v4436 = vmul.f32 %v4420, %v4420
    %v4437 = vmul.f32 %v4421, %v4421
    %v4438 = vmul.f32 %v4422, %v4422
    %v4439 = vmul.f32 %v4423, %v4423
    %v4440 = vsub.f32 %v4424, %v4432
    %v4441 = vsub.f32 %v4425, %v4433
    %v4442 = vsub.f32 %v4426, %v4434
    %v4443 = vsub.f32 %v4427, %v4435
    %v4444 = vsub.f32 %v4428, %v4436
    %v4445 = vsub.f32 %v4429, %v4437
    %v4446 = vsub.f32 %v4430, %v4438
    %v4447 = vsub.f32 %v4431, %v4439
    %v4448 = vmax.f32 %v4440, 0.0
    %v4449 = vmax.f32 %v4441, 0.0
    %v4450 = vmax.f32 %v4442, 0.0
    %v4451 = vmax.f32 %v4443, 0.0
    %v4452 = vmax.f32 %v4444, 0.0
    %v4453 = vmax.f32 %v4445, 0.0
    %v4454 = vmax.f32 %v4446, 0.0
    %v4455 = vmax.f32 %v4447, 0.0
    %v4456 = vadd.f32 %v4448, 1e-05
    %v4457 = vadd.f32 %v4449, 1e-05
    %v4458 = vadd.f32 %v4450, 1e-05
    %v4459 = vadd.f32 %v4451, 1e-05
    %v4460 = vadd.f32 %v4452, 1e-05
    %v4461 = vadd.f32 %v4453, 1e-05
    %v4462 = vadd.f32 %v4454, 1e-05
    %v4463 = vadd.f32 %v4455, 1e-05
    %v4464 = vrsqrt.pop %v4456
    %v4465 = vrsqrt.pop %v4457
    %v4466 = vrsqrt.pop %v4458
    %v4467 = vrsqrt.pop %v4459
    %v4468 = vrsqrt.pop %v4460
    %v4469 = vrsqrt.pop %v4461
    %v4470 = vrsqrt.pop %v4462
    %v4471 = vrsqrt.pop %v4463
    %v4472 = vmul.f32 %v1202, %v4464
    %v4473 = vmul.f32 %v1207, %v4465
    %v4474 = vmul.f32 %v1212, %v4466
    %v4475 = vmul.f32 %v1217, %v4467
    %v4476 = vmul.f32 %v1222, %v4468
    %v4477 = vmul.f32 %v1227, %v4469
    %v4478 = vmul.f32 %v1232, %v4470
    %v4479 = vmul.f32 %v1237, %v4471
    %v4480 = vmul.f32 %v4472, %v4416
    %v4481 = vmul.f32 %v4473, %v4417
    %v4482 = vmul.f32 %v4474, %v4418
    %v4483 = vmul.f32 %v4475, %v4419
    %v4484 = vmul.f32 %v4476, %v4420
    %v4485 = vmul.f32 %v4477, %v4421
    %v4486 = vmul.f32 %v4478, %v4422
    %v4487 = vmul.f32 %v4479, %v4423
    %v4488 = vsub.f32 %v1242, %v4480
    %v4489 = vsub.f32 %v1247, %v4481
    %v4490 = vsub.f32 %v1252, %v4482
    %v4491 = vsub.f32 %v1257, %v4483
    %v4492 = vsub.f32 %v1262, %v4484
    %v4493 = vsub.f32 %v1267, %v4485
    %v4494 = vsub.f32 %v1272, %v4486
    %v4495 = vsub.f32 %v1277, %v4487
    %4497 = vset.pattern.permute.xlu0 0
    %4498 = vperm.xlu0 %4497, %v4472
    %v4499 = vpop.permute.xlu0 %4498
    %4502 = vset.pattern.permute.xlu0 0
    %4503 = vperm.xlu0 %4502, %v4473
    %v4504 = vpop.permute.xlu0 %4503
    %4507 = vset.pattern.permute.xlu0 0
    %4508 = vperm.xlu0 %4507, %v4474
    %v4509 = vpop.permute.xlu0 %4508
    %4512 = vset.pattern.permute.xlu0 0
    %4513 = vperm.xlu0 %4512, %v4475
    %v4514 = vpop.permute.xlu0 %4513
    %4517 = vset.pattern.permute.xlu0 0
    %4518 = vperm.xlu0 %4517, %v4476
    %v4519 = vpop.permute.xlu0 %4518
    %4522 = vset.pattern.permute.xlu0 0
    %4523 = vperm.xlu0 %4522, %v4477
    %v4524 = vpop.permute.xlu0 %4523
    %4527 = vset.pattern.permute.xlu0 0
    %4528 = vperm.xlu0 %4527, %v4478
    %v4529 = vpop.permute.xlu0 %4528
    %4532 = vset.pattern.permute.xlu0 0
    %4533 = vperm.xlu0 %4532, %v4479
    %v4534 = vpop.permute.xlu0 %4533
    %v4536 = vmul.f32 %v4499, %v4306
    %v4537 = vmul.f32 %v4504, %v4312
    %v4538 = vmul.f32 %v4509, %v4318
    %v4539 = vmul.f32 %v4514, %v4324
    %v4540 = vmul.f32 %v4519, %v4330
    %v4541 = vmul.f32 %v4524, %v4336
    %v4542 = vmul.f32 %v4529, %v4342
    %v4543 = vmul.f32 %v4534, %v4348
    %4545 = vset.pattern.permute.xlu0 0
    %4546 = vperm.xlu0 %4545, %v4488
    %v4547 = vpop.permute.xlu0 %4546
    %4550 = vset.pattern.permute.xlu0 0
    %4551 = vperm.xlu0 %4550, %v4489
    %v4552 = vpop.permute.xlu0 %4551
    %4555 = vset.pattern.permute.xlu0 0
    %4556 = vperm.xlu0 %4555, %v4490
    %v4557 = vpop.permute.xlu0 %4556
    %4560 = vset.pattern.permute.xlu0 0
    %4561 = vperm.xlu0 %4560, %v4491
    %v4562 = vpop.permute.xlu0 %4561
    %4565 = vset.pattern.permute.xlu0 0
    %4566 = vperm.xlu0 %4565, %v4492
    %v4567 = vpop.permute.xlu0 %4566
    %4570 = vset.pattern.permute.xlu0 0
    %4571 = vperm.xlu0 %4570, %v4493
    %v4572 = vpop.permute.xlu0 %4571
    %4575 = vset.pattern.permute.xlu0 0
    %4576 = vperm.xlu0 %4575, %v4494
    %v4577 = vpop.permute.xlu0 %4576
    %4580 = vset.pattern.permute.xlu0 0
    %4581 = vperm.xlu0 %4580, %v4495
    %v4582 = vpop.permute.xlu0 %4581
    %v4584 = vadd.f32 %v4536, %v4547
    %v4585 = vadd.f32 %v4537, %v4552
    %v4586 = vadd.f32 %v4538, %v4557
    %v4587 = vadd.f32 %v4539, %v4562
    %v4588 = vadd.f32 %v4540, %v4567
    %v4589 = vadd.f32 %v4541, %v4572
    %v4590 = vadd.f32 %v4542, %v4577
    %v4591 = vadd.f32 %v4543, %v4582
    %v4592 = vmax.f32 %v4584, 0.0
    %v4593 = vmax.f32 %v4585, 0.0
    %v4594 = vmax.f32 %v4586, 0.0
    %v4595 = vmax.f32 %v4587, 0.0
    %v4596 = vmax.f32 %v4588, 0.0
    %v4597 = vmax.f32 %v4589, 0.0
    %v4598 = vmax.f32 %v4590, 0.0
    %v4599 = vmax.f32 %v4591, 0.0
    %4600 = vset.pattern.permute.xlu0 1
    %4601 = vperm.xlu0 %4600, %v4472
    %v4602 = vpop.permute.xlu0 %4601
    %4604 = vset.pattern.permute.xlu0 1
    %4605 = vperm.xlu0 %4604, %v4473
    %v4606 = vpop.permute.xlu0 %4605
    %4608 = vset.pattern.permute.xlu0 1
    %4609 = vperm.xlu0 %4608, %v4474
    %v4610 = vpop.permute.xlu0 %4609
    %4612 = vset.pattern.permute.xlu0 1
    %4613 = vperm.xlu0 %4612, %v4475
    %v4614 = vpop.permute.xlu0 %4613
    %4616 = vset.pattern.permute.xlu0 1
    %4617 = vperm.xlu0 %4616, %v4476
    %v4618 = vpop.permute.xlu0 %4617
    %4620 = vset.pattern.permute.xlu0 1
    %4621 = vperm.xlu0 %4620, %v4477
    %v4622 = vpop.permute.xlu0 %4621
    %4624 = vset.pattern.permute.xlu0 1
    %4625 = vperm.xlu0 %4624, %v4478
    %v4626 = vpop.permute.xlu0 %4625
    %4628 = vset.pattern.permute.xlu0 1
    %4629 = vperm.xlu0 %4628, %v4479
    %v4630 = vpop.permute.xlu0 %4629
    %v4632 = vmul.f32 %v4602, %v4308
    %v4633 = vmul.f32 %v4606, %v4314
    %v4634 = vmul.f32 %v4610, %v4320
    %v4635 = vmul.f32 %v4614, %v4326
    %v4636 = vmul.f32 %v4618, %v4332
    %v4637 = vmul.f32 %v4622, %v4338
    %v4638 = vmul.f32 %v4626, %v4344
    %v4639 = vmul.f32 %v4630, %v4350
    %4640 = vset.pattern.permute.xlu0 1
    %4641 = vperm.xlu0 %4640, %v4488
    %v4642 = vpop.permute.xlu0 %4641
    %4644 = vset.pattern.permute.xlu0 1
    %4645 = vperm.xlu0 %4644, %v4489
    %v4646 = vpop.permute.xlu0 %4645
    %4648 = vset.pattern.permute.xlu0 1
    %4649 = vperm.xlu0 %4648, %v4490
    %v4650 = vpop.permute.xlu0 %4649
    %4652 = vset.pattern.permute.xlu0 1
    %4653 = vperm.xlu0 %4652, %v4491
    %v4654 = vpop.permute.xlu0 %4653
    %4656 = vset.pattern.permute.xlu0 1
    %4657 = vperm.xlu0 %4656, %v4492
    %v4658 = vpop.permute.xlu0 %4657
    %4660 = vset.pattern.permute.xlu0 1
    %4661 = vperm.xlu0 %4660, %v4493
    %v4662 = vpop.permute.xlu0 %4661
    %4664 = vset.pattern.permute.xlu0 1
    %4665 = vperm.xlu0 %4664, %v4494
    %v4666 = vpop.permute.xlu0 %4665
    %4668 = vset.pattern.permute.xlu0 1
    %4669 = vperm.xlu0 %4668, %v4495
    %v4670 = vpop.permute.xlu0 %4669
    %v4672 = vadd.f32 %v4632, %v4642
    %v4673 = vadd.f32 %v4633, %v4646
    %v4674 = vadd.f32 %v4634, %v4650
    %v4675 = vadd.f32 %v4635, %v4654
    %v4676 = vadd.f32 %v4636, %v4658
    %v4677 = vadd.f32 %v4637, %v4662
    %v4678 = vadd.f32 %v4638, %v4666
    %v4679 = vadd.f32 %v4639, %v4670
    %v4680 = vmax.f32 %v4672, 0.0
    %v4681 = vmax.f32 %v4673, 0.0
    %v4682 = vmax.f32 %v4674, 0.0
    %v4683 = vmax.f32 %v4675, 0.0
    %v4684 = vmax.f32 %v4676, 0.0
    %v4685 = vmax.f32 %v4677, 0.0
    %v4686 = vmax.f32 %v4678, 0.0
    %v4687 = vmax.f32 %v4679, 0.0
    %s4688 = scalar_lea.vmem %s3, 320
    %v4689 = vld [vmem:[%s4688] sm:$0xff]
    %v4690 = vld [vmem:[%s4688 + $0x8] sm:$0xff]
    %v4691 = vld [vmem:[%s4688 + $0x10] sm:$0xff]
    %v4692 = vld [vmem:[%s4688 + $0x18] sm:$0xff]
    %v4693 = vld [vmem:[%s4688 + $0x20] sm:$0xff]
    %v4694 = vld [vmem:[%s4688 + $0x28] sm:$0xff]
    %v4695 = vld [vmem:[%s4688 + $0x30] sm:$0xff]
    %v4696 = vld [vmem:[%s4688 + $0x38] sm:$0xff]
    %v4698 = vsel %vm2254, %v4689, 0
    %v4701 = vsel %vm2254, %v4690, 0
    %v4704 = vsel %vm2254, %v4691, 0
    %v4707 = vsel %vm2254, %v4692, 0
    %v4710 = vsel %vm2254, %v4693, 0
    %v4713 = vsel %vm2254, %v4694, 0
    %v4716 = vsel %vm2254, %v4695, 0
    %v4719 = vsel %vm2254, %v4696, 0
    %4721 = vmatprep.subr.mxu0 %v4680
    %4722 = vmatpush1.msra.mxu0 %v4592
    %4723 = vmatprep.subr.mxu0 %v4681
    %4724 = vmatpush1.msra.mxu0 %v4593
    %4725 = vmatprep.subr.mxu0 %v4682
    %4726 = vmatpush1.msra.mxu0 %v4594
    %4727 = vmatprep.subr.mxu0 %v4683
    %4728 = vmatpush1.msra.mxu0 %v4595
    %4729 = vmatprep.subr.mxu0 %v4684
    %4730 = vmatpush1.msra.mxu0 %v4596
    %4731 = vmatprep.subr.mxu0 %v4685
    %4732 = vmatpush1.msra.mxu0 %v4597
    %4733 = vmatprep.subr.mxu0 %v4686
    %4734 = vmatpush1.msra.mxu0 %v4598
    %4735 = vmatprep.subr.mxu0 %v4687
    %4736 = vmatpush1.msra.mxu0 %v4599
    %4737 = vmatprep.subr.mxu0 0.0
    %4738 = vmatpush1.msra.mxu0 0.0
    %4739 = vmatprep.subr.mxu0 0.0
    %4740 = vmatpush1.msra.mxu0 0.0
    %4741 = vmatprep.subr.mxu0 0.0
    %4742 = vmatpush1.msra.mxu0 0.0
    %4743 = vmatprep.subr.mxu0 0.0
    %4744 = vmatpush1.msra.mxu0 0.0
    %4745 = vmatprep.subr.mxu0 0.0
    %4746 = vmatpush1.msra.mxu0 0.0
    %4747 = vmatprep.subr.mxu0 0.0
    %4748 = vmatpush1.msra.mxu0 0.0
    %4749 = vmatprep.subr.mxu0 0.0
    %4750 = vmatpush1.msra.mxu0 0.0
    %4751 = vmatprep.subr.mxu0 0.0
    %4752 = vmatpush1.msra.mxu0 0.0
    %4753 = vmatprep.subr.mxu0 0.0
    %4754 = vmatpush1.msra.mxu0 0.0
    %4755 = vmatprep.subr.mxu0 0.0
    %4756 = vmatpush1.msra.mxu0 0.0
    %4757 = vmatprep.subr.mxu0 0.0
    %4758 = vmatpush1.msra.mxu0 0.0
    %4759 = vmatprep.subr.mxu0 0.0
    %4760 = vmatpush1.msra.mxu0 0.0
    %4761 = vmatprep.subr.mxu0 0.0
    %4762 = vmatpush1.msra.mxu0 0.0
    %4763 = vmatprep.subr.mxu0 0.0
    %4764 = vmatpush1.msra.mxu0 0.0
    %4765 = vmatprep.subr.mxu0 0.0
    %4766 = vmatpush1.msra.mxu0 0.0
    %4767 = vmatprep.subr.mxu0 0.0
    %4768 = vmatpush1.msra.mxu0 0.0
    %4769 = vmatprep.subr.mxu0 0.0
    %4770 = vmatpush1.msra.mxu0 0.0
    %4771 = vmatprep.subr.mxu0 0.0
    %4772 = vmatpush1.msra.mxu0 0.0
    %4773 = vmatprep.subr.mxu0 0.0
    %4774 = vmatpush1.msra.mxu0 0.0
    %4775 = vmatprep.subr.mxu0 0.0
    %4776 = vmatpush1.msra.mxu0 0.0
    %4777 = vmatprep.subr.mxu0 0.0
    %4778 = vmatpush1.msra.mxu0 0.0
    %4779 = vmatprep.subr.mxu0 0.0
    %4780 = vmatpush1.msra.mxu0 0.0
    %4781 = vmatprep.subr.mxu0 0.0
    %4782 = vmatpush1.msra.mxu0 0.0
    %4783 = vmatprep.subr.mxu0 0.0
    %4784 = vmatpush1.msra.mxu0 0.0
    %4785 = vmatprep.mubr.f32.mxu0 0.0
    %4786 = vmatmul.mubr.f32.gmra.mrb[0].mxu0 %v4698
    %v4787 = vpop.f32.mrb[0].mxu0
    %v4788 = vadd.f32 0.0, %v4787
    %v4789 = vpop.f32.mrb[0].mxu0
    %v4790 = vadd.f32 0.0, %v4789
    %4791 = vmatprep.mubr.f32.mxu0 0.0
    %4792 = vmatmul.mubr.f32.gmra.mrb[0].mxu0 %v4701
    %v4793 = vpop.f32.mrb[0].mxu0
    %v4794 = vadd.f32 0.0, %v4793
    %v4795 = vpop.f32.mrb[0].mxu0
    %v4796 = vadd.f32 0.0, %v4795
    %4797 = vmatprep.mubr.f32.mxu0 0.0
    %4798 = vmatmul.mubr.f32.gmra.mrb[0].mxu0 %v4704
    %v4799 = vpop.f32.mrb[0].mxu0
    %v4800 = vadd.f32 0.0, %v4799
    %v4801 = vpop.f32.mrb[0].mxu0
    %v4802 = vadd.f32 0.0, %v4801
    %4803 = vmatprep.mubr.f32.mxu0 0.0
    %4804 = vmatmul.mubr.f32.gmra.mrb[0].mxu0 %v4707
    %v4805 = vpop.f32.mrb[0].mxu0
    %v4806 = vadd.f32 0.0, %v4805
    %v4807 = vpop.f32.mrb[0].mxu0
    %v4808 = vadd.f32 0.0, %v4807
    %4809 = vmatprep.mubr.f32.mxu0 0.0
    %4810 = vmatmul.mubr.f32.gmra.mrb[0].mxu0 %v4710
    %v4811 = vpop.f32.mrb[0].mxu0
    %v4812 = vadd.f32 0.0, %v4811
    %v4813 = vpop.f32.mrb[0].mxu0
    %v4814 = vadd.f32 0.0, %v4813
    %4815 = vmatprep.mubr.f32.mxu0 0.0
    %4816 = vmatmul.mubr.f32.gmra.mrb[0].mxu0 %v4713
    %v4817 = vpop.f32.mrb[0].mxu0
    %v4818 = vadd.f32 0.0, %v4817
    %v4819 = vpop.f32.mrb[0].mxu0
    %v4820 = vadd.f32 0.0, %v4819
    %4821 = vmatprep.mubr.f32.mxu0 0.0
    %4822 = vmatmul.mubr.f32.gmra.mrb[0].mxu0 %v4716
    %v4823 = vpop.f32.mrb[0].mxu0
    %v4824 = vadd.f32 0.0, %v4823
    %v4825 = vpop.f32.mrb[0].mxu0
    %v4826 = vadd.f32 0.0, %v4825
    %4827 = vmatprep.mubr.f32.mxu0 0.0
    %4828 = vmatmul.mubr.f32.gmra.mrb[0].mxu0 %v4719
    %v4829 = vpop.f32.mrb[0].mxu0
    %v4830 = vadd.f32 0.0, %v4829
    %v4831 = vpop.f32.mrb[0].mxu0
    %v4832 = vadd.f32 0.0, %v4831
    %4833 = vdwg.mxu0
    %v4834 = vadd.f32 %v3854, %v4788
    %v4835 = vadd.f32 %v3855, %v4790
    %v4836 = vadd.f32 %v3856, %v4794
    %v4837 = vadd.f32 %v3857, %v4796
    %v4838 = vadd.f32 %v3858, %v4800
    %v4839 = vadd.f32 %v3859, %v4802
    %v4840 = vadd.f32 %v3860, %v4806
    %v4841 = vadd.f32 %v3861, %v4808
    %v4842 = vadd.f32 %v3862, %v4812
    %v4843 = vadd.f32 %v3863, %v4814
    %v4844 = vadd.f32 %v3864, %v4818
    %v4845 = vadd.f32 %v3865, %v4820
    %v4846 = vadd.f32 %v3866, %v4824
    %v4847 = vadd.f32 %v3867, %v4826
    %v4848 = vadd.f32 %v3868, %v4830
    %v4849 = vadd.f32 %v3869, %v4832
    %v4850 = vadd.f32 %v4834, %v4835
    %4851 = vadd.xlane.f32.xlu0 %v4850
    %v4852 = vpop.xlane.xlu0 %4851
    %v4853 = vadd.f32 %v4836, %v4837
    %4854 = vadd.xlane.f32.xlu0 %v4853
    %v4855 = vpop.xlane.xlu0 %4854
    %v4856 = vadd.f32 %v4838, %v4839
    %4857 = vadd.xlane.f32.xlu0 %v4856
    %v4858 = vpop.xlane.xlu0 %4857
    %v4859 = vadd.f32 %v4840, %v4841
    %4860 = vadd.xlane.f32.xlu0 %v4859
    %v4861 = vpop.xlane.xlu0 %4860
    %v4862 = vadd.f32 %v4842, %v4843
    %4863 = vadd.xlane.f32.xlu0 %v4862
    %v4864 = vpop.xlane.xlu0 %4863
    %v4865 = vadd.f32 %v4844, %v4845
    %4866 = vadd.xlane.f32.xlu0 %v4865
    %v4867 = vpop.xlane.xlu0 %4866
    %v4868 = vadd.f32 %v4846, %v4847
    %4869 = vadd.xlane.f32.xlu0 %v4868
    %v4870 = vpop.xlane.xlu0 %4869
    %v4871 = vadd.f32 %v4848, %v4849
    %4872 = vadd.xlane.f32.xlu0 %v4871
    %v4873 = vpop.xlane.xlu0 %4872
    %v4874 = vmul.f32 %v4834, %v4834
    %v4875 = vmul.f32 %v4835, %v4835
    %v4876 = vmul.f32 %v4836, %v4836
    %v4877 = vmul.f32 %v4837, %v4837
    %v4878 = vmul.f32 %v4838, %v4838
    %v4879 = vmul.f32 %v4839, %v4839
    %v4880 = vmul.f32 %v4840, %v4840
    %v4881 = vmul.f32 %v4841, %v4841
    %v4882 = vmul.f32 %v4842, %v4842
    %v4883 = vmul.f32 %v4843, %v4843
    %v4884 = vmul.f32 %v4844, %v4844
    %v4885 = vmul.f32 %v4845, %v4845
    %v4886 = vmul.f32 %v4846, %v4846
    %v4887 = vmul.f32 %v4847, %v4847
    %v4888 = vmul.f32 %v4848, %v4848
    %v4889 = vmul.f32 %v4849, %v4849
    %v4890 = vadd.f32 %v4874, %v4875
    %4891 = vadd.xlane.f32.xlu0 %v4890
    %v4892 = vpop.xlane.xlu0 %4891
    %v4893 = vadd.f32 %v4876, %v4877
    %4894 = vadd.xlane.f32.xlu0 %v4893
    %v4895 = vpop.xlane.xlu0 %4894
    %v4896 = vadd.f32 %v4878, %v4879
    %4897 = vadd.xlane.f32.xlu0 %v4896
    %v4898 = vpop.xlane.xlu0 %4897
    %v4899 = vadd.f32 %v4880, %v4881
    %4900 = vadd.xlane.f32.xlu0 %v4899
    %v4901 = vpop.xlane.xlu0 %4900
    %v4902 = vadd.f32 %v4882, %v4883
    %4903 = vadd.xlane.f32.xlu0 %v4902
    %v4904 = vpop.xlane.xlu0 %4903
    %v4905 = vadd.f32 %v4884, %v4885
    %4906 = vadd.xlane.f32.xlu0 %v4905
    %v4907 = vpop.xlane.xlu0 %4906
    %v4908 = vadd.f32 %v4886, %v4887
    %4909 = vadd.xlane.f32.xlu0 %v4908
    %v4910 = vpop.xlane.xlu0 %4909
    %v4911 = vadd.f32 %v4888, %v4889
    %4912 = vadd.xlane.f32.xlu0 %v4911
    %v4913 = vpop.xlane.xlu0 %4912
    %v4914 = vmul.f32 %v4852, 0.00390625
    %v4915 = vmul.f32 %v4855, 0.00390625
    %v4916 = vmul.f32 %v4858, 0.00390625
    %v4917 = vmul.f32 %v4861, 0.00390625
    %v4918 = vmul.f32 %v4864, 0.00390625
    %v4919 = vmul.f32 %v4867, 0.00390625
    %v4920 = vmul.f32 %v4870, 0.00390625
    %v4921 = vmul.f32 %v4873, 0.00390625
    %v4922 = vmul.f32 %v4892, 0.00390625
    %v4923 = vmul.f32 %v4895, 0.00390625
    %v4924 = vmul.f32 %v4898, 0.00390625
    %v4925 = vmul.f32 %v4901, 0.00390625
    %v4926 = vmul.f32 %v4904, 0.00390625
    %v4927 = vmul.f32 %v4907, 0.00390625
    %v4928 = vmul.f32 %v4910, 0.00390625
    %v4929 = vmul.f32 %v4913, 0.00390625
    %v4930 = vmul.f32 %v4914, %v4914
    %v4931 = vmul.f32 %v4915, %v4915
    %v4932 = vmul.f32 %v4916, %v4916
    %v4933 = vmul.f32 %v4917, %v4917
    %v4934 = vmul.f32 %v4918, %v4918
    %v4935 = vmul.f32 %v4919, %v4919
    %v4936 = vmul.f32 %v4920, %v4920
    %v4937 = vmul.f32 %v4921, %v4921
    %v4938 = vsub.f32 %v4922, %v4930
    %v4939 = vsub.f32 %v4923, %v4931
    %v4940 = vsub.f32 %v4924, %v4932
    %v4941 = vsub.f32 %v4925, %v4933
    %v4942 = vsub.f32 %v4926, %v4934
    %v4943 = vsub.f32 %v4927, %v4935
    %v4944 = vsub.f32 %v4928, %v4936
    %v4945 = vsub.f32 %v4929, %v4937
    %v4946 = vmax.f32 %v4938, 0.0
    %v4947 = vmax.f32 %v4939, 0.0
    %v4948 = vmax.f32 %v4940, 0.0
    %v4949 = vmax.f32 %v4941, 0.0
    %v4950 = vmax.f32 %v4942, 0.0
    %v4951 = vmax.f32 %v4943, 0.0
    %v4952 = vmax.f32 %v4944, 0.0
    %v4953 = vmax.f32 %v4945, 0.0
    %v4954 = vadd.f32 %v4946, 1e-05
    %v4955 = vadd.f32 %v4947, 1e-05
    %v4956 = vadd.f32 %v4948, 1e-05
    %v4957 = vadd.f32 %v4949, 1e-05
    %v4958 = vadd.f32 %v4950, 1e-05
    %v4959 = vadd.f32 %v4951, 1e-05
    %v4960 = vadd.f32 %v4952, 1e-05
    %v4961 = vadd.f32 %v4953, 1e-05
    %v4962 = vrsqrt.pop %v4954
    %v4963 = vrsqrt.pop %v4955
    %v4964 = vrsqrt.pop %v4956
    %v4965 = vrsqrt.pop %v4957
    %v4966 = vrsqrt.pop %v4958
    %v4967 = vrsqrt.pop %v4959
    %v4968 = vrsqrt.pop %v4960
    %v4969 = vrsqrt.pop %v4961
    %v4970 = vmul.f32 %v1282, %v4962
    %v4971 = vmul.f32 %v1287, %v4963
    %v4972 = vmul.f32 %v1292, %v4964
    %v4973 = vmul.f32 %v1297, %v4965
    %v4974 = vmul.f32 %v1302, %v4966
    %v4975 = vmul.f32 %v1307, %v4967
    %v4976 = vmul.f32 %v1312, %v4968
    %v4977 = vmul.f32 %v1317, %v4969
    %v4978 = vmul.f32 %v4970, %v4914
    %v4979 = vmul.f32 %v4971, %v4915
    %v4980 = vmul.f32 %v4972, %v4916
    %v4981 = vmul.f32 %v4973, %v4917
    %v4982 = vmul.f32 %v4974, %v4918
    %v4983 = vmul.f32 %v4975, %v4919
    %v4984 = vmul.f32 %v4976, %v4920
    %v4985 = vmul.f32 %v4977, %v4921
    %v4986 = vsub.f32 %v1322, %v4978
    %v4987 = vsub.f32 %v1327, %v4979
    %v4988 = vsub.f32 %v1332, %v4980
    %v4989 = vsub.f32 %v1337, %v4981
    %v4990 = vsub.f32 %v1342, %v4982
    %v4991 = vsub.f32 %v1347, %v4983
    %v4992 = vsub.f32 %v1352, %v4984
    %v4993 = vsub.f32 %v1357, %v4985
    %4995 = vset.pattern.permute.xlu0 0
    %4996 = vperm.xlu0 %4995, %v4970
    %v4997 = vpop.permute.xlu0 %4996
    %5000 = vset.pattern.permute.xlu0 0
    %5001 = vperm.xlu0 %5000, %v4971
    %v5002 = vpop.permute.xlu0 %5001
    %5005 = vset.pattern.permute.xlu0 0
    %5006 = vperm.xlu0 %5005, %v4972
    %v5007 = vpop.permute.xlu0 %5006
    %5010 = vset.pattern.permute.xlu0 0
    %5011 = vperm.xlu0 %5010, %v4973
    %v5012 = vpop.permute.xlu0 %5011
    %5015 = vset.pattern.permute.xlu0 0
    %5016 = vperm.xlu0 %5015, %v4974
    %v5017 = vpop.permute.xlu0 %5016
    %5020 = vset.pattern.permute.xlu0 0
    %5021 = vperm.xlu0 %5020, %v4975
    %v5022 = vpop.permute.xlu0 %5021
    %5025 = vset.pattern.permute.xlu0 0
    %5026 = vperm.xlu0 %5025, %v4976
    %v5027 = vpop.permute.xlu0 %5026
    %5030 = vset.pattern.permute.xlu0 0
    %5031 = vperm.xlu0 %5030, %v4977
    %v5032 = vpop.permute.xlu0 %5031
    %v5034 = vmul.f32 %v4997, %v4834
    %v5035 = vmul.f32 %v5002, %v4836
    %v5036 = vmul.f32 %v5007, %v4838
    %v5037 = vmul.f32 %v5012, %v4840
    %v5038 = vmul.f32 %v5017, %v4842
    %v5039 = vmul.f32 %v5022, %v4844
    %v5040 = vmul.f32 %v5027, %v4846
    %v5041 = vmul.f32 %v5032, %v4848
    %5043 = vset.pattern.permute.xlu0 0
    %5044 = vperm.xlu0 %5043, %v4986
    %v5045 = vpop.permute.xlu0 %5044
    %5048 = vset.pattern.permute.xlu0 0
    %5049 = vperm.xlu0 %5048, %v4987
    %v5050 = vpop.permute.xlu0 %5049
    %5053 = vset.pattern.permute.xlu0 0
    %5054 = vperm.xlu0 %5053, %v4988
    %v5055 = vpop.permute.xlu0 %5054
    %5058 = vset.pattern.permute.xlu0 0
    %5059 = vperm.xlu0 %5058, %v4989
    %v5060 = vpop.permute.xlu0 %5059
    %5063 = vset.pattern.permute.xlu0 0
    %5064 = vperm.xlu0 %5063, %v4990
    %v5065 = vpop.permute.xlu0 %5064
    %5068 = vset.pattern.permute.xlu0 0
    %5069 = vperm.xlu0 %5068, %v4991
    %v5070 = vpop.permute.xlu0 %5069
    %5073 = vset.pattern.permute.xlu0 0
    %5074 = vperm.xlu0 %5073, %v4992
    %v5075 = vpop.permute.xlu0 %5074
    %5078 = vset.pattern.permute.xlu0 0
    %5079 = vperm.xlu0 %5078, %v4993
    %v5080 = vpop.permute.xlu0 %5079
    %v5082 = vadd.f32 %v5034, %v5045
    %v5083 = vadd.f32 %v5035, %v5050
    %v5084 = vadd.f32 %v5036, %v5055
    %v5085 = vadd.f32 %v5037, %v5060
    %v5086 = vadd.f32 %v5038, %v5065
    %v5087 = vadd.f32 %v5039, %v5070
    %v5088 = vadd.f32 %v5040, %v5075
    %v5089 = vadd.f32 %v5041, %v5080
    %v5090 = vmax.f32 %v5082, 0.0
    %v5091 = vmax.f32 %v5083, 0.0
    %v5092 = vmax.f32 %v5084, 0.0
    %v5093 = vmax.f32 %v5085, 0.0
    %v5094 = vmax.f32 %v5086, 0.0
    %v5095 = vmax.f32 %v5087, 0.0
    %v5096 = vmax.f32 %v5088, 0.0
    %v5097 = vmax.f32 %v5089, 0.0
    %5098 = vset.pattern.permute.xlu0 1
    %5099 = vperm.xlu0 %5098, %v4970
    %v5100 = vpop.permute.xlu0 %5099
    %5102 = vset.pattern.permute.xlu0 1
    %5103 = vperm.xlu0 %5102, %v4971
    %v5104 = vpop.permute.xlu0 %5103
    %5106 = vset.pattern.permute.xlu0 1
    %5107 = vperm.xlu0 %5106, %v4972
    %v5108 = vpop.permute.xlu0 %5107
    %5110 = vset.pattern.permute.xlu0 1
    %5111 = vperm.xlu0 %5110, %v4973
    %v5112 = vpop.permute.xlu0 %5111
    %5114 = vset.pattern.permute.xlu0 1
    %5115 = vperm.xlu0 %5114, %v4974
    %v5116 = vpop.permute.xlu0 %5115
    %5118 = vset.pattern.permute.xlu0 1
    %5119 = vperm.xlu0 %5118, %v4975
    %v5120 = vpop.permute.xlu0 %5119
    %5122 = vset.pattern.permute.xlu0 1
    %5123 = vperm.xlu0 %5122, %v4976
    %v5124 = vpop.permute.xlu0 %5123
    %5126 = vset.pattern.permute.xlu0 1
    %5127 = vperm.xlu0 %5126, %v4977
    %v5128 = vpop.permute.xlu0 %5127
    %v5130 = vmul.f32 %v5100, %v4835
    %v5131 = vmul.f32 %v5104, %v4837
    %v5132 = vmul.f32 %v5108, %v4839
    %v5133 = vmul.f32 %v5112, %v4841
    %v5134 = vmul.f32 %v5116, %v4843
    %v5135 = vmul.f32 %v5120, %v4845
    %v5136 = vmul.f32 %v5124, %v4847
    %v5137 = vmul.f32 %v5128, %v4849
    %5138 = vset.pattern.permute.xlu0 1
    %5139 = vperm.xlu0 %5138, %v4986
    %v5140 = vpop.permute.xlu0 %5139
    %5142 = vset.pattern.permute.xlu0 1
    %5143 = vperm.xlu0 %5142, %v4987
    %v5144 = vpop.permute.xlu0 %5143
    %5146 = vset.pattern.permute.xlu0 1
    %5147 = vperm.xlu0 %5146, %v4988
    %v5148 = vpop.permute.xlu0 %5147
    %5150 = vset.pattern.permute.xlu0 1
    %5151 = vperm.xlu0 %5150, %v4989
    %v5152 = vpop.permute.xlu0 %5151
    %5154 = vset.pattern.permute.xlu0 1
    %5155 = vperm.xlu0 %5154, %v4990
    %v5156 = vpop.permute.xlu0 %5155
    %5158 = vset.pattern.permute.xlu0 1
    %5159 = vperm.xlu0 %5158, %v4991
    %v5160 = vpop.permute.xlu0 %5159
    %5162 = vset.pattern.permute.xlu0 1
    %5163 = vperm.xlu0 %5162, %v4992
    %v5164 = vpop.permute.xlu0 %5163
    %5166 = vset.pattern.permute.xlu0 1
    %5167 = vperm.xlu0 %5166, %v4993
    %v5168 = vpop.permute.xlu0 %5167
    %v5170 = vadd.f32 %v5130, %v5140
    %v5171 = vadd.f32 %v5131, %v5144
    %v5172 = vadd.f32 %v5132, %v5148
    %v5173 = vadd.f32 %v5133, %v5152
    %v5174 = vadd.f32 %v5134, %v5156
    %v5175 = vadd.f32 %v5135, %v5160
    %v5176 = vadd.f32 %v5136, %v5164
    %v5177 = vadd.f32 %v5137, %v5168
    %v5178 = vmax.f32 %v5170, 0.0
    %v5179 = vmax.f32 %v5171, 0.0
    %v5180 = vmax.f32 %v5172, 0.0
    %v5181 = vmax.f32 %v5173, 0.0
    %v5182 = vmax.f32 %v5174, 0.0
    %v5183 = vmax.f32 %v5175, 0.0
    %v5184 = vmax.f32 %v5176, 0.0
    %v5185 = vmax.f32 %v5177, 0.0
    %s5186 = scalar_lea.vmem %s3, 384
    %v5187 = vld [vmem:[%s5186] sm:$0xff]
    %v5188 = vld [vmem:[%s5186 + $0x8] sm:$0xff]
    %v5189 = vld [vmem:[%s5186 + $0x10] sm:$0xff]
    %v5190 = vld [vmem:[%s5186 + $0x18] sm:$0xff]
    %v5191 = vld [vmem:[%s5186 + $0x20] sm:$0xff]
    %v5192 = vld [vmem:[%s5186 + $0x28] sm:$0xff]
    %v5193 = vld [vmem:[%s5186 + $0x30] sm:$0xff]
    %v5194 = vld [vmem:[%s5186 + $0x38] sm:$0xff]
    %v5196 = vsel %vm2254, %v5187, 0
    %v5199 = vsel %vm2254, %v5188, 0
    %v5202 = vsel %vm2254, %v5189, 0
    %v5205 = vsel %vm2254, %v5190, 0
    %v5208 = vsel %vm2254, %v5191, 0
    %v5211 = vsel %vm2254, %v5192, 0
    %v5214 = vsel %vm2254, %v5193, 0
    %v5217 = vsel %vm2254, %v5194, 0
    %5219 = vmatprep.subr.mxu0 %v5178
    %5220 = vmatpush1.msra.mxu0 %v5090
    %5221 = vmatprep.subr.mxu0 %v5179
    %5222 = vmatpush1.msra.mxu0 %v5091
    %5223 = vmatprep.subr.mxu0 %v5180
    %5224 = vmatpush1.msra.mxu0 %v5092
    %5225 = vmatprep.subr.mxu0 %v5181
    %5226 = vmatpush1.msra.mxu0 %v5093
    %5227 = vmatprep.subr.mxu0 %v5182
    %5228 = vmatpush1.msra.mxu0 %v5094
    %5229 = vmatprep.subr.mxu0 %v5183
    %5230 = vmatpush1.msra.mxu0 %v5095
    %5231 = vmatprep.subr.mxu0 %v5184
    %5232 = vmatpush1.msra.mxu0 %v5096
    %5233 = vmatprep.subr.mxu0 %v5185
    %5234 = vmatpush1.msra.mxu0 %v5097
    %5235 = vmatprep.subr.mxu0 0.0
    %5236 = vmatpush1.msra.mxu0 0.0
    %5237 = vmatprep.subr.mxu0 0.0
    %5238 = vmatpush1.msra.mxu0 0.0
    %5239 = vmatprep.subr.mxu0 0.0
    %5240 = vmatpush1.msra.mxu0 0.0
    %5241 = vmatprep.subr.mxu0 0.0
    %5242 = vmatpush1.msra.mxu0 0.0
    %5243 = vmatprep.subr.mxu0 0.0
    %5244 = vmatpush1.msra.mxu0 0.0
    %5245 = vmatprep.subr.mxu0 0.0
    %5246 = vmatpush1.msra.mxu0 0.0
    %5247 = vmatprep.subr.mxu0 0.0
    %5248 = vmatpush1.msra.mxu0 0.0
    %5249 = vmatprep.subr.mxu0 0.0
    %5250 = vmatpush1.msra.mxu0 0.0
    %5251 = vmatprep.subr.mxu0 0.0
    %5252 = vmatpush1.msra.mxu0 0.0
    %5253 = vmatprep.subr.mxu0 0.0
    %5254 = vmatpush1.msra.mxu0 0.0
    %5255 = vmatprep.subr.mxu0 0.0
    %5256 = vmatpush1.msra.mxu0 0.0
    %5257 = vmatprep.subr.mxu0 0.0
    %5258 = vmatpush1.msra.mxu0 0.0
    %5259 = vmatprep.subr.mxu0 0.0
    %5260 = vmatpush1.msra.mxu0 0.0
    %5261 = vmatprep.subr.mxu0 0.0
    %5262 = vmatpush1.msra.mxu0 0.0
    %5263 = vmatprep.subr.mxu0 0.0
    %5264 = vmatpush1.msra.mxu0 0.0
    %5265 = vmatprep.subr.mxu0 0.0
    %5266 = vmatpush1.msra.mxu0 0.0
    %5267 = vmatprep.subr.mxu0 0.0
    %5268 = vmatpush1.msra.mxu0 0.0
    %5269 = vmatprep.subr.mxu0 0.0
    %5270 = vmatpush1.msra.mxu0 0.0
    %5271 = vmatprep.subr.mxu0 0.0
    %5272 = vmatpush1.msra.mxu0 0.0
    %5273 = vmatprep.subr.mxu0 0.0
    %5274 = vmatpush1.msra.mxu0 0.0
    %5275 = vmatprep.subr.mxu0 0.0
    %5276 = vmatpush1.msra.mxu0 0.0
    %5277 = vmatprep.subr.mxu0 0.0
    %5278 = vmatpush1.msra.mxu0 0.0
    %5279 = vmatprep.subr.mxu0 0.0
    %5280 = vmatpush1.msra.mxu0 0.0
    %5281 = vmatprep.subr.mxu0 0.0
    %5282 = vmatpush1.msra.mxu0 0.0
    %5283 = vmatprep.mubr.f32.mxu0 0.0
    %5284 = vmatmul.mubr.f32.gmra.mrb[0].mxu0 %v5196
    %v5285 = vpop.f32.mrb[0].mxu0
    %v5286 = vadd.f32 0.0, %v5285
    %v5287 = vpop.f32.mrb[0].mxu0
    %v5288 = vadd.f32 0.0, %v5287
    %5289 = vmatprep.mubr.f32.mxu0 0.0
    %5290 = vmatmul.mubr.f32.gmra.mrb[0].mxu0 %v5199
    %v5291 = vpop.f32.mrb[0].mxu0
    %v5292 = vadd.f32 0.0, %v5291
    %v5293 = vpop.f32.mrb[0].mxu0
    %v5294 = vadd.f32 0.0, %v5293
    %5295 = vmatprep.mubr.f32.mxu0 0.0
    %5296 = vmatmul.mubr.f32.gmra.mrb[0].mxu0 %v5202
    %v5297 = vpop.f32.mrb[0].mxu0
    %v5298 = vadd.f32 0.0, %v5297
    %v5299 = vpop.f32.mrb[0].mxu0
    %v5300 = vadd.f32 0.0, %v5299
    %5301 = vmatprep.mubr.f32.mxu0 0.0
    %5302 = vmatmul.mubr.f32.gmra.mrb[0].mxu0 %v5205
    %v5303 = vpop.f32.mrb[0].mxu0
    %v5304 = vadd.f32 0.0, %v5303
    %v5305 = vpop.f32.mrb[0].mxu0
    %v5306 = vadd.f32 0.0, %v5305
    %5307 = vmatprep.mubr.f32.mxu0 0.0
    %5308 = vmatmul.mubr.f32.gmra.mrb[0].mxu0 %v5208
    %v5309 = vpop.f32.mrb[0].mxu0
    %v5310 = vadd.f32 0.0, %v5309
    %v5311 = vpop.f32.mrb[0].mxu0
    %v5312 = vadd.f32 0.0, %v5311
    %5313 = vmatprep.mubr.f32.mxu0 0.0
    %5314 = vmatmul.mubr.f32.gmra.mrb[0].mxu0 %v5211
    %v5315 = vpop.f32.mrb[0].mxu0
    %v5316 = vadd.f32 0.0, %v5315
    %v5317 = vpop.f32.mrb[0].mxu0
    %v5318 = vadd.f32 0.0, %v5317
    %5319 = vmatprep.mubr.f32.mxu0 0.0
    %5320 = vmatmul.mubr.f32.gmra.mrb[0].mxu0 %v5214
    %v5321 = vpop.f32.mrb[0].mxu0
    %v5322 = vadd.f32 0.0, %v5321
    %v5323 = vpop.f32.mrb[0].mxu0
    %v5324 = vadd.f32 0.0, %v5323
    %5325 = vmatprep.mubr.f32.mxu0 0.0
    %5326 = vmatmul.mubr.f32.gmra.mrb[0].mxu0 %v5217
    %v5327 = vpop.f32.mrb[0].mxu0
    %v5328 = vadd.f32 0.0, %v5327
    %v5329 = vpop.f32.mrb[0].mxu0
    %v5330 = vadd.f32 0.0, %v5329
    %5331 = vdwg.mxu0
    %v5332 = vadd.f32 %v5286, %v5288
    %5333 = vadd.xlane.f32.xlu0 %v5332
    %v5334 = vpop.xlane.xlu0 %5333
    %v5335 = vadd.f32 %v5292, %v5294
    %5336 = vadd.xlane.f32.xlu0 %v5335
    %v5337 = vpop.xlane.xlu0 %5336
    %v5338 = vadd.f32 %v5298, %v5300
    %5339 = vadd.xlane.f32.xlu0 %v5338
    %v5340 = vpop.xlane.xlu0 %5339
    %v5341 = vadd.f32 %v5304, %v5306
    %5342 = vadd.xlane.f32.xlu0 %v5341
    %v5343 = vpop.xlane.xlu0 %5342
    %v5344 = vadd.f32 %v5310, %v5312
    %5345 = vadd.xlane.f32.xlu0 %v5344
    %v5346 = vpop.xlane.xlu0 %5345
    %v5347 = vadd.f32 %v5316, %v5318
    %5348 = vadd.xlane.f32.xlu0 %v5347
    %v5349 = vpop.xlane.xlu0 %5348
    %v5350 = vadd.f32 %v5322, %v5324
    %5351 = vadd.xlane.f32.xlu0 %v5350
    %v5352 = vpop.xlane.xlu0 %5351
    %v5353 = vadd.f32 %v5328, %v5330
    %5354 = vadd.xlane.f32.xlu0 %v5353
    %v5355 = vpop.xlane.xlu0 %5354
    %v5356 = vmul.f32 %v5286, %v5286
    %v5357 = vmul.f32 %v5288, %v5288
    %v5358 = vmul.f32 %v5292, %v5292
    %v5359 = vmul.f32 %v5294, %v5294
    %v5360 = vmul.f32 %v5298, %v5298
    %v5361 = vmul.f32 %v5300, %v5300
    %v5362 = vmul.f32 %v5304, %v5304
    %v5363 = vmul.f32 %v5306, %v5306
    %v5364 = vmul.f32 %v5310, %v5310
    %v5365 = vmul.f32 %v5312, %v5312
    %v5366 = vmul.f32 %v5316, %v5316
    %v5367 = vmul.f32 %v5318, %v5318
    %v5368 = vmul.f32 %v5322, %v5322
    %v5369 = vmul.f32 %v5324, %v5324
    %v5370 = vmul.f32 %v5328, %v5328
    %v5371 = vmul.f32 %v5330, %v5330
    %v5372 = vadd.f32 %v5356, %v5357
    %5373 = vadd.xlane.f32.xlu0 %v5372
    %v5374 = vpop.xlane.xlu0 %5373
    %v5375 = vadd.f32 %v5358, %v5359
    %5376 = vadd.xlane.f32.xlu0 %v5375
    %v5377 = vpop.xlane.xlu0 %5376
    %v5378 = vadd.f32 %v5360, %v5361
    %5379 = vadd.xlane.f32.xlu0 %v5378
    %v5380 = vpop.xlane.xlu0 %5379
    %v5381 = vadd.f32 %v5362, %v5363
    %5382 = vadd.xlane.f32.xlu0 %v5381
    %v5383 = vpop.xlane.xlu0 %5382
    %v5384 = vadd.f32 %v5364, %v5365
    %5385 = vadd.xlane.f32.xlu0 %v5384
    %v5386 = vpop.xlane.xlu0 %5385
    %v5387 = vadd.f32 %v5366, %v5367
    %5388 = vadd.xlane.f32.xlu0 %v5387
    %v5389 = vpop.xlane.xlu0 %5388
    %v5390 = vadd.f32 %v5368, %v5369
    %5391 = vadd.xlane.f32.xlu0 %v5390
    %v5392 = vpop.xlane.xlu0 %5391
    %v5393 = vadd.f32 %v5370, %v5371
    %5394 = vadd.xlane.f32.xlu0 %v5393
    %v5395 = vpop.xlane.xlu0 %5394
    %v5396 = vmul.f32 %v5334, 0.00390625
    %v5397 = vmul.f32 %v5337, 0.00390625
    %v5398 = vmul.f32 %v5340, 0.00390625
    %v5399 = vmul.f32 %v5343, 0.00390625
    %v5400 = vmul.f32 %v5346, 0.00390625
    %v5401 = vmul.f32 %v5349, 0.00390625
    %v5402 = vmul.f32 %v5352, 0.00390625
    %v5403 = vmul.f32 %v5355, 0.00390625
    %v5404 = vmul.f32 %v5374, 0.00390625
    %v5405 = vmul.f32 %v5377, 0.00390625
    %v5406 = vmul.f32 %v5380, 0.00390625
    %v5407 = vmul.f32 %v5383, 0.00390625
    %v5408 = vmul.f32 %v5386, 0.00390625
    %v5409 = vmul.f32 %v5389, 0.00390625
    %v5410 = vmul.f32 %v5392, 0.00390625
    %v5411 = vmul.f32 %v5395, 0.00390625
    %v5412 = vmul.f32 %v5396, %v5396
    %v5413 = vmul.f32 %v5397, %v5397
    %v5414 = vmul.f32 %v5398, %v5398
    %v5415 = vmul.f32 %v5399, %v5399
    %v5416 = vmul.f32 %v5400, %v5400
    %v5417 = vmul.f32 %v5401, %v5401
    %v5418 = vmul.f32 %v5402, %v5402
    %v5419 = vmul.f32 %v5403, %v5403
    %v5420 = vsub.f32 %v5404, %v5412
    %v5421 = vsub.f32 %v5405, %v5413
    %v5422 = vsub.f32 %v5406, %v5414
    %v5423 = vsub.f32 %v5407, %v5415
    %v5424 = vsub.f32 %v5408, %v5416
    %v5425 = vsub.f32 %v5409, %v5417
    %v5426 = vsub.f32 %v5410, %v5418
    %v5427 = vsub.f32 %v5411, %v5419
    %v5428 = vmax.f32 %v5420, 0.0
    %v5429 = vmax.f32 %v5421, 0.0
    %v5430 = vmax.f32 %v5422, 0.0
    %v5431 = vmax.f32 %v5423, 0.0
    %v5432 = vmax.f32 %v5424, 0.0
    %v5433 = vmax.f32 %v5425, 0.0
    %v5434 = vmax.f32 %v5426, 0.0
    %v5435 = vmax.f32 %v5427, 0.0
    %v5436 = vadd.f32 %v5428, 1e-05
    %v5437 = vadd.f32 %v5429, 1e-05
    %v5438 = vadd.f32 %v5430, 1e-05
    %v5439 = vadd.f32 %v5431, 1e-05
    %v5440 = vadd.f32 %v5432, 1e-05
    %v5441 = vadd.f32 %v5433, 1e-05
    %v5442 = vadd.f32 %v5434, 1e-05
    %v5443 = vadd.f32 %v5435, 1e-05
    %v5444 = vrsqrt.pop %v5436
    %v5445 = vrsqrt.pop %v5437
    %v5446 = vrsqrt.pop %v5438
    %v5447 = vrsqrt.pop %v5439
    %v5448 = vrsqrt.pop %v5440
    %v5449 = vrsqrt.pop %v5441
    %v5450 = vrsqrt.pop %v5442
    %v5451 = vrsqrt.pop %v5443
    %v5452 = vmul.f32 %v1362, %v5444
    %v5453 = vmul.f32 %v1367, %v5445
    %v5454 = vmul.f32 %v1372, %v5446
    %v5455 = vmul.f32 %v1377, %v5447
    %v5456 = vmul.f32 %v1382, %v5448
    %v5457 = vmul.f32 %v1387, %v5449
    %v5458 = vmul.f32 %v1392, %v5450
    %v5459 = vmul.f32 %v1397, %v5451
    %v5460 = vmul.f32 %v5452, %v5396
    %v5461 = vmul.f32 %v5453, %v5397
    %v5462 = vmul.f32 %v5454, %v5398
    %v5463 = vmul.f32 %v5455, %v5399
    %v5464 = vmul.f32 %v5456, %v5400
    %v5465 = vmul.f32 %v5457, %v5401
    %v5466 = vmul.f32 %v5458, %v5402
    %v5467 = vmul.f32 %v5459, %v5403
    %v5468 = vsub.f32 %v1402, %v5460
    %v5469 = vsub.f32 %v1407, %v5461
    %v5470 = vsub.f32 %v1412, %v5462
    %v5471 = vsub.f32 %v1417, %v5463
    %v5472 = vsub.f32 %v1422, %v5464
    %v5473 = vsub.f32 %v1427, %v5465
    %v5474 = vsub.f32 %v1432, %v5466
    %v5475 = vsub.f32 %v1437, %v5467
    %5477 = vset.pattern.permute.xlu0 0
    %5478 = vperm.xlu0 %5477, %v5452
    %v5479 = vpop.permute.xlu0 %5478
    %5482 = vset.pattern.permute.xlu0 0
    %5483 = vperm.xlu0 %5482, %v5453
    %v5484 = vpop.permute.xlu0 %5483
    %5487 = vset.pattern.permute.xlu0 0
    %5488 = vperm.xlu0 %5487, %v5454
    %v5489 = vpop.permute.xlu0 %5488
    %5492 = vset.pattern.permute.xlu0 0
    %5493 = vperm.xlu0 %5492, %v5455
    %v5494 = vpop.permute.xlu0 %5493
    %5497 = vset.pattern.permute.xlu0 0
    %5498 = vperm.xlu0 %5497, %v5456
    %v5499 = vpop.permute.xlu0 %5498
    %5502 = vset.pattern.permute.xlu0 0
    %5503 = vperm.xlu0 %5502, %v5457
    %v5504 = vpop.permute.xlu0 %5503
    %5507 = vset.pattern.permute.xlu0 0
    %5508 = vperm.xlu0 %5507, %v5458
    %v5509 = vpop.permute.xlu0 %5508
    %5512 = vset.pattern.permute.xlu0 0
    %5513 = vperm.xlu0 %5512, %v5459
    %v5514 = vpop.permute.xlu0 %5513
    %v5516 = vmul.f32 %v5479, %v5286
    %v5517 = vmul.f32 %v5484, %v5292
    %v5518 = vmul.f32 %v5489, %v5298
    %v5519 = vmul.f32 %v5494, %v5304
    %v5520 = vmul.f32 %v5499, %v5310
    %v5521 = vmul.f32 %v5504, %v5316
    %v5522 = vmul.f32 %v5509, %v5322
    %v5523 = vmul.f32 %v5514, %v5328
    %5525 = vset.pattern.permute.xlu0 0
    %5526 = vperm.xlu0 %5525, %v5468
    %v5527 = vpop.permute.xlu0 %5526
    %5530 = vset.pattern.permute.xlu0 0
    %5531 = vperm.xlu0 %5530, %v5469
    %v5532 = vpop.permute.xlu0 %5531
    %5535 = vset.pattern.permute.xlu0 0
    %5536 = vperm.xlu0 %5535, %v5470
    %v5537 = vpop.permute.xlu0 %5536
    %5540 = vset.pattern.permute.xlu0 0
    %5541 = vperm.xlu0 %5540, %v5471
    %v5542 = vpop.permute.xlu0 %5541
    %5545 = vset.pattern.permute.xlu0 0
    %5546 = vperm.xlu0 %5545, %v5472
    %v5547 = vpop.permute.xlu0 %5546
    %5550 = vset.pattern.permute.xlu0 0
    %5551 = vperm.xlu0 %5550, %v5473
    %v5552 = vpop.permute.xlu0 %5551
    %5555 = vset.pattern.permute.xlu0 0
    %5556 = vperm.xlu0 %5555, %v5474
    %v5557 = vpop.permute.xlu0 %5556
    %5560 = vset.pattern.permute.xlu0 0
    %5561 = vperm.xlu0 %5560, %v5475
    %v5562 = vpop.permute.xlu0 %5561
    %v5564 = vadd.f32 %v5516, %v5527
    %v5565 = vadd.f32 %v5517, %v5532
    %v5566 = vadd.f32 %v5518, %v5537
    %v5567 = vadd.f32 %v5519, %v5542
    %v5568 = vadd.f32 %v5520, %v5547
    %v5569 = vadd.f32 %v5521, %v5552
    %v5570 = vadd.f32 %v5522, %v5557
    %v5571 = vadd.f32 %v5523, %v5562
    %v5572 = vmax.f32 %v5564, 0.0
    %v5573 = vmax.f32 %v5565, 0.0
    %v5574 = vmax.f32 %v5566, 0.0
    %v5575 = vmax.f32 %v5567, 0.0
    %v5576 = vmax.f32 %v5568, 0.0
    %v5577 = vmax.f32 %v5569, 0.0
    %v5578 = vmax.f32 %v5570, 0.0
    %v5579 = vmax.f32 %v5571, 0.0
    %5580 = vset.pattern.permute.xlu0 1
    %5581 = vperm.xlu0 %5580, %v5452
    %v5582 = vpop.permute.xlu0 %5581
    %5584 = vset.pattern.permute.xlu0 1
    %5585 = vperm.xlu0 %5584, %v5453
    %v5586 = vpop.permute.xlu0 %5585
    %5588 = vset.pattern.permute.xlu0 1
    %5589 = vperm.xlu0 %5588, %v5454
    %v5590 = vpop.permute.xlu0 %5589
    %5592 = vset.pattern.permute.xlu0 1
    %5593 = vperm.xlu0 %5592, %v5455
    %v5594 = vpop.permute.xlu0 %5593
    %5596 = vset.pattern.permute.xlu0 1
    %5597 = vperm.xlu0 %5596, %v5456
    %v5598 = vpop.permute.xlu0 %5597
    %5600 = vset.pattern.permute.xlu0 1
    %5601 = vperm.xlu0 %5600, %v5457
    %v5602 = vpop.permute.xlu0 %5601
    %5604 = vset.pattern.permute.xlu0 1
    %5605 = vperm.xlu0 %5604, %v5458
    %v5606 = vpop.permute.xlu0 %5605
    %5608 = vset.pattern.permute.xlu0 1
    %5609 = vperm.xlu0 %5608, %v5459
    %v5610 = vpop.permute.xlu0 %5609
    %v5612 = vmul.f32 %v5582, %v5288
    %v5613 = vmul.f32 %v5586, %v5294
    %v5614 = vmul.f32 %v5590, %v5300
    %v5615 = vmul.f32 %v5594, %v5306
    %v5616 = vmul.f32 %v5598, %v5312
    %v5617 = vmul.f32 %v5602, %v5318
    %v5618 = vmul.f32 %v5606, %v5324
    %v5619 = vmul.f32 %v5610, %v5330
    %5620 = vset.pattern.permute.xlu0 1
    %5621 = vperm.xlu0 %5620, %v5468
    %v5622 = vpop.permute.xlu0 %5621
    %5624 = vset.pattern.permute.xlu0 1
    %5625 = vperm.xlu0 %5624, %v5469
    %v5626 = vpop.permute.xlu0 %5625
    %5628 = vset.pattern.permute.xlu0 1
    %5629 = vperm.xlu0 %5628, %v5470
    %v5630 = vpop.permute.xlu0 %5629
    %5632 = vset.pattern.permute.xlu0 1
    %5633 = vperm.xlu0 %5632, %v5471
    %v5634 = vpop.permute.xlu0 %5633
    %5636 = vset.pattern.permute.xlu0 1
    %5637 = vperm.xlu0 %5636, %v5472
    %v5638 = vpop.permute.xlu0 %5637
    %5640 = vset.pattern.permute.xlu0 1
    %5641 = vperm.xlu0 %5640, %v5473
    %v5642 = vpop.permute.xlu0 %5641
    %5644 = vset.pattern.permute.xlu0 1
    %5645 = vperm.xlu0 %5644, %v5474
    %v5646 = vpop.permute.xlu0 %5645
    %5648 = vset.pattern.permute.xlu0 1
    %5649 = vperm.xlu0 %5648, %v5475
    %v5650 = vpop.permute.xlu0 %5649
    %v5652 = vadd.f32 %v5612, %v5622
    %v5653 = vadd.f32 %v5613, %v5626
    %v5654 = vadd.f32 %v5614, %v5630
    %v5655 = vadd.f32 %v5615, %v5634
    %v5656 = vadd.f32 %v5616, %v5638
    %v5657 = vadd.f32 %v5617, %v5642
    %v5658 = vadd.f32 %v5618, %v5646
    %v5659 = vadd.f32 %v5619, %v5650
    %v5660 = vmax.f32 %v5652, 0.0
    %v5661 = vmax.f32 %v5653, 0.0
    %v5662 = vmax.f32 %v5654, 0.0
    %v5663 = vmax.f32 %v5655, 0.0
    %v5664 = vmax.f32 %v5656, 0.0
    %v5665 = vmax.f32 %v5657, 0.0
    %v5666 = vmax.f32 %v5658, 0.0
    %v5667 = vmax.f32 %v5659, 0.0
    %s5668 = scalar_lea.vmem %s3, 448
    %v5669 = vld [vmem:[%s5668] sm:$0xff]
    %v5670 = vld [vmem:[%s5668 + $0x8] sm:$0xff]
    %v5671 = vld [vmem:[%s5668 + $0x10] sm:$0xff]
    %v5672 = vld [vmem:[%s5668 + $0x18] sm:$0xff]
    %v5673 = vld [vmem:[%s5668 + $0x20] sm:$0xff]
    %v5674 = vld [vmem:[%s5668 + $0x28] sm:$0xff]
    %v5675 = vld [vmem:[%s5668 + $0x30] sm:$0xff]
    %v5676 = vld [vmem:[%s5668 + $0x38] sm:$0xff]
    %v5678 = vsel %vm2254, %v5669, 0
    %v5681 = vsel %vm2254, %v5670, 0
    %v5684 = vsel %vm2254, %v5671, 0
    %v5687 = vsel %vm2254, %v5672, 0
    %v5690 = vsel %vm2254, %v5673, 0
    %v5693 = vsel %vm2254, %v5674, 0
    %v5696 = vsel %vm2254, %v5675, 0
    %v5699 = vsel %vm2254, %v5676, 0
    %5701 = vmatprep.subr.mxu0 %v5660
    %5702 = vmatpush1.msra.mxu0 %v5572
    %5703 = vmatprep.subr.mxu0 %v5661
    %5704 = vmatpush1.msra.mxu0 %v5573
    %5705 = vmatprep.subr.mxu0 %v5662
    %5706 = vmatpush1.msra.mxu0 %v5574
    %5707 = vmatprep.subr.mxu0 %v5663
    %5708 = vmatpush1.msra.mxu0 %v5575
    %5709 = vmatprep.subr.mxu0 %v5664
    %5710 = vmatpush1.msra.mxu0 %v5576
    %5711 = vmatprep.subr.mxu0 %v5665
    %5712 = vmatpush1.msra.mxu0 %v5577
    %5713 = vmatprep.subr.mxu0 %v5666
    %5714 = vmatpush1.msra.mxu0 %v5578
    %5715 = vmatprep.subr.mxu0 %v5667
    %5716 = vmatpush1.msra.mxu0 %v5579
    %5717 = vmatprep.subr.mxu0 0.0
    %5718 = vmatpush1.msra.mxu0 0.0
    %5719 = vmatprep.subr.mxu0 0.0
    %5720 = vmatpush1.msra.mxu0 0.0
    %5721 = vmatprep.subr.mxu0 0.0
    %5722 = vmatpush1.msra.mxu0 0.0
    %5723 = vmatprep.subr.mxu0 0.0
    %5724 = vmatpush1.msra.mxu0 0.0
    %5725 = vmatprep.subr.mxu0 0.0
    %5726 = vmatpush1.msra.mxu0 0.0
    %5727 = vmatprep.subr.mxu0 0.0
    %5728 = vmatpush1.msra.mxu0 0.0
    %5729 = vmatprep.subr.mxu0 0.0
    %5730 = vmatpush1.msra.mxu0 0.0
    %5731 = vmatprep.subr.mxu0 0.0
    %5732 = vmatpush1.msra.mxu0 0.0
    %5733 = vmatprep.subr.mxu0 0.0
    %5734 = vmatpush1.msra.mxu0 0.0
    %5735 = vmatprep.subr.mxu0 0.0
    %5736 = vmatpush1.msra.mxu0 0.0
    %5737 = vmatprep.subr.mxu0 0.0
    %5738 = vmatpush1.msra.mxu0 0.0
    %5739 = vmatprep.subr.mxu0 0.0
    %5740 = vmatpush1.msra.mxu0 0.0
    %5741 = vmatprep.subr.mxu0 0.0
    %5742 = vmatpush1.msra.mxu0 0.0
    %5743 = vmatprep.subr.mxu0 0.0
    %5744 = vmatpush1.msra.mxu0 0.0
    %5745 = vmatprep.subr.mxu0 0.0
    %5746 = vmatpush1.msra.mxu0 0.0
    %5747 = vmatprep.subr.mxu0 0.0
    %5748 = vmatpush1.msra.mxu0 0.0
    %5749 = vmatprep.subr.mxu0 0.0
    %5750 = vmatpush1.msra.mxu0 0.0
    %5751 = vmatprep.subr.mxu0 0.0
    %5752 = vmatpush1.msra.mxu0 0.0
    %5753 = vmatprep.subr.mxu0 0.0
    %5754 = vmatpush1.msra.mxu0 0.0
    %5755 = vmatprep.subr.mxu0 0.0
    %5756 = vmatpush1.msra.mxu0 0.0
    %5757 = vmatprep.subr.mxu0 0.0
    %5758 = vmatpush1.msra.mxu0 0.0
    %5759 = vmatprep.subr.mxu0 0.0
    %5760 = vmatpush1.msra.mxu0 0.0
    %5761 = vmatprep.subr.mxu0 0.0
    %5762 = vmatpush1.msra.mxu0 0.0
    %5763 = vmatprep.subr.mxu0 0.0
    %5764 = vmatpush1.msra.mxu0 0.0
    %5765 = vmatprep.mubr.f32.mxu0 0.0
    %5766 = vmatmul.mubr.f32.gmra.mrb[0].mxu0 %v5678
    %v5767 = vpop.f32.mrb[0].mxu0
    %v5768 = vadd.f32 0.0, %v5767
    %v5769 = vpop.f32.mrb[0].mxu0
    %v5770 = vadd.f32 0.0, %v5769
    %5771 = vmatprep.mubr.f32.mxu0 0.0
    %5772 = vmatmul.mubr.f32.gmra.mrb[0].mxu0 %v5681
    %v5773 = vpop.f32.mrb[0].mxu0
    %v5774 = vadd.f32 0.0, %v5773
    %v5775 = vpop.f32.mrb[0].mxu0
    %v5776 = vadd.f32 0.0, %v5775
    %5777 = vmatprep.mubr.f32.mxu0 0.0
    %5778 = vmatmul.mubr.f32.gmra.mrb[0].mxu0 %v5684
    %v5779 = vpop.f32.mrb[0].mxu0
    %v5780 = vadd.f32 0.0, %v5779
    %v5781 = vpop.f32.mrb[0].mxu0
    %v5782 = vadd.f32 0.0, %v5781
    %5783 = vmatprep.mubr.f32.mxu0 0.0
    %5784 = vmatmul.mubr.f32.gmra.mrb[0].mxu0 %v5687
    %v5785 = vpop.f32.mrb[0].mxu0
    %v5786 = vadd.f32 0.0, %v5785
    %v5787 = vpop.f32.mrb[0].mxu0
    %v5788 = vadd.f32 0.0, %v5787
    %5789 = vmatprep.mubr.f32.mxu0 0.0
    %5790 = vmatmul.mubr.f32.gmra.mrb[0].mxu0 %v5690
    %v5791 = vpop.f32.mrb[0].mxu0
    %v5792 = vadd.f32 0.0, %v5791
    %v5793 = vpop.f32.mrb[0].mxu0
    %v5794 = vadd.f32 0.0, %v5793
    %5795 = vmatprep.mubr.f32.mxu0 0.0
    %5796 = vmatmul.mubr.f32.gmra.mrb[0].mxu0 %v5693
    %v5797 = vpop.f32.mrb[0].mxu0
    %v5798 = vadd.f32 0.0, %v5797
    %v5799 = vpop.f32.mrb[0].mxu0
    %v5800 = vadd.f32 0.0, %v5799
    %5801 = vmatprep.mubr.f32.mxu0 0.0
    %5802 = vmatmul.mubr.f32.gmra.mrb[0].mxu0 %v5696
    %v5803 = vpop.f32.mrb[0].mxu0
    %v5804 = vadd.f32 0.0, %v5803
    %v5805 = vpop.f32.mrb[0].mxu0
    %v5806 = vadd.f32 0.0, %v5805
    %5807 = vmatprep.mubr.f32.mxu0 0.0
    %5808 = vmatmul.mubr.f32.gmra.mrb[0].mxu0 %v5699
    %v5809 = vpop.f32.mrb[0].mxu0
    %v5810 = vadd.f32 0.0, %v5809
    %v5811 = vpop.f32.mrb[0].mxu0
    %v5812 = vadd.f32 0.0, %v5811
    %5813 = vdwg.mxu0
    %v5814 = vadd.f32 %v4834, %v5768
    %v5815 = vadd.f32 %v4835, %v5770
    %v5816 = vadd.f32 %v4836, %v5774
    %v5817 = vadd.f32 %v4837, %v5776
    %v5818 = vadd.f32 %v4838, %v5780
    %v5819 = vadd.f32 %v4839, %v5782
    %v5820 = vadd.f32 %v4840, %v5786
    %v5821 = vadd.f32 %v4841, %v5788
    %v5822 = vadd.f32 %v4842, %v5792
    %v5823 = vadd.f32 %v4843, %v5794
    %v5824 = vadd.f32 %v4844, %v5798
    %v5825 = vadd.f32 %v4845, %v5800
    %v5826 = vadd.f32 %v4846, %v5804
    %v5827 = vadd.f32 %v4847, %v5806
    %v5828 = vadd.f32 %v4848, %v5810
    %v5829 = vadd.f32 %v4849, %v5812
    %v5830 = vadd.f32 %v5814, %v5815
    %5831 = vadd.xlane.f32.xlu0 %v5830
    %v5832 = vpop.xlane.xlu0 %5831
    %v5833 = vadd.f32 %v5816, %v5817
    %5834 = vadd.xlane.f32.xlu0 %v5833
    %v5835 = vpop.xlane.xlu0 %5834
    %v5836 = vadd.f32 %v5818, %v5819
    %5837 = vadd.xlane.f32.xlu0 %v5836
    %v5838 = vpop.xlane.xlu0 %5837
    %v5839 = vadd.f32 %v5820, %v5821
    %5840 = vadd.xlane.f32.xlu0 %v5839
    %v5841 = vpop.xlane.xlu0 %5840
    %v5842 = vadd.f32 %v5822, %v5823
    %5843 = vadd.xlane.f32.xlu0 %v5842
    %v5844 = vpop.xlane.xlu0 %5843
    %v5845 = vadd.f32 %v5824, %v5825
    %5846 = vadd.xlane.f32.xlu0 %v5845
    %v5847 = vpop.xlane.xlu0 %5846
    %v5848 = vadd.f32 %v5826, %v5827
    %5849 = vadd.xlane.f32.xlu0 %v5848
    %v5850 = vpop.xlane.xlu0 %5849
    %v5851 = vadd.f32 %v5828, %v5829
    %5852 = vadd.xlane.f32.xlu0 %v5851
    %v5853 = vpop.xlane.xlu0 %5852
    %v5854 = vmul.f32 %v5814, %v5814
    %v5855 = vmul.f32 %v5815, %v5815
    %v5856 = vmul.f32 %v5816, %v5816
    %v5857 = vmul.f32 %v5817, %v5817
    %v5858 = vmul.f32 %v5818, %v5818
    %v5859 = vmul.f32 %v5819, %v5819
    %v5860 = vmul.f32 %v5820, %v5820
    %v5861 = vmul.f32 %v5821, %v5821
    %v5862 = vmul.f32 %v5822, %v5822
    %v5863 = vmul.f32 %v5823, %v5823
    %v5864 = vmul.f32 %v5824, %v5824
    %v5865 = vmul.f32 %v5825, %v5825
    %v5866 = vmul.f32 %v5826, %v5826
    %v5867 = vmul.f32 %v5827, %v5827
    %v5868 = vmul.f32 %v5828, %v5828
    %v5869 = vmul.f32 %v5829, %v5829
    %v5870 = vadd.f32 %v5854, %v5855
    %5871 = vadd.xlane.f32.xlu0 %v5870
    %v5872 = vpop.xlane.xlu0 %5871
    %v5873 = vadd.f32 %v5856, %v5857
    %5874 = vadd.xlane.f32.xlu0 %v5873
    %v5875 = vpop.xlane.xlu0 %5874
    %v5876 = vadd.f32 %v5858, %v5859
    %5877 = vadd.xlane.f32.xlu0 %v5876
    %v5878 = vpop.xlane.xlu0 %5877
    %v5879 = vadd.f32 %v5860, %v5861
    %5880 = vadd.xlane.f32.xlu0 %v5879
    %v5881 = vpop.xlane.xlu0 %5880
    %v5882 = vadd.f32 %v5862, %v5863
    %5883 = vadd.xlane.f32.xlu0 %v5882
    %v5884 = vpop.xlane.xlu0 %5883
    %v5885 = vadd.f32 %v5864, %v5865
    %5886 = vadd.xlane.f32.xlu0 %v5885
    %v5887 = vpop.xlane.xlu0 %5886
    %v5888 = vadd.f32 %v5866, %v5867
    %5889 = vadd.xlane.f32.xlu0 %v5888
    %v5890 = vpop.xlane.xlu0 %5889
    %v5891 = vadd.f32 %v5868, %v5869
    %5892 = vadd.xlane.f32.xlu0 %v5891
    %v5893 = vpop.xlane.xlu0 %5892
    %v5894 = vmul.f32 %v5832, 0.00390625
    %v5895 = vmul.f32 %v5835, 0.00390625
    %v5896 = vmul.f32 %v5838, 0.00390625
    %v5897 = vmul.f32 %v5841, 0.00390625
    %v5898 = vmul.f32 %v5844, 0.00390625
    %v5899 = vmul.f32 %v5847, 0.00390625
    %v5900 = vmul.f32 %v5850, 0.00390625
    %v5901 = vmul.f32 %v5853, 0.00390625
    %v5902 = vmul.f32 %v5872, 0.00390625
    %v5903 = vmul.f32 %v5875, 0.00390625
    %v5904 = vmul.f32 %v5878, 0.00390625
    %v5905 = vmul.f32 %v5881, 0.00390625
    %v5906 = vmul.f32 %v5884, 0.00390625
    %v5907 = vmul.f32 %v5887, 0.00390625
    %v5908 = vmul.f32 %v5890, 0.00390625
    %v5909 = vmul.f32 %v5893, 0.00390625
    %v5910 = vmul.f32 %v5894, %v5894
    %v5911 = vmul.f32 %v5895, %v5895
    %v5912 = vmul.f32 %v5896, %v5896
    %v5913 = vmul.f32 %v5897, %v5897
    %v5914 = vmul.f32 %v5898, %v5898
    %v5915 = vmul.f32 %v5899, %v5899
    %v5916 = vmul.f32 %v5900, %v5900
    %v5917 = vmul.f32 %v5901, %v5901
    %v5918 = vsub.f32 %v5902, %v5910
    %v5919 = vsub.f32 %v5903, %v5911
    %v5920 = vsub.f32 %v5904, %v5912
    %v5921 = vsub.f32 %v5905, %v5913
    %v5922 = vsub.f32 %v5906, %v5914
    %v5923 = vsub.f32 %v5907, %v5915
    %v5924 = vsub.f32 %v5908, %v5916
    %v5925 = vsub.f32 %v5909, %v5917
    %v5926 = vmax.f32 %v5918, 0.0
    %v5927 = vmax.f32 %v5919, 0.0
    %v5928 = vmax.f32 %v5920, 0.0
    %v5929 = vmax.f32 %v5921, 0.0
    %v5930 = vmax.f32 %v5922, 0.0
    %v5931 = vmax.f32 %v5923, 0.0
    %v5932 = vmax.f32 %v5924, 0.0
    %v5933 = vmax.f32 %v5925, 0.0
    %v5934 = vadd.f32 %v5926, 1e-05
    %v5935 = vadd.f32 %v5927, 1e-05
    %v5936 = vadd.f32 %v5928, 1e-05
    %v5937 = vadd.f32 %v5929, 1e-05
    %v5938 = vadd.f32 %v5930, 1e-05
    %v5939 = vadd.f32 %v5931, 1e-05
    %v5940 = vadd.f32 %v5932, 1e-05
    %v5941 = vadd.f32 %v5933, 1e-05
    %v5942 = vrsqrt.pop %v5934
    %v5943 = vrsqrt.pop %v5935
    %v5944 = vrsqrt.pop %v5936
    %v5945 = vrsqrt.pop %v5937
    %v5946 = vrsqrt.pop %v5938
    %v5947 = vrsqrt.pop %v5939
    %v5948 = vrsqrt.pop %v5940
    %v5949 = vrsqrt.pop %v5941
    %v5950 = vmul.f32 %v1442, %v5942
    %v5951 = vmul.f32 %v1447, %v5943
    %v5952 = vmul.f32 %v1452, %v5944
    %v5953 = vmul.f32 %v1457, %v5945
    %v5954 = vmul.f32 %v1462, %v5946
    %v5955 = vmul.f32 %v1467, %v5947
    %v5956 = vmul.f32 %v1472, %v5948
    %v5957 = vmul.f32 %v1477, %v5949
    %v5958 = vmul.f32 %v5950, %v5894
    %v5959 = vmul.f32 %v5951, %v5895
    %v5960 = vmul.f32 %v5952, %v5896
    %v5961 = vmul.f32 %v5953, %v5897
    %v5962 = vmul.f32 %v5954, %v5898
    %v5963 = vmul.f32 %v5955, %v5899
    %v5964 = vmul.f32 %v5956, %v5900
    %v5965 = vmul.f32 %v5957, %v5901
    %v5966 = vsub.f32 %v1482, %v5958
    %v5967 = vsub.f32 %v1487, %v5959
    %v5968 = vsub.f32 %v1492, %v5960
    %v5969 = vsub.f32 %v1497, %v5961
    %v5970 = vsub.f32 %v1502, %v5962
    %v5971 = vsub.f32 %v1507, %v5963
    %v5972 = vsub.f32 %v1512, %v5964
    %v5973 = vsub.f32 %v1517, %v5965
    %5975 = vset.pattern.permute.xlu0 0
    %5976 = vperm.xlu0 %5975, %v5950
    %v5977 = vpop.permute.xlu0 %5976
    %5980 = vset.pattern.permute.xlu0 0
    %5981 = vperm.xlu0 %5980, %v5951
    %v5982 = vpop.permute.xlu0 %5981
    %5985 = vset.pattern.permute.xlu0 0
    %5986 = vperm.xlu0 %5985, %v5952
    %v5987 = vpop.permute.xlu0 %5986
    %5990 = vset.pattern.permute.xlu0 0
    %5991 = vperm.xlu0 %5990, %v5953
    %v5992 = vpop.permute.xlu0 %5991
    %5995 = vset.pattern.permute.xlu0 0
    %5996 = vperm.xlu0 %5995, %v5954
    %v5997 = vpop.permute.xlu0 %5996
    %6000 = vset.pattern.permute.xlu0 0
    %6001 = vperm.xlu0 %6000, %v5955
    %v6002 = vpop.permute.xlu0 %6001
    %6005 = vset.pattern.permute.xlu0 0
    %6006 = vperm.xlu0 %6005, %v5956
    %v6007 = vpop.permute.xlu0 %6006
    %6010 = vset.pattern.permute.xlu0 0
    %6011 = vperm.xlu0 %6010, %v5957
    %v6012 = vpop.permute.xlu0 %6011
    %v6014 = vmul.f32 %v5977, %v5814
    %v6015 = vmul.f32 %v5982, %v5816
    %v6016 = vmul.f32 %v5987, %v5818
    %v6017 = vmul.f32 %v5992, %v5820
    %v6018 = vmul.f32 %v5997, %v5822
    %v6019 = vmul.f32 %v6002, %v5824
    %v6020 = vmul.f32 %v6007, %v5826
    %v6021 = vmul.f32 %v6012, %v5828
    %6023 = vset.pattern.permute.xlu0 0
    %6024 = vperm.xlu0 %6023, %v5966
    %v6025 = vpop.permute.xlu0 %6024
    %6028 = vset.pattern.permute.xlu0 0
    %6029 = vperm.xlu0 %6028, %v5967
    %v6030 = vpop.permute.xlu0 %6029
    %6033 = vset.pattern.permute.xlu0 0
    %6034 = vperm.xlu0 %6033, %v5968
    %v6035 = vpop.permute.xlu0 %6034
    %6038 = vset.pattern.permute.xlu0 0
    %6039 = vperm.xlu0 %6038, %v5969
    %v6040 = vpop.permute.xlu0 %6039
    %6043 = vset.pattern.permute.xlu0 0
    %6044 = vperm.xlu0 %6043, %v5970
    %v6045 = vpop.permute.xlu0 %6044
    %6048 = vset.pattern.permute.xlu0 0
    %6049 = vperm.xlu0 %6048, %v5971
    %v6050 = vpop.permute.xlu0 %6049
    %6053 = vset.pattern.permute.xlu0 0
    %6054 = vperm.xlu0 %6053, %v5972
    %v6055 = vpop.permute.xlu0 %6054
    %6058 = vset.pattern.permute.xlu0 0
    %6059 = vperm.xlu0 %6058, %v5973
    %v6060 = vpop.permute.xlu0 %6059
    %v6062 = vadd.f32 %v6014, %v6025
    %v6063 = vadd.f32 %v6015, %v6030
    %v6064 = vadd.f32 %v6016, %v6035
    %v6065 = vadd.f32 %v6017, %v6040
    %v6066 = vadd.f32 %v6018, %v6045
    %v6067 = vadd.f32 %v6019, %v6050
    %v6068 = vadd.f32 %v6020, %v6055
    %v6069 = vadd.f32 %v6021, %v6060
    %v6070 = vmax.f32 %v6062, 0.0
    %v6071 = vmax.f32 %v6063, 0.0
    %v6072 = vmax.f32 %v6064, 0.0
    %v6073 = vmax.f32 %v6065, 0.0
    %v6074 = vmax.f32 %v6066, 0.0
    %v6075 = vmax.f32 %v6067, 0.0
    %v6076 = vmax.f32 %v6068, 0.0
    %v6077 = vmax.f32 %v6069, 0.0
    %6078 = vset.pattern.permute.xlu0 1
    %6079 = vperm.xlu0 %6078, %v5950
    %v6080 = vpop.permute.xlu0 %6079
    %6082 = vset.pattern.permute.xlu0 1
    %6083 = vperm.xlu0 %6082, %v5951
    %v6084 = vpop.permute.xlu0 %6083
    %6086 = vset.pattern.permute.xlu0 1
    %6087 = vperm.xlu0 %6086, %v5952
    %v6088 = vpop.permute.xlu0 %6087
    %6090 = vset.pattern.permute.xlu0 1
    %6091 = vperm.xlu0 %6090, %v5953
    %v6092 = vpop.permute.xlu0 %6091
    %6094 = vset.pattern.permute.xlu0 1
    %6095 = vperm.xlu0 %6094, %v5954
    %v6096 = vpop.permute.xlu0 %6095
    %6098 = vset.pattern.permute.xlu0 1
    %6099 = vperm.xlu0 %6098, %v5955
    %v6100 = vpop.permute.xlu0 %6099
    %6102 = vset.pattern.permute.xlu0 1
    %6103 = vperm.xlu0 %6102, %v5956
    %v6104 = vpop.permute.xlu0 %6103
    %6106 = vset.pattern.permute.xlu0 1
    %6107 = vperm.xlu0 %6106, %v5957
    %v6108 = vpop.permute.xlu0 %6107
    %v6110 = vmul.f32 %v6080, %v5815
    %v6111 = vmul.f32 %v6084, %v5817
    %v6112 = vmul.f32 %v6088, %v5819
    %v6113 = vmul.f32 %v6092, %v5821
    %v6114 = vmul.f32 %v6096, %v5823
    %v6115 = vmul.f32 %v6100, %v5825
    %v6116 = vmul.f32 %v6104, %v5827
    %v6117 = vmul.f32 %v6108, %v5829
    %6118 = vset.pattern.permute.xlu0 1
    %6119 = vperm.xlu0 %6118, %v5966
    %v6120 = vpop.permute.xlu0 %6119
    %6122 = vset.pattern.permute.xlu0 1
    %6123 = vperm.xlu0 %6122, %v5967
    %v6124 = vpop.permute.xlu0 %6123
    %6126 = vset.pattern.permute.xlu0 1
    %6127 = vperm.xlu0 %6126, %v5968
    %v6128 = vpop.permute.xlu0 %6127
    %6130 = vset.pattern.permute.xlu0 1
    %6131 = vperm.xlu0 %6130, %v5969
    %v6132 = vpop.permute.xlu0 %6131
    %6134 = vset.pattern.permute.xlu0 1
    %6135 = vperm.xlu0 %6134, %v5970
    %v6136 = vpop.permute.xlu0 %6135
    %6138 = vset.pattern.permute.xlu0 1
    %6139 = vperm.xlu0 %6138, %v5971
    %v6140 = vpop.permute.xlu0 %6139
    %6142 = vset.pattern.permute.xlu0 1
    %6143 = vperm.xlu0 %6142, %v5972
    %v6144 = vpop.permute.xlu0 %6143
    %6146 = vset.pattern.permute.xlu0 1
    %6147 = vperm.xlu0 %6146, %v5973
    %v6148 = vpop.permute.xlu0 %6147
    %v6150 = vadd.f32 %v6110, %v6120
    %v6151 = vadd.f32 %v6111, %v6124
    %v6152 = vadd.f32 %v6112, %v6128
    %v6153 = vadd.f32 %v6113, %v6132
    %v6154 = vadd.f32 %v6114, %v6136
    %v6155 = vadd.f32 %v6115, %v6140
    %v6156 = vadd.f32 %v6116, %v6144
    %v6157 = vadd.f32 %v6117, %v6148
    %v6158 = vmax.f32 %v6150, 0.0
    %v6159 = vmax.f32 %v6151, 0.0
    %v6160 = vmax.f32 %v6152, 0.0
    %v6161 = vmax.f32 %v6153, 0.0
    %v6162 = vmax.f32 %v6154, 0.0
    %v6163 = vmax.f32 %v6155, 0.0
    %v6164 = vmax.f32 %v6156, 0.0
    %v6165 = vmax.f32 %v6157, 0.0
    %s6166 = scalar_lea.vmem %s3, 512
    %v6167 = vld [vmem:[%s6166] sm:$0xff]
    %v6168 = vld [vmem:[%s6166 + $0x8] sm:$0xff]
    %v6169 = vld [vmem:[%s6166 + $0x10] sm:$0xff]
    %v6170 = vld [vmem:[%s6166 + $0x18] sm:$0xff]
    %v6171 = vld [vmem:[%s6166 + $0x20] sm:$0xff]
    %v6172 = vld [vmem:[%s6166 + $0x28] sm:$0xff]
    %v6173 = vld [vmem:[%s6166 + $0x30] sm:$0xff]
    %v6174 = vld [vmem:[%s6166 + $0x38] sm:$0xff]
    %v6176 = vsel %vm2254, %v6167, 0
    %v6179 = vsel %vm2254, %v6168, 0
    %v6182 = vsel %vm2254, %v6169, 0
    %v6185 = vsel %vm2254, %v6170, 0
    %v6188 = vsel %vm2254, %v6171, 0
    %v6191 = vsel %vm2254, %v6172, 0
    %v6194 = vsel %vm2254, %v6173, 0
    %v6197 = vsel %vm2254, %v6174, 0
    %6199 = vmatprep.subr.mxu0 %v6158
    %6200 = vmatpush1.msra.mxu0 %v6070
    %6201 = vmatprep.subr.mxu0 %v6159
    %6202 = vmatpush1.msra.mxu0 %v6071
    %6203 = vmatprep.subr.mxu0 %v6160
    %6204 = vmatpush1.msra.mxu0 %v6072
    %6205 = vmatprep.subr.mxu0 %v6161
    %6206 = vmatpush1.msra.mxu0 %v6073
    %6207 = vmatprep.subr.mxu0 %v6162
    %6208 = vmatpush1.msra.mxu0 %v6074
    %6209 = vmatprep.subr.mxu0 %v6163
    %6210 = vmatpush1.msra.mxu0 %v6075
    %6211 = vmatprep.subr.mxu0 %v6164
    %6212 = vmatpush1.msra.mxu0 %v6076
    %6213 = vmatprep.subr.mxu0 %v6165
    %6214 = vmatpush1.msra.mxu0 %v6077
    %6215 = vmatprep.subr.mxu0 0.0
    %6216 = vmatpush1.msra.mxu0 0.0
    %6217 = vmatprep.subr.mxu0 0.0
    %6218 = vmatpush1.msra.mxu0 0.0
    %6219 = vmatprep.subr.mxu0 0.0
    %6220 = vmatpush1.msra.mxu0 0.0
    %6221 = vmatprep.subr.mxu0 0.0
    %6222 = vmatpush1.msra.mxu0 0.0
    %6223 = vmatprep.subr.mxu0 0.0
    %6224 = vmatpush1.msra.mxu0 0.0
    %6225 = vmatprep.subr.mxu0 0.0
    %6226 = vmatpush1.msra.mxu0 0.0
    %6227 = vmatprep.subr.mxu0 0.0
    %6228 = vmatpush1.msra.mxu0 0.0
    %6229 = vmatprep.subr.mxu0 0.0
    %6230 = vmatpush1.msra.mxu0 0.0
    %6231 = vmatprep.subr.mxu0 0.0
    %6232 = vmatpush1.msra.mxu0 0.0
    %6233 = vmatprep.subr.mxu0 0.0
    %6234 = vmatpush1.msra.mxu0 0.0
    %6235 = vmatprep.subr.mxu0 0.0
    %6236 = vmatpush1.msra.mxu0 0.0
    %6237 = vmatprep.subr.mxu0 0.0
    %6238 = vmatpush1.msra.mxu0 0.0
    %6239 = vmatprep.subr.mxu0 0.0
    %6240 = vmatpush1.msra.mxu0 0.0
    %6241 = vmatprep.subr.mxu0 0.0
    %6242 = vmatpush1.msra.mxu0 0.0
    %6243 = vmatprep.subr.mxu0 0.0
    %6244 = vmatpush1.msra.mxu0 0.0
    %6245 = vmatprep.subr.mxu0 0.0
    %6246 = vmatpush1.msra.mxu0 0.0
    %6247 = vmatprep.subr.mxu0 0.0
    %6248 = vmatpush1.msra.mxu0 0.0
    %6249 = vmatprep.subr.mxu0 0.0
    %6250 = vmatpush1.msra.mxu0 0.0
    %6251 = vmatprep.subr.mxu0 0.0
    %6252 = vmatpush1.msra.mxu0 0.0
    %6253 = vmatprep.subr.mxu0 0.0
    %6254 = vmatpush1.msra.mxu0 0.0
    %6255 = vmatprep.subr.mxu0 0.0
    %6256 = vmatpush1.msra.mxu0 0.0
    %6257 = vmatprep.subr.mxu0 0.0
    %6258 = vmatpush1.msra.mxu0 0.0
    %6259 = vmatprep.subr.mxu0 0.0
    %6260 = vmatpush1.msra.mxu0 0.0
    %6261 = vmatprep.subr.mxu0 0.0
    %6262 = vmatpush1.msra.mxu0 0.0
    %6263 = vmatprep.mubr.f32.mxu0 0.0
    %6264 = vmatmul.mubr.f32.gmra.mrb[0].mxu0 %v6176
    %v6265 = vpop.f32.mrb[0].mxu0
    %v6266 = vadd.f32 0.0, %v6265
    %v6267 = vpop.f32.mrb[0].mxu0
    %v6268 = vadd.f32 0.0, %v6267
    %6269 = vmatprep.mubr.f32.mxu0 0.0
    %6270 = vmatmul.mubr.f32.gmra.mrb[0].mxu0 %v6179
    %v6271 = vpop.f32.mrb[0].mxu0
    %v6272 = vadd.f32 0.0, %v6271
    %v6273 = vpop.f32.mrb[0].mxu0
    %v6274 = vadd.f32 0.0, %v6273
    %6275 = vmatprep.mubr.f32.mxu0 0.0
    %6276 = vmatmul.mubr.f32.gmra.mrb[0].mxu0 %v6182
    %v6277 = vpop.f32.mrb[0].mxu0
    %v6278 = vadd.f32 0.0, %v6277
    %v6279 = vpop.f32.mrb[0].mxu0
    %v6280 = vadd.f32 0.0, %v6279
    %6281 = vmatprep.mubr.f32.mxu0 0.0
    %6282 = vmatmul.mubr.f32.gmra.mrb[0].mxu0 %v6185
    %v6283 = vpop.f32.mrb[0].mxu0
    %v6284 = vadd.f32 0.0, %v6283
    %v6285 = vpop.f32.mrb[0].mxu0
    %v6286 = vadd.f32 0.0, %v6285
    %6287 = vmatprep.mubr.f32.mxu0 0.0
    %6288 = vmatmul.mubr.f32.gmra.mrb[0].mxu0 %v6188
    %v6289 = vpop.f32.mrb[0].mxu0
    %v6290 = vadd.f32 0.0, %v6289
    %v6291 = vpop.f32.mrb[0].mxu0
    %v6292 = vadd.f32 0.0, %v6291
    %6293 = vmatprep.mubr.f32.mxu0 0.0
    %6294 = vmatmul.mubr.f32.gmra.mrb[0].mxu0 %v6191
    %v6295 = vpop.f32.mrb[0].mxu0
    %v6296 = vadd.f32 0.0, %v6295
    %v6297 = vpop.f32.mrb[0].mxu0
    %v6298 = vadd.f32 0.0, %v6297
    %6299 = vmatprep.mubr.f32.mxu0 0.0
    %6300 = vmatmul.mubr.f32.gmra.mrb[0].mxu0 %v6194
    %v6301 = vpop.f32.mrb[0].mxu0
    %v6302 = vadd.f32 0.0, %v6301
    %v6303 = vpop.f32.mrb[0].mxu0
    %v6304 = vadd.f32 0.0, %v6303
    %6305 = vmatprep.mubr.f32.mxu0 0.0
    %6306 = vmatmul.mubr.f32.gmra.mrb[0].mxu0 %v6197
    %v6307 = vpop.f32.mrb[0].mxu0
    %v6308 = vadd.f32 0.0, %v6307
    %v6309 = vpop.f32.mrb[0].mxu0
    %v6310 = vadd.f32 0.0, %v6309
    %6311 = vdwg.mxu0
    %v6312 = vadd.f32 %v6266, %v6268
    %6313 = vadd.xlane.f32.xlu0 %v6312
    %v6314 = vpop.xlane.xlu0 %6313
    %v6315 = vadd.f32 %v6272, %v6274
    %6316 = vadd.xlane.f32.xlu0 %v6315
    %v6317 = vpop.xlane.xlu0 %6316
    %v6318 = vadd.f32 %v6278, %v6280
    %6319 = vadd.xlane.f32.xlu0 %v6318
    %v6320 = vpop.xlane.xlu0 %6319
    %v6321 = vadd.f32 %v6284, %v6286
    %6322 = vadd.xlane.f32.xlu0 %v6321
    %v6323 = vpop.xlane.xlu0 %6322
    %v6324 = vadd.f32 %v6290, %v6292
    %6325 = vadd.xlane.f32.xlu0 %v6324
    %v6326 = vpop.xlane.xlu0 %6325
    %v6327 = vadd.f32 %v6296, %v6298
    %6328 = vadd.xlane.f32.xlu0 %v6327
    %v6329 = vpop.xlane.xlu0 %6328
    %v6330 = vadd.f32 %v6302, %v6304
    %6331 = vadd.xlane.f32.xlu0 %v6330
    %v6332 = vpop.xlane.xlu0 %6331
    %v6333 = vadd.f32 %v6308, %v6310
    %6334 = vadd.xlane.f32.xlu0 %v6333
    %v6335 = vpop.xlane.xlu0 %6334
    %v6336 = vmul.f32 %v6266, %v6266
    %v6337 = vmul.f32 %v6268, %v6268
    %v6338 = vmul.f32 %v6272, %v6272
    %v6339 = vmul.f32 %v6274, %v6274
    %v6340 = vmul.f32 %v6278, %v6278
    %v6341 = vmul.f32 %v6280, %v6280
    %v6342 = vmul.f32 %v6284, %v6284
    %v6343 = vmul.f32 %v6286, %v6286
    %v6344 = vmul.f32 %v6290, %v6290
    %v6345 = vmul.f32 %v6292, %v6292
    %v6346 = vmul.f32 %v6296, %v6296
    %v6347 = vmul.f32 %v6298, %v6298
    %v6348 = vmul.f32 %v6302, %v6302
    %v6349 = vmul.f32 %v6304, %v6304
    %v6350 = vmul.f32 %v6308, %v6308
    %v6351 = vmul.f32 %v6310, %v6310
    %v6352 = vadd.f32 %v6336, %v6337
    %6353 = vadd.xlane.f32.xlu0 %v6352
    %v6354 = vpop.xlane.xlu0 %6353
    %v6355 = vadd.f32 %v6338, %v6339
    %6356 = vadd.xlane.f32.xlu0 %v6355
    %v6357 = vpop.xlane.xlu0 %6356
    %v6358 = vadd.f32 %v6340, %v6341
    %6359 = vadd.xlane.f32.xlu0 %v6358
    %v6360 = vpop.xlane.xlu0 %6359
    %v6361 = vadd.f32 %v6342, %v6343
    %6362 = vadd.xlane.f32.xlu0 %v6361
    %v6363 = vpop.xlane.xlu0 %6362
    %v6364 = vadd.f32 %v6344, %v6345
    %6365 = vadd.xlane.f32.xlu0 %v6364
    %v6366 = vpop.xlane.xlu0 %6365
    %v6367 = vadd.f32 %v6346, %v6347
    %6368 = vadd.xlane.f32.xlu0 %v6367
    %v6369 = vpop.xlane.xlu0 %6368
    %v6370 = vadd.f32 %v6348, %v6349
    %6371 = vadd.xlane.f32.xlu0 %v6370
    %v6372 = vpop.xlane.xlu0 %6371
    %v6373 = vadd.f32 %v6350, %v6351
    %6374 = vadd.xlane.f32.xlu0 %v6373
    %v6375 = vpop.xlane.xlu0 %6374
    %v6376 = vmul.f32 %v6314, 0.00390625
    %v6377 = vmul.f32 %v6317, 0.00390625
    %v6378 = vmul.f32 %v6320, 0.00390625
    %v6379 = vmul.f32 %v6323, 0.00390625
    %v6380 = vmul.f32 %v6326, 0.00390625
    %v6381 = vmul.f32 %v6329, 0.00390625
    %v6382 = vmul.f32 %v6332, 0.00390625
    %v6383 = vmul.f32 %v6335, 0.00390625
    %v6384 = vmul.f32 %v6354, 0.00390625
    %v6385 = vmul.f32 %v6357, 0.00390625
    %v6386 = vmul.f32 %v6360, 0.00390625
    %v6387 = vmul.f32 %v6363, 0.00390625
    %v6388 = vmul.f32 %v6366, 0.00390625
    %v6389 = vmul.f32 %v6369, 0.00390625
    %v6390 = vmul.f32 %v6372, 0.00390625
    %v6391 = vmul.f32 %v6375, 0.00390625
    %v6392 = vmul.f32 %v6376, %v6376
    %v6393 = vmul.f32 %v6377, %v6377
    %v6394 = vmul.f32 %v6378, %v6378
    %v6395 = vmul.f32 %v6379, %v6379
    %v6396 = vmul.f32 %v6380, %v6380
    %v6397 = vmul.f32 %v6381, %v6381
    %v6398 = vmul.f32 %v6382, %v6382
    %v6399 = vmul.f32 %v6383, %v6383
    %v6400 = vsub.f32 %v6384, %v6392
    %v6401 = vsub.f32 %v6385, %v6393
    %v6402 = vsub.f32 %v6386, %v6394
    %v6403 = vsub.f32 %v6387, %v6395
    %v6404 = vsub.f32 %v6388, %v6396
    %v6405 = vsub.f32 %v6389, %v6397
    %v6406 = vsub.f32 %v6390, %v6398
    %v6407 = vsub.f32 %v6391, %v6399
    %v6408 = vmax.f32 %v6400, 0.0
    %v6409 = vmax.f32 %v6401, 0.0
    %v6410 = vmax.f32 %v6402, 0.0
    %v6411 = vmax.f32 %v6403, 0.0
    %v6412 = vmax.f32 %v6404, 0.0
    %v6413 = vmax.f32 %v6405, 0.0
    %v6414 = vmax.f32 %v6406, 0.0
    %v6415 = vmax.f32 %v6407, 0.0
    %v6416 = vadd.f32 %v6408, 1e-05
    %v6417 = vadd.f32 %v6409, 1e-05
    %v6418 = vadd.f32 %v6410, 1e-05
    %v6419 = vadd.f32 %v6411, 1e-05
    %v6420 = vadd.f32 %v6412, 1e-05
    %v6421 = vadd.f32 %v6413, 1e-05
    %v6422 = vadd.f32 %v6414, 1e-05
    %v6423 = vadd.f32 %v6415, 1e-05
    %v6424 = vrsqrt.pop %v6416
    %v6425 = vrsqrt.pop %v6417
    %v6426 = vrsqrt.pop %v6418
    %v6427 = vrsqrt.pop %v6419
    %v6428 = vrsqrt.pop %v6420
    %v6429 = vrsqrt.pop %v6421
    %v6430 = vrsqrt.pop %v6422
    %v6431 = vrsqrt.pop %v6423
    %v6432 = vmul.f32 %v1522, %v6424
    %v6433 = vmul.f32 %v1527, %v6425
    %v6434 = vmul.f32 %v1532, %v6426
    %v6435 = vmul.f32 %v1537, %v6427
    %v6436 = vmul.f32 %v1542, %v6428
    %v6437 = vmul.f32 %v1547, %v6429
    %v6438 = vmul.f32 %v1552, %v6430
    %v6439 = vmul.f32 %v1557, %v6431
    %v6440 = vmul.f32 %v6432, %v6376
    %v6441 = vmul.f32 %v6433, %v6377
    %v6442 = vmul.f32 %v6434, %v6378
    %v6443 = vmul.f32 %v6435, %v6379
    %v6444 = vmul.f32 %v6436, %v6380
    %v6445 = vmul.f32 %v6437, %v6381
    %v6446 = vmul.f32 %v6438, %v6382
    %v6447 = vmul.f32 %v6439, %v6383
    %v6448 = vsub.f32 %v1562, %v6440
    %v6449 = vsub.f32 %v1567, %v6441
    %v6450 = vsub.f32 %v1572, %v6442
    %v6451 = vsub.f32 %v1577, %v6443
    %v6452 = vsub.f32 %v1582, %v6444
    %v6453 = vsub.f32 %v1587, %v6445
    %v6454 = vsub.f32 %v1592, %v6446
    %v6455 = vsub.f32 %v1597, %v6447
    %6457 = vset.pattern.permute.xlu0 0
    %6458 = vperm.xlu0 %6457, %v6432
    %v6459 = vpop.permute.xlu0 %6458
    %6462 = vset.pattern.permute.xlu0 0
    %6463 = vperm.xlu0 %6462, %v6433
    %v6464 = vpop.permute.xlu0 %6463
    %6467 = vset.pattern.permute.xlu0 0
    %6468 = vperm.xlu0 %6467, %v6434
    %v6469 = vpop.permute.xlu0 %6468
    %6472 = vset.pattern.permute.xlu0 0
    %6473 = vperm.xlu0 %6472, %v6435
    %v6474 = vpop.permute.xlu0 %6473
    %6477 = vset.pattern.permute.xlu0 0
    %6478 = vperm.xlu0 %6477, %v6436
    %v6479 = vpop.permute.xlu0 %6478
    %6482 = vset.pattern.permute.xlu0 0
    %6483 = vperm.xlu0 %6482, %v6437
    %v6484 = vpop.permute.xlu0 %6483
    %6487 = vset.pattern.permute.xlu0 0
    %6488 = vperm.xlu0 %6487, %v6438
    %v6489 = vpop.permute.xlu0 %6488
    %6492 = vset.pattern.permute.xlu0 0
    %6493 = vperm.xlu0 %6492, %v6439
    %v6494 = vpop.permute.xlu0 %6493
    %v6496 = vmul.f32 %v6459, %v6266
    %v6497 = vmul.f32 %v6464, %v6272
    %v6498 = vmul.f32 %v6469, %v6278
    %v6499 = vmul.f32 %v6474, %v6284
    %v6500 = vmul.f32 %v6479, %v6290
    %v6501 = vmul.f32 %v6484, %v6296
    %v6502 = vmul.f32 %v6489, %v6302
    %v6503 = vmul.f32 %v6494, %v6308
    %6505 = vset.pattern.permute.xlu0 0
    %6506 = vperm.xlu0 %6505, %v6448
    %v6507 = vpop.permute.xlu0 %6506
    %6510 = vset.pattern.permute.xlu0 0
    %6511 = vperm.xlu0 %6510, %v6449
    %v6512 = vpop.permute.xlu0 %6511
    %6515 = vset.pattern.permute.xlu0 0
    %6516 = vperm.xlu0 %6515, %v6450
    %v6517 = vpop.permute.xlu0 %6516
    %6520 = vset.pattern.permute.xlu0 0
    %6521 = vperm.xlu0 %6520, %v6451
    %v6522 = vpop.permute.xlu0 %6521
    %6525 = vset.pattern.permute.xlu0 0
    %6526 = vperm.xlu0 %6525, %v6452
    %v6527 = vpop.permute.xlu0 %6526
    %6530 = vset.pattern.permute.xlu0 0
    %6531 = vperm.xlu0 %6530, %v6453
    %v6532 = vpop.permute.xlu0 %6531
    %6535 = vset.pattern.permute.xlu0 0
    %6536 = vperm.xlu0 %6535, %v6454
    %v6537 = vpop.permute.xlu0 %6536
    %6540 = vset.pattern.permute.xlu0 0
    %6541 = vperm.xlu0 %6540, %v6455
    %v6542 = vpop.permute.xlu0 %6541
    %v6544 = vadd.f32 %v6496, %v6507
    %v6545 = vadd.f32 %v6497, %v6512
    %v6546 = vadd.f32 %v6498, %v6517
    %v6547 = vadd.f32 %v6499, %v6522
    %v6548 = vadd.f32 %v6500, %v6527
    %v6549 = vadd.f32 %v6501, %v6532
    %v6550 = vadd.f32 %v6502, %v6537
    %v6551 = vadd.f32 %v6503, %v6542
    %v6552 = vmax.f32 %v6544, 0.0
    %v6553 = vmax.f32 %v6545, 0.0
    %v6554 = vmax.f32 %v6546, 0.0
    %v6555 = vmax.f32 %v6547, 0.0
    %v6556 = vmax.f32 %v6548, 0.0
    %v6557 = vmax.f32 %v6549, 0.0
    %v6558 = vmax.f32 %v6550, 0.0
    %v6559 = vmax.f32 %v6551, 0.0
    %6560 = vset.pattern.permute.xlu0 1
    %6561 = vperm.xlu0 %6560, %v6432
    %v6562 = vpop.permute.xlu0 %6561
    %6564 = vset.pattern.permute.xlu0 1
    %6565 = vperm.xlu0 %6564, %v6433
    %v6566 = vpop.permute.xlu0 %6565
    %6568 = vset.pattern.permute.xlu0 1
    %6569 = vperm.xlu0 %6568, %v6434
    %v6570 = vpop.permute.xlu0 %6569
    %6572 = vset.pattern.permute.xlu0 1
    %6573 = vperm.xlu0 %6572, %v6435
    %v6574 = vpop.permute.xlu0 %6573
    %6576 = vset.pattern.permute.xlu0 1
    %6577 = vperm.xlu0 %6576, %v6436
    %v6578 = vpop.permute.xlu0 %6577
    %6580 = vset.pattern.permute.xlu0 1
    %6581 = vperm.xlu0 %6580, %v6437
    %v6582 = vpop.permute.xlu0 %6581
    %6584 = vset.pattern.permute.xlu0 1
    %6585 = vperm.xlu0 %6584, %v6438
    %v6586 = vpop.permute.xlu0 %6585
    %6588 = vset.pattern.permute.xlu0 1
    %6589 = vperm.xlu0 %6588, %v6439
    %v6590 = vpop.permute.xlu0 %6589
    %v6592 = vmul.f32 %v6562, %v6268
    %v6593 = vmul.f32 %v6566, %v6274
    %v6594 = vmul.f32 %v6570, %v6280
    %v6595 = vmul.f32 %v6574, %v6286
    %v6596 = vmul.f32 %v6578, %v6292
    %v6597 = vmul.f32 %v6582, %v6298
    %v6598 = vmul.f32 %v6586, %v6304
    %v6599 = vmul.f32 %v6590, %v6310
    %6600 = vset.pattern.permute.xlu0 1
    %6601 = vperm.xlu0 %6600, %v6448
    %v6602 = vpop.permute.xlu0 %6601
    %6604 = vset.pattern.permute.xlu0 1
    %6605 = vperm.xlu0 %6604, %v6449
    %v6606 = vpop.permute.xlu0 %6605
    %6608 = vset.pattern.permute.xlu0 1
    %6609 = vperm.xlu0 %6608, %v6450
    %v6610 = vpop.permute.xlu0 %6609
    %6612 = vset.pattern.permute.xlu0 1
    %6613 = vperm.xlu0 %6612, %v6451
    %v6614 = vpop.permute.xlu0 %6613
    %6616 = vset.pattern.permute.xlu0 1
    %6617 = vperm.xlu0 %6616, %v6452
    %v6618 = vpop.permute.xlu0 %6617
    %6620 = vset.pattern.permute.xlu0 1
    %6621 = vperm.xlu0 %6620, %v6453
    %v6622 = vpop.permute.xlu0 %6621
    %6624 = vset.pattern.permute.xlu0 1
    %6625 = vperm.xlu0 %6624, %v6454
    %v6626 = vpop.permute.xlu0 %6625
    %6628 = vset.pattern.permute.xlu0 1
    %6629 = vperm.xlu0 %6628, %v6455
    %v6630 = vpop.permute.xlu0 %6629
    %v6632 = vadd.f32 %v6592, %v6602
    %v6633 = vadd.f32 %v6593, %v6606
    %v6634 = vadd.f32 %v6594, %v6610
    %v6635 = vadd.f32 %v6595, %v6614
    %v6636 = vadd.f32 %v6596, %v6618
    %v6637 = vadd.f32 %v6597, %v6622
    %v6638 = vadd.f32 %v6598, %v6626
    %v6639 = vadd.f32 %v6599, %v6630
    %v6640 = vmax.f32 %v6632, 0.0
    %v6641 = vmax.f32 %v6633, 0.0
    %v6642 = vmax.f32 %v6634, 0.0
    %v6643 = vmax.f32 %v6635, 0.0
    %v6644 = vmax.f32 %v6636, 0.0
    %v6645 = vmax.f32 %v6637, 0.0
    %v6646 = vmax.f32 %v6638, 0.0
    %v6647 = vmax.f32 %v6639, 0.0
    %s6648 = scalar_lea.vmem %s3, 576
    %v6649 = vld [vmem:[%s6648] sm:$0xff]
    %v6650 = vld [vmem:[%s6648 + $0x8] sm:$0xff]
    %v6651 = vld [vmem:[%s6648 + $0x10] sm:$0xff]
    %v6652 = vld [vmem:[%s6648 + $0x18] sm:$0xff]
    %v6653 = vld [vmem:[%s6648 + $0x20] sm:$0xff]
    %v6654 = vld [vmem:[%s6648 + $0x28] sm:$0xff]
    %v6655 = vld [vmem:[%s6648 + $0x30] sm:$0xff]
    %v6656 = vld [vmem:[%s6648 + $0x38] sm:$0xff]
    %v6658 = vsel %vm2254, %v6649, 0
    %v6661 = vsel %vm2254, %v6650, 0
    %v6664 = vsel %vm2254, %v6651, 0
    %v6667 = vsel %vm2254, %v6652, 0
    %v6670 = vsel %vm2254, %v6653, 0
    %v6673 = vsel %vm2254, %v6654, 0
    %v6676 = vsel %vm2254, %v6655, 0
    %v6679 = vsel %vm2254, %v6656, 0
    %6681 = vmatprep.subr.mxu0 %v6640
    %6682 = vmatpush1.msra.mxu0 %v6552
    %6683 = vmatprep.subr.mxu0 %v6641
    %6684 = vmatpush1.msra.mxu0 %v6553
    %6685 = vmatprep.subr.mxu0 %v6642
    %6686 = vmatpush1.msra.mxu0 %v6554
    %6687 = vmatprep.subr.mxu0 %v6643
    %6688 = vmatpush1.msra.mxu0 %v6555
    %6689 = vmatprep.subr.mxu0 %v6644
    %6690 = vmatpush1.msra.mxu0 %v6556
    %6691 = vmatprep.subr.mxu0 %v6645
    %6692 = vmatpush1.msra.mxu0 %v6557
    %6693 = vmatprep.subr.mxu0 %v6646
    %6694 = vmatpush1.msra.mxu0 %v6558
    %6695 = vmatprep.subr.mxu0 %v6647
    %6696 = vmatpush1.msra.mxu0 %v6559
    %6697 = vmatprep.subr.mxu0 0.0
    %6698 = vmatpush1.msra.mxu0 0.0
    %6699 = vmatprep.subr.mxu0 0.0
    %6700 = vmatpush1.msra.mxu0 0.0
    %6701 = vmatprep.subr.mxu0 0.0
    %6702 = vmatpush1.msra.mxu0 0.0
    %6703 = vmatprep.subr.mxu0 0.0
    %6704 = vmatpush1.msra.mxu0 0.0
    %6705 = vmatprep.subr.mxu0 0.0
    %6706 = vmatpush1.msra.mxu0 0.0
    %6707 = vmatprep.subr.mxu0 0.0
    %6708 = vmatpush1.msra.mxu0 0.0
    %6709 = vmatprep.subr.mxu0 0.0
    %6710 = vmatpush1.msra.mxu0 0.0
    %6711 = vmatprep.subr.mxu0 0.0
    %6712 = vmatpush1.msra.mxu0 0.0
    %6713 = vmatprep.subr.mxu0 0.0
    %6714 = vmatpush1.msra.mxu0 0.0
    %6715 = vmatprep.subr.mxu0 0.0
    %6716 = vmatpush1.msra.mxu0 0.0
    %6717 = vmatprep.subr.mxu0 0.0
    %6718 = vmatpush1.msra.mxu0 0.0
    %6719 = vmatprep.subr.mxu0 0.0
    %6720 = vmatpush1.msra.mxu0 0.0
    %6721 = vmatprep.subr.mxu0 0.0
    %6722 = vmatpush1.msra.mxu0 0.0
    %6723 = vmatprep.subr.mxu0 0.0
    %6724 = vmatpush1.msra.mxu0 0.0
    %6725 = vmatprep.subr.mxu0 0.0
    %6726 = vmatpush1.msra.mxu0 0.0
    %6727 = vmatprep.subr.mxu0 0.0
    %6728 = vmatpush1.msra.mxu0 0.0
    %6729 = vmatprep.subr.mxu0 0.0
    %6730 = vmatpush1.msra.mxu0 0.0
    %6731 = vmatprep.subr.mxu0 0.0
    %6732 = vmatpush1.msra.mxu0 0.0
    %6733 = vmatprep.subr.mxu0 0.0
    %6734 = vmatpush1.msra.mxu0 0.0
    %6735 = vmatprep.subr.mxu0 0.0
    %6736 = vmatpush1.msra.mxu0 0.0
    %6737 = vmatprep.subr.mxu0 0.0
    %6738 = vmatpush1.msra.mxu0 0.0
    %6739 = vmatprep.subr.mxu0 0.0
    %6740 = vmatpush1.msra.mxu0 0.0
    %6741 = vmatprep.subr.mxu0 0.0
    %6742 = vmatpush1.msra.mxu0 0.0
    %6743 = vmatprep.subr.mxu0 0.0
    %6744 = vmatpush1.msra.mxu0 0.0
    %6745 = vmatprep.mubr.f32.mxu0 0.0
    %6746 = vmatmul.mubr.f32.gmra.mrb[0].mxu0 %v6658
    %v6747 = vpop.f32.mrb[0].mxu0
    %v6748 = vadd.f32 0.0, %v6747
    %v6749 = vpop.f32.mrb[0].mxu0
    %v6750 = vadd.f32 0.0, %v6749
    %6751 = vmatprep.mubr.f32.mxu0 0.0
    %6752 = vmatmul.mubr.f32.gmra.mrb[0].mxu0 %v6661
    %v6753 = vpop.f32.mrb[0].mxu0
    %v6754 = vadd.f32 0.0, %v6753
    %v6755 = vpop.f32.mrb[0].mxu0
    %v6756 = vadd.f32 0.0, %v6755
    %6757 = vmatprep.mubr.f32.mxu0 0.0
    %6758 = vmatmul.mubr.f32.gmra.mrb[0].mxu0 %v6664
    %v6759 = vpop.f32.mrb[0].mxu0
    %v6760 = vadd.f32 0.0, %v6759
    %v6761 = vpop.f32.mrb[0].mxu0
    %v6762 = vadd.f32 0.0, %v6761
    %6763 = vmatprep.mubr.f32.mxu0 0.0
    %6764 = vmatmul.mubr.f32.gmra.mrb[0].mxu0 %v6667
    %v6765 = vpop.f32.mrb[0].mxu0
    %v6766 = vadd.f32 0.0, %v6765
    %v6767 = vpop.f32.mrb[0].mxu0
    %v6768 = vadd.f32 0.0, %v6767
    %6769 = vmatprep.mubr.f32.mxu0 0.0
    %6770 = vmatmul.mubr.f32.gmra.mrb[0].mxu0 %v6670
    %v6771 = vpop.f32.mrb[0].mxu0
    %v6772 = vadd.f32 0.0, %v6771
    %v6773 = vpop.f32.mrb[0].mxu0
    %v6774 = vadd.f32 0.0, %v6773
    %6775 = vmatprep.mubr.f32.mxu0 0.0
    %6776 = vmatmul.mubr.f32.gmra.mrb[0].mxu0 %v6673
    %v6777 = vpop.f32.mrb[0].mxu0
    %v6778 = vadd.f32 0.0, %v6777
    %v6779 = vpop.f32.mrb[0].mxu0
    %v6780 = vadd.f32 0.0, %v6779
    %6781 = vmatprep.mubr.f32.mxu0 0.0
    %6782 = vmatmul.mubr.f32.gmra.mrb[0].mxu0 %v6676
    %v6783 = vpop.f32.mrb[0].mxu0
    %v6784 = vadd.f32 0.0, %v6783
    %v6785 = vpop.f32.mrb[0].mxu0
    %v6786 = vadd.f32 0.0, %v6785
    %6787 = vmatprep.mubr.f32.mxu0 0.0
    %6788 = vmatmul.mubr.f32.gmra.mrb[0].mxu0 %v6679
    %v6789 = vpop.f32.mrb[0].mxu0
    %v6790 = vadd.f32 0.0, %v6789
    %v6791 = vpop.f32.mrb[0].mxu0
    %v6792 = vadd.f32 0.0, %v6791
    %6793 = vdwg.mxu0
    %v6794 = vadd.f32 %v5814, %v6748
    %v6795 = vadd.f32 %v5815, %v6750
    %v6796 = vadd.f32 %v5816, %v6754
    %v6797 = vadd.f32 %v5817, %v6756
    %v6798 = vadd.f32 %v5818, %v6760
    %v6799 = vadd.f32 %v5819, %v6762
    %v6800 = vadd.f32 %v5820, %v6766
    %v6801 = vadd.f32 %v5821, %v6768
    %v6802 = vadd.f32 %v5822, %v6772
    %v6803 = vadd.f32 %v5823, %v6774
    %v6804 = vadd.f32 %v5824, %v6778
    %v6805 = vadd.f32 %v5825, %v6780
    %v6806 = vadd.f32 %v5826, %v6784
    %v6807 = vadd.f32 %v5827, %v6786
    %v6808 = vadd.f32 %v5828, %v6790
    %v6809 = vadd.f32 %v5829, %v6792
    %v6810 = vadd.f32 %v6794, %v6795
    %6811 = vadd.xlane.f32.xlu0 %v6810
    %v6812 = vpop.xlane.xlu0 %6811
    %v6813 = vadd.f32 %v6796, %v6797
    %6814 = vadd.xlane.f32.xlu0 %v6813
    %v6815 = vpop.xlane.xlu0 %6814
    %v6816 = vadd.f32 %v6798, %v6799
    %6817 = vadd.xlane.f32.xlu0 %v6816
    %v6818 = vpop.xlane.xlu0 %6817
    %v6819 = vadd.f32 %v6800, %v6801
    %6820 = vadd.xlane.f32.xlu0 %v6819
    %v6821 = vpop.xlane.xlu0 %6820
    %v6822 = vadd.f32 %v6802, %v6803
    %6823 = vadd.xlane.f32.xlu0 %v6822
    %v6824 = vpop.xlane.xlu0 %6823
    %v6825 = vadd.f32 %v6804, %v6805
    %6826 = vadd.xlane.f32.xlu0 %v6825
    %v6827 = vpop.xlane.xlu0 %6826
    %v6828 = vadd.f32 %v6806, %v6807
    %6829 = vadd.xlane.f32.xlu0 %v6828
    %v6830 = vpop.xlane.xlu0 %6829
    %v6831 = vadd.f32 %v6808, %v6809
    %6832 = vadd.xlane.f32.xlu0 %v6831
    %v6833 = vpop.xlane.xlu0 %6832
    %v6834 = vmul.f32 %v6794, %v6794
    %v6835 = vmul.f32 %v6795, %v6795
    %v6836 = vmul.f32 %v6796, %v6796
    %v6837 = vmul.f32 %v6797, %v6797
    %v6838 = vmul.f32 %v6798, %v6798
    %v6839 = vmul.f32 %v6799, %v6799
    %v6840 = vmul.f32 %v6800, %v6800
    %v6841 = vmul.f32 %v6801, %v6801
    %v6842 = vmul.f32 %v6802, %v6802
    %v6843 = vmul.f32 %v6803, %v6803
    %v6844 = vmul.f32 %v6804, %v6804
    %v6845 = vmul.f32 %v6805, %v6805
    %v6846 = vmul.f32 %v6806, %v6806
    %v6847 = vmul.f32 %v6807, %v6807
    %v6848 = vmul.f32 %v6808, %v6808
    %v6849 = vmul.f32 %v6809, %v6809
    %v6850 = vadd.f32 %v6834, %v6835
    %6851 = vadd.xlane.f32.xlu0 %v6850
    %v6852 = vpop.xlane.xlu0 %6851
    %v6853 = vadd.f32 %v6836, %v6837
    %6854 = vadd.xlane.f32.xlu0 %v6853
    %v6855 = vpop.xlane.xlu0 %6854
    %v6856 = vadd.f32 %v6838, %v6839
    %6857 = vadd.xlane.f32.xlu0 %v6856
    %v6858 = vpop.xlane.xlu0 %6857
    %v6859 = vadd.f32 %v6840, %v6841
    %6860 = vadd.xlane.f32.xlu0 %v6859
    %v6861 = vpop.xlane.xlu0 %6860
    %v6862 = vadd.f32 %v6842, %v6843
    %6863 = vadd.xlane.f32.xlu0 %v6862
    %v6864 = vpop.xlane.xlu0 %6863
    %v6865 = vadd.f32 %v6844, %v6845
    %6866 = vadd.xlane.f32.xlu0 %v6865
    %v6867 = vpop.xlane.xlu0 %6866
    %v6868 = vadd.f32 %v6846, %v6847
    %6869 = vadd.xlane.f32.xlu0 %v6868
    %v6870 = vpop.xlane.xlu0 %6869
    %v6871 = vadd.f32 %v6848, %v6849
    %6872 = vadd.xlane.f32.xlu0 %v6871
    %v6873 = vpop.xlane.xlu0 %6872
    %v6874 = vmul.f32 %v6812, 0.00390625
    %v6875 = vmul.f32 %v6815, 0.00390625
    %v6876 = vmul.f32 %v6818, 0.00390625
    %v6877 = vmul.f32 %v6821, 0.00390625
    %v6878 = vmul.f32 %v6824, 0.00390625
    %v6879 = vmul.f32 %v6827, 0.00390625
    %v6880 = vmul.f32 %v6830, 0.00390625
    %v6881 = vmul.f32 %v6833, 0.00390625
    %v6882 = vmul.f32 %v6852, 0.00390625
    %v6883 = vmul.f32 %v6855, 0.00390625
    %v6884 = vmul.f32 %v6858, 0.00390625
    %v6885 = vmul.f32 %v6861, 0.00390625
    %v6886 = vmul.f32 %v6864, 0.00390625
    %v6887 = vmul.f32 %v6867, 0.00390625
    %v6888 = vmul.f32 %v6870, 0.00390625
    %v6889 = vmul.f32 %v6873, 0.00390625
    %v6890 = vmul.f32 %v6874, %v6874
    %v6891 = vmul.f32 %v6875, %v6875
    %v6892 = vmul.f32 %v6876, %v6876
    %v6893 = vmul.f32 %v6877, %v6877
    %v6894 = vmul.f32 %v6878, %v6878
    %v6895 = vmul.f32 %v6879, %v6879
    %v6896 = vmul.f32 %v6880, %v6880
    %v6897 = vmul.f32 %v6881, %v6881
    %v6898 = vsub.f32 %v6882, %v6890
    %v6899 = vsub.f32 %v6883, %v6891
    %v6900 = vsub.f32 %v6884, %v6892
    %v6901 = vsub.f32 %v6885, %v6893
    %v6902 = vsub.f32 %v6886, %v6894
    %v6903 = vsub.f32 %v6887, %v6895
    %v6904 = vsub.f32 %v6888, %v6896
    %v6905 = vsub.f32 %v6889, %v6897
    %v6906 = vmax.f32 %v6898, 0.0
    %v6907 = vmax.f32 %v6899, 0.0
    %v6908 = vmax.f32 %v6900, 0.0
    %v6909 = vmax.f32 %v6901, 0.0
    %v6910 = vmax.f32 %v6902, 0.0
    %v6911 = vmax.f32 %v6903, 0.0
    %v6912 = vmax.f32 %v6904, 0.0
    %v6913 = vmax.f32 %v6905, 0.0
    %v6914 = vadd.f32 %v6906, 1e-05
    %v6915 = vadd.f32 %v6907, 1e-05
    %v6916 = vadd.f32 %v6908, 1e-05
    %v6917 = vadd.f32 %v6909, 1e-05
    %v6918 = vadd.f32 %v6910, 1e-05
    %v6919 = vadd.f32 %v6911, 1e-05
    %v6920 = vadd.f32 %v6912, 1e-05
    %v6921 = vadd.f32 %v6913, 1e-05
    %v6922 = vrsqrt.pop %v6914
    %v6923 = vrsqrt.pop %v6915
    %v6924 = vrsqrt.pop %v6916
    %v6925 = vrsqrt.pop %v6917
    %v6926 = vrsqrt.pop %v6918
    %v6927 = vrsqrt.pop %v6919
    %v6928 = vrsqrt.pop %v6920
    %v6929 = vrsqrt.pop %v6921
    %v6930 = vmul.f32 %v1602, %v6922
    %v6931 = vmul.f32 %v1607, %v6923
    %v6932 = vmul.f32 %v1612, %v6924
    %v6933 = vmul.f32 %v1617, %v6925
    %v6934 = vmul.f32 %v1622, %v6926
    %v6935 = vmul.f32 %v1627, %v6927
    %v6936 = vmul.f32 %v1632, %v6928
    %v6937 = vmul.f32 %v1637, %v6929
    %v6938 = vmul.f32 %v6930, %v6874
    %v6939 = vmul.f32 %v6931, %v6875
    %v6940 = vmul.f32 %v6932, %v6876
    %v6941 = vmul.f32 %v6933, %v6877
    %v6942 = vmul.f32 %v6934, %v6878
    %v6943 = vmul.f32 %v6935, %v6879
    %v6944 = vmul.f32 %v6936, %v6880
    %v6945 = vmul.f32 %v6937, %v6881
    %v6946 = vsub.f32 %v1642, %v6938
    %v6947 = vsub.f32 %v1647, %v6939
    %v6948 = vsub.f32 %v1652, %v6940
    %v6949 = vsub.f32 %v1657, %v6941
    %v6950 = vsub.f32 %v1662, %v6942
    %v6951 = vsub.f32 %v1667, %v6943
    %v6952 = vsub.f32 %v1672, %v6944
    %v6953 = vsub.f32 %v1677, %v6945
    %6955 = vset.pattern.permute.xlu0 0
    %6956 = vperm.xlu0 %6955, %v6930
    %v6957 = vpop.permute.xlu0 %6956
    %6960 = vset.pattern.permute.xlu0 0
    %6961 = vperm.xlu0 %6960, %v6931
    %v6962 = vpop.permute.xlu0 %6961
    %6965 = vset.pattern.permute.xlu0 0
    %6966 = vperm.xlu0 %6965, %v6932
    %v6967 = vpop.permute.xlu0 %6966
    %6970 = vset.pattern.permute.xlu0 0
    %6971 = vperm.xlu0 %6970, %v6933
    %v6972 = vpop.permute.xlu0 %6971
    %6975 = vset.pattern.permute.xlu0 0
    %6976 = vperm.xlu0 %6975, %v6934
    %v6977 = vpop.permute.xlu0 %6976
    %6980 = vset.pattern.permute.xlu0 0
    %6981 = vperm.xlu0 %6980, %v6935
    %v6982 = vpop.permute.xlu0 %6981
    %6985 = vset.pattern.permute.xlu0 0
    %6986 = vperm.xlu0 %6985, %v6936
    %v6987 = vpop.permute.xlu0 %6986
    %6990 = vset.pattern.permute.xlu0 0
    %6991 = vperm.xlu0 %6990, %v6937
    %v6992 = vpop.permute.xlu0 %6991
    %v6994 = vmul.f32 %v6957, %v6794
    %v6995 = vmul.f32 %v6962, %v6796
    %v6996 = vmul.f32 %v6967, %v6798
    %v6997 = vmul.f32 %v6972, %v6800
    %v6998 = vmul.f32 %v6977, %v6802
    %v6999 = vmul.f32 %v6982, %v6804
    %v7000 = vmul.f32 %v6987, %v6806
    %v7001 = vmul.f32 %v6992, %v6808
    %7003 = vset.pattern.permute.xlu0 0
    %7004 = vperm.xlu0 %7003, %v6946
    %v7005 = vpop.permute.xlu0 %7004
    %7008 = vset.pattern.permute.xlu0 0
    %7009 = vperm.xlu0 %7008, %v6947
    %v7010 = vpop.permute.xlu0 %7009
    %7013 = vset.pattern.permute.xlu0 0
    %7014 = vperm.xlu0 %7013, %v6948
    %v7015 = vpop.permute.xlu0 %7014
    %7018 = vset.pattern.permute.xlu0 0
    %7019 = vperm.xlu0 %7018, %v6949
    %v7020 = vpop.permute.xlu0 %7019
    %7023 = vset.pattern.permute.xlu0 0
    %7024 = vperm.xlu0 %7023, %v6950
    %v7025 = vpop.permute.xlu0 %7024
    %7028 = vset.pattern.permute.xlu0 0
    %7029 = vperm.xlu0 %7028, %v6951
    %v7030 = vpop.permute.xlu0 %7029
    %7033 = vset.pattern.permute.xlu0 0
    %7034 = vperm.xlu0 %7033, %v6952
    %v7035 = vpop.permute.xlu0 %7034
    %7038 = vset.pattern.permute.xlu0 0
    %7039 = vperm.xlu0 %7038, %v6953
    %v7040 = vpop.permute.xlu0 %7039
    %v7042 = vadd.f32 %v6994, %v7005
    %v7043 = vadd.f32 %v6995, %v7010
    %v7044 = vadd.f32 %v6996, %v7015
    %v7045 = vadd.f32 %v6997, %v7020
    %v7046 = vadd.f32 %v6998, %v7025
    %v7047 = vadd.f32 %v6999, %v7030
    %v7048 = vadd.f32 %v7000, %v7035
    %v7049 = vadd.f32 %v7001, %v7040
    %v7050 = vmax.f32 %v7042, 0.0
    %v7051 = vmax.f32 %v7043, 0.0
    %v7052 = vmax.f32 %v7044, 0.0
    %v7053 = vmax.f32 %v7045, 0.0
    %v7054 = vmax.f32 %v7046, 0.0
    %v7055 = vmax.f32 %v7047, 0.0
    %v7056 = vmax.f32 %v7048, 0.0
    %v7057 = vmax.f32 %v7049, 0.0
    %7058 = vset.pattern.permute.xlu0 1
    %7059 = vperm.xlu0 %7058, %v6930
    %v7060 = vpop.permute.xlu0 %7059
    %7062 = vset.pattern.permute.xlu0 1
    %7063 = vperm.xlu0 %7062, %v6931
    %v7064 = vpop.permute.xlu0 %7063
    %7066 = vset.pattern.permute.xlu0 1
    %7067 = vperm.xlu0 %7066, %v6932
    %v7068 = vpop.permute.xlu0 %7067
    %7070 = vset.pattern.permute.xlu0 1
    %7071 = vperm.xlu0 %7070, %v6933
    %v7072 = vpop.permute.xlu0 %7071
    %7074 = vset.pattern.permute.xlu0 1
    %7075 = vperm.xlu0 %7074, %v6934
    %v7076 = vpop.permute.xlu0 %7075
    %7078 = vset.pattern.permute.xlu0 1
    %7079 = vperm.xlu0 %7078, %v6935
    %v7080 = vpop.permute.xlu0 %7079
    %7082 = vset.pattern.permute.xlu0 1
    %7083 = vperm.xlu0 %7082, %v6936
    %v7084 = vpop.permute.xlu0 %7083
    %7086 = vset.pattern.permute.xlu0 1
    %7087 = vperm.xlu0 %7086, %v6937
    %v7088 = vpop.permute.xlu0 %7087
    %v7090 = vmul.f32 %v7060, %v6795
    %v7091 = vmul.f32 %v7064, %v6797
    %v7092 = vmul.f32 %v7068, %v6799
    %v7093 = vmul.f32 %v7072, %v6801
    %v7094 = vmul.f32 %v7076, %v6803
    %v7095 = vmul.f32 %v7080, %v6805
    %v7096 = vmul.f32 %v7084, %v6807
    %v7097 = vmul.f32 %v7088, %v6809
    %7098 = vset.pattern.permute.xlu0 1
    %7099 = vperm.xlu0 %7098, %v6946
    %v7100 = vpop.permute.xlu0 %7099
    %7102 = vset.pattern.permute.xlu0 1
    %7103 = vperm.xlu0 %7102, %v6947
    %v7104 = vpop.permute.xlu0 %7103
    %7106 = vset.pattern.permute.xlu0 1
    %7107 = vperm.xlu0 %7106, %v6948
    %v7108 = vpop.permute.xlu0 %7107
    %7110 = vset.pattern.permute.xlu0 1
    %7111 = vperm.xlu0 %7110, %v6949
    %v7112 = vpop.permute.xlu0 %7111
    %7114 = vset.pattern.permute.xlu0 1
    %7115 = vperm.xlu0 %7114, %v6950
    %v7116 = vpop.permute.xlu0 %7115
    %7118 = vset.pattern.permute.xlu0 1
    %7119 = vperm.xlu0 %7118, %v6951
    %v7120 = vpop.permute.xlu0 %7119
    %7122 = vset.pattern.permute.xlu0 1
    %7123 = vperm.xlu0 %7122, %v6952
    %v7124 = vpop.permute.xlu0 %7123
    %7126 = vset.pattern.permute.xlu0 1
    %7127 = vperm.xlu0 %7126, %v6953
    %v7128 = vpop.permute.xlu0 %7127
    %v7130 = vadd.f32 %v7090, %v7100
    %v7131 = vadd.f32 %v7091, %v7104
    %v7132 = vadd.f32 %v7092, %v7108
    %v7133 = vadd.f32 %v7093, %v7112
    %v7134 = vadd.f32 %v7094, %v7116
    %v7135 = vadd.f32 %v7095, %v7120
    %v7136 = vadd.f32 %v7096, %v7124
    %v7137 = vadd.f32 %v7097, %v7128
    %v7138 = vmax.f32 %v7130, 0.0
    %v7139 = vmax.f32 %v7131, 0.0
    %v7140 = vmax.f32 %v7132, 0.0
    %v7141 = vmax.f32 %v7133, 0.0
    %v7142 = vmax.f32 %v7134, 0.0
    %v7143 = vmax.f32 %v7135, 0.0
    %v7144 = vmax.f32 %v7136, 0.0
    %v7145 = vmax.f32 %v7137, 0.0
    %7146 = vset.pattern.permute.xlu0 3
    %7147 = vperm.xlu0 %7146, %v1680
    %v7148 = vpop.permute.xlu0 %7147
    %7150 = vset.pattern.permute.xlu0 3
    %7151 = vperm.xlu0 %7150, %v1681
    %v7152 = vpop.permute.xlu0 %7151
    %7154 = vset.pattern.permute.xlu0 3
    %7155 = vperm.xlu0 %7154, %v1682
    %v7156 = vpop.permute.xlu0 %7155
    %7158 = vset.pattern.permute.xlu0 3
    %7159 = vperm.xlu0 %7158, %v1683
    %v7160 = vpop.permute.xlu0 %7159
    %7162 = vset.pattern.permute.xlu0 3
    %7163 = vperm.xlu0 %7162, %v1684
    %v7164 = vpop.permute.xlu0 %7163
    %7166 = vset.pattern.permute.xlu0 3
    %7167 = vperm.xlu0 %7166, %v1685
    %v7168 = vpop.permute.xlu0 %7167
    %7170 = vset.pattern.permute.xlu0 3
    %7171 = vperm.xlu0 %7170, %v1686
    %v7172 = vpop.permute.xlu0 %7171
    %7174 = vset.pattern.permute.xlu0 3
    %7175 = vperm.xlu0 %7174, %v1687
    %v7176 = vpop.permute.xlu0 %7175
    %v7178 = vmul.f32 %v7148, %v7050
    %v7179 = vmul.f32 %v7148, %v7138
    %v7180 = vmul.f32 %v7152, %v7051
    %v7181 = vmul.f32 %v7152, %v7139
    %v7182 = vmul.f32 %v7156, %v7052
    %v7183 = vmul.f32 %v7156, %v7140
    %v7184 = vmul.f32 %v7160, %v7053
    %v7185 = vmul.f32 %v7160, %v7141
    %v7186 = vmul.f32 %v7164, %v7054
    %v7187 = vmul.f32 %v7164, %v7142
    %v7188 = vmul.f32 %v7168, %v7055
    %v7189 = vmul.f32 %v7168, %v7143
    %v7190 = vmul.f32 %v7172, %v7056
    %v7191 = vmul.f32 %v7172, %v7144
    %v7192 = vmul.f32 %v7176, %v7057
    %v7193 = vmul.f32 %v7176, %v7145
    %v7194 = vadd.f32 %v7178, %v7180
    %v7195 = vadd.f32 %v7194, %v7182
    %v7196 = vadd.f32 %v7195, %v7184
    %v7197 = vadd.f32 %v7196, %v7186
    %v7198 = vadd.f32 %v7197, %v7188
    %v7199 = vadd.f32 %v7198, %v7190
    %v7200 = vadd.f32 %v7199, %v7192
    %v7201 = vrot.slane %v7200, 4
    %v7202 = vadd.f32 %v7200, %v7201
    %v7203 = vrot.slane %v7202, 2
    %v7204 = vadd.f32 %v7202, %v7203
    %v7205 = vrot.slane %v7204, 1
    %v7206 = vadd.f32 %v7204, %v7205
    %v7207 = vadd.f32 %v7179, %v7181
    %v7208 = vadd.f32 %v7207, %v7183
    %v7209 = vadd.f32 %v7208, %v7185
    %v7210 = vadd.f32 %v7209, %v7187
    %v7211 = vadd.f32 %v7210, %v7189
    %v7212 = vadd.f32 %v7211, %v7191
    %v7213 = vadd.f32 %v7212, %v7193
    %v7214 = vrot.slane %v7213, 4
    %v7215 = vadd.f32 %v7213, %v7214
    %v7216 = vrot.slane %v7215, 2
    %v7217 = vadd.f32 %v7215, %v7216
    %v7218 = vrot.slane %v7217, 1
    %v7219 = vadd.f32 %v7217, %v7218
    %v7220 = vld [vmem:[%s4] sm:$0x1]
    %7222 = vset.pattern.permute.xlu0 4
    %7223 = vperm.xlu0 %7222, %v7220
    %v7224 = vpop.permute.xlu0 %7223
    %v7226 = vadd.f32 %v7206, %v7224
    %v7227 = vadd.f32 %v7219, %v7224
    %v7230 = vcombine.low %v7226, %v7227
    %v7232 = vunpack.c.l.s4 1966171168
    %v7233 = vunpack.c.0.s8 %v7232
    %v7234 = vlaneseq
    %v7235 = vshrl.u32 %v7234, 7
    %v7236 = vsub.s32 %v7233, %v7235
    %v7237 = vrot.slane %v7230, %v7236
    %v7239 = vunpack.c.l.s4 1966171168
    %v7240 = vunpack.c.0.s8 %v7239
    %v7241 = vlaneseq
    %v7242 = vshrl.u32 %v7241, 7
    %v7243 = vsub.s32 %v7240, %v7242
    %v7244 = vrot.slane %v7237, %v7243
    %v7246 = vlaneseq
    %vm7247 = vcmp.ge.s32.totalorder %v7246, 0
    %vm7248 = vcmp.lt.s32.totalorder %v7246, 256
    %vm7249 = vmand %vm7247, %vm7248
    %7250 = vst.msk [vmem:[#allocation2] sm:$0x3] %vm7249, %v7244
    // Predicated region
    $region22: #{tpu_custom_call.1} parent=1 // pred_check
      _
    $region23: #{tpu_custom_call.1} parent=1 // pred_check_branch
      %7252 = sbr.rel (0) target = $region25
    $region24: #{tpu_custom_call.1} parent=1 // pred_region
      %s7254 = ssub.s32 32, 32
      %7255 = vsyncadd [#allocation3], %s7254
      %s7257 = sshll.u32 [#allocation2], 4
      %s7258 = int_to_ptr.vmem [resolvable:$true] %s7257
      %7260 = dma.vmem_to_hbm [thread:$0]  %s7258, 32, %s5, [#allocation3]
    $region25: #{tpu_custom_call.1} parent=1 // pred_fallthru
      _
    // Predicated region
    $region26: #{tpu_custom_call.1} parent=1 // pred_check
      _
    $region27: #{tpu_custom_call.1} parent=1 // pred_check_branch
      %7262 = sbr.rel (0) target = $region29
    $region28: #{tpu_custom_call.1} parent=1 // pred_region
      %7263 = dma.done [#allocation3], 32
    $region29: #{tpu_custom_call.1} parent=1 // pred_fallthru
      _
    %7264 = vsyncpa [#allocation3], 1

</llo_original>
